<compile_context>
chip_gen: v5e
topology: v5e:2x2
jax: 0.10.0
libtpu: 0.0.40
codegen_flags: <defaults>
</compile_context>

<pallas_src>
import functools
import numpy as np

import jax
import jax.numpy as jnp
from jax.experimental import pallas as pl
from jax.experimental.pallas import tpu as pltpu

# ----------------------------- small config ---------------------------------
IMG = 32
IN_CH = 3
PATCH = 4
EMBED = 32
DEPTHS = (2, 2)
HEADS = (2, 4)
WINDOW = 4
MLP_RATIO = 4
LN_EPS = 1e-5
KPAD = 128                      # padded im2col K (3*4*4 = 48 -> 128), lane aligned
NEG_INF = -1e9                  # cross-window logit (exp underflows to exactly 0)
NBLK = 13                       # number of param refs per Swin block


# ------------------------- in-kernel math helpers ---------------------------
def _erf_approx(x):
    # Abramowitz & Stegun 7.1.26 (|err| < 1.5e-7 in f32); only mul/add/exp/abs/select.
    a1, a2, a3, a4, a5 = 0.254829592, -0.284496736, 1.421413741, -1.453152027, 1.061405429
    p = 0.3275911
    s = jnp.where(x >= 0.0, 1.0, -1.0)
    ax = jnp.abs(x)
    t = 1.0 / (1.0 + p * ax)
    y = 1.0 - (((((a5 * t + a4) * t) + a3) * t + a2) * t + a1) * t * jnp.exp(-ax * ax)
    return s * y


def _gelu(x):
    # matches torch.nn.GELU() (erf-based) to f32 precision
    return 0.5 * x * (1.0 + _erf_approx(x * 0.7071067811865476))


def _layernorm(x, g, b, eps=LN_EPS):
    mu = jnp.mean(x, axis=-1, keepdims=True)
    xc = x - mu
    var = jnp.mean(xc * xc, axis=-1, keepdims=True)
    return xc * jax.lax.rsqrt(var + eps) * g + b


def _mm(a, w_bf16):
    # bf16 MXU feed, f32 accumulate
    return jnp.dot(a.astype(jnp.bfloat16), w_bf16, preferred_element_type=jnp.float32)


# ------------------------- fused Swin block (in-kernel) ----------------------
def _block_fwd(x, refs, nh):
    """x: (T, C) f32 tokens in raster order -> full Swin block (same shape)."""
    (ln1g, ln1b, qkvw, qkvb, bias, projw, projb,
     ln2g, ln2b, w1, b1, w2, b2) = refs
    T, C = x.shape
    dh = C // nh
    scale = float(dh) ** -0.5

    # LN1 + fused QKV projection (one MXU matmul for q,k,v of all heads)
    h = _layernorm(x, ln1g[...], ln1b[...])
    qkv = _mm(h, qkvw[...]) + qkvb[...]                       # (T, 3C) f32

    # Dense masked attention == shifted-window attention (bias encodes windows/shift)
    heads = []
    for hd in range(nh):
        lo = hd * dh
        q = (qkv[:, lo:lo + dh] * scale).astype(jnp.bfloat16)
        k = qkv[:, C + lo:C + lo + dh].astype(jnp.bfloat16)
        v = qkv[:, 2 * C + lo:2 * C + lo + dh].astype(jnp.bfloat16)
        s = jax.lax.dot_general(q, k, (((1,), (1,)), ((), ())),
                                preferred_element_type=jnp.float32)   # (T, T)
        s = s + bias[hd]
        s = s - jnp.max(s, axis=-1, keepdims=True)
        p = jnp.exp(s)
        p = p * pl.reciprocal(jnp.sum(p, axis=-1, keepdims=True), approx=True)
        heads.append(jnp.dot(p.astype(jnp.bfloat16), v,
                             preferred_element_type=jnp.float32))     # (T, dh)
    attn = jnp.concatenate(heads, axis=-1)                    # (T, C)
    y = x + _mm(attn, projw[...]) + projb[...]                # single output-proj matmul

    # LN2 + MLP + residual (hidden activations never leave VMEM)
    h2 = _layernorm(y, ln2g[...], ln2b[...])
    f = _gelu(_mm(h2, w1[...]) + b1[...])
    return y + _mm(f, w2[...]) + b2[...]


# --------------------------- the two fused kernels ---------------------------
def _stage0_kernel(*refs, nh):
    """patch-embed matmul + LN + two Swin blocks, one batch element per program."""
    patches, pew, peb, peg, pebt = refs[:5]
    blk_refs = refs[5:5 + 2 * NBLK]
    o_ref = refs[5 + 2 * NBLK]

    x = _mm(patches[0], pew[...]) + peb[...]                  # (T, C)
    x = _layernorm(x, peg[...], pebt[...])
    x = _block_fwd(x, blk_refs[:NBLK], nh)
    x = _block_fwd(x, blk_refs[NBLK:], nh)
    o_ref[0] = x.astype(o_ref.dtype)


def _stage1_kernel(*refs, nh):
    """patch-merging LN+reduction + two Swin blocks + final LN + global avg pool."""
    xm, mg, mb, mw = refs[:4]
    blk_refs = refs[4:4 + 2 * NBLK]
    fg, fb = refs[4 + 2 * NBLK:6 + 2 * NBLK]
    o_ref = refs[6 + 2 * NBLK]

    h = _layernorm(xm[0], mg[...], mb[...])                   # (T, 4*C0)
    x = _mm(h, mw[...])                                       # (T, C1), bias-free reduction
    x = _block_fwd(x, blk_refs[:NBLK], nh)
    x = _block_fwd(x, blk_refs[NBLK:], nh)
    h = _layernorm(x, fg[...], fb[...])
    o_ref[0] = jnp.mean(h, axis=0, keepdims=True)             # (1, C1)


# ----------------------------- pallas_call wrappers --------------------------
def _rep2(b):
    return (0, 0)


def _rep3(b):
    return (0, 0, 0)


def _blk_specs(C, nh, T):
    hid = C * MLP_RATIO
    return [
        pl.BlockSpec((1, C), _rep2), pl.BlockSpec((1, C), _rep2),         # ln1 g/b
        pl.BlockSpec((C, 3 * C), _rep2), pl.BlockSpec((1, 3 * C), _rep2), # qkv w/b
        pl.BlockSpec((nh, T, T), _rep3),                                  # dense bias+mask
        pl.BlockSpec((C, C), _rep2), pl.BlockSpec((1, C), _rep2),         # proj w/b
        pl.BlockSpec((1, C), _rep2), pl.BlockSpec((1, C), _rep2),         # ln2 g/b
        pl.BlockSpec((C, hid), _rep2), pl.BlockSpec((1, hid), _rep2),     # fc1 w/b
        pl.BlockSpec((hid, C), _rep2), pl.BlockSpec((1, C), _rep2),       # fc2 w/b
    ]


def _blk_args(blk):
    return [blk["ln1_g"], blk["ln1_b"], blk["qkv_w"], blk["qkv_b"], blk["attn_bias"],
            blk["proj_w"], blk["proj_b"], blk["ln2_g"], blk["ln2_b"],
            blk["fc1_w"], blk["fc1_b"], blk["fc2_w"], blk["fc2_b"]]


_CPARAMS = pltpu.CompilerParams(dimension_semantics=("parallel",),
                                vmem_limit_bytes=32 * 1024 * 1024)


def stage0_forward(patches, params):
    B, T, K = patches.shape
    C, nh = EMBED, HEADS[0]
    blocks = params["stages"][0]["blocks"]
    in_specs = [pl.BlockSpec((1, T, K), lambda b: (b, 0, 0)),
                pl.BlockSpec((K, C), _rep2),
                pl.BlockSpec((1, C), _rep2),
                pl.BlockSpec((1, C), _rep2),
                pl.BlockSpec((1, C), _rep2)]
    args = [patches, params["patch_w"], params["patch_b"],
            params["patch_ln_g"], params["patch_ln_b"]]
    for blk in blocks:
        in_specs += _blk_specs(C, nh, T)
        args += _blk_args(blk)
    return pl.pallas_call(
        functools.partial(_stage0_kernel, nh=nh),
        out_shape=jax.ShapeDtypeStruct((B, T, C), jnp.float32),
        grid=(B,),
        in_specs=in_specs,
        out_specs=pl.BlockSpec((1, T, C), lambda b: (b, 0, 0)),
        compiler_params=_CPARAMS,
    )(*args)


def stage1_forward(xm, params):
    B, T, K = xm.shape
    C, nh = 2 * EMBED, HEADS[1]
    st0 = params["stages"][0]
    blocks = params["stages"][1]["blocks"]
    in_specs = [pl.BlockSpec((1, T, K), lambda b: (b, 0, 0)),
                pl.BlockSpec((1, K), _rep2),
                pl.BlockSpec((1, K), _rep2),
                pl.BlockSpec((K, C), _rep2)]
    args = [xm, st0["merge_ln_g"], st0["merge_ln_b"], st0["merge_w"]]
    for blk in blocks:
        in_specs += _blk_specs(C, nh, T)
        args += _blk_args(blk)
    in_specs += [pl.BlockSpec((1, C), _rep2), pl.BlockSpec((1, C), _rep2)]
    args += [params["final_ln_g"], params["final_ln_b"]]
    return pl.pallas_call(
        functools.partial(_stage1_kernel, nh=nh),
        out_shape=jax.ShapeDtypeStruct((B, 1, C), jnp.float32),
        grid=(B,),
        in_specs=in_specs,
        out_specs=pl.BlockSpec((1, 1, C), lambda b: (b, 0, 0)),
        compiler_params=_CPARAMS,
    )(*args)


# ----------------------------- full forward ---------------------------------
def swin_t_f_forward(params, x_nchw):
    B, Cin, H, W = x_nchw.shape
    Hp, Wp = H // PATCH, W // PATCH

    # im2col for the stride-4 / kernel-4 patch conv; pad K 48 -> 128 (lane aligned)
    x = x_nchw.reshape(B, Cin, Hp, PATCH, Wp, PATCH)
    x = x.transpose(0, 2, 4, 1, 3, 5).reshape(B, Hp * Wp, Cin * PATCH * PATCH)
    x = jnp.pad(x, ((0, 0), (0, 0), (0, KPAD - Cin * PATCH * PATCH)))

    # kernel A: patch embed + LN + stage-0 blocks
    x = stage0_forward(x, params)                             # (B, Hp*Wp, EMBED)

    # patch-merging 2x2 regroup (pure layout glue between the two fused kernels)
    C0 = EMBED
    x = x.reshape(B, Hp, Wp, C0)
    x0 = x[:, 0::2, 0::2, :]
    x1 = x[:, 1::2, 0::2, :]
    x2 = x[:, 0::2, 1::2, :]
    x3 = x[:, 1::2, 1::2, :]
    xm = jnp.concatenate([x0, x1, x2, x3], axis=-1)
    xm = xm.reshape(B, (Hp // 2) * (Wp // 2), 4 * C0)         # (B, 16, 128)

    # kernel B: merge LN+reduction + stage-1 blocks + final LN + global avg pool
    pooled = stage1_forward(xm, params)                       # (B, 1, 2*EMBED)

    # head = Identity; SwinT_f returns y[:, :, None, None]
    return pooled.reshape(B, -1)[:, :, None, None]


# ----------------------------- constants / params ---------------------------
def get_relative_position_index(ws):
    coords = np.stack(np.meshgrid(np.arange(ws), np.arange(ws), indexing="ij"))
    cf = coords.reshape(2, -1)
    rel = cf[:, :, None] - cf[:, None, :]
    rel = rel.transpose(1, 2, 0).astype(np.int64)
    rel[:, :, 0] += ws - 1
    rel[:, :, 1] += ws - 1
    rel[:, :, 0] *= 2 * ws - 1
    return rel.sum(-1)  # (N, N)


def build_dense_attn_bias(H, W, ws, shift, relpos_table_np, nh):
    """Additive bias (nh, H*W, H*W) over tokens in raster order encoding the windowed
    (optionally cyclically shifted) attention pattern + rel-pos bias + torchvision's
    -100 shift mask.  Cross-window pairs get -1e9 (exp underflows to exactly 0)."""
    N = ws * ws
    rel_idx = get_relative_position_index(ws).reshape(-1)
    relpos = relpos_table_np[rel_idx].reshape(N, N, nh).transpose(2, 0, 1)  # (nh, N, N)

    ii, jj = np.meshgrid(np.arange(H), np.arange(W), indexing="ij")
    si = (ii - shift) % H                      # position in the rolled frame
    sj = (jj - shift) % W
    win = ((si // ws) * (W // ws) + (sj // ws)).reshape(-1)
    pos = ((si % ws) * ws + (sj % ws)).reshape(-1)

    same = win[:, None] == win[None, :]                                    # (T, T)
    add = np.where(same, 0.0, NEG_INF).astype(np.float32)
    if shift > 0:
        # exact replica of torchvision's region labelling for the shift mask
        img = np.zeros((H, W), np.float32)
        cnt = 0
        for h0, h1 in ((0, H - ws), (H - ws, H - shift), (H - shift, H)):
            for w0, w1 in ((0, W - ws), (W - ws, W - shift), (W - shift, W)):
                img[h0:h1, w0:w1] = cnt
                cnt += 1
        lab = img[si, sj].reshape(-1)
        add = add + np.where(same & (lab[:, None] != lab[None, :]),
                             -100.0, 0.0).astype(np.float32)

    bias = relpos[:, pos[:, None], pos[None, :]] + add[None]               # (nh, T, T)
    return jnp.asarray(bias, dtype=jnp.float32)


def init_params(key):
    kit = iter(jax.random.split(key, 64))

    def nrm(shape, std=0.02, dtype=jnp.float32):
        return (std * jax.random.normal(next(kit), shape)).astype(dtype)

    k_raw = IN_CH * PATCH * PATCH
    patch_w = nrm((EMBED, IN_CH, PATCH, PATCH)).reshape(EMBED, k_raw).T    # (48, EMBED)
    patch_w = jnp.pad(patch_w, ((0, KPAD - k_raw), (0, 0))).astype(jnp.bfloat16)

    params = {
        "patch_w": patch_w,
        "patch_b": jnp.zeros((1, EMBED), jnp.float32),
        "patch_ln_g": jnp.ones((1, EMBED), jnp.float32),
        "patch_ln_b": jnp.zeros((1, EMBED), jnp.float32),
        "stages": [],
    }
    dim = EMBED
    res = IMG // PATCH
    for s, depth in enumerate(DEPTHS):
        nh = HEADS[s]
        hid = dim * MLP_RATIO
        blocks = []
        for bi in range(depth):
            shift = 0 if (bi % 2 == 0 or WINDOW >= res) else WINDOW // 2
            table = np.asarray(nrm(((2 * WINDOW - 1) ** 2, nh)))
            blocks.append({
                "ln1_g": jnp.ones((1, dim), jnp.float32),
                "ln1_b": jnp.zeros((1, dim), jnp.float32),
                "qkv_w": nrm((dim, 3 * dim), dtype=jnp.bfloat16),
                "qkv_b": jnp.zeros((1, 3 * dim), jnp.float32),
                "attn_bias": build_dense_attn_bias(res, res, WINDOW, shift, table, nh),
                "proj_w": nrm((dim, dim), dtype=jnp.bfloat16),
                "proj_b": jnp.zeros((1, dim), jnp.float32),
                "ln2_g": jnp.ones((1, dim), jnp.float32),
                "ln2_b": jnp.zeros((1, dim), jnp.float32),
                "fc1_w": nrm((dim, hid), dtype=jnp.bfloat16),
                "fc1_b": jnp.zeros((1, hid), jnp.float32),
                "fc2_w": nrm((hid, dim), dtype=jnp.bfloat16),
                "fc2_b": jnp.zeros((1, dim), jnp.float32),
            })
        stage = {"blocks": blocks}
        if s < len(DEPTHS) - 1:
            stage["merge_ln_g"] = jnp.ones((1, 4 * dim), jnp.float32)
            stage["merge_ln_b"] = jnp.zeros((1, 4 * dim), jnp.float32)
            stage["merge_w"] = nrm((4 * dim, 2 * dim), dtype=jnp.bfloat16)
            dim *= 2
            res //= 2
        params["stages"].append(stage)
    params["final_ln_g"] = jnp.ones((1, dim), jnp.float32)
    params["final_ln_b"] = jnp.zeros((1, dim), jnp.float32)
    return params


# --------------------------------- main --------------------------------------
if __name__ == "__main__":
    key = jax.random.PRNGKey(0)
    pkey, xkey = jax.random.split(key)
    params = init_params(pkey)
    x = jax.random.normal(xkey, (2, IN_CH, IMG, IMG), jnp.float32)   # NCHW, like PyTorch

    fwd = jax.jit(swin_t_f_forward)
    y = jax.block_until_ready(fwd(params, x))

    final_dim = EMBED * (2 ** (len(DEPTHS) - 1))
    assert y.shape == (2, final_dim, 1, 1), y.shape
    assert y.dtype == jnp.float32
    assert bool(jnp.all(jnp.isfinite(y)))
    print("KERNEL_OK")
</pallas_src>

<mosaic_0001>
module attributes {stable_mosaic.version = 11 : i64} {
  func.func @_stage0_kernel(%arg0: i32, %arg1: memref<1x64x128xf32, #tpu.memory_space<vmem>>, %arg2: memref<128x32xbf16, #tpu.memory_space<vmem>>, %arg3: memref<1x32xf32, #tpu.memory_space<vmem>>, %arg4: memref<1x32xf32, #tpu.memory_space<vmem>>, %arg5: memref<1x32xf32, #tpu.memory_space<vmem>>, %arg6: memref<1x32xf32, #tpu.memory_space<vmem>>, %arg7: memref<1x32xf32, #tpu.memory_space<vmem>>, %arg8: memref<32x96xbf16, #tpu.memory_space<vmem>>, %arg9: memref<1x96xf32, #tpu.memory_space<vmem>>, %arg10: memref<2x64x64xf32, #tpu.memory_space<vmem>>, %arg11: memref<32x32xbf16, #tpu.memory_space<vmem>>, %arg12: memref<1x32xf32, #tpu.memory_space<vmem>>, %arg13: memref<1x32xf32, #tpu.memory_space<vmem>>, %arg14: memref<1x32xf32, #tpu.memory_space<vmem>>, %arg15: memref<32x128xbf16, #tpu.memory_space<vmem>>, %arg16: memref<1x128xf32, #tpu.memory_space<vmem>>, %arg17: memref<128x32xbf16, #tpu.memory_space<vmem>>, %arg18: memref<1x32xf32, #tpu.memory_space<vmem>>, %arg19: memref<1x32xf32, #tpu.memory_space<vmem>>, %arg20: memref<1x32xf32, #tpu.memory_space<vmem>>, %arg21: memref<32x96xbf16, #tpu.memory_space<vmem>>, %arg22: memref<1x96xf32, #tpu.memory_space<vmem>>, %arg23: memref<2x64x64xf32, #tpu.memory_space<vmem>>, %arg24: memref<32x32xbf16, #tpu.memory_space<vmem>>, %arg25: memref<1x32xf32, #tpu.memory_space<vmem>>, %arg26: memref<1x32xf32, #tpu.memory_space<vmem>>, %arg27: memref<1x32xf32, #tpu.memory_space<vmem>>, %arg28: memref<32x128xbf16, #tpu.memory_space<vmem>>, %arg29: memref<1x128xf32, #tpu.memory_space<vmem>>, %arg30: memref<128x32xbf16, #tpu.memory_space<vmem>>, %arg31: memref<1x32xf32, #tpu.memory_space<vmem>>, %arg32: memref<1x64x32xf32, #tpu.memory_space<vmem>>) attributes {dimension_semantics = [#tpu.dimension_semantics<parallel>], iteration_bounds = array<i64: 2>, scalar_prefetch = 0 : i64, scratch_operands = 0 : i64, tpu.core_type = #tpu.core_type<tc>, window_params = [{transform_indices = @transform_0, window_bounds = array<i64: 1, 64, 128>}, {pipeline_mode = #tpu.pipeline_mode<synchronous>, transform_indices = @transform_1, window_bounds = array<i64: 128, 32>}, {pipeline_mode = #tpu.pipeline_mode<synchronous>, transform_indices = @transform_2, window_bounds = array<i64: 1, 32>}, {pipeline_mode = #tpu.pipeline_mode<synchronous>, transform_indices = @transform_3, window_bounds = array<i64: 1, 32>}, {pipeline_mode = #tpu.pipeline_mode<synchronous>, transform_indices = @transform_4, window_bounds = array<i64: 1, 32>}, {pipeline_mode = #tpu.pipeline_mode<synchronous>, transform_indices = @transform_5, window_bounds = array<i64: 1, 32>}, {pipeline_mode = #tpu.pipeline_mode<synchronous>, transform_indices = @transform_6, window_bounds = array<i64: 1, 32>}, {pipeline_mode = #tpu.pipeline_mode<synchronous>, transform_indices = @transform_7, window_bounds = array<i64: 32, 96>}, {pipeline_mode = #tpu.pipeline_mode<synchronous>, transform_indices = @transform_8, window_bounds = array<i64: 1, 96>}, {pipeline_mode = #tpu.pipeline_mode<synchronous>, transform_indices = @transform_9, window_bounds = array<i64: 2, 64, 64>}, {pipeline_mode = #tpu.pipeline_mode<synchronous>, transform_indices = @transform_10, window_bounds = array<i64: 32, 32>}, {pipeline_mode = #tpu.pipeline_mode<synchronous>, transform_indices = @transform_11, window_bounds = array<i64: 1, 32>}, {pipeline_mode = #tpu.pipeline_mode<synchronous>, transform_indices = @transform_12, window_bounds = array<i64: 1, 32>}, {pipeline_mode = #tpu.pipeline_mode<synchronous>, transform_indices = @transform_13, window_bounds = array<i64: 1, 32>}, {pipeline_mode = #tpu.pipeline_mode<synchronous>, transform_indices = @transform_14, window_bounds = array<i64: 32, 128>}, {pipeline_mode = #tpu.pipeline_mode<synchronous>, transform_indices = @transform_15, window_bounds = array<i64: 1, 128>}, {pipeline_mode = #tpu.pipeline_mode<synchronous>, transform_indices = @transform_16, window_bounds = array<i64: 128, 32>}, {pipeline_mode = #tpu.pipeline_mode<synchronous>, transform_indices = @transform_17, window_bounds = array<i64: 1, 32>}, {pipeline_mode = #tpu.pipeline_mode<synchronous>, transform_indices = @transform_18, window_bounds = array<i64: 1, 32>}, {pipeline_mode = #tpu.pipeline_mode<synchronous>, transform_indices = @transform_19, window_bounds = array<i64: 1, 32>}, {pipeline_mode = #tpu.pipeline_mode<synchronous>, transform_indices = @transform_20, window_bounds = array<i64: 32, 96>}, {pipeline_mode = #tpu.pipeline_mode<synchronous>, transform_indices = @transform_21, window_bounds = array<i64: 1, 96>}, {pipeline_mode = #tpu.pipeline_mode<synchronous>, transform_indices = @transform_22, window_bounds = array<i64: 2, 64, 64>}, {pipeline_mode = #tpu.pipeline_mode<synchronous>, transform_indices = @transform_23, window_bounds = array<i64: 32, 32>}, {pipeline_mode = #tpu.pipeline_mode<synchronous>, transform_indices = @transform_24, window_bounds = array<i64: 1, 32>}, {pipeline_mode = #tpu.pipeline_mode<synchronous>, transform_indices = @transform_25, window_bounds = array<i64: 1, 32>}, {pipeline_mode = #tpu.pipeline_mode<synchronous>, transform_indices = @transform_26, window_bounds = array<i64: 1, 32>}, {pipeline_mode = #tpu.pipeline_mode<synchronous>, transform_indices = @transform_27, window_bounds = array<i64: 32, 128>}, {pipeline_mode = #tpu.pipeline_mode<synchronous>, transform_indices = @transform_28, window_bounds = array<i64: 1, 128>}, {pipeline_mode = #tpu.pipeline_mode<synchronous>, transform_indices = @transform_29, window_bounds = array<i64: 128, 32>}, {pipeline_mode = #tpu.pipeline_mode<synchronous>, transform_indices = @transform_30, window_bounds = array<i64: 1, 32>}, {transform_indices = @transform_31, window_bounds = array<i64: 1, 64, 32>}]} {
    %c0 = arith.constant 0 : index
    %c0_0 = arith.constant 0 : index
    %c0_1 = arith.constant 0 : index
    %0 = vector.load %arg1[%c0, %c0_0, %c0_1] : memref<1x64x128xf32, #tpu.memory_space<vmem>>, vector<1x64x128xf32>
    %1 = vector.shape_cast %0 : vector<1x64x128xf32> to vector<64x128xf32>
    %c0_2 = arith.constant 0 : index
    %c0_3 = arith.constant 0 : index
    %2 = vector.load %arg2[%c0_2, %c0_3] : memref<128x32xbf16, #tpu.memory_space<vmem>>, vector<128x32xbf16>
    %3 = arith.truncf %1 : vector<64x128xf32> to vector<64x128xbf16>
    %cst = arith.constant dense<0.000000e+00> : vector<64x32xf32>
    %4 = tpu.matmul %3, %2, %cst {dimension_numbers = #tpu.dot_dimension_numbers<[1], [0], [0], [1], [0, 0, 1, 1], [], []>} : vector<64x128xbf16>, vector<128x32xbf16>, vector<64x32xf32> -> vector<64x32xf32>
    %c0_4 = arith.constant 0 : index
    %c0_5 = arith.constant 0 : index
    %5 = vector.load %arg3[%c0_4, %c0_5] : memref<1x32xf32, #tpu.memory_space<vmem>>, vector<1x32xf32>
    %6 = vector.broadcast %5 : vector<1x32xf32> to vector<64x32xf32>
    %7 = arith.addf %4, %6 : vector<64x32xf32>
    %c0_6 = arith.constant 0 : index
    %c0_7 = arith.constant 0 : index
    %8 = vector.load %arg4[%c0_6, %c0_7] : memref<1x32xf32, #tpu.memory_space<vmem>>, vector<1x32xf32>
    %c0_8 = arith.constant 0 : index
    %c0_9 = arith.constant 0 : index
    %9 = vector.load %arg5[%c0_8, %c0_9] : memref<1x32xf32, #tpu.memory_space<vmem>>, vector<1x32xf32>
    %cst_10 = arith.constant dense<0.000000e+00> : vector<64xf32>
    %10 = vector.multi_reduction <add>, %7, %cst_10 [1] : vector<64x32xf32> to vector<64xf32>
    %11 = vector.shape_cast %10 : vector<64xf32> to vector<64x1xf32>
    %cst_11 = arith.constant 3.200000e+01 : f32
    %12 = vector.broadcast %cst_11 : f32 to vector<64x1xf32>
    %13 = arith.divf %11, %12 : vector<64x1xf32>
    %14 = vector.broadcast %13 : vector<64x1xf32> to vector<64x32xf32>
    %15 = arith.subf %7, %14 : vector<64x32xf32>
    %16 = arith.mulf %15, %15 : vector<64x32xf32>
    %cst_12 = arith.constant dense<0.000000e+00> : vector<64xf32>
    %17 = vector.multi_reduction <add>, %16, %cst_12 [1] : vector<64x32xf32> to vector<64xf32>
    %18 = vector.shape_cast %17 : vector<64xf32> to vector<64x1xf32>
    %cst_13 = arith.constant 3.200000e+01 : f32
    %19 = vector.broadcast %cst_13 : f32 to vector<64x1xf32>
    %20 = arith.divf %18, %19 : vector<64x1xf32>
    %cst_14 = arith.constant 9.99999974E-6 : f32
    %21 = vector.broadcast %cst_14 : f32 to vector<64x1xf32>
    %22 = arith.addf %20, %21 : vector<64x1xf32>
    %23 = math.rsqrt %22 : vector<64x1xf32>
    %24 = vector.broadcast %23 : vector<64x1xf32> to vector<64x32xf32>
    %25 = arith.mulf %15, %24 : vector<64x32xf32>
    %26 = vector.broadcast %8 : vector<1x32xf32> to vector<64x32xf32>
    %27 = arith.mulf %25, %26 : vector<64x32xf32>
    %28 = vector.broadcast %9 : vector<1x32xf32> to vector<64x32xf32>
    %29 = arith.addf %27, %28 : vector<64x32xf32>
    %c0_15 = arith.constant 0 : index
    %c0_16 = arith.constant 0 : index
    %30 = vector.load %arg6[%c0_15, %c0_16] : memref<1x32xf32, #tpu.memory_space<vmem>>, vector<1x32xf32>
    %c0_17 = arith.constant 0 : index
    %c0_18 = arith.constant 0 : index
    %31 = vector.load %arg7[%c0_17, %c0_18] : memref<1x32xf32, #tpu.memory_space<vmem>>, vector<1x32xf32>
    %cst_19 = arith.constant dense<0.000000e+00> : vector<64xf32>
    %32 = vector.multi_reduction <add>, %29, %cst_19 [1] : vector<64x32xf32> to vector<64xf32>
    %33 = vector.shape_cast %32 : vector<64xf32> to vector<64x1xf32>
    %cst_20 = arith.constant 3.200000e+01 : f32
    %34 = vector.broadcast %cst_20 : f32 to vector<64x1xf32>
    %35 = arith.divf %33, %34 : vector<64x1xf32>
    %36 = vector.broadcast %35 : vector<64x1xf32> to vector<64x32xf32>
    %37 = arith.subf %29, %36 : vector<64x32xf32>
    %38 = arith.mulf %37, %37 : vector<64x32xf32>
    %cst_21 = arith.constant dense<0.000000e+00> : vector<64xf32>
    %39 = vector.multi_reduction <add>, %38, %cst_21 [1] : vector<64x32xf32> to vector<64xf32>
    %40 = vector.shape_cast %39 : vector<64xf32> to vector<64x1xf32>
    %cst_22 = arith.constant 3.200000e+01 : f32
    %41 = vector.broadcast %cst_22 : f32 to vector<64x1xf32>
    %42 = arith.divf %40, %41 : vector<64x1xf32>
    %cst_23 = arith.constant 9.99999974E-6 : f32
    %43 = vector.broadcast %cst_23 : f32 to vector<64x1xf32>
    %44 = arith.addf %42, %43 : vector<64x1xf32>
    %45 = math.rsqrt %44 : vector<64x1xf32>
    %46 = vector.broadcast %45 : vector<64x1xf32> to vector<64x32xf32>
    %47 = arith.mulf %37, %46 : vector<64x32xf32>
    %48 = vector.broadcast %30 : vector<1x32xf32> to vector<64x32xf32>
    %49 = arith.mulf %47, %48 : vector<64x32xf32>
    %50 = vector.broadcast %31 : vector<1x32xf32> to vector<64x32xf32>
    %51 = arith.addf %49, %50 : vector<64x32xf32>
    %c0_24 = arith.constant 0 : index
    %c0_25 = arith.constant 0 : index
    %52 = vector.load %arg8[%c0_24, %c0_25] : memref<32x96xbf16, #tpu.memory_space<vmem>>, vector<32x96xbf16>
    %53 = arith.truncf %51 : vector<64x32xf32> to vector<64x32xbf16>
    %cst_26 = arith.constant dense<0.000000e+00> : vector<64x96xf32>
    %54 = tpu.matmul %53, %52, %cst_26 {dimension_numbers = #tpu.dot_dimension_numbers<[1], [0], [0], [1], [0, 0, 1, 1], [], []>} : vector<64x32xbf16>, vector<32x96xbf16>, vector<64x96xf32> -> vector<64x96xf32>
    %c0_27 = arith.constant 0 : index
    %c0_28 = arith.constant 0 : index
    %55 = vector.load %arg9[%c0_27, %c0_28] : memref<1x96xf32, #tpu.memory_space<vmem>>, vector<1x96xf32>
    %56 = vector.broadcast %55 : vector<1x96xf32> to vector<64x96xf32>
    %57 = arith.addf %54, %56 : vector<64x96xf32>
    %58 = vector.extract_strided_slice %57 {offsets = [0, 0], sizes = [64, 16], strides = [1, 1]} : vector<64x96xf32> to vector<64x16xf32>
    %cst_29 = arith.constant 2.500000e-01 : f32
    %59 = vector.broadcast %cst_29 : f32 to vector<64x16xf32>
    %60 = arith.mulf %58, %59 : vector<64x16xf32>
    %61 = arith.truncf %60 : vector<64x16xf32> to vector<64x16xbf16>
    %62 = vector.extract_strided_slice %57 {offsets = [0, 32], sizes = [64, 16], strides = [1, 1]} : vector<64x96xf32> to vector<64x16xf32>
    %63 = arith.truncf %62 : vector<64x16xf32> to vector<64x16xbf16>
    %64 = vector.extract_strided_slice %57 {offsets = [0, 64], sizes = [64, 16], strides = [1, 1]} : vector<64x96xf32> to vector<64x16xf32>
    %65 = arith.truncf %64 : vector<64x16xf32> to vector<64x16xbf16>
    %cst_30 = arith.constant dense<0.000000e+00> : vector<64x64xf32>
    %66 = tpu.matmul %61, %63, %cst_30 {dimension_numbers = #tpu.dot_dimension_numbers<[1], [1], [0], [0], [0, 0, 1, 0], [], []>} : vector<64x16xbf16>, vector<64x16xbf16>, vector<64x64xf32> -> vector<64x64xf32>
    %c0_31 = arith.constant 0 : index
    %c0_32 = arith.constant 0 : index
    %c0_33 = arith.constant 0 : index
    %67 = vector.load %arg10[%c0_31, %c0_32, %c0_33] : memref<2x64x64xf32, #tpu.memory_space<vmem>>, vector<1x64x64xf32>
    %68 = vector.shape_cast %67 : vector<1x64x64xf32> to vector<64x64xf32>
    %69 = arith.addf %66, %68 : vector<64x64xf32>
    %cst_34 = arith.constant dense<0xFF800000> : vector<64xf32>
    %70 = vector.multi_reduction <maximumf>, %69, %cst_34 [1] : vector<64x64xf32> to vector<64xf32>
    %71 = vector.shape_cast %70 : vector<64xf32> to vector<64x1xf32>
    %72 = vector.broadcast %71 : vector<64x1xf32> to vector<64x64xf32>
    %73 = arith.subf %69, %72 : vector<64x64xf32>
    %74 = math.exp %73 : vector<64x64xf32>
    %cst_35 = arith.constant dense<0.000000e+00> : vector<64xf32>
    %75 = vector.multi_reduction <add>, %74, %cst_35 [1] : vector<64x64xf32> to vector<64xf32>
    %76 = vector.shape_cast %75 : vector<64xf32> to vector<64x1xf32>
    %77 = tpu.reciprocal %76 {approx = true} : vector<64x1xf32> -> vector<64x1xf32>
    %78 = vector.broadcast %77 : vector<64x1xf32> to vector<64x64xf32>
    %79 = arith.mulf %74, %78 : vector<64x64xf32>
    %80 = arith.truncf %79 : vector<64x64xf32> to vector<64x64xbf16>
    %cst_36 = arith.constant dense<0.000000e+00> : vector<64x16xf32>
    %81 = tpu.matmul %80, %65, %cst_36 {dimension_numbers = #tpu.dot_dimension_numbers<[1], [0], [0], [1], [0, 0, 1, 1], [], []>} : vector<64x64xbf16>, vector<64x16xbf16>, vector<64x16xf32> -> vector<64x16xf32>
    %82 = vector.extract_strided_slice %57 {offsets = [0, 16], sizes = [64, 16], strides = [1, 1]} : vector<64x96xf32> to vector<64x16xf32>
    %cst_37 = arith.constant 2.500000e-01 : f32
    %83 = vector.broadcast %cst_37 : f32 to vector<64x16xf32>
    %84 = arith.mulf %82, %83 : vector<64x16xf32>
    %85 = arith.truncf %84 : vector<64x16xf32> to vector<64x16xbf16>
    %86 = vector.extract_strided_slice %57 {offsets = [0, 48], sizes = [64, 16], strides = [1, 1]} : vector<64x96xf32> to vector<64x16xf32>
    %87 = arith.truncf %86 : vector<64x16xf32> to vector<64x16xbf16>
    %88 = vector.extract_strided_slice %57 {offsets = [0, 80], sizes = [64, 16], strides = [1, 1]} : vector<64x96xf32> to vector<64x16xf32>
    %89 = arith.truncf %88 : vector<64x16xf32> to vector<64x16xbf16>
    %cst_38 = arith.constant dense<0.000000e+00> : vector<64x64xf32>
    %90 = tpu.matmul %85, %87, %cst_38 {dimension_numbers = #tpu.dot_dimension_numbers<[1], [1], [0], [0], [0, 0, 1, 0], [], []>} : vector<64x16xbf16>, vector<64x16xbf16>, vector<64x64xf32> -> vector<64x64xf32>
    %c1 = arith.constant 1 : index
    %c0_39 = arith.constant 0 : index
    %c0_40 = arith.constant 0 : index
    %91 = vector.load %arg10[%c1, %c0_39, %c0_40] : memref<2x64x64xf32, #tpu.memory_space<vmem>>, vector<1x64x64xf32>
    %92 = vector.shape_cast %91 : vector<1x64x64xf32> to vector<64x64xf32>
    %93 = arith.addf %90, %92 : vector<64x64xf32>
    %cst_41 = arith.constant dense<0xFF800000> : vector<64xf32>
    %94 = vector.multi_reduction <maximumf>, %93, %cst_41 [1] : vector<64x64xf32> to vector<64xf32>
    %95 = vector.shape_cast %94 : vector<64xf32> to vector<64x1xf32>
    %96 = vector.broadcast %95 : vector<64x1xf32> to vector<64x64xf32>
    %97 = arith.subf %93, %96 : vector<64x64xf32>
    %98 = math.exp %97 : vector<64x64xf32>
    %cst_42 = arith.constant dense<0.000000e+00> : vector<64xf32>
    %99 = vector.multi_reduction <add>, %98, %cst_42 [1] : vector<64x64xf32> to vector<64xf32>
    %100 = vector.shape_cast %99 : vector<64xf32> to vector<64x1xf32>
    %101 = tpu.reciprocal %100 {approx = true} : vector<64x1xf32> -> vector<64x1xf32>
    %102 = vector.broadcast %101 : vector<64x1xf32> to vector<64x64xf32>
    %103 = arith.mulf %98, %102 : vector<64x64xf32>
    %104 = arith.truncf %103 : vector<64x64xf32> to vector<64x64xbf16>
    %cst_43 = arith.constant dense<0.000000e+00> : vector<64x16xf32>
    %105 = tpu.matmul %104, %89, %cst_43 {dimension_numbers = #tpu.dot_dimension_numbers<[1], [0], [0], [1], [0, 0, 1, 1], [], []>} : vector<64x64xbf16>, vector<64x16xbf16>, vector<64x16xf32> -> vector<64x16xf32>
    %106 = tpu.concatenate %81, %105 in 1 : vector<64x16xf32>, vector<64x16xf32> -> vector<64x32xf32>
    %c0_44 = arith.constant 0 : index
    %c0_45 = arith.constant 0 : index
    %107 = vector.load %arg11[%c0_44, %c0_45] : memref<32x32xbf16, #tpu.memory_space<vmem>>, vector<32x32xbf16>
    %108 = arith.truncf %106 : vector<64x32xf32> to vector<64x32xbf16>
    %cst_46 = arith.constant dense<0.000000e+00> : vector<64x32xf32>
    %109 = tpu.matmul %108, %107, %cst_46 {dimension_numbers = #tpu.dot_dimension_numbers<[1], [0], [0], [1], [0, 0, 1, 1], [], []>} : vector<64x32xbf16>, vector<32x32xbf16>, vector<64x32xf32> -> vector<64x32xf32>
    %110 = arith.addf %29, %109 : vector<64x32xf32>
    %c0_47 = arith.constant 0 : index
    %c0_48 = arith.constant 0 : index
    %111 = vector.load %arg12[%c0_47, %c0_48] : memref<1x32xf32, #tpu.memory_space<vmem>>, vector<1x32xf32>
    %112 = vector.broadcast %111 : vector<1x32xf32> to vector<64x32xf32>
    %113 = arith.addf %110, %112 : vector<64x32xf32>
    %c0_49 = arith.constant 0 : index
    %c0_50 = arith.constant 0 : index
    %114 = vector.load %arg13[%c0_49, %c0_50] : memref<1x32xf32, #tpu.memory_space<vmem>>, vector<1x32xf32>
    %c0_51 = arith.constant 0 : index
    %c0_52 = arith.constant 0 : index
    %115 = vector.load %arg14[%c0_51, %c0_52] : memref<1x32xf32, #tpu.memory_space<vmem>>, vector<1x32xf32>
    %cst_53 = arith.constant dense<0.000000e+00> : vector<64xf32>
    %116 = vector.multi_reduction <add>, %113, %cst_53 [1] : vector<64x32xf32> to vector<64xf32>
    %117 = vector.shape_cast %116 : vector<64xf32> to vector<64x1xf32>
    %cst_54 = arith.constant 3.200000e+01 : f32
    %118 = vector.broadcast %cst_54 : f32 to vector<64x1xf32>
    %119 = arith.divf %117, %118 : vector<64x1xf32>
    %120 = vector.broadcast %119 : vector<64x1xf32> to vector<64x32xf32>
    %121 = arith.subf %113, %120 : vector<64x32xf32>
    %122 = arith.mulf %121, %121 : vector<64x32xf32>
    %cst_55 = arith.constant dense<0.000000e+00> : vector<64xf32>
    %123 = vector.multi_reduction <add>, %122, %cst_55 [1] : vector<64x32xf32> to vector<64xf32>
    %124 = vector.shape_cast %123 : vector<64xf32> to vector<64x1xf32>
    %cst_56 = arith.constant 3.200000e+01 : f32
    %125 = vector.broadcast %cst_56 : f32 to vector<64x1xf32>
    %126 = arith.divf %124, %125 : vector<64x1xf32>
    %cst_57 = arith.constant 9.99999974E-6 : f32
    %127 = vector.broadcast %cst_57 : f32 to vector<64x1xf32>
    %128 = arith.addf %126, %127 : vector<64x1xf32>
    %129 = math.rsqrt %128 : vector<64x1xf32>
    %130 = vector.broadcast %129 : vector<64x1xf32> to vector<64x32xf32>
    %131 = arith.mulf %121, %130 : vector<64x32xf32>
    %132 = vector.broadcast %114 : vector<1x32xf32> to vector<64x32xf32>
    %133 = arith.mulf %131, %132 : vector<64x32xf32>
    %134 = vector.broadcast %115 : vector<1x32xf32> to vector<64x32xf32>
    %135 = arith.addf %133, %134 : vector<64x32xf32>
    %c0_58 = arith.constant 0 : index
    %c0_59 = arith.constant 0 : index
    %136 = vector.load %arg15[%c0_58, %c0_59] : memref<32x128xbf16, #tpu.memory_space<vmem>>, vector<32x128xbf16>
    %137 = arith.truncf %135 : vector<64x32xf32> to vector<64x32xbf16>
    %cst_60 = arith.constant dense<0.000000e+00> : vector<64x128xf32>
    %138 = tpu.matmul %137, %136, %cst_60 {dimension_numbers = #tpu.dot_dimension_numbers<[1], [0], [0], [1], [0, 0, 1, 1], [], []>} : vector<64x32xbf16>, vector<32x128xbf16>, vector<64x128xf32> -> vector<64x128xf32>
    %c0_61 = arith.constant 0 : index
    %c0_62 = arith.constant 0 : index
    %139 = vector.load %arg16[%c0_61, %c0_62] : memref<1x128xf32, #tpu.memory_space<vmem>>, vector<1x128xf32>
    %140 = vector.broadcast %139 : vector<1x128xf32> to vector<64x128xf32>
    %141 = arith.addf %138, %140 : vector<64x128xf32>
    %cst_63 = arith.constant 5.000000e-01 : f32
    %142 = vector.broadcast %cst_63 : f32 to vector<64x128xf32>
    %143 = arith.mulf %142, %141 : vector<64x128xf32>
    %cst_64 = arith.constant 0.707106769 : f32
    %144 = vector.broadcast %cst_64 : f32 to vector<64x128xf32>
    %145 = arith.mulf %141, %144 : vector<64x128xf32>
    %cst_65 = arith.constant 0.000000e+00 : f32
    %146 = vector.broadcast %cst_65 : f32 to vector<64x128xf32>
    %147 = arith.cmpf oge, %145, %146 : vector<64x128xf32>
    %cst_66 = arith.constant 1.000000e+00 : f32
    %cst_67 = arith.constant -1.000000e+00 : f32
    %148 = vector.broadcast %cst_66 : f32 to vector<64x128xf32>
    %149 = vector.broadcast %cst_67 : f32 to vector<64x128xf32>
    %150 = arith.select %147, %148, %149 : vector<64x128xi1>, vector<64x128xf32>
    %151 = math.absf %145 : vector<64x128xf32>
    %cst_68 = arith.constant 0.327591091 : f32
    %152 = vector.broadcast %cst_68 : f32 to vector<64x128xf32>
    %153 = arith.mulf %152, %151 : vector<64x128xf32>
    %cst_69 = arith.constant 1.000000e+00 : f32
    %154 = vector.broadcast %cst_69 : f32 to vector<64x128xf32>
    %155 = arith.addf %154, %153 : vector<64x128xf32>
    %cst_70 = arith.constant 1.000000e+00 : f32
    %156 = vector.broadcast %cst_70 : f32 to vector<64x128xf32>
    %157 = arith.divf %156, %155 : vector<64x128xf32>
    %cst_71 = arith.constant 1.06140542 : f32
    %158 = vector.broadcast %cst_71 : f32 to vector<64x128xf32>
    %159 = arith.mulf %158, %157 : vector<64x128xf32>
    %cst_72 = arith.constant -1.45315206 : f32
    %160 = vector.broadcast %cst_72 : f32 to vector<64x128xf32>
    %161 = arith.addf %159, %160 : vector<64x128xf32>
    %162 = arith.mulf %161, %157 : vector<64x128xf32>
    %cst_73 = arith.constant 1.42141378 : f32
    %163 = vector.broadcast %cst_73 : f32 to vector<64x128xf32>
    %164 = arith.addf %162, %163 : vector<64x128xf32>
    %165 = arith.mulf %164, %157 : vector<64x128xf32>
    %cst_74 = arith.constant -0.284496725 : f32
    %166 = vector.broadcast %cst_74 : f32 to vector<64x128xf32>
    %167 = arith.addf %165, %166 : vector<64x128xf32>
    %168 = arith.mulf %167, %157 : vector<64x128xf32>
    %cst_75 = arith.constant 0.254829586 : f32
    %169 = vector.broadcast %cst_75 : f32 to vector<64x128xf32>
    %170 = arith.addf %168, %169 : vector<64x128xf32>
    %171 = arith.mulf %170, %157 : vector<64x128xf32>
    %cst_76 = arith.constant 0.000000e+00 : f32
    %172 = vector.broadcast %cst_76 : f32 to vector<64x128xf32>
    %173 = arith.subf %172, %151 : vector<64x128xf32>
    %174 = arith.mulf %173, %151 : vector<64x128xf32>
    %175 = math.exp %174 : vector<64x128xf32>
    %176 = arith.mulf %171, %175 : vector<64x128xf32>
    %cst_77 = arith.constant 1.000000e+00 : f32
    %177 = vector.broadcast %cst_77 : f32 to vector<64x128xf32>
    %178 = arith.subf %177, %176 : vector<64x128xf32>
    %179 = arith.mulf %150, %178 : vector<64x128xf32>
    %cst_78 = arith.constant 1.000000e+00 : f32
    %180 = vector.broadcast %cst_78 : f32 to vector<64x128xf32>
    %181 = arith.addf %180, %179 : vector<64x128xf32>
    %182 = arith.mulf %143, %181 : vector<64x128xf32>
    %c0_79 = arith.constant 0 : index
    %c0_80 = arith.constant 0 : index
    %183 = vector.load %arg17[%c0_79, %c0_80] : memref<128x32xbf16, #tpu.memory_space<vmem>>, vector<128x32xbf16>
    %184 = arith.truncf %182 : vector<64x128xf32> to vector<64x128xbf16>
    %cst_81 = arith.constant dense<0.000000e+00> : vector<64x32xf32>
    %185 = tpu.matmul %184, %183, %cst_81 {dimension_numbers = #tpu.dot_dimension_numbers<[1], [0], [0], [1], [0, 0, 1, 1], [], []>} : vector<64x128xbf16>, vector<128x32xbf16>, vector<64x32xf32> -> vector<64x32xf32>
    %186 = arith.addf %113, %185 : vector<64x32xf32>
    %c0_82 = arith.constant 0 : index
    %c0_83 = arith.constant 0 : index
    %187 = vector.load %arg18[%c0_82, %c0_83] : memref<1x32xf32, #tpu.memory_space<vmem>>, vector<1x32xf32>
    %188 = vector.broadcast %187 : vector<1x32xf32> to vector<64x32xf32>
    %189 = arith.addf %186, %188 : vector<64x32xf32>
    %c0_84 = arith.constant 0 : index
    %c0_85 = arith.constant 0 : index
    %190 = vector.load %arg19[%c0_84, %c0_85] : memref<1x32xf32, #tpu.memory_space<vmem>>, vector<1x32xf32>
    %c0_86 = arith.constant 0 : index
    %c0_87 = arith.constant 0 : index
    %191 = vector.load %arg20[%c0_86, %c0_87] : memref<1x32xf32, #tpu.memory_space<vmem>>, vector<1x32xf32>
    %cst_88 = arith.constant dense<0.000000e+00> : vector<64xf32>
    %192 = vector.multi_reduction <add>, %189, %cst_88 [1] : vector<64x32xf32> to vector<64xf32>
    %193 = vector.shape_cast %192 : vector<64xf32> to vector<64x1xf32>
    %cst_89 = arith.constant 3.200000e+01 : f32
    %194 = vector.broadcast %cst_89 : f32 to vector<64x1xf32>
    %195 = arith.divf %193, %194 : vector<64x1xf32>
    %196 = vector.broadcast %195 : vector<64x1xf32> to vector<64x32xf32>
    %197 = arith.subf %189, %196 : vector<64x32xf32>
    %198 = arith.mulf %197, %197 : vector<64x32xf32>
    %cst_90 = arith.constant dense<0.000000e+00> : vector<64xf32>
    %199 = vector.multi_reduction <add>, %198, %cst_90 [1] : vector<64x32xf32> to vector<64xf32>
    %200 = vector.shape_cast %199 : vector<64xf32> to vector<64x1xf32>
    %cst_91 = arith.constant 3.200000e+01 : f32
    %201 = vector.broadcast %cst_91 : f32 to vector<64x1xf32>
    %202 = arith.divf %200, %201 : vector<64x1xf32>
    %cst_92 = arith.constant 9.99999974E-6 : f32
    %203 = vector.broadcast %cst_92 : f32 to vector<64x1xf32>
    %204 = arith.addf %202, %203 : vector<64x1xf32>
    %205 = math.rsqrt %204 : vector<64x1xf32>
    %206 = vector.broadcast %205 : vector<64x1xf32> to vector<64x32xf32>
    %207 = arith.mulf %197, %206 : vector<64x32xf32>
    %208 = vector.broadcast %190 : vector<1x32xf32> to vector<64x32xf32>
    %209 = arith.mulf %207, %208 : vector<64x32xf32>
    %210 = vector.broadcast %191 : vector<1x32xf32> to vector<64x32xf32>
    %211 = arith.addf %209, %210 : vector<64x32xf32>
    %c0_93 = arith.constant 0 : index
    %c0_94 = arith.constant 0 : index
    %212 = vector.load %arg21[%c0_93, %c0_94] : memref<32x96xbf16, #tpu.memory_space<vmem>>, vector<32x96xbf16>
    %213 = arith.truncf %211 : vector<64x32xf32> to vector<64x32xbf16>
    %cst_95 = arith.constant dense<0.000000e+00> : vector<64x96xf32>
    %214 = tpu.matmul %213, %212, %cst_95 {dimension_numbers = #tpu.dot_dimension_numbers<[1], [0], [0], [1], [0, 0, 1, 1], [], []>} : vector<64x32xbf16>, vector<32x96xbf16>, vector<64x96xf32> -> vector<64x96xf32>
    %c0_96 = arith.constant 0 : index
    %c0_97 = arith.constant 0 : index
    %215 = vector.load %arg22[%c0_96, %c0_97] : memref<1x96xf32, #tpu.memory_space<vmem>>, vector<1x96xf32>
    %216 = vector.broadcast %215 : vector<1x96xf32> to vector<64x96xf32>
    %217 = arith.addf %214, %216 : vector<64x96xf32>
    %218 = vector.extract_strided_slice %217 {offsets = [0, 0], sizes = [64, 16], strides = [1, 1]} : vector<64x96xf32> to vector<64x16xf32>
    %cst_98 = arith.constant 2.500000e-01 : f32
    %219 = vector.broadcast %cst_98 : f32 to vector<64x16xf32>
    %220 = arith.mulf %218, %219 : vector<64x16xf32>
    %221 = arith.truncf %220 : vector<64x16xf32> to vector<64x16xbf16>
    %222 = vector.extract_strided_slice %217 {offsets = [0, 32], sizes = [64, 16], strides = [1, 1]} : vector<64x96xf32> to vector<64x16xf32>
    %223 = arith.truncf %222 : vector<64x16xf32> to vector<64x16xbf16>
    %224 = vector.extract_strided_slice %217 {offsets = [0, 64], sizes = [64, 16], strides = [1, 1]} : vector<64x96xf32> to vector<64x16xf32>
    %225 = arith.truncf %224 : vector<64x16xf32> to vector<64x16xbf16>
    %cst_99 = arith.constant dense<0.000000e+00> : vector<64x64xf32>
    %226 = tpu.matmul %221, %223, %cst_99 {dimension_numbers = #tpu.dot_dimension_numbers<[1], [1], [0], [0], [0, 0, 1, 0], [], []>} : vector<64x16xbf16>, vector<64x16xbf16>, vector<64x64xf32> -> vector<64x64xf32>
    %c0_100 = arith.constant 0 : index
    %c0_101 = arith.constant 0 : index
    %c0_102 = arith.constant 0 : index
    %227 = vector.load %arg23[%c0_100, %c0_101, %c0_102] : memref<2x64x64xf32, #tpu.memory_space<vmem>>, vector<1x64x64xf32>
    %228 = vector.shape_cast %227 : vector<1x64x64xf32> to vector<64x64xf32>
    %229 = arith.addf %226, %228 : vector<64x64xf32>
    %cst_103 = arith.constant dense<0xFF800000> : vector<64xf32>
    %230 = vector.multi_reduction <maximumf>, %229, %cst_103 [1] : vector<64x64xf32> to vector<64xf32>
    %231 = vector.shape_cast %230 : vector<64xf32> to vector<64x1xf32>
    %232 = vector.broadcast %231 : vector<64x1xf32> to vector<64x64xf32>
    %233 = arith.subf %229, %232 : vector<64x64xf32>
    %234 = math.exp %233 : vector<64x64xf32>
    %cst_104 = arith.constant dense<0.000000e+00> : vector<64xf32>
    %235 = vector.multi_reduction <add>, %234, %cst_104 [1] : vector<64x64xf32> to vector<64xf32>
    %236 = vector.shape_cast %235 : vector<64xf32> to vector<64x1xf32>
    %237 = tpu.reciprocal %236 {approx = true} : vector<64x1xf32> -> vector<64x1xf32>
    %238 = vector.broadcast %237 : vector<64x1xf32> to vector<64x64xf32>
    %239 = arith.mulf %234, %238 : vector<64x64xf32>
    %240 = arith.truncf %239 : vector<64x64xf32> to vector<64x64xbf16>
    %cst_105 = arith.constant dense<0.000000e+00> : vector<64x16xf32>
    %241 = tpu.matmul %240, %225, %cst_105 {dimension_numbers = #tpu.dot_dimension_numbers<[1], [0], [0], [1], [0, 0, 1, 1], [], []>} : vector<64x64xbf16>, vector<64x16xbf16>, vector<64x16xf32> -> vector<64x16xf32>
    %242 = vector.extract_strided_slice %217 {offsets = [0, 16], sizes = [64, 16], strides = [1, 1]} : vector<64x96xf32> to vector<64x16xf32>
    %cst_106 = arith.constant 2.500000e-01 : f32
    %243 = vector.broadcast %cst_106 : f32 to vector<64x16xf32>
    %244 = arith.mulf %242, %243 : vector<64x16xf32>
    %245 = arith.truncf %244 : vector<64x16xf32> to vector<64x16xbf16>
    %246 = vector.extract_strided_slice %217 {offsets = [0, 48], sizes = [64, 16], strides = [1, 1]} : vector<64x96xf32> to vector<64x16xf32>
    %247 = arith.truncf %246 : vector<64x16xf32> to vector<64x16xbf16>
    %248 = vector.extract_strided_slice %217 {offsets = [0, 80], sizes = [64, 16], strides = [1, 1]} : vector<64x96xf32> to vector<64x16xf32>
    %249 = arith.truncf %248 : vector<64x16xf32> to vector<64x16xbf16>
    %cst_107 = arith.constant dense<0.000000e+00> : vector<64x64xf32>
    %250 = tpu.matmul %245, %247, %cst_107 {dimension_numbers = #tpu.dot_dimension_numbers<[1], [1], [0], [0], [0, 0, 1, 0], [], []>} : vector<64x16xbf16>, vector<64x16xbf16>, vector<64x64xf32> -> vector<64x64xf32>
    %c1_108 = arith.constant 1 : index
    %c0_109 = arith.constant 0 : index
    %c0_110 = arith.constant 0 : index
    %251 = vector.load %arg23[%c1_108, %c0_109, %c0_110] : memref<2x64x64xf32, #tpu.memory_space<vmem>>, vector<1x64x64xf32>
    %252 = vector.shape_cast %251 : vector<1x64x64xf32> to vector<64x64xf32>
    %253 = arith.addf %250, %252 : vector<64x64xf32>
    %cst_111 = arith.constant dense<0xFF800000> : vector<64xf32>
    %254 = vector.multi_reduction <maximumf>, %253, %cst_111 [1] : vector<64x64xf32> to vector<64xf32>
    %255 = vector.shape_cast %254 : vector<64xf32> to vector<64x1xf32>
    %256 = vector.broadcast %255 : vector<64x1xf32> to vector<64x64xf32>
    %257 = arith.subf %253, %256 : vector<64x64xf32>
    %258 = math.exp %257 : vector<64x64xf32>
    %cst_112 = arith.constant dense<0.000000e+00> : vector<64xf32>
    %259 = vector.multi_reduction <add>, %258, %cst_112 [1] : vector<64x64xf32> to vector<64xf32>
    %260 = vector.shape_cast %259 : vector<64xf32> to vector<64x1xf32>
    %261 = tpu.reciprocal %260 {approx = true} : vector<64x1xf32> -> vector<64x1xf32>
    %262 = vector.broadcast %261 : vector<64x1xf32> to vector<64x64xf32>
    %263 = arith.mulf %258, %262 : vector<64x64xf32>
    %264 = arith.truncf %263 : vector<64x64xf32> to vector<64x64xbf16>
    %cst_113 = arith.constant dense<0.000000e+00> : vector<64x16xf32>
    %265 = tpu.matmul %264, %249, %cst_113 {dimension_numbers = #tpu.dot_dimension_numbers<[1], [0], [0], [1], [0, 0, 1, 1], [], []>} : vector<64x64xbf16>, vector<64x16xbf16>, vector<64x16xf32> -> vector<64x16xf32>
    %266 = tpu.concatenate %241, %265 in 1 : vector<64x16xf32>, vector<64x16xf32> -> vector<64x32xf32>
    %c0_114 = arith.constant 0 : index
    %c0_115 = arith.constant 0 : index
    %267 = vector.load %arg24[%c0_114, %c0_115] : memref<32x32xbf16, #tpu.memory_space<vmem>>, vector<32x32xbf16>
    %268 = arith.truncf %266 : vector<64x32xf32> to vector<64x32xbf16>
    %cst_116 = arith.constant dense<0.000000e+00> : vector<64x32xf32>
    %269 = tpu.matmul %268, %267, %cst_116 {dimension_numbers = #tpu.dot_dimension_numbers<[1], [0], [0], [1], [0, 0, 1, 1], [], []>} : vector<64x32xbf16>, vector<32x32xbf16>, vector<64x32xf32> -> vector<64x32xf32>
    %270 = arith.addf %189, %269 : vector<64x32xf32>
    %c0_117 = arith.constant 0 : index
    %c0_118 = arith.constant 0 : index
    %271 = vector.load %arg25[%c0_117, %c0_118] : memref<1x32xf32, #tpu.memory_space<vmem>>, vector<1x32xf32>
    %272 = vector.broadcast %271 : vector<1x32xf32> to vector<64x32xf32>
    %273 = arith.addf %270, %272 : vector<64x32xf32>
    %c0_119 = arith.constant 0 : index
    %c0_120 = arith.constant 0 : index
    %274 = vector.load %arg26[%c0_119, %c0_120] : memref<1x32xf32, #tpu.memory_space<vmem>>, vector<1x32xf32>
    %c0_121 = arith.constant 0 : index
    %c0_122 = arith.constant 0 : index
    %275 = vector.load %arg27[%c0_121, %c0_122] : memref<1x32xf32, #tpu.memory_space<vmem>>, vector<1x32xf32>
    %cst_123 = arith.constant dense<0.000000e+00> : vector<64xf32>
    %276 = vector.multi_reduction <add>, %273, %cst_123 [1] : vector<64x32xf32> to vector<64xf32>
    %277 = vector.shape_cast %276 : vector<64xf32> to vector<64x1xf32>
    %cst_124 = arith.constant 3.200000e+01 : f32
    %278 = vector.broadcast %cst_124 : f32 to vector<64x1xf32>
    %279 = arith.divf %277, %278 : vector<64x1xf32>
    %280 = vector.broadcast %279 : vector<64x1xf32> to vector<64x32xf32>
    %281 = arith.subf %273, %280 : vector<64x32xf32>
    %282 = arith.mulf %281, %281 : vector<64x32xf32>
    %cst_125 = arith.constant dense<0.000000e+00> : vector<64xf32>
    %283 = vector.multi_reduction <add>, %282, %cst_125 [1] : vector<64x32xf32> to vector<64xf32>
    %284 = vector.shape_cast %283 : vector<64xf32> to vector<64x1xf32>
    %cst_126 = arith.constant 3.200000e+01 : f32
    %285 = vector.broadcast %cst_126 : f32 to vector<64x1xf32>
    %286 = arith.divf %284, %285 : vector<64x1xf32>
    %cst_127 = arith.constant 9.99999974E-6 : f32
    %287 = vector.broadcast %cst_127 : f32 to vector<64x1xf32>
    %288 = arith.addf %286, %287 : vector<64x1xf32>
    %289 = math.rsqrt %288 : vector<64x1xf32>
    %290 = vector.broadcast %289 : vector<64x1xf32> to vector<64x32xf32>
    %291 = arith.mulf %281, %290 : vector<64x32xf32>
    %292 = vector.broadcast %274 : vector<1x32xf32> to vector<64x32xf32>
    %293 = arith.mulf %291, %292 : vector<64x32xf32>
    %294 = vector.broadcast %275 : vector<1x32xf32> to vector<64x32xf32>
    %295 = arith.addf %293, %294 : vector<64x32xf32>
    %c0_128 = arith.constant 0 : index
    %c0_129 = arith.constant 0 : index
    %296 = vector.load %arg28[%c0_128, %c0_129] : memref<32x128xbf16, #tpu.memory_space<vmem>>, vector<32x128xbf16>
    %297 = arith.truncf %295 : vector<64x32xf32> to vector<64x32xbf16>
    %cst_130 = arith.constant dense<0.000000e+00> : vector<64x128xf32>
    %298 = tpu.matmul %297, %296, %cst_130 {dimension_numbers = #tpu.dot_dimension_numbers<[1], [0], [0], [1], [0, 0, 1, 1], [], []>} : vector<64x32xbf16>, vector<32x128xbf16>, vector<64x128xf32> -> vector<64x128xf32>
    %c0_131 = arith.constant 0 : index
    %c0_132 = arith.constant 0 : index
    %299 = vector.load %arg29[%c0_131, %c0_132] : memref<1x128xf32, #tpu.memory_space<vmem>>, vector<1x128xf32>
    %300 = vector.broadcast %299 : vector<1x128xf32> to vector<64x128xf32>
    %301 = arith.addf %298, %300 : vector<64x128xf32>
    %cst_133 = arith.constant 5.000000e-01 : f32
    %302 = vector.broadcast %cst_133 : f32 to vector<64x128xf32>
    %303 = arith.mulf %302, %301 : vector<64x128xf32>
    %cst_134 = arith.constant 0.707106769 : f32
    %304 = vector.broadcast %cst_134 : f32 to vector<64x128xf32>
    %305 = arith.mulf %301, %304 : vector<64x128xf32>
    %cst_135 = arith.constant 0.000000e+00 : f32
    %306 = vector.broadcast %cst_135 : f32 to vector<64x128xf32>
    %307 = arith.cmpf oge, %305, %306 : vector<64x128xf32>
    %cst_136 = arith.constant 1.000000e+00 : f32
    %cst_137 = arith.constant -1.000000e+00 : f32
    %308 = vector.broadcast %cst_136 : f32 to vector<64x128xf32>
    %309 = vector.broadcast %cst_137 : f32 to vector<64x128xf32>
    %310 = arith.select %307, %308, %309 : vector<64x128xi1>, vector<64x128xf32>
    %311 = math.absf %305 : vector<64x128xf32>
    %cst_138 = arith.constant 0.327591091 : f32
    %312 = vector.broadcast %cst_138 : f32 to vector<64x128xf32>
    %313 = arith.mulf %312, %311 : vector<64x128xf32>
    %cst_139 = arith.constant 1.000000e+00 : f32
    %314 = vector.broadcast %cst_139 : f32 to vector<64x128xf32>
    %315 = arith.addf %314, %313 : vector<64x128xf32>
    %cst_140 = arith.constant 1.000000e+00 : f32
    %316 = vector.broadcast %cst_140 : f32 to vector<64x128xf32>
    %317 = arith.divf %316, %315 : vector<64x128xf32>
    %cst_141 = arith.constant 1.06140542 : f32
    %318 = vector.broadcast %cst_141 : f32 to vector<64x128xf32>
    %319 = arith.mulf %318, %317 : vector<64x128xf32>
    %cst_142 = arith.constant -1.45315206 : f32
    %320 = vector.broadcast %cst_142 : f32 to vector<64x128xf32>
    %321 = arith.addf %319, %320 : vector<64x128xf32>
    %322 = arith.mulf %321, %317 : vector<64x128xf32>
    %cst_143 = arith.constant 1.42141378 : f32
    %323 = vector.broadcast %cst_143 : f32 to vector<64x128xf32>
    %324 = arith.addf %322, %323 : vector<64x128xf32>
    %325 = arith.mulf %324, %317 : vector<64x128xf32>
    %cst_144 = arith.constant -0.284496725 : f32
    %326 = vector.broadcast %cst_144 : f32 to vector<64x128xf32>
    %327 = arith.addf %325, %326 : vector<64x128xf32>
    %328 = arith.mulf %327, %317 : vector<64x128xf32>
    %cst_145 = arith.constant 0.254829586 : f32
    %329 = vector.broadcast %cst_145 : f32 to vector<64x128xf32>
    %330 = arith.addf %328, %329 : vector<64x128xf32>
    %331 = arith.mulf %330, %317 : vector<64x128xf32>
    %cst_146 = arith.constant 0.000000e+00 : f32
    %332 = vector.broadcast %cst_146 : f32 to vector<64x128xf32>
    %333 = arith.subf %332, %311 : vector<64x128xf32>
    %334 = arith.mulf %333, %311 : vector<64x128xf32>
    %335 = math.exp %334 : vector<64x128xf32>
    %336 = arith.mulf %331, %335 : vector<64x128xf32>
    %cst_147 = arith.constant 1.000000e+00 : f32
    %337 = vector.broadcast %cst_147 : f32 to vector<64x128xf32>
    %338 = arith.subf %337, %336 : vector<64x128xf32>
    %339 = arith.mulf %310, %338 : vector<64x128xf32>
    %cst_148 = arith.constant 1.000000e+00 : f32
    %340 = vector.broadcast %cst_148 : f32 to vector<64x128xf32>
    %341 = arith.addf %340, %339 : vector<64x128xf32>
    %342 = arith.mulf %303, %341 : vector<64x128xf32>
    %c0_149 = arith.constant 0 : index
    %c0_150 = arith.constant 0 : index
    %343 = vector.load %arg30[%c0_149, %c0_150] : memref<128x32xbf16, #tpu.memory_space<vmem>>, vector<128x32xbf16>
    %344 = arith.truncf %342 : vector<64x128xf32> to vector<64x128xbf16>
    %cst_151 = arith.constant dense<0.000000e+00> : vector<64x32xf32>
    %345 = tpu.matmul %344, %343, %cst_151 {dimension_numbers = #tpu.dot_dimension_numbers<[1], [0], [0], [1], [0, 0, 1, 1], [], []>} : vector<64x128xbf16>, vector<128x32xbf16>, vector<64x32xf32> -> vector<64x32xf32>
    %346 = arith.addf %273, %345 : vector<64x32xf32>
    %c0_152 = arith.constant 0 : index
    %c0_153 = arith.constant 0 : index
    %347 = vector.load %arg31[%c0_152, %c0_153] : memref<1x32xf32, #tpu.memory_space<vmem>>, vector<1x32xf32>
    %348 = vector.broadcast %347 : vector<1x32xf32> to vector<64x32xf32>
    %349 = arith.addf %346, %348 : vector<64x32xf32>
    %c0_154 = arith.constant 0 : index
    %c0_155 = arith.constant 0 : index
    %c0_156 = arith.constant 0 : index
    %350 = vector.load %arg32[%c0_154, %c0_155, %c0_156] : memref<1x64x32xf32, #tpu.memory_space<vmem>>, vector<1x64x32xf32>
    %351 = vector.shape_cast %350 : vector<1x64x32xf32> to vector<64x32xf32>
    %352 = vector.shape_cast %349 : vector<64x32xf32> to vector<1x64x32xf32>
    tpu.vector_store %arg32[%c0_154, %c0_155, %c0_156], %352 {strides = array<i32>} : memref<1x64x32xf32, #tpu.memory_space<vmem>>, vector<1x64x32xf32>,
    return
  }
  func.func @transform_0(%arg0: i32) -> (i32, i32, i32) {
    %c0_i32 = arith.constant 0 : i32
    %c0_i32_0 = arith.constant 0 : i32
    %c0_i32_1 = arith.constant 0 : i32
    return %arg0, %c0_i32, %c0_i32_0 : i32, i32, i32
  }
  func.func @transform_1(%arg0: i32) -> (i32, i32) {
    %c0_i32 = arith.constant 0 : i32
    %c0_i32_0 = arith.constant 0 : i32
    %c0_i32_1 = arith.constant 0 : i32
    return %c0_i32, %c0_i32_0 : i32, i32
  }
  func.func @transform_2(%arg0: i32) -> (i32, i32) {
    %c0_i32 = arith.constant 0 : i32
    %c0_i32_0 = arith.constant 0 : i32
    %c0_i32_1 = arith.constant 0 : i32
    return %c0_i32, %c0_i32_0 : i32, i32
  }
  func.func @transform_3(%arg0: i32) -> (i32, i32) {
    %c0_i32 = arith.constant 0 : i32
    %c0_i32_0 = arith.constant 0 : i32
    %c0_i32_1 = arith.constant 0 : i32
    return %c0_i32, %c0_i32_0 : i32, i32
  }
  func.func @transform_4(%arg0: i32) -> (i32, i32) {
    %c0_i32 = arith.constant 0 : i32
    %c0_i32_0 = arith.constant 0 : i32
    %c0_i32_1 = arith.constant 0 : i32
    return %c0_i32, %c0_i32_0 : i32, i32
  }
  func.func @transform_5(%arg0: i32) -> (i32, i32) {
    %c0_i32 = arith.constant 0 : i32
    %c0_i32_0 = arith.constant 0 : i32
    %c0_i32_1 = arith.constant 0 : i32
    return %c0_i32, %c0_i32_0 : i32, i32
  }
  func.func @transform_6(%arg0: i32) -> (i32, i32) {
    %c0_i32 = arith.constant 0 : i32
    %c0_i32_0 = arith.constant 0 : i32
    %c0_i32_1 = arith.constant 0 : i32
    return %c0_i32, %c0_i32_0 : i32, i32
  }
  func.func @transform_7(%arg0: i32) -> (i32, i32) {
    %c0_i32 = arith.constant 0 : i32
    %c0_i32_0 = arith.constant 0 : i32
    %c0_i32_1 = arith.constant 0 : i32
    return %c0_i32, %c0_i32_0 : i32, i32
  }
  func.func @transform_8(%arg0: i32) -> (i32, i32) {
    %c0_i32 = arith.constant 0 : i32
    %c0_i32_0 = arith.constant 0 : i32
    %c0_i32_1 = arith.constant 0 : i32
    return %c0_i32, %c0_i32_0 : i32, i32
  }
  func.func @transform_9(%arg0: i32) -> (i32, i32, i32) {
    %c0_i32 = arith.constant 0 : i32
    %c0_i32_0 = arith.constant 0 : i32
    %c0_i32_1 = arith.constant 0 : i32
    %c0_i32_2 = arith.constant 0 : i32
    return %c0_i32, %c0_i32_0, %c0_i32_1 : i32, i32, i32
  }
  func.func @transform_10(%arg0: i32) -> (i32, i32) {
    %c0_i32 = arith.constant 0 : i32
    %c0_i32_0 = arith.constant 0 : i32
    %c0_i32_1 = arith.constant 0 : i32
    return %c0_i32, %c0_i32_0 : i32, i32
  }
  func.func @transform_11(%arg0: i32) -> (i32, i32) {
    %c0_i32 = arith.constant 0 : i32
    %c0_i32_0 = arith.constant 0 : i32
    %c0_i32_1 = arith.constant 0 : i32
    return %c0_i32, %c0_i32_0 : i32, i32
  }
  func.func @transform_12(%arg0: i32) -> (i32, i32) {
    %c0_i32 = arith.constant 0 : i32
    %c0_i32_0 = arith.constant 0 : i32
    %c0_i32_1 = arith.constant 0 : i32
    return %c0_i32, %c0_i32_0 : i32, i32
  }
  func.func @transform_13(%arg0: i32) -> (i32, i32) {
    %c0_i32 = arith.constant 0 : i32
    %c0_i32_0 = arith.constant 0 : i32
    %c0_i32_1 = arith.constant 0 : i32
    return %c0_i32, %c0_i32_0 : i32, i32
  }
  func.func @transform_14(%arg0: i32) -> (i32, i32) {
    %c0_i32 = arith.constant 0 : i32
    %c0_i32_0 = arith.constant 0 : i32
    %c0_i32_1 = arith.constant 0 : i32
    return %c0_i32, %c0_i32_0 : i32, i32
  }
  func.func @transform_15(%arg0: i32) -> (i32, i32) {
    %c0_i32 = arith.constant 0 : i32
    %c0_i32_0 = arith.constant 0 : i32
    %c0_i32_1 = arith.constant 0 : i32
    return %c0_i32, %c0_i32_0 : i32, i32
  }
  func.func @transform_16(%arg0: i32) -> (i32, i32) {
    %c0_i32 = arith.constant 0 : i32
    %c0_i32_0 = arith.constant 0 : i32
    %c0_i32_1 = arith.constant 0 : i32
    return %c0_i32, %c0_i32_0 : i32, i32
  }
  func.func @transform_17(%arg0: i32) -> (i32, i32) {
    %c0_i32 = arith.constant 0 : i32
    %c0_i32_0 = arith.constant 0 : i32
    %c0_i32_1 = arith.constant 0 : i32
    return %c0_i32, %c0_i32_0 : i32, i32
  }
  func.func @transform_18(%arg0: i32) -> (i32, i32) {
    %c0_i32 = arith.constant 0 : i32
    %c0_i32_0 = arith.constant 0 : i32
    %c0_i32_1 = arith.constant 0 : i32
    return %c0_i32, %c0_i32_0 : i32, i32
  }
  func.func @transform_19(%arg0: i32) -> (i32, i32) {
    %c0_i32 = arith.constant 0 : i32
    %c0_i32_0 = arith.constant 0 : i32
    %c0_i32_1 = arith.constant 0 : i32
    return %c0_i32, %c0_i32_0 : i32, i32
  }
  func.func @transform_20(%arg0: i32) -> (i32, i32) {
    %c0_i32 = arith.constant 0 : i32
    %c0_i32_0 = arith.constant 0 : i32
    %c0_i32_1 = arith.constant 0 : i32
    return %c0_i32, %c0_i32_0 : i32, i32
  }
  func.func @transform_21(%arg0: i32) -> (i32, i32) {
    %c0_i32 = arith.constant 0 : i32
    %c0_i32_0 = arith.constant 0 : i32
    %c0_i32_1 = arith.constant 0 : i32
    return %c0_i32, %c0_i32_0 : i32, i32
  }
  func.func @transform_22(%arg0: i32) -> (i32, i32, i32) {
    %c0_i32 = arith.constant 0 : i32
    %c0_i32_0 = arith.constant 0 : i32
    %c0_i32_1 = arith.constant 0 : i32
    %c0_i32_2 = arith.constant 0 : i32
    return %c0_i32, %c0_i32_0, %c0_i32_1 : i32, i32, i32
  }
  func.func @transform_23(%arg0: i32) -> (i32, i32) {
    %c0_i32 = arith.constant 0 : i32
    %c0_i32_0 = arith.constant 0 : i32
    %c0_i32_1 = arith.constant 0 : i32
    return %c0_i32, %c0_i32_0 : i32, i32
  }
  func.func @transform_24(%arg0: i32) -> (i32, i32) {
    %c0_i32 = arith.constant 0 : i32
    %c0_i32_0 = arith.constant 0 : i32
    %c0_i32_1 = arith.constant 0 : i32
    return %c0_i32, %c0_i32_0 : i32, i32
  }
  func.func @transform_25(%arg0: i32) -> (i32, i32) {
    %c0_i32 = arith.constant 0 : i32
    %c0_i32_0 = arith.constant 0 : i32
    %c0_i32_1 = arith.constant 0 : i32
    return %c0_i32, %c0_i32_0 : i32, i32
  }
  func.func @transform_26(%arg0: i32) -> (i32, i32) {
    %c0_i32 = arith.constant 0 : i32
    %c0_i32_0 = arith.constant 0 : i32
    %c0_i32_1 = arith.constant 0 : i32
    return %c0_i32, %c0_i32_0 : i32, i32
  }
  func.func @transform_27(%arg0: i32) -> (i32, i32) {
    %c0_i32 = arith.constant 0 : i32
    %c0_i32_0 = arith.constant 0 : i32
    %c0_i32_1 = arith.constant 0 : i32
    return %c0_i32, %c0_i32_0 : i32, i32
  }
  func.func @transform_28(%arg0: i32) -> (i32, i32) {
    %c0_i32 = arith.constant 0 : i32
    %c0_i32_0 = arith.constant 0 : i32
    %c0_i32_1 = arith.constant 0 : i32
    return %c0_i32, %c0_i32_0 : i32, i32
  }
  func.func @transform_29(%arg0: i32) -> (i32, i32) {
    %c0_i32 = arith.constant 0 : i32
    %c0_i32_0 = arith.constant 0 : i32
    %c0_i32_1 = arith.constant 0 : i32
    return %c0_i32, %c0_i32_0 : i32, i32
  }
  func.func @transform_30(%arg0: i32) -> (i32, i32) {
    %c0_i32 = arith.constant 0 : i32
    %c0_i32_0 = arith.constant 0 : i32
    %c0_i32_1 = arith.constant 0 : i32
    return %c0_i32, %c0_i32_0 : i32, i32
  }
  func.func @transform_31(%arg0: i32) -> (i32, i32, i32) {
    %c0_i32 = arith.constant 0 : i32
    %c0_i32_0 = arith.constant 0 : i32
    %c0_i32_1 = arith.constant 0 : i32
    return %arg0, %c0_i32, %c0_i32_0 : i32, i32, i32
  }
}

module attributes {stable_mosaic.version = 11 : i64} {
  func.func @_stage1_kernel(%arg0: i32, %arg1: memref<1x16x128xf32, #tpu.memory_space<vmem>>, %arg2: memref<1x128xf32, #tpu.memory_space<vmem>>, %arg3: memref<1x128xf32, #tpu.memory_space<vmem>>, %arg4: memref<128x64xbf16, #tpu.memory_space<vmem>>, %arg5: memref<1x64xf32, #tpu.memory_space<vmem>>, %arg6: memref<1x64xf32, #tpu.memory_space<vmem>>, %arg7: memref<64x192xbf16, #tpu.memory_space<vmem>>, %arg8: memref<1x192xf32, #tpu.memory_space<vmem>>, %arg9: memref<4x16x16xf32, #tpu.memory_space<vmem>>, %arg10: memref<64x64xbf16, #tpu.memory_space<vmem>>, %arg11: memref<1x64xf32, #tpu.memory_space<vmem>>, %arg12: memref<1x64xf32, #tpu.memory_space<vmem>>, %arg13: memref<1x64xf32, #tpu.memory_space<vmem>>, %arg14: memref<64x256xbf16, #tpu.memory_space<vmem>>, %arg15: memref<1x256xf32, #tpu.memory_space<vmem>>, %arg16: memref<256x64xbf16, #tpu.memory_space<vmem>>, %arg17: memref<1x64xf32, #tpu.memory_space<vmem>>, %arg18: memref<1x64xf32, #tpu.memory_space<vmem>>, %arg19: memref<1x64xf32, #tpu.memory_space<vmem>>, %arg20: memref<64x192xbf16, #tpu.memory_space<vmem>>, %arg21: memref<1x192xf32, #tpu.memory_space<vmem>>, %arg22: memref<4x16x16xf32, #tpu.memory_space<vmem>>, %arg23: memref<64x64xbf16, #tpu.memory_space<vmem>>, %arg24: memref<1x64xf32, #tpu.memory_space<vmem>>, %arg25: memref<1x64xf32, #tpu.memory_space<vmem>>, %arg26: memref<1x64xf32, #tpu.memory_space<vmem>>, %arg27: memref<64x256xbf16, #tpu.memory_space<vmem>>, %arg28: memref<1x256xf32, #tpu.memory_space<vmem>>, %arg29: memref<256x64xbf16, #tpu.memory_space<vmem>>, %arg30: memref<1x64xf32, #tpu.memory_space<vmem>>, %arg31: memref<1x64xf32, #tpu.memory_space<vmem>>, %arg32: memref<1x64xf32, #tpu.memory_space<vmem>>, %arg33: memref<1x1x64xf32, #tpu.memory_space<vmem>>) attributes {dimension_semantics = [#tpu.dimension_semantics<parallel>], iteration_bounds = array<i64: 2>, scalar_prefetch = 0 : i64, scratch_operands = 0 : i64, tpu.core_type = #tpu.core_type<tc>, window_params = [{transform_indices = @transform_0, window_bounds = array<i64: 1, 16, 128>}, {pipeline_mode = #tpu.pipeline_mode<synchronous>, transform_indices = @transform_1, window_bounds = array<i64: 1, 128>}, {pipeline_mode = #tpu.pipeline_mode<synchronous>, transform_indices = @transform_2, window_bounds = array<i64: 1, 128>}, {pipeline_mode = #tpu.pipeline_mode<synchronous>, transform_indices = @transform_3, window_bounds = array<i64: 128, 64>}, {pipeline_mode = #tpu.pipeline_mode<synchronous>, transform_indices = @transform_4, window_bounds = array<i64: 1, 64>}, {pipeline_mode = #tpu.pipeline_mode<synchronous>, transform_indices = @transform_5, window_bounds = array<i64: 1, 64>}, {pipeline_mode = #tpu.pipeline_mode<synchronous>, transform_indices = @transform_6, window_bounds = array<i64: 64, 192>}, {pipeline_mode = #tpu.pipeline_mode<synchronous>, transform_indices = @transform_7, window_bounds = array<i64: 1, 192>}, {pipeline_mode = #tpu.pipeline_mode<synchronous>, transform_indices = @transform_8, window_bounds = array<i64: 4, 16, 16>}, {pipeline_mode = #tpu.pipeline_mode<synchronous>, transform_indices = @transform_9, window_bounds = array<i64: 64, 64>}, {pipeline_mode = #tpu.pipeline_mode<synchronous>, transform_indices = @transform_10, window_bounds = array<i64: 1, 64>}, {pipeline_mode = #tpu.pipeline_mode<synchronous>, transform_indices = @transform_11, window_bounds = array<i64: 1, 64>}, {pipeline_mode = #tpu.pipeline_mode<synchronous>, transform_indices = @transform_12, window_bounds = array<i64: 1, 64>}, {pipeline_mode = #tpu.pipeline_mode<synchronous>, transform_indices = @transform_13, window_bounds = array<i64: 64, 256>}, {pipeline_mode = #tpu.pipeline_mode<synchronous>, transform_indices = @transform_14, window_bounds = array<i64: 1, 256>}, {pipeline_mode = #tpu.pipeline_mode<synchronous>, transform_indices = @transform_15, window_bounds = array<i64: 256, 64>}, {pipeline_mode = #tpu.pipeline_mode<synchronous>, transform_indices = @transform_16, window_bounds = array<i64: 1, 64>}, {pipeline_mode = #tpu.pipeline_mode<synchronous>, transform_indices = @transform_17, window_bounds = array<i64: 1, 64>}, {pipeline_mode = #tpu.pipeline_mode<synchronous>, transform_indices = @transform_18, window_bounds = array<i64: 1, 64>}, {pipeline_mode = #tpu.pipeline_mode<synchronous>, transform_indices = @transform_19, window_bounds = array<i64: 64, 192>}, {pipeline_mode = #tpu.pipeline_mode<synchronous>, transform_indices = @transform_20, window_bounds = array<i64: 1, 192>}, {pipeline_mode = #tpu.pipeline_mode<synchronous>, transform_indices = @transform_21, window_bounds = array<i64: 4, 16, 16>}, {pipeline_mode = #tpu.pipeline_mode<synchronous>, transform_indices = @transform_22, window_bounds = array<i64: 64, 64>}, {pipeline_mode = #tpu.pipeline_mode<synchronous>, transform_indices = @transform_23, window_bounds = array<i64: 1, 64>}, {pipeline_mode = #tpu.pipeline_mode<synchronous>, transform_indices = @transform_24, window_bounds = array<i64: 1, 64>}, {pipeline_mode = #tpu.pipeline_mode<synchronous>, transform_indices = @transform_25, window_bounds = array<i64: 1, 64>}, {pipeline_mode = #tpu.pipeline_mode<synchronous>, transform_indices = @transform_26, window_bounds = array<i64: 64, 256>}, {pipeline_mode = #tpu.pipeline_mode<synchronous>, transform_indices = @transform_27, window_bounds = array<i64: 1, 256>}, {pipeline_mode = #tpu.pipeline_mode<synchronous>, transform_indices = @transform_28, window_bounds = array<i64: 256, 64>}, {pipeline_mode = #tpu.pipeline_mode<synchronous>, transform_indices = @transform_29, window_bounds = array<i64: 1, 64>}, {pipeline_mode = #tpu.pipeline_mode<synchronous>, transform_indices = @transform_30, window_bounds = array<i64: 1, 64>}, {pipeline_mode = #tpu.pipeline_mode<synchronous>, transform_indices = @transform_31, window_bounds = array<i64: 1, 64>}, {transform_indices = @transform_32, window_bounds = array<i64: 1, 1, 64>}]} {
    %c0 = arith.constant 0 : index
    %c0_0 = arith.constant 0 : index
    %c0_1 = arith.constant 0 : index
    %0 = vector.load %arg1[%c0, %c0_0, %c0_1] : memref<1x16x128xf32, #tpu.memory_space<vmem>>, vector<1x16x128xf32>
    %1 = vector.shape_cast %0 : vector<1x16x128xf32> to vector<16x128xf32>
    %c0_2 = arith.constant 0 : index
    %c0_3 = arith.constant 0 : index
    %2 = vector.load %arg2[%c0_2, %c0_3] : memref<1x128xf32, #tpu.memory_space<vmem>>, vector<1x128xf32>
    %c0_4 = arith.constant 0 : index
    %c0_5 = arith.constant 0 : index
    %3 = vector.load %arg3[%c0_4, %c0_5] : memref<1x128xf32, #tpu.memory_space<vmem>>, vector<1x128xf32>
    %cst = arith.constant dense<0.000000e+00> : vector<16xf32>
    %4 = vector.multi_reduction <add>, %1, %cst [1] : vector<16x128xf32> to vector<16xf32>
    %5 = vector.shape_cast %4 : vector<16xf32> to vector<16x1xf32>
    %cst_6 = arith.constant 1.280000e+02 : f32
    %6 = vector.broadcast %cst_6 : f32 to vector<16x1xf32>
    %7 = arith.divf %5, %6 : vector<16x1xf32>
    %8 = vector.broadcast %7 : vector<16x1xf32> to vector<16x128xf32>
    %9 = arith.subf %1, %8 : vector<16x128xf32>
    %10 = arith.mulf %9, %9 : vector<16x128xf32>
    %cst_7 = arith.constant dense<0.000000e+00> : vector<16xf32>
    %11 = vector.multi_reduction <add>, %10, %cst_7 [1] : vector<16x128xf32> to vector<16xf32>
    %12 = vector.shape_cast %11 : vector<16xf32> to vector<16x1xf32>
    %cst_8 = arith.constant 1.280000e+02 : f32
    %13 = vector.broadcast %cst_8 : f32 to vector<16x1xf32>
    %14 = arith.divf %12, %13 : vector<16x1xf32>
    %cst_9 = arith.constant 9.99999974E-6 : f32
    %15 = vector.broadcast %cst_9 : f32 to vector<16x1xf32>
    %16 = arith.addf %14, %15 : vector<16x1xf32>
    %17 = math.rsqrt %16 : vector<16x1xf32>
    %18 = vector.broadcast %17 : vector<16x1xf32> to vector<16x128xf32>
    %19 = arith.mulf %9, %18 : vector<16x128xf32>
    %20 = vector.broadcast %2 : vector<1x128xf32> to vector<16x128xf32>
    %21 = arith.mulf %19, %20 : vector<16x128xf32>
    %22 = vector.broadcast %3 : vector<1x128xf32> to vector<16x128xf32>
    %23 = arith.addf %21, %22 : vector<16x128xf32>
    %c0_10 = arith.constant 0 : index
    %c0_11 = arith.constant 0 : index
    %24 = vector.load %arg4[%c0_10, %c0_11] : memref<128x64xbf16, #tpu.memory_space<vmem>>, vector<128x64xbf16>
    %25 = arith.truncf %23 : vector<16x128xf32> to vector<16x128xbf16>
    %cst_12 = arith.constant dense<0.000000e+00> : vector<16x64xf32>
    %26 = tpu.matmul %25, %24, %cst_12 {dimension_numbers = #tpu.dot_dimension_numbers<[1], [0], [0], [1], [0, 0, 1, 1], [], []>} : vector<16x128xbf16>, vector<128x64xbf16>, vector<16x64xf32> -> vector<16x64xf32>
    %c0_13 = arith.constant 0 : index
    %c0_14 = arith.constant 0 : index
    %27 = vector.load %arg5[%c0_13, %c0_14] : memref<1x64xf32, #tpu.memory_space<vmem>>, vector<1x64xf32>
    %c0_15 = arith.constant 0 : index
    %c0_16 = arith.constant 0 : index
    %28 = vector.load %arg6[%c0_15, %c0_16] : memref<1x64xf32, #tpu.memory_space<vmem>>, vector<1x64xf32>
    %cst_17 = arith.constant dense<0.000000e+00> : vector<16xf32>
    %29 = vector.multi_reduction <add>, %26, %cst_17 [1] : vector<16x64xf32> to vector<16xf32>
    %30 = vector.shape_cast %29 : vector<16xf32> to vector<16x1xf32>
    %cst_18 = arith.constant 6.400000e+01 : f32
    %31 = vector.broadcast %cst_18 : f32 to vector<16x1xf32>
    %32 = arith.divf %30, %31 : vector<16x1xf32>
    %33 = vector.broadcast %32 : vector<16x1xf32> to vector<16x64xf32>
    %34 = arith.subf %26, %33 : vector<16x64xf32>
    %35 = arith.mulf %34, %34 : vector<16x64xf32>
    %cst_19 = arith.constant dense<0.000000e+00> : vector<16xf32>
    %36 = vector.multi_reduction <add>, %35, %cst_19 [1] : vector<16x64xf32> to vector<16xf32>
    %37 = vector.shape_cast %36 : vector<16xf32> to vector<16x1xf32>
    %cst_20 = arith.constant 6.400000e+01 : f32
    %38 = vector.broadcast %cst_20 : f32 to vector<16x1xf32>
    %39 = arith.divf %37, %38 : vector<16x1xf32>
    %cst_21 = arith.constant 9.99999974E-6 : f32
    %40 = vector.broadcast %cst_21 : f32 to vector<16x1xf32>
    %41 = arith.addf %39, %40 : vector<16x1xf32>
    %42 = math.rsqrt %41 : vector<16x1xf32>
    %43 = vector.broadcast %42 : vector<16x1xf32> to vector<16x64xf32>
    %44 = arith.mulf %34, %43 : vector<16x64xf32>
    %45 = vector.broadcast %27 : vector<1x64xf32> to vector<16x64xf32>
    %46 = arith.mulf %44, %45 : vector<16x64xf32>
    %47 = vector.broadcast %28 : vector<1x64xf32> to vector<16x64xf32>
    %48 = arith.addf %46, %47 : vector<16x64xf32>
    %c0_22 = arith.constant 0 : index
    %c0_23 = arith.constant 0 : index
    %49 = vector.load %arg7[%c0_22, %c0_23] : memref<64x192xbf16, #tpu.memory_space<vmem>>, vector<64x192xbf16>
    %50 = arith.truncf %48 : vector<16x64xf32> to vector<16x64xbf16>
    %cst_24 = arith.constant dense<0.000000e+00> : vector<16x192xf32>
    %51 = tpu.matmul %50, %49, %cst_24 {dimension_numbers = #tpu.dot_dimension_numbers<[1], [0], [0], [1], [0, 0, 1, 1], [], []>} : vector<16x64xbf16>, vector<64x192xbf16>, vector<16x192xf32> -> vector<16x192xf32>
    %c0_25 = arith.constant 0 : index
    %c0_26 = arith.constant 0 : index
    %52 = vector.load %arg8[%c0_25, %c0_26] : memref<1x192xf32, #tpu.memory_space<vmem>>, vector<1x192xf32>
    %53 = vector.broadcast %52 : vector<1x192xf32> to vector<16x192xf32>
    %54 = arith.addf %51, %53 : vector<16x192xf32>
    %55 = vector.extract_strided_slice %54 {offsets = [0, 0], sizes = [16, 16], strides = [1, 1]} : vector<16x192xf32> to vector<16x16xf32>
    %cst_27 = arith.constant 2.500000e-01 : f32
    %56 = vector.broadcast %cst_27 : f32 to vector<16x16xf32>
    %57 = arith.mulf %55, %56 : vector<16x16xf32>
    %58 = arith.truncf %57 : vector<16x16xf32> to vector<16x16xbf16>
    %59 = vector.extract_strided_slice %54 {offsets = [0, 64], sizes = [16, 16], strides = [1, 1]} : vector<16x192xf32> to vector<16x16xf32>
    %60 = arith.truncf %59 : vector<16x16xf32> to vector<16x16xbf16>
    %61 = vector.extract_strided_slice %54 {offsets = [0, 128], sizes = [16, 16], strides = [1, 1]} : vector<16x192xf32> to vector<16x16xf32>
    %62 = arith.truncf %61 : vector<16x16xf32> to vector<16x16xbf16>
    %cst_28 = arith.constant dense<0.000000e+00> : vector<16x16xf32>
    %63 = tpu.matmul %58, %60, %cst_28 {dimension_numbers = #tpu.dot_dimension_numbers<[1], [1], [0], [0], [0, 0, 1, 0], [], []>} : vector<16x16xbf16>, vector<16x16xbf16>, vector<16x16xf32> -> vector<16x16xf32>
    %c0_29 = arith.constant 0 : index
    %c0_30 = arith.constant 0 : index
    %c0_31 = arith.constant 0 : index
    %64 = vector.load %arg9[%c0_29, %c0_30, %c0_31] : memref<4x16x16xf32, #tpu.memory_space<vmem>>, vector<1x16x16xf32>
    %65 = vector.shape_cast %64 : vector<1x16x16xf32> to vector<16x16xf32>
    %66 = arith.addf %63, %65 : vector<16x16xf32>
    %cst_32 = arith.constant dense<0xFF800000> : vector<16xf32>
    %67 = vector.multi_reduction <maximumf>, %66, %cst_32 [1] : vector<16x16xf32> to vector<16xf32>
    %68 = vector.shape_cast %67 : vector<16xf32> to vector<16x1xf32>
    %69 = vector.broadcast %68 : vector<16x1xf32> to vector<16x16xf32>
    %70 = arith.subf %66, %69 : vector<16x16xf32>
    %71 = math.exp %70 : vector<16x16xf32>
    %cst_33 = arith.constant dense<0.000000e+00> : vector<16xf32>
    %72 = vector.multi_reduction <add>, %71, %cst_33 [1] : vector<16x16xf32> to vector<16xf32>
    %73 = vector.shape_cast %72 : vector<16xf32> to vector<16x1xf32>
    %74 = tpu.reciprocal %73 {approx = true} : vector<16x1xf32> -> vector<16x1xf32>
    %75 = vector.broadcast %74 : vector<16x1xf32> to vector<16x16xf32>
    %76 = arith.mulf %71, %75 : vector<16x16xf32>
    %77 = arith.truncf %76 : vector<16x16xf32> to vector<16x16xbf16>
    %cst_34 = arith.constant dense<0.000000e+00> : vector<16x16xf32>
    %78 = tpu.matmul %77, %62, %cst_34 {dimension_numbers = #tpu.dot_dimension_numbers<[1], [0], [0], [1], [0, 0, 1, 1], [], []>} : vector<16x16xbf16>, vector<16x16xbf16>, vector<16x16xf32> -> vector<16x16xf32>
    %79 = vector.extract_strided_slice %54 {offsets = [0, 16], sizes = [16, 16], strides = [1, 1]} : vector<16x192xf32> to vector<16x16xf32>
    %cst_35 = arith.constant 2.500000e-01 : f32
    %80 = vector.broadcast %cst_35 : f32 to vector<16x16xf32>
    %81 = arith.mulf %79, %80 : vector<16x16xf32>
    %82 = arith.truncf %81 : vector<16x16xf32> to vector<16x16xbf16>
    %83 = vector.extract_strided_slice %54 {offsets = [0, 80], sizes = [16, 16], strides = [1, 1]} : vector<16x192xf32> to vector<16x16xf32>
    %84 = arith.truncf %83 : vector<16x16xf32> to vector<16x16xbf16>
    %85 = vector.extract_strided_slice %54 {offsets = [0, 144], sizes = [16, 16], strides = [1, 1]} : vector<16x192xf32> to vector<16x16xf32>
    %86 = arith.truncf %85 : vector<16x16xf32> to vector<16x16xbf16>
    %cst_36 = arith.constant dense<0.000000e+00> : vector<16x16xf32>
    %87 = tpu.matmul %82, %84, %cst_36 {dimension_numbers = #tpu.dot_dimension_numbers<[1], [1], [0], [0], [0, 0, 1, 0], [], []>} : vector<16x16xbf16>, vector<16x16xbf16>, vector<16x16xf32> -> vector<16x16xf32>
    %c1 = arith.constant 1 : index
    %c0_37 = arith.constant 0 : index
    %c0_38 = arith.constant 0 : index
    %88 = vector.load %arg9[%c1, %c0_37, %c0_38] : memref<4x16x16xf32, #tpu.memory_space<vmem>>, vector<1x16x16xf32>
    %89 = vector.shape_cast %88 : vector<1x16x16xf32> to vector<16x16xf32>
    %90 = arith.addf %87, %89 : vector<16x16xf32>
    %cst_39 = arith.constant dense<0xFF800000> : vector<16xf32>
    %91 = vector.multi_reduction <maximumf>, %90, %cst_39 [1] : vector<16x16xf32> to vector<16xf32>
    %92 = vector.shape_cast %91 : vector<16xf32> to vector<16x1xf32>
    %93 = vector.broadcast %92 : vector<16x1xf32> to vector<16x16xf32>
    %94 = arith.subf %90, %93 : vector<16x16xf32>
    %95 = math.exp %94 : vector<16x16xf32>
    %cst_40 = arith.constant dense<0.000000e+00> : vector<16xf32>
    %96 = vector.multi_reduction <add>, %95, %cst_40 [1] : vector<16x16xf32> to vector<16xf32>
    %97 = vector.shape_cast %96 : vector<16xf32> to vector<16x1xf32>
    %98 = tpu.reciprocal %97 {approx = true} : vector<16x1xf32> -> vector<16x1xf32>
    %99 = vector.broadcast %98 : vector<16x1xf32> to vector<16x16xf32>
    %100 = arith.mulf %95, %99 : vector<16x16xf32>
    %101 = arith.truncf %100 : vector<16x16xf32> to vector<16x16xbf16>
    %cst_41 = arith.constant dense<0.000000e+00> : vector<16x16xf32>
    %102 = tpu.matmul %101, %86, %cst_41 {dimension_numbers = #tpu.dot_dimension_numbers<[1], [0], [0], [1], [0, 0, 1, 1], [], []>} : vector<16x16xbf16>, vector<16x16xbf16>, vector<16x16xf32> -> vector<16x16xf32>
    %103 = vector.extract_strided_slice %54 {offsets = [0, 32], sizes = [16, 16], strides = [1, 1]} : vector<16x192xf32> to vector<16x16xf32>
    %cst_42 = arith.constant 2.500000e-01 : f32
    %104 = vector.broadcast %cst_42 : f32 to vector<16x16xf32>
    %105 = arith.mulf %103, %104 : vector<16x16xf32>
    %106 = arith.truncf %105 : vector<16x16xf32> to vector<16x16xbf16>
    %107 = vector.extract_strided_slice %54 {offsets = [0, 96], sizes = [16, 16], strides = [1, 1]} : vector<16x192xf32> to vector<16x16xf32>
    %108 = arith.truncf %107 : vector<16x16xf32> to vector<16x16xbf16>
    %109 = vector.extract_strided_slice %54 {offsets = [0, 160], sizes = [16, 16], strides = [1, 1]} : vector<16x192xf32> to vector<16x16xf32>
    %110 = arith.truncf %109 : vector<16x16xf32> to vector<16x16xbf16>
    %cst_43 = arith.constant dense<0.000000e+00> : vector<16x16xf32>
    %111 = tpu.matmul %106, %108, %cst_43 {dimension_numbers = #tpu.dot_dimension_numbers<[1], [1], [0], [0], [0, 0, 1, 0], [], []>} : vector<16x16xbf16>, vector<16x16xbf16>, vector<16x16xf32> -> vector<16x16xf32>
    %c2 = arith.constant 2 : index
    %c0_44 = arith.constant 0 : index
    %c0_45 = arith.constant 0 : index
    %112 = vector.load %arg9[%c2, %c0_44, %c0_45] : memref<4x16x16xf32, #tpu.memory_space<vmem>>, vector<1x16x16xf32>
    %113 = vector.shape_cast %112 : vector<1x16x16xf32> to vector<16x16xf32>
    %114 = arith.addf %111, %113 : vector<16x16xf32>
    %cst_46 = arith.constant dense<0xFF800000> : vector<16xf32>
    %115 = vector.multi_reduction <maximumf>, %114, %cst_46 [1] : vector<16x16xf32> to vector<16xf32>
    %116 = vector.shape_cast %115 : vector<16xf32> to vector<16x1xf32>
    %117 = vector.broadcast %116 : vector<16x1xf32> to vector<16x16xf32>
    %118 = arith.subf %114, %117 : vector<16x16xf32>
    %119 = math.exp %118 : vector<16x16xf32>
    %cst_47 = arith.constant dense<0.000000e+00> : vector<16xf32>
    %120 = vector.multi_reduction <add>, %119, %cst_47 [1] : vector<16x16xf32> to vector<16xf32>
    %121 = vector.shape_cast %120 : vector<16xf32> to vector<16x1xf32>
    %122 = tpu.reciprocal %121 {approx = true} : vector<16x1xf32> -> vector<16x1xf32>
    %123 = vector.broadcast %122 : vector<16x1xf32> to vector<16x16xf32>
    %124 = arith.mulf %119, %123 : vector<16x16xf32>
    %125 = arith.truncf %124 : vector<16x16xf32> to vector<16x16xbf16>
    %cst_48 = arith.constant dense<0.000000e+00> : vector<16x16xf32>
    %126 = tpu.matmul %125, %110, %cst_48 {dimension_numbers = #tpu.dot_dimension_numbers<[1], [0], [0], [1], [0, 0, 1, 1], [], []>} : vector<16x16xbf16>, vector<16x16xbf16>, vector<16x16xf32> -> vector<16x16xf32>
    %127 = vector.extract_strided_slice %54 {offsets = [0, 48], sizes = [16, 16], strides = [1, 1]} : vector<16x192xf32> to vector<16x16xf32>
    %cst_49 = arith.constant 2.500000e-01 : f32
    %128 = vector.broadcast %cst_49 : f32 to vector<16x16xf32>
    %129 = arith.mulf %127, %128 : vector<16x16xf32>
    %130 = arith.truncf %129 : vector<16x16xf32> to vector<16x16xbf16>
    %131 = vector.extract_strided_slice %54 {offsets = [0, 112], sizes = [16, 16], strides = [1, 1]} : vector<16x192xf32> to vector<16x16xf32>
    %132 = arith.truncf %131 : vector<16x16xf32> to vector<16x16xbf16>
    %133 = vector.extract_strided_slice %54 {offsets = [0, 176], sizes = [16, 16], strides = [1, 1]} : vector<16x192xf32> to vector<16x16xf32>
    %134 = arith.truncf %133 : vector<16x16xf32> to vector<16x16xbf16>
    %cst_50 = arith.constant dense<0.000000e+00> : vector<16x16xf32>
    %135 = tpu.matmul %130, %132, %cst_50 {dimension_numbers = #tpu.dot_dimension_numbers<[1], [1], [0], [0], [0, 0, 1, 0], [], []>} : vector<16x16xbf16>, vector<16x16xbf16>, vector<16x16xf32> -> vector<16x16xf32>
    %c3 = arith.constant 3 : index
    %c0_51 = arith.constant 0 : index
    %c0_52 = arith.constant 0 : index
    %136 = vector.load %arg9[%c3, %c0_51, %c0_52] : memref<4x16x16xf32, #tpu.memory_space<vmem>>, vector<1x16x16xf32>
    %137 = vector.shape_cast %136 : vector<1x16x16xf32> to vector<16x16xf32>
    %138 = arith.addf %135, %137 : vector<16x16xf32>
    %cst_53 = arith.constant dense<0xFF800000> : vector<16xf32>
    %139 = vector.multi_reduction <maximumf>, %138, %cst_53 [1] : vector<16x16xf32> to vector<16xf32>
    %140 = vector.shape_cast %139 : vector<16xf32> to vector<16x1xf32>
    %141 = vector.broadcast %140 : vector<16x1xf32> to vector<16x16xf32>
    %142 = arith.subf %138, %141 : vector<16x16xf32>
    %143 = math.exp %142 : vector<16x16xf32>
    %cst_54 = arith.constant dense<0.000000e+00> : vector<16xf32>
    %144 = vector.multi_reduction <add>, %143, %cst_54 [1] : vector<16x16xf32> to vector<16xf32>
    %145 = vector.shape_cast %144 : vector<16xf32> to vector<16x1xf32>
    %146 = tpu.reciprocal %145 {approx = true} : vector<16x1xf32> -> vector<16x1xf32>
    %147 = vector.broadcast %146 : vector<16x1xf32> to vector<16x16xf32>
    %148 = arith.mulf %143, %147 : vector<16x16xf32>
    %149 = arith.truncf %148 : vector<16x16xf32> to vector<16x16xbf16>
    %cst_55 = arith.constant dense<0.000000e+00> : vector<16x16xf32>
    %150 = tpu.matmul %149, %134, %cst_55 {dimension_numbers = #tpu.dot_dimension_numbers<[1], [0], [0], [1], [0, 0, 1, 1], [], []>} : vector<16x16xbf16>, vector<16x16xbf16>, vector<16x16xf32> -> vector<16x16xf32>
    %151 = tpu.concatenate %78, %102, %126, %150 in 1 : vector<16x16xf32>, vector<16x16xf32>, vector<16x16xf32>, vector<16x16xf32> -> vector<16x64xf32>
    %c0_56 = arith.constant 0 : index
    %c0_57 = arith.constant 0 : index
    %152 = vector.load %arg10[%c0_56, %c0_57] : memref<64x64xbf16, #tpu.memory_space<vmem>>, vector<64x64xbf16>
    %153 = arith.truncf %151 : vector<16x64xf32> to vector<16x64xbf16>
    %cst_58 = arith.constant dense<0.000000e+00> : vector<16x64xf32>
    %154 = tpu.matmul %153, %152, %cst_58 {dimension_numbers = #tpu.dot_dimension_numbers<[1], [0], [0], [1], [0, 0, 1, 1], [], []>} : vector<16x64xbf16>, vector<64x64xbf16>, vector<16x64xf32> -> vector<16x64xf32>
    %155 = arith.addf %26, %154 : vector<16x64xf32>
    %c0_59 = arith.constant 0 : index
    %c0_60 = arith.constant 0 : index
    %156 = vector.load %arg11[%c0_59, %c0_60] : memref<1x64xf32, #tpu.memory_space<vmem>>, vector<1x64xf32>
    %157 = vector.broadcast %156 : vector<1x64xf32> to vector<16x64xf32>
    %158 = arith.addf %155, %157 : vector<16x64xf32>
    %c0_61 = arith.constant 0 : index
    %c0_62 = arith.constant 0 : index
    %159 = vector.load %arg12[%c0_61, %c0_62] : memref<1x64xf32, #tpu.memory_space<vmem>>, vector<1x64xf32>
    %c0_63 = arith.constant 0 : index
    %c0_64 = arith.constant 0 : index
    %160 = vector.load %arg13[%c0_63, %c0_64] : memref<1x64xf32, #tpu.memory_space<vmem>>, vector<1x64xf32>
    %cst_65 = arith.constant dense<0.000000e+00> : vector<16xf32>
    %161 = vector.multi_reduction <add>, %158, %cst_65 [1] : vector<16x64xf32> to vector<16xf32>
    %162 = vector.shape_cast %161 : vector<16xf32> to vector<16x1xf32>
    %cst_66 = arith.constant 6.400000e+01 : f32
    %163 = vector.broadcast %cst_66 : f32 to vector<16x1xf32>
    %164 = arith.divf %162, %163 : vector<16x1xf32>
    %165 = vector.broadcast %164 : vector<16x1xf32> to vector<16x64xf32>
    %166 = arith.subf %158, %165 : vector<16x64xf32>
    %167 = arith.mulf %166, %166 : vector<16x64xf32>
    %cst_67 = arith.constant dense<0.000000e+00> : vector<16xf32>
    %168 = vector.multi_reduction <add>, %167, %cst_67 [1] : vector<16x64xf32> to vector<16xf32>
    %169 = vector.shape_cast %168 : vector<16xf32> to vector<16x1xf32>
    %cst_68 = arith.constant 6.400000e+01 : f32
    %170 = vector.broadcast %cst_68 : f32 to vector<16x1xf32>
    %171 = arith.divf %169, %170 : vector<16x1xf32>
    %cst_69 = arith.constant 9.99999974E-6 : f32
    %172 = vector.broadcast %cst_69 : f32 to vector<16x1xf32>
    %173 = arith.addf %171, %172 : vector<16x1xf32>
    %174 = math.rsqrt %173 : vector<16x1xf32>
    %175 = vector.broadcast %174 : vector<16x1xf32> to vector<16x64xf32>
    %176 = arith.mulf %166, %175 : vector<16x64xf32>
    %177 = vector.broadcast %159 : vector<1x64xf32> to vector<16x64xf32>
    %178 = arith.mulf %176, %177 : vector<16x64xf32>
    %179 = vector.broadcast %160 : vector<1x64xf32> to vector<16x64xf32>
    %180 = arith.addf %178, %179 : vector<16x64xf32>
    %c0_70 = arith.constant 0 : index
    %c0_71 = arith.constant 0 : index
    %181 = vector.load %arg14[%c0_70, %c0_71] : memref<64x256xbf16, #tpu.memory_space<vmem>>, vector<64x256xbf16>
    %182 = arith.truncf %180 : vector<16x64xf32> to vector<16x64xbf16>
    %cst_72 = arith.constant dense<0.000000e+00> : vector<16x256xf32>
    %183 = tpu.matmul %182, %181, %cst_72 {dimension_numbers = #tpu.dot_dimension_numbers<[1], [0], [0], [1], [0, 0, 1, 1], [], []>} : vector<16x64xbf16>, vector<64x256xbf16>, vector<16x256xf32> -> vector<16x256xf32>
    %c0_73 = arith.constant 0 : index
    %c0_74 = arith.constant 0 : index
    %184 = vector.load %arg15[%c0_73, %c0_74] : memref<1x256xf32, #tpu.memory_space<vmem>>, vector<1x256xf32>
    %185 = vector.broadcast %184 : vector<1x256xf32> to vector<16x256xf32>
    %186 = arith.addf %183, %185 : vector<16x256xf32>
    %cst_75 = arith.constant 5.000000e-01 : f32
    %187 = vector.broadcast %cst_75 : f32 to vector<16x256xf32>
    %188 = arith.mulf %187, %186 : vector<16x256xf32>
    %cst_76 = arith.constant 0.707106769 : f32
    %189 = vector.broadcast %cst_76 : f32 to vector<16x256xf32>
    %190 = arith.mulf %186, %189 : vector<16x256xf32>
    %cst_77 = arith.constant 0.000000e+00 : f32
    %191 = vector.broadcast %cst_77 : f32 to vector<16x256xf32>
    %192 = arith.cmpf oge, %190, %191 : vector<16x256xf32>
    %cst_78 = arith.constant 1.000000e+00 : f32
    %cst_79 = arith.constant -1.000000e+00 : f32
    %193 = vector.broadcast %cst_78 : f32 to vector<16x256xf32>
    %194 = vector.broadcast %cst_79 : f32 to vector<16x256xf32>
    %195 = arith.select %192, %193, %194 : vector<16x256xi1>, vector<16x256xf32>
    %196 = math.absf %190 : vector<16x256xf32>
    %cst_80 = arith.constant 0.327591091 : f32
    %197 = vector.broadcast %cst_80 : f32 to vector<16x256xf32>
    %198 = arith.mulf %197, %196 : vector<16x256xf32>
    %cst_81 = arith.constant 1.000000e+00 : f32
    %199 = vector.broadcast %cst_81 : f32 to vector<16x256xf32>
    %200 = arith.addf %199, %198 : vector<16x256xf32>
    %cst_82 = arith.constant 1.000000e+00 : f32
    %201 = vector.broadcast %cst_82 : f32 to vector<16x256xf32>
    %202 = arith.divf %201, %200 : vector<16x256xf32>
    %cst_83 = arith.constant 1.06140542 : f32
    %203 = vector.broadcast %cst_83 : f32 to vector<16x256xf32>
    %204 = arith.mulf %203, %202 : vector<16x256xf32>
    %cst_84 = arith.constant -1.45315206 : f32
    %205 = vector.broadcast %cst_84 : f32 to vector<16x256xf32>
    %206 = arith.addf %204, %205 : vector<16x256xf32>
    %207 = arith.mulf %206, %202 : vector<16x256xf32>
    %cst_85 = arith.constant 1.42141378 : f32
    %208 = vector.broadcast %cst_85 : f32 to vector<16x256xf32>
    %209 = arith.addf %207, %208 : vector<16x256xf32>
    %210 = arith.mulf %209, %202 : vector<16x256xf32>
    %cst_86 = arith.constant -0.284496725 : f32
    %211 = vector.broadcast %cst_86 : f32 to vector<16x256xf32>
    %212 = arith.addf %210, %211 : vector<16x256xf32>
    %213 = arith.mulf %212, %202 : vector<16x256xf32>
    %cst_87 = arith.constant 0.254829586 : f32
    %214 = vector.broadcast %cst_87 : f32 to vector<16x256xf32>
    %215 = arith.addf %213, %214 : vector<16x256xf32>
    %216 = arith.mulf %215, %202 : vector<16x256xf32>
    %cst_88 = arith.constant 0.000000e+00 : f32
    %217 = vector.broadcast %cst_88 : f32 to vector<16x256xf32>
    %218 = arith.subf %217, %196 : vector<16x256xf32>
    %219 = arith.mulf %218, %196 : vector<16x256xf32>
    %220 = math.exp %219 : vector<16x256xf32>
    %221 = arith.mulf %216, %220 : vector<16x256xf32>
    %cst_89 = arith.constant 1.000000e+00 : f32
    %222 = vector.broadcast %cst_89 : f32 to vector<16x256xf32>
    %223 = arith.subf %222, %221 : vector<16x256xf32>
    %224 = arith.mulf %195, %223 : vector<16x256xf32>
    %cst_90 = arith.constant 1.000000e+00 : f32
    %225 = vector.broadcast %cst_90 : f32 to vector<16x256xf32>
    %226 = arith.addf %225, %224 : vector<16x256xf32>
    %227 = arith.mulf %188, %226 : vector<16x256xf32>
    %c0_91 = arith.constant 0 : index
    %c0_92 = arith.constant 0 : index
    %228 = vector.load %arg16[%c0_91, %c0_92] : memref<256x64xbf16, #tpu.memory_space<vmem>>, vector<256x64xbf16>
    %229 = arith.truncf %227 : vector<16x256xf32> to vector<16x256xbf16>
    %cst_93 = arith.constant dense<0.000000e+00> : vector<16x64xf32>
    %230 = tpu.matmul %229, %228, %cst_93 {dimension_numbers = #tpu.dot_dimension_numbers<[1], [0], [0], [1], [0, 0, 1, 1], [], []>} : vector<16x256xbf16>, vector<256x64xbf16>, vector<16x64xf32> -> vector<16x64xf32>
    %231 = arith.addf %158, %230 : vector<16x64xf32>
    %c0_94 = arith.constant 0 : index
    %c0_95 = arith.constant 0 : index
    %232 = vector.load %arg17[%c0_94, %c0_95] : memref<1x64xf32, #tpu.memory_space<vmem>>, vector<1x64xf32>
    %233 = vector.broadcast %232 : vector<1x64xf32> to vector<16x64xf32>
    %234 = arith.addf %231, %233 : vector<16x64xf32>
    %c0_96 = arith.constant 0 : index
    %c0_97 = arith.constant 0 : index
    %235 = vector.load %arg18[%c0_96, %c0_97] : memref<1x64xf32, #tpu.memory_space<vmem>>, vector<1x64xf32>
    %c0_98 = arith.constant 0 : index
    %c0_99 = arith.constant 0 : index
    %236 = vector.load %arg19[%c0_98, %c0_99] : memref<1x64xf32, #tpu.memory_space<vmem>>, vector<1x64xf32>
    %cst_100 = arith.constant dense<0.000000e+00> : vector<16xf32>
    %237 = vector.multi_reduction <add>, %234, %cst_100 [1] : vector<16x64xf32> to vector<16xf32>
    %238 = vector.shape_cast %237 : vector<16xf32> to vector<16x1xf32>
    %cst_101 = arith.constant 6.400000e+01 : f32
    %239 = vector.broadcast %cst_101 : f32 to vector<16x1xf32>
    %240 = arith.divf %238, %239 : vector<16x1xf32>
    %241 = vector.broadcast %240 : vector<16x1xf32> to vector<16x64xf32>
    %242 = arith.subf %234, %241 : vector<16x64xf32>
    %243 = arith.mulf %242, %242 : vector<16x64xf32>
    %cst_102 = arith.constant dense<0.000000e+00> : vector<16xf32>
    %244 = vector.multi_reduction <add>, %243, %cst_102 [1] : vector<16x64xf32> to vector<16xf32>
    %245 = vector.shape_cast %244 : vector<16xf32> to vector<16x1xf32>
    %cst_103 = arith.constant 6.400000e+01 : f32
    %246 = vector.broadcast %cst_103 : f32 to vector<16x1xf32>
    %247 = arith.divf %245, %246 : vector<16x1xf32>
    %cst_104 = arith.constant 9.99999974E-6 : f32
    %248 = vector.broadcast %cst_104 : f32 to vector<16x1xf32>
    %249 = arith.addf %247, %248 : vector<16x1xf32>
    %250 = math.rsqrt %249 : vector<16x1xf32>
    %251 = vector.broadcast %250 : vector<16x1xf32> to vector<16x64xf32>
    %252 = arith.mulf %242, %251 : vector<16x64xf32>
    %253 = vector.broadcast %235 : vector<1x64xf32> to vector<16x64xf32>
    %254 = arith.mulf %252, %253 : vector<16x64xf32>
    %255 = vector.broadcast %236 : vector<1x64xf32> to vector<16x64xf32>
    %256 = arith.addf %254, %255 : vector<16x64xf32>
    %c0_105 = arith.constant 0 : index
    %c0_106 = arith.constant 0 : index
    %257 = vector.load %arg20[%c0_105, %c0_106] : memref<64x192xbf16, #tpu.memory_space<vmem>>, vector<64x192xbf16>
    %258 = arith.truncf %256 : vector<16x64xf32> to vector<16x64xbf16>
    %cst_107 = arith.constant dense<0.000000e+00> : vector<16x192xf32>
    %259 = tpu.matmul %258, %257, %cst_107 {dimension_numbers = #tpu.dot_dimension_numbers<[1], [0], [0], [1], [0, 0, 1, 1], [], []>} : vector<16x64xbf16>, vector<64x192xbf16>, vector<16x192xf32> -> vector<16x192xf32>
    %c0_108 = arith.constant 0 : index
    %c0_109 = arith.constant 0 : index
    %260 = vector.load %arg21[%c0_108, %c0_109] : memref<1x192xf32, #tpu.memory_space<vmem>>, vector<1x192xf32>
    %261 = vector.broadcast %260 : vector<1x192xf32> to vector<16x192xf32>
    %262 = arith.addf %259, %261 : vector<16x192xf32>
    %263 = vector.extract_strided_slice %262 {offsets = [0, 0], sizes = [16, 16], strides = [1, 1]} : vector<16x192xf32> to vector<16x16xf32>
    %cst_110 = arith.constant 2.500000e-01 : f32
    %264 = vector.broadcast %cst_110 : f32 to vector<16x16xf32>
    %265 = arith.mulf %263, %264 : vector<16x16xf32>
    %266 = arith.truncf %265 : vector<16x16xf32> to vector<16x16xbf16>
    %267 = vector.extract_strided_slice %262 {offsets = [0, 64], sizes = [16, 16], strides = [1, 1]} : vector<16x192xf32> to vector<16x16xf32>
    %268 = arith.truncf %267 : vector<16x16xf32> to vector<16x16xbf16>
    %269 = vector.extract_strided_slice %262 {offsets = [0, 128], sizes = [16, 16], strides = [1, 1]} : vector<16x192xf32> to vector<16x16xf32>
    %270 = arith.truncf %269 : vector<16x16xf32> to vector<16x16xbf16>
    %cst_111 = arith.constant dense<0.000000e+00> : vector<16x16xf32>
    %271 = tpu.matmul %266, %268, %cst_111 {dimension_numbers = #tpu.dot_dimension_numbers<[1], [1], [0], [0], [0, 0, 1, 0], [], []>} : vector<16x16xbf16>, vector<16x16xbf16>, vector<16x16xf32> -> vector<16x16xf32>
    %c0_112 = arith.constant 0 : index
    %c0_113 = arith.constant 0 : index
    %c0_114 = arith.constant 0 : index
    %272 = vector.load %arg22[%c0_112, %c0_113, %c0_114] : memref<4x16x16xf32, #tpu.memory_space<vmem>>, vector<1x16x16xf32>
    %273 = vector.shape_cast %272 : vector<1x16x16xf32> to vector<16x16xf32>
    %274 = arith.addf %271, %273 : vector<16x16xf32>
    %cst_115 = arith.constant dense<0xFF800000> : vector<16xf32>
    %275 = vector.multi_reduction <maximumf>, %274, %cst_115 [1] : vector<16x16xf32> to vector<16xf32>
    %276 = vector.shape_cast %275 : vector<16xf32> to vector<16x1xf32>
    %277 = vector.broadcast %276 : vector<16x1xf32> to vector<16x16xf32>
    %278 = arith.subf %274, %277 : vector<16x16xf32>
    %279 = math.exp %278 : vector<16x16xf32>
    %cst_116 = arith.constant dense<0.000000e+00> : vector<16xf32>
    %280 = vector.multi_reduction <add>, %279, %cst_116 [1] : vector<16x16xf32> to vector<16xf32>
    %281 = vector.shape_cast %280 : vector<16xf32> to vector<16x1xf32>
    %282 = tpu.reciprocal %281 {approx = true} : vector<16x1xf32> -> vector<16x1xf32>
    %283 = vector.broadcast %282 : vector<16x1xf32> to vector<16x16xf32>
    %284 = arith.mulf %279, %283 : vector<16x16xf32>
    %285 = arith.truncf %284 : vector<16x16xf32> to vector<16x16xbf16>
    %cst_117 = arith.constant dense<0.000000e+00> : vector<16x16xf32>
    %286 = tpu.matmul %285, %270, %cst_117 {dimension_numbers = #tpu.dot_dimension_numbers<[1], [0], [0], [1], [0, 0, 1, 1], [], []>} : vector<16x16xbf16>, vector<16x16xbf16>, vector<16x16xf32> -> vector<16x16xf32>
    %287 = vector.extract_strided_slice %262 {offsets = [0, 16], sizes = [16, 16], strides = [1, 1]} : vector<16x192xf32> to vector<16x16xf32>
    %cst_118 = arith.constant 2.500000e-01 : f32
    %288 = vector.broadcast %cst_118 : f32 to vector<16x16xf32>
    %289 = arith.mulf %287, %288 : vector<16x16xf32>
    %290 = arith.truncf %289 : vector<16x16xf32> to vector<16x16xbf16>
    %291 = vector.extract_strided_slice %262 {offsets = [0, 80], sizes = [16, 16], strides = [1, 1]} : vector<16x192xf32> to vector<16x16xf32>
    %292 = arith.truncf %291 : vector<16x16xf32> to vector<16x16xbf16>
    %293 = vector.extract_strided_slice %262 {offsets = [0, 144], sizes = [16, 16], strides = [1, 1]} : vector<16x192xf32> to vector<16x16xf32>
    %294 = arith.truncf %293 : vector<16x16xf32> to vector<16x16xbf16>
    %cst_119 = arith.constant dense<0.000000e+00> : vector<16x16xf32>
    %295 = tpu.matmul %290, %292, %cst_119 {dimension_numbers = #tpu.dot_dimension_numbers<[1], [1], [0], [0], [0, 0, 1, 0], [], []>} : vector<16x16xbf16>, vector<16x16xbf16>, vector<16x16xf32> -> vector<16x16xf32>
    %c1_120 = arith.constant 1 : index
    %c0_121 = arith.constant 0 : index
    %c0_122 = arith.constant 0 : index
    %296 = vector.load %arg22[%c1_120, %c0_121, %c0_122] : memref<4x16x16xf32, #tpu.memory_space<vmem>>, vector<1x16x16xf32>
    %297 = vector.shape_cast %296 : vector<1x16x16xf32> to vector<16x16xf32>
    %298 = arith.addf %295, %297 : vector<16x16xf32>
    %cst_123 = arith.constant dense<0xFF800000> : vector<16xf32>
    %299 = vector.multi_reduction <maximumf>, %298, %cst_123 [1] : vector<16x16xf32> to vector<16xf32>
    %300 = vector.shape_cast %299 : vector<16xf32> to vector<16x1xf32>
    %301 = vector.broadcast %300 : vector<16x1xf32> to vector<16x16xf32>
    %302 = arith.subf %298, %301 : vector<16x16xf32>
    %303 = math.exp %302 : vector<16x16xf32>
    %cst_124 = arith.constant dense<0.000000e+00> : vector<16xf32>
    %304 = vector.multi_reduction <add>, %303, %cst_124 [1] : vector<16x16xf32> to vector<16xf32>
    %305 = vector.shape_cast %304 : vector<16xf32> to vector<16x1xf32>
    %306 = tpu.reciprocal %305 {approx = true} : vector<16x1xf32> -> vector<16x1xf32>
    %307 = vector.broadcast %306 : vector<16x1xf32> to vector<16x16xf32>
    %308 = arith.mulf %303, %307 : vector<16x16xf32>
    %309 = arith.truncf %308 : vector<16x16xf32> to vector<16x16xbf16>
    %cst_125 = arith.constant dense<0.000000e+00> : vector<16x16xf32>
    %310 = tpu.matmul %309, %294, %cst_125 {dimension_numbers = #tpu.dot_dimension_numbers<[1], [0], [0], [1], [0, 0, 1, 1], [], []>} : vector<16x16xbf16>, vector<16x16xbf16>, vector<16x16xf32> -> vector<16x16xf32>
    %311 = vector.extract_strided_slice %262 {offsets = [0, 32], sizes = [16, 16], strides = [1, 1]} : vector<16x192xf32> to vector<16x16xf32>
    %cst_126 = arith.constant 2.500000e-01 : f32
    %312 = vector.broadcast %cst_126 : f32 to vector<16x16xf32>
    %313 = arith.mulf %311, %312 : vector<16x16xf32>
    %314 = arith.truncf %313 : vector<16x16xf32> to vector<16x16xbf16>
    %315 = vector.extract_strided_slice %262 {offsets = [0, 96], sizes = [16, 16], strides = [1, 1]} : vector<16x192xf32> to vector<16x16xf32>
    %316 = arith.truncf %315 : vector<16x16xf32> to vector<16x16xbf16>
    %317 = vector.extract_strided_slice %262 {offsets = [0, 160], sizes = [16, 16], strides = [1, 1]} : vector<16x192xf32> to vector<16x16xf32>
    %318 = arith.truncf %317 : vector<16x16xf32> to vector<16x16xbf16>
    %cst_127 = arith.constant dense<0.000000e+00> : vector<16x16xf32>
    %319 = tpu.matmul %314, %316, %cst_127 {dimension_numbers = #tpu.dot_dimension_numbers<[1], [1], [0], [0], [0, 0, 1, 0], [], []>} : vector<16x16xbf16>, vector<16x16xbf16>, vector<16x16xf32> -> vector<16x16xf32>
    %c2_128 = arith.constant 2 : index
    %c0_129 = arith.constant 0 : index
    %c0_130 = arith.constant 0 : index
    %320 = vector.load %arg22[%c2_128, %c0_129, %c0_130] : memref<4x16x16xf32, #tpu.memory_space<vmem>>, vector<1x16x16xf32>
    %321 = vector.shape_cast %320 : vector<1x16x16xf32> to vector<16x16xf32>
    %322 = arith.addf %319, %321 : vector<16x16xf32>
    %cst_131 = arith.constant dense<0xFF800000> : vector<16xf32>
    %323 = vector.multi_reduction <maximumf>, %322, %cst_131 [1] : vector<16x16xf32> to vector<16xf32>
    %324 = vector.shape_cast %323 : vector<16xf32> to vector<16x1xf32>
    %325 = vector.broadcast %324 : vector<16x1xf32> to vector<16x16xf32>
    %326 = arith.subf %322, %325 : vector<16x16xf32>
    %327 = math.exp %326 : vector<16x16xf32>
    %cst_132 = arith.constant dense<0.000000e+00> : vector<16xf32>
    %328 = vector.multi_reduction <add>, %327, %cst_132 [1] : vector<16x16xf32> to vector<16xf32>
    %329 = vector.shape_cast %328 : vector<16xf32> to vector<16x1xf32>
    %330 = tpu.reciprocal %329 {approx = true} : vector<16x1xf32> -> vector<16x1xf32>
    %331 = vector.broadcast %330 : vector<16x1xf32> to vector<16x16xf32>
    %332 = arith.mulf %327, %331 : vector<16x16xf32>
    %333 = arith.truncf %332 : vector<16x16xf32> to vector<16x16xbf16>
    %cst_133 = arith.constant dense<0.000000e+00> : vector<16x16xf32>
    %334 = tpu.matmul %333, %318, %cst_133 {dimension_numbers = #tpu.dot_dimension_numbers<[1], [0], [0], [1], [0, 0, 1, 1], [], []>} : vector<16x16xbf16>, vector<16x16xbf16>, vector<16x16xf32> -> vector<16x16xf32>
    %335 = vector.extract_strided_slice %262 {offsets = [0, 48], sizes = [16, 16], strides = [1, 1]} : vector<16x192xf32> to vector<16x16xf32>
    %cst_134 = arith.constant 2.500000e-01 : f32
    %336 = vector.broadcast %cst_134 : f32 to vector<16x16xf32>
    %337 = arith.mulf %335, %336 : vector<16x16xf32>
    %338 = arith.truncf %337 : vector<16x16xf32> to vector<16x16xbf16>
    %339 = vector.extract_strided_slice %262 {offsets = [0, 112], sizes = [16, 16], strides = [1, 1]} : vector<16x192xf32> to vector<16x16xf32>
    %340 = arith.truncf %339 : vector<16x16xf32> to vector<16x16xbf16>
    %341 = vector.extract_strided_slice %262 {offsets = [0, 176], sizes = [16, 16], strides = [1, 1]} : vector<16x192xf32> to vector<16x16xf32>
    %342 = arith.truncf %341 : vector<16x16xf32> to vector<16x16xbf16>
    %cst_135 = arith.constant dense<0.000000e+00> : vector<16x16xf32>
    %343 = tpu.matmul %338, %340, %cst_135 {dimension_numbers = #tpu.dot_dimension_numbers<[1], [1], [0], [0], [0, 0, 1, 0], [], []>} : vector<16x16xbf16>, vector<16x16xbf16>, vector<16x16xf32> -> vector<16x16xf32>
    %c3_136 = arith.constant 3 : index
    %c0_137 = arith.constant 0 : index
    %c0_138 = arith.constant 0 : index
    %344 = vector.load %arg22[%c3_136, %c0_137, %c0_138] : memref<4x16x16xf32, #tpu.memory_space<vmem>>, vector<1x16x16xf32>
    %345 = vector.shape_cast %344 : vector<1x16x16xf32> to vector<16x16xf32>
    %346 = arith.addf %343, %345 : vector<16x16xf32>
    %cst_139 = arith.constant dense<0xFF800000> : vector<16xf32>
    %347 = vector.multi_reduction <maximumf>, %346, %cst_139 [1] : vector<16x16xf32> to vector<16xf32>
    %348 = vector.shape_cast %347 : vector<16xf32> to vector<16x1xf32>
    %349 = vector.broadcast %348 : vector<16x1xf32> to vector<16x16xf32>
    %350 = arith.subf %346, %349 : vector<16x16xf32>
    %351 = math.exp %350 : vector<16x16xf32>
    %cst_140 = arith.constant dense<0.000000e+00> : vector<16xf32>
    %352 = vector.multi_reduction <add>, %351, %cst_140 [1] : vector<16x16xf32> to vector<16xf32>
    %353 = vector.shape_cast %352 : vector<16xf32> to vector<16x1xf32>
    %354 = tpu.reciprocal %353 {approx = true} : vector<16x1xf32> -> vector<16x1xf32>
    %355 = vector.broadcast %354 : vector<16x1xf32> to vector<16x16xf32>
    %356 = arith.mulf %351, %355 : vector<16x16xf32>
    %357 = arith.truncf %356 : vector<16x16xf32> to vector<16x16xbf16>
    %cst_141 = arith.constant dense<0.000000e+00> : vector<16x16xf32>
    %358 = tpu.matmul %357, %342, %cst_141 {dimension_numbers = #tpu.dot_dimension_numbers<[1], [0], [0], [1], [0, 0, 1, 1], [], []>} : vector<16x16xbf16>, vector<16x16xbf16>, vector<16x16xf32> -> vector<16x16xf32>
    %359 = tpu.concatenate %286, %310, %334, %358 in 1 : vector<16x16xf32>, vector<16x16xf32>, vector<16x16xf32>, vector<16x16xf32> -> vector<16x64xf32>
    %c0_142 = arith.constant 0 : index
    %c0_143 = arith.constant 0 : index
    %360 = vector.load %arg23[%c0_142, %c0_143] : memref<64x64xbf16, #tpu.memory_space<vmem>>, vector<64x64xbf16>
    %361 = arith.truncf %359 : vector<16x64xf32> to vector<16x64xbf16>
    %cst_144 = arith.constant dense<0.000000e+00> : vector<16x64xf32>
    %362 = tpu.matmul %361, %360, %cst_144 {dimension_numbers = #tpu.dot_dimension_numbers<[1], [0], [0], [1], [0, 0, 1, 1], [], []>} : vector<16x64xbf16>, vector<64x64xbf16>, vector<16x64xf32> -> vector<16x64xf32>
    %363 = arith.addf %234, %362 : vector<16x64xf32>
    %c0_145 = arith.constant 0 : index
    %c0_146 = arith.constant 0 : index
    %364 = vector.load %arg24[%c0_145, %c0_146] : memref<1x64xf32, #tpu.memory_space<vmem>>, vector<1x64xf32>
    %365 = vector.broadcast %364 : vector<1x64xf32> to vector<16x64xf32>
    %366 = arith.addf %363, %365 : vector<16x64xf32>
    %c0_147 = arith.constant 0 : index
    %c0_148 = arith.constant 0 : index
    %367 = vector.load %arg25[%c0_147, %c0_148] : memref<1x64xf32, #tpu.memory_space<vmem>>, vector<1x64xf32>
    %c0_149 = arith.constant 0 : index
    %c0_150 = arith.constant 0 : index
    %368 = vector.load %arg26[%c0_149, %c0_150] : memref<1x64xf32, #tpu.memory_space<vmem>>, vector<1x64xf32>
    %cst_151 = arith.constant dense<0.000000e+00> : vector<16xf32>
    %369 = vector.multi_reduction <add>, %366, %cst_151 [1] : vector<16x64xf32> to vector<16xf32>
    %370 = vector.shape_cast %369 : vector<16xf32> to vector<16x1xf32>
    %cst_152 = arith.constant 6.400000e+01 : f32
    %371 = vector.broadcast %cst_152 : f32 to vector<16x1xf32>
    %372 = arith.divf %370, %371 : vector<16x1xf32>
    %373 = vector.broadcast %372 : vector<16x1xf32> to vector<16x64xf32>
    %374 = arith.subf %366, %373 : vector<16x64xf32>
    %375 = arith.mulf %374, %374 : vector<16x64xf32>
    %cst_153 = arith.constant dense<0.000000e+00> : vector<16xf32>
    %376 = vector.multi_reduction <add>, %375, %cst_153 [1] : vector<16x64xf32> to vector<16xf32>
    %377 = vector.shape_cast %376 : vector<16xf32> to vector<16x1xf32>
    %cst_154 = arith.constant 6.400000e+01 : f32
    %378 = vector.broadcast %cst_154 : f32 to vector<16x1xf32>
    %379 = arith.divf %377, %378 : vector<16x1xf32>
    %cst_155 = arith.constant 9.99999974E-6 : f32
    %380 = vector.broadcast %cst_155 : f32 to vector<16x1xf32>
    %381 = arith.addf %379, %380 : vector<16x1xf32>
    %382 = math.rsqrt %381 : vector<16x1xf32>
    %383 = vector.broadcast %382 : vector<16x1xf32> to vector<16x64xf32>
    %384 = arith.mulf %374, %383 : vector<16x64xf32>
    %385 = vector.broadcast %367 : vector<1x64xf32> to vector<16x64xf32>
    %386 = arith.mulf %384, %385 : vector<16x64xf32>
    %387 = vector.broadcast %368 : vector<1x64xf32> to vector<16x64xf32>
    %388 = arith.addf %386, %387 : vector<16x64xf32>
    %c0_156 = arith.constant 0 : index
    %c0_157 = arith.constant 0 : index
    %389 = vector.load %arg27[%c0_156, %c0_157] : memref<64x256xbf16, #tpu.memory_space<vmem>>, vector<64x256xbf16>
    %390 = arith.truncf %388 : vector<16x64xf32> to vector<16x64xbf16>
    %cst_158 = arith.constant dense<0.000000e+00> : vector<16x256xf32>
    %391 = tpu.matmul %390, %389, %cst_158 {dimension_numbers = #tpu.dot_dimension_numbers<[1], [0], [0], [1], [0, 0, 1, 1], [], []>} : vector<16x64xbf16>, vector<64x256xbf16>, vector<16x256xf32> -> vector<16x256xf32>
    %c0_159 = arith.constant 0 : index
    %c0_160 = arith.constant 0 : index
    %392 = vector.load %arg28[%c0_159, %c0_160] : memref<1x256xf32, #tpu.memory_space<vmem>>, vector<1x256xf32>
    %393 = vector.broadcast %392 : vector<1x256xf32> to vector<16x256xf32>
    %394 = arith.addf %391, %393 : vector<16x256xf32>
    %cst_161 = arith.constant 5.000000e-01 : f32
    %395 = vector.broadcast %cst_161 : f32 to vector<16x256xf32>
    %396 = arith.mulf %395, %394 : vector<16x256xf32>
    %cst_162 = arith.constant 0.707106769 : f32
    %397 = vector.broadcast %cst_162 : f32 to vector<16x256xf32>
    %398 = arith.mulf %394, %397 : vector<16x256xf32>
    %cst_163 = arith.constant 0.000000e+00 : f32
    %399 = vector.broadcast %cst_163 : f32 to vector<16x256xf32>
    %400 = arith.cmpf oge, %398, %399 : vector<16x256xf32>
    %cst_164 = arith.constant 1.000000e+00 : f32
    %cst_165 = arith.constant -1.000000e+00 : f32
    %401 = vector.broadcast %cst_164 : f32 to vector<16x256xf32>
    %402 = vector.broadcast %cst_165 : f32 to vector<16x256xf32>
    %403 = arith.select %400, %401, %402 : vector<16x256xi1>, vector<16x256xf32>
    %404 = math.absf %398 : vector<16x256xf32>
    %cst_166 = arith.constant 0.327591091 : f32
    %405 = vector.broadcast %cst_166 : f32 to vector<16x256xf32>
    %406 = arith.mulf %405, %404 : vector<16x256xf32>
    %cst_167 = arith.constant 1.000000e+00 : f32
    %407 = vector.broadcast %cst_167 : f32 to vector<16x256xf32>
    %408 = arith.addf %407, %406 : vector<16x256xf32>
    %cst_168 = arith.constant 1.000000e+00 : f32
    %409 = vector.broadcast %cst_168 : f32 to vector<16x256xf32>
    %410 = arith.divf %409, %408 : vector<16x256xf32>
    %cst_169 = arith.constant 1.06140542 : f32
    %411 = vector.broadcast %cst_169 : f32 to vector<16x256xf32>
    %412 = arith.mulf %411, %410 : vector<16x256xf32>
    %cst_170 = arith.constant -1.45315206 : f32
    %413 = vector.broadcast %cst_170 : f32 to vector<16x256xf32>
    %414 = arith.addf %412, %413 : vector<16x256xf32>
    %415 = arith.mulf %414, %410 : vector<16x256xf32>
    %cst_171 = arith.constant 1.42141378 : f32
    %416 = vector.broadcast %cst_171 : f32 to vector<16x256xf32>
    %417 = arith.addf %415, %416 : vector<16x256xf32>
    %418 = arith.mulf %417, %410 : vector<16x256xf32>
    %cst_172 = arith.constant -0.284496725 : f32
    %419 = vector.broadcast %cst_172 : f32 to vector<16x256xf32>
    %420 = arith.addf %418, %419 : vector<16x256xf32>
    %421 = arith.mulf %420, %410 : vector<16x256xf32>
    %cst_173 = arith.constant 0.254829586 : f32
    %422 = vector.broadcast %cst_173 : f32 to vector<16x256xf32>
    %423 = arith.addf %421, %422 : vector<16x256xf32>
    %424 = arith.mulf %423, %410 : vector<16x256xf32>
    %cst_174 = arith.constant 0.000000e+00 : f32
    %425 = vector.broadcast %cst_174 : f32 to vector<16x256xf32>
    %426 = arith.subf %425, %404 : vector<16x256xf32>
    %427 = arith.mulf %426, %404 : vector<16x256xf32>
    %428 = math.exp %427 : vector<16x256xf32>
    %429 = arith.mulf %424, %428 : vector<16x256xf32>
    %cst_175 = arith.constant 1.000000e+00 : f32
    %430 = vector.broadcast %cst_175 : f32 to vector<16x256xf32>
    %431 = arith.subf %430, %429 : vector<16x256xf32>
    %432 = arith.mulf %403, %431 : vector<16x256xf32>
    %cst_176 = arith.constant 1.000000e+00 : f32
    %433 = vector.broadcast %cst_176 : f32 to vector<16x256xf32>
    %434 = arith.addf %433, %432 : vector<16x256xf32>
    %435 = arith.mulf %396, %434 : vector<16x256xf32>
    %c0_177 = arith.constant 0 : index
    %c0_178 = arith.constant 0 : index
    %436 = vector.load %arg29[%c0_177, %c0_178] : memref<256x64xbf16, #tpu.memory_space<vmem>>, vector<256x64xbf16>
    %437 = arith.truncf %435 : vector<16x256xf32> to vector<16x256xbf16>
    %cst_179 = arith.constant dense<0.000000e+00> : vector<16x64xf32>
    %438 = tpu.matmul %437, %436, %cst_179 {dimension_numbers = #tpu.dot_dimension_numbers<[1], [0], [0], [1], [0, 0, 1, 1], [], []>} : vector<16x256xbf16>, vector<256x64xbf16>, vector<16x64xf32> -> vector<16x64xf32>
    %439 = arith.addf %366, %438 : vector<16x64xf32>
    %c0_180 = arith.constant 0 : index
    %c0_181 = arith.constant 0 : index
    %440 = vector.load %arg30[%c0_180, %c0_181] : memref<1x64xf32, #tpu.memory_space<vmem>>, vector<1x64xf32>
    %441 = vector.broadcast %440 : vector<1x64xf32> to vector<16x64xf32>
    %442 = arith.addf %439, %441 : vector<16x64xf32>
    %c0_182 = arith.constant 0 : index
    %c0_183 = arith.constant 0 : index
    %443 = vector.load %arg31[%c0_182, %c0_183] : memref<1x64xf32, #tpu.memory_space<vmem>>, vector<1x64xf32>
    %c0_184 = arith.constant 0 : index
    %c0_185 = arith.constant 0 : index
    %444 = vector.load %arg32[%c0_184, %c0_185] : memref<1x64xf32, #tpu.memory_space<vmem>>, vector<1x64xf32>
    %cst_186 = arith.constant dense<0.000000e+00> : vector<16xf32>
    %445 = vector.multi_reduction <add>, %442, %cst_186 [1] : vector<16x64xf32> to vector<16xf32>
    %446 = vector.shape_cast %445 : vector<16xf32> to vector<16x1xf32>
    %cst_187 = arith.constant 6.400000e+01 : f32
    %447 = vector.broadcast %cst_187 : f32 to vector<16x1xf32>
    %448 = arith.divf %446, %447 : vector<16x1xf32>
    %449 = vector.broadcast %448 : vector<16x1xf32> to vector<16x64xf32>
    %450 = arith.subf %442, %449 : vector<16x64xf32>
    %451 = arith.mulf %450, %450 : vector<16x64xf32>
    %cst_188 = arith.constant dense<0.000000e+00> : vector<16xf32>
    %452 = vector.multi_reduction <add>, %451, %cst_188 [1] : vector<16x64xf32> to vector<16xf32>
    %453 = vector.shape_cast %452 : vector<16xf32> to vector<16x1xf32>
    %cst_189 = arith.constant 6.400000e+01 : f32
    %454 = vector.broadcast %cst_189 : f32 to vector<16x1xf32>
    %455 = arith.divf %453, %454 : vector<16x1xf32>
    %cst_190 = arith.constant 9.99999974E-6 : f32
    %456 = vector.broadcast %cst_190 : f32 to vector<16x1xf32>
    %457 = arith.addf %455, %456 : vector<16x1xf32>
    %458 = math.rsqrt %457 : vector<16x1xf32>
    %459 = vector.broadcast %458 : vector<16x1xf32> to vector<16x64xf32>
    %460 = arith.mulf %450, %459 : vector<16x64xf32>
    %461 = vector.broadcast %443 : vector<1x64xf32> to vector<16x64xf32>
    %462 = arith.mulf %460, %461 : vector<16x64xf32>
    %463 = vector.broadcast %444 : vector<1x64xf32> to vector<16x64xf32>
    %464 = arith.addf %462, %463 : vector<16x64xf32>
    %cst_191 = arith.constant dense<0.000000e+00> : vector<64xf32>
    %465 = vector.multi_reduction <add>, %464, %cst_191 [0] : vector<16x64xf32> to vector<64xf32>
    %466 = vector.shape_cast %465 : vector<64xf32> to vector<1x64xf32>
    %cst_192 = arith.constant 1.600000e+01 : f32
    %467 = vector.broadcast %cst_192 : f32 to vector<1x64xf32>
    %468 = arith.divf %466, %467 : vector<1x64xf32>
    %c0_193 = arith.constant 0 : index
    %c0_194 = arith.constant 0 : index
    %c0_195 = arith.constant 0 : index
    %469 = vector.load %arg33[%c0_193, %c0_194, %c0_195] : memref<1x1x64xf32, #tpu.memory_space<vmem>>, vector<1x1x64xf32>
    %470 = vector.shape_cast %469 : vector<1x1x64xf32> to vector<1x64xf32>
    %471 = vector.shape_cast %468 : vector<1x64xf32> to vector<1x1x64xf32>
    tpu.vector_store %arg33[%c0_193, %c0_194, %c0_195], %471 {strides = array<i32>} : memref<1x1x64xf32, #tpu.memory_space<vmem>>, vector<1x1x64xf32>,
    return
  }
  func.func @transform_0(%arg0: i32) -> (i32, i32, i32) {
    %c0_i32 = arith.constant 0 : i32
    %c0_i32_0 = arith.constant 0 : i32
    %c0_i32_1 = arith.constant 0 : i32
    return %arg0, %c0_i32, %c0_i32_0 : i32, i32, i32
  }
  func.func @transform_1(%arg0: i32) -> (i32, i32) {
    %c0_i32 = arith.constant 0 : i32
    %c0_i32_0 = arith.constant 0 : i32
    %c0_i32_1 = arith.constant 0 : i32
    return %c0_i32, %c0_i32_0 : i32, i32
  }
  func.func @transform_2(%arg0: i32) -> (i32, i32) {
    %c0_i32 = arith.constant 0 : i32
    %c0_i32_0 = arith.constant 0 : i32
    %c0_i32_1 = arith.constant 0 : i32
    return %c0_i32, %c0_i32_0 : i32, i32
  }
  func.func @transform_3(%arg0: i32) -> (i32, i32) {
    %c0_i32 = arith.constant 0 : i32
    %c0_i32_0 = arith.constant 0 : i32
    %c0_i32_1 = arith.constant 0 : i32
    return %c0_i32, %c0_i32_0 : i32, i32
  }
  func.func @transform_4(%arg0: i32) -> (i32, i32) {
    %c0_i32 = arith.constant 0 : i32
    %c0_i32_0 = arith.constant 0 : i32
    %c0_i32_1 = arith.constant 0 : i32
    return %c0_i32, %c0_i32_0 : i32, i32
  }
  func.func @transform_5(%arg0: i32) -> (i32, i32) {
    %c0_i32 = arith.constant 0 : i32
    %c0_i32_0 = arith.constant 0 : i32
    %c0_i32_1 = arith.constant 0 : i32
    return %c0_i32, %c0_i32_0 : i32, i32
  }
  func.func @transform_6(%arg0: i32) -> (i32, i32) {
    %c0_i32 = arith.constant 0 : i32
    %c0_i32_0 = arith.constant 0 : i32
    %c0_i32_1 = arith.constant 0 : i32
    return %c0_i32, %c0_i32_0 : i32, i32
  }
  func.func @transform_7(%arg0: i32) -> (i32, i32) {
    %c0_i32 = arith.constant 0 : i32
    %c0_i32_0 = arith.constant 0 : i32
    %c0_i32_1 = arith.constant 0 : i32
    return %c0_i32, %c0_i32_0 : i32, i32
  }
  func.func @transform_8(%arg0: i32) -> (i32, i32, i32) {
    %c0_i32 = arith.constant 0 : i32
    %c0_i32_0 = arith.constant 0 : i32
    %c0_i32_1 = arith.constant 0 : i32
    %c0_i32_2 = arith.constant 0 : i32
    return %c0_i32, %c0_i32_0, %c0_i32_1 : i32, i32, i32
  }
  func.func @transform_9(%arg0: i32) -> (i32, i32) {
    %c0_i32 = arith.constant 0 : i32
    %c0_i32_0 = arith.constant 0 : i32
    %c0_i32_1 = arith.constant 0 : i32
    return %c0_i32, %c0_i32_0 : i32, i32
  }
  func.func @transform_10(%arg0: i32) -> (i32, i32) {
    %c0_i32 = arith.constant 0 : i32
    %c0_i32_0 = arith.constant 0 : i32
    %c0_i32_1 = arith.constant 0 : i32
    return %c0_i32, %c0_i32_0 : i32, i32
  }
  func.func @transform_11(%arg0: i32) -> (i32, i32) {
    %c0_i32 = arith.constant 0 : i32
    %c0_i32_0 = arith.constant 0 : i32
    %c0_i32_1 = arith.constant 0 : i32
    return %c0_i32, %c0_i32_0 : i32, i32
  }
  func.func @transform_12(%arg0: i32) -> (i32, i32) {
    %c0_i32 = arith.constant 0 : i32
    %c0_i32_0 = arith.constant 0 : i32
    %c0_i32_1 = arith.constant 0 : i32
    return %c0_i32, %c0_i32_0 : i32, i32
  }
  func.func @transform_13(%arg0: i32) -> (i32, i32) {
    %c0_i32 = arith.constant 0 : i32
    %c0_i32_0 = arith.constant 0 : i32
    %c0_i32_1 = arith.constant 0 : i32
    return %c0_i32, %c0_i32_0 : i32, i32
  }
  func.func @transform_14(%arg0: i32) -> (i32, i32) {
    %c0_i32 = arith.constant 0 : i32
    %c0_i32_0 = arith.constant 0 : i32
    %c0_i32_1 = arith.constant 0 : i32
    return %c0_i32, %c0_i32_0 : i32, i32
  }
  func.func @transform_15(%arg0: i32) -> (i32, i32) {
    %c0_i32 = arith.constant 0 : i32
    %c0_i32_0 = arith.constant 0 : i32
    %c0_i32_1 = arith.constant 0 : i32
    return %c0_i32, %c0_i32_0 : i32, i32
  }
  func.func @transform_16(%arg0: i32) -> (i32, i32) {
    %c0_i32 = arith.constant 0 : i32
    %c0_i32_0 = arith.constant 0 : i32
    %c0_i32_1 = arith.constant 0 : i32
    return %c0_i32, %c0_i32_0 : i32, i32
  }
  func.func @transform_17(%arg0: i32) -> (i32, i32) {
    %c0_i32 = arith.constant 0 : i32
    %c0_i32_0 = arith.constant 0 : i32
    %c0_i32_1 = arith.constant 0 : i32
    return %c0_i32, %c0_i32_0 : i32, i32
  }
  func.func @transform_18(%arg0: i32) -> (i32, i32) {
    %c0_i32 = arith.constant 0 : i32
    %c0_i32_0 = arith.constant 0 : i32
    %c0_i32_1 = arith.constant 0 : i32
    return %c0_i32, %c0_i32_0 : i32, i32
  }
  func.func @transform_19(%arg0: i32) -> (i32, i32) {
    %c0_i32 = arith.constant 0 : i32
    %c0_i32_0 = arith.constant 0 : i32
    %c0_i32_1 = arith.constant 0 : i32
    return %c0_i32, %c0_i32_0 : i32, i32
  }
  func.func @transform_20(%arg0: i32) -> (i32, i32) {
    %c0_i32 = arith.constant 0 : i32
    %c0_i32_0 = arith.constant 0 : i32
    %c0_i32_1 = arith.constant 0 : i32
    return %c0_i32, %c0_i32_0 : i32, i32
  }
  func.func @transform_21(%arg0: i32) -> (i32, i32, i32) {
    %c0_i32 = arith.constant 0 : i32
    %c0_i32_0 = arith.constant 0 : i32
    %c0_i32_1 = arith.constant 0 : i32
    %c0_i32_2 = arith.constant 0 : i32
    return %c0_i32, %c0_i32_0, %c0_i32_1 : i32, i32, i32
  }
  func.func @transform_22(%arg0: i32) -> (i32, i32) {
    %c0_i32 = arith.constant 0 : i32
    %c0_i32_0 = arith.constant 0 : i32
    %c0_i32_1 = arith.constant 0 : i32
    return %c0_i32, %c0_i32_0 : i32, i32
  }
  func.func @transform_23(%arg0: i32) -> (i32, i32) {
    %c0_i32 = arith.constant 0 : i32
    %c0_i32_0 = arith.constant 0 : i32
    %c0_i32_1 = arith.constant 0 : i32
    return %c0_i32, %c0_i32_0 : i32, i32
  }
  func.func @transform_24(%arg0: i32) -> (i32, i32) {
    %c0_i32 = arith.constant 0 : i32
    %c0_i32_0 = arith.constant 0 : i32
    %c0_i32_1 = arith.constant 0 : i32
    return %c0_i32, %c0_i32_0 : i32, i32
  }
  func.func @transform_25(%arg0: i32) -> (i32, i32) {
    %c0_i32 = arith.constant 0 : i32
    %c0_i32_0 = arith.constant 0 : i32
    %c0_i32_1 = arith.constant 0 : i32
    return %c0_i32, %c0_i32_0 : i32, i32
  }
  func.func @transform_26(%arg0: i32) -> (i32, i32) {
    %c0_i32 = arith.constant 0 : i32
    %c0_i32_0 = arith.constant 0 : i32
    %c0_i32_1 = arith.constant 0 : i32
    return %c0_i32, %c0_i32_0 : i32, i32
  }
  func.func @transform_27(%arg0: i32) -> (i32, i32) {
    %c0_i32 = arith.constant 0 : i32
    %c0_i32_0 = arith.constant 0 : i32
    %c0_i32_1 = arith.constant 0 : i32
    return %c0_i32, %c0_i32_0 : i32, i32
  }
  func.func @transform_28(%arg0: i32) -> (i32, i32) {
    %c0_i32 = arith.constant 0 : i32
    %c0_i32_0 = arith.constant 0 : i32
    %c0_i32_1 = arith.constant 0 : i32
    return %c0_i32, %c0_i32_0 : i32, i32
  }
  func.func @transform_29(%arg0: i32) -> (i32, i32) {
    %c0_i32 = arith.constant 0 : i32
    %c0_i32_0 = arith.constant 0 : i32
    %c0_i32_1 = arith.constant 0 : i32
    return %c0_i32, %c0_i32_0 : i32, i32
  }
  func.func @transform_30(%arg0: i32) -> (i32, i32) {
    %c0_i32 = arith.constant 0 : i32
    %c0_i32_0 = arith.constant 0 : i32
    %c0_i32_1 = arith.constant 0 : i32
    return %c0_i32, %c0_i32_0 : i32, i32
  }
  func.func @transform_31(%arg0: i32) -> (i32, i32) {
    %c0_i32 = arith.constant 0 : i32
    %c0_i32_0 = arith.constant 0 : i32
    %c0_i32_1 = arith.constant 0 : i32
    return %c0_i32, %c0_i32_0 : i32, i32
  }
  func.func @transform_32(%arg0: i32) -> (i32, i32, i32) {
    %c0_i32 = arith.constant 0 : i32
    %c0_i32_0 = arith.constant 0 : i32
    %c0_i32_1 = arith.constant 0 : i32
    return %arg0, %c0_i32, %c0_i32_0 : i32, i32, i32
  }
}

</mosaic_0001>

<llo_original>
// kernel: swin_t_f_forward.2
$region0: #{swin_t_f_forward.2}
  #allocation0 [shape = 'u32[]', space=smem, size = 0x4, offset = 0x4, fixed_abs, tag = 'smem constant byte address 0x4 - core index']
  #allocation1 [shape = 'u32[72,128]{1,0:T(1,128)}', space=vmem, size = 0x9000, scoped, tag = 'internal scratch']
  %s0 = inlined_call_operand.smem [shape: u32[32], index: -1, kind: input, shape index: {}]
  %s1 = sld [smem:[%s0]]
  %s2 = scalar_lea.smem %s0, 1
  %s3 = sld [smem:[%s2]]
  %s4 = scalar_lea.smem %s0, 2
  %s5 = sld [smem:[%s4]]
  %s6 = scalar_lea.smem %s0, 3
  %s7 = sld [smem:[%s6]]
  %s8 = scalar_lea.smem %s0, 4
  %s9 = sld [smem:[%s8]]
  %s10 = scalar_lea.smem %s0, 5
  %s11 = sld [smem:[%s10]]
  %s12 = scalar_lea.smem %s0, 6
  %s13 = sld [smem:[%s12]]
  %s14 = scalar_lea.smem %s0, 7
  %s15 = sld [smem:[%s14]]
  %s16 = scalar_lea.smem %s0, 8
  %s17 = sld [smem:[%s16]]
  %s18 = scalar_lea.smem %s0, 9
  %s19 = sld [smem:[%s18]]
  %s20 = scalar_lea.smem %s0, 10
  %s21 = sld [smem:[%s20]]
  %s22 = scalar_lea.smem %s0, 11
  %s23 = sld [smem:[%s22]]
  %s24 = scalar_lea.smem %s0, 12
  %s25 = sld [smem:[%s24]]
  %s26 = scalar_lea.smem %s0, 13
  %s27 = sld [smem:[%s26]]
  %s28 = scalar_lea.smem %s0, 14
  %s29 = sld [smem:[%s28]]
  %s30 = scalar_lea.smem %s0, 15
  %s31 = sld [smem:[%s30]]
  %s32 = scalar_lea.smem %s0, 16
  %s33 = sld [smem:[%s32]]
  %s34 = scalar_lea.smem %s0, 17
  %s35 = sld [smem:[%s34]]
  %s36 = scalar_lea.smem %s0, 18
  %s37 = sld [smem:[%s36]]
  %s38 = scalar_lea.smem %s0, 19
  %s39 = sld [smem:[%s38]]
  %s40 = scalar_lea.smem %s0, 20
  %s41 = sld [smem:[%s40]]
  %s42 = scalar_lea.smem %s0, 21
  %s43 = sld [smem:[%s42]]
  %s44 = scalar_lea.smem %s0, 22
  %s45 = sld [smem:[%s44]]
  %s46 = scalar_lea.smem %s0, 23
  %s47 = sld [smem:[%s46]]
  %s48 = scalar_lea.smem %s0, 24
  %s49 = sld [smem:[%s48]]
  %s50 = scalar_lea.smem %s0, 25
  %s51 = sld [smem:[%s50]]
  %s52 = scalar_lea.smem %s0, 26
  %s53 = sld [smem:[%s52]]
  %s54 = scalar_lea.smem %s0, 27
  %s55 = sld [smem:[%s54]]
  %s56 = scalar_lea.smem %s0, 28
  %s57 = sld [smem:[%s56]]
  %s58 = scalar_lea.smem %s0, 29
  %s59 = sld [smem:[%s58]]
  %s60 = scalar_lea.smem %s0, 30
  %s61 = sld [smem:[%s60]]
  %s62 = scalar_lea.smem %s0, 31
  %s63 = sld [smem:[%s62]]
  %s64 = sld [smem:[#allocation0]]
  $region157: #{swin_t_f_forward.2} parent=0
    _
  %s66 = ssub.s32 1, %s64
  %s67 = scalar_select 0, %s66, %s64
  loop: start=0, step=1, limit=4
  $region2: #{swin_t_f_forward.2} parent=0 // loop_pre_header
    _
  $region3: #{swin_t_f_forward.2} parent=0 // loop_header
    %s69 = sphi 0, %s73
    %p70 = scmp.ge.s32.totalorder %s69, 4
    %s79 = sphi 0, %s81
    %s82 = sphi 0, %s79
    %s83 = sphi 0, %s82
    %s99 = sphi 0, %s83
    %s103 = sphi 0, %s103
    %s105 = sphi 0, %s103
    %s106 = sphi 0, %s105
    %s120 = sphi 0, %s106
    %s124 = sphi 0, %s124
    %s126 = sphi 0, %s124
    %s127 = sphi 0, %s126
    %s141 = sphi 0, %s127
    %s145 = sphi 0, %s145
    %s147 = sphi 0, %s145
    %s148 = sphi 0, %s147
    %s162 = sphi 0, %s148
    %s166 = sphi 0, %s166
    %s168 = sphi 0, %s166
    %s169 = sphi 0, %s168
    %s183 = sphi 0, %s169
    %s187 = sphi 0, %s187
    %s189 = sphi 0, %s187
    %s190 = sphi 0, %s189
    %s204 = sphi 0, %s190
    %s208 = sphi 0, %s208
    %s210 = sphi 0, %s208
    %s211 = sphi 0, %s210
    %s225 = sphi 0, %s211
    %s229 = sphi 0, %s229
    %s231 = sphi 0, %s229
    %s232 = sphi 0, %s231
    %s246 = sphi 0, %s232
    %s250 = sphi 0, %s250
    %s252 = sphi 0, %s250
    %s253 = sphi 0, %s252
    %s267 = sphi 0, %s253
    %s271 = sphi 0, %s271
    %s273 = sphi 0, %s271
    %s274 = sphi 0, %s273
    %s288 = sphi 0, %s274
    %s292 = sphi 0, %s292
    %s294 = sphi 0, %s292
    %s295 = sphi 0, %s294
    %s309 = sphi 0, %s295
    %s313 = sphi 0, %s313
    %s315 = sphi 0, %s313
    %s316 = sphi 0, %s315
    %s330 = sphi 0, %s316
    %s334 = sphi 0, %s334
    %s336 = sphi 0, %s334
    %s337 = sphi 0, %s336
    %s351 = sphi 0, %s337
    %s355 = sphi 0, %s355
    %s357 = sphi 0, %s355
    %s358 = sphi 0, %s357
    %s372 = sphi 0, %s358
    %s376 = sphi 0, %s376
    %s378 = sphi 0, %s376
    %s379 = sphi 0, %s378
    %s393 = sphi 0, %s379
    %s397 = sphi 0, %s397
    %s399 = sphi 0, %s397
    %s400 = sphi 0, %s399
    %s414 = sphi 0, %s400
    %s418 = sphi 0, %s418
    %s420 = sphi 0, %s418
    %s421 = sphi 0, %s420
    %s435 = sphi 0, %s421
    %s439 = sphi 0, %s439
    %s441 = sphi 0, %s439
    %s442 = sphi 0, %s441
    %s456 = sphi 0, %s442
    %s460 = sphi 0, %s460
    %s462 = sphi 0, %s460
    %s463 = sphi 0, %s462
    %s477 = sphi 0, %s463
    %s481 = sphi 0, %s481
    %s483 = sphi 0, %s481
    %s484 = sphi 0, %s483
    %s498 = sphi 0, %s484
    %s502 = sphi 0, %s502
    %s504 = sphi 0, %s502
    %s505 = sphi 0, %s504
    %s519 = sphi 0, %s505
    %s523 = sphi 0, %s523
    %s525 = sphi 0, %s523
    %s526 = sphi 0, %s525
    %s540 = sphi 0, %s526
    %s544 = sphi 0, %s544
    %s546 = sphi 0, %s544
    %s547 = sphi 0, %s546
    %s561 = sphi 0, %s547
    %s565 = sphi 0, %s565
    %s567 = sphi 0, %s565
    %s568 = sphi 0, %s567
    %s582 = sphi 0, %s568
    %s586 = sphi 0, %s586
    %s588 = sphi 0, %s586
    %s589 = sphi 0, %s588
    %s603 = sphi 0, %s589
    %s607 = sphi 0, %s607
    %s609 = sphi 0, %s607
    %s610 = sphi 0, %s609
    %s624 = sphi 0, %s610
    %s628 = sphi 0, %s628
    %s630 = sphi 0, %s628
    %s631 = sphi 0, %s630
    %s645 = sphi 0, %s631
    %s649 = sphi 0, %s649
    %s651 = sphi 0, %s649
    %s652 = sphi 0, %s651
    %s666 = sphi 0, %s652
    %s670 = sphi 0, %s670
    %s672 = sphi 0, %s670
    %s673 = sphi 0, %s672
    %s687 = sphi 0, %s673
    %s691 = sphi 0, %s691
    %s693 = sphi 0, %s691
    %s694 = sphi 0, %s693
    %s708 = sphi 0, %s694
    %s712 = sphi 0, %s712
    %s714 = sphi 0, %s712
    %s715 = sphi 0, %s714
    %s729 = sphi 0, %s715
    %s735 = sphi 0, %s737
    %s738 = sphi 0, %s735
    %s739 = sphi 0, %s738
    %s755 = sphi 0, %s739
  $region4: #{swin_t_f_forward.2} parent=0 // loop_header_branch
    %72 = sbr.rel (%p70) target = $region8
  $region5: #{swin_t_f_forward.2} parent=0 // loop_body
    %s74 = ssub.s32 %s69, 1
    %s75 = ssub.s32 %s69, 2
    %s76 = sadd.s32 %s69, 1
    %s77 = ssub.s32 %s69, %s76
    %p78 = scmp.eq.s32.totalorder %s77, 0
    %s80 = sadd.s32 %s79, 1
    %s81 = scalar_select %p78, %s79, %s80
    %p84 = pneg %p78
    %p85 = scmp.eq.s32.totalorder %s69, 1
    %p86 = por %p84, %p85
    %p87 = scmp.ne.s32.totalorder %s79, %s82
    %p88 = scmp.eq.s32.totalorder %s69, 0
    %p89 = por %p87, %p88
    %p90 = scmp.ne.s32.totalorder %s79, %s82
    %p91 = scmp.eq.s32.totalorder %s74, 1
    %p92 = por %p90, %p91
    %p93 = scmp.ne.s32.totalorder %s82, %s83
    %p94 = scmp.eq.s32.totalorder %s74, 0
    %p95 = por %p93, %p94
    %p96 = scmp.ne.s32.totalorder %s82, %s83
    %p97 = scmp.eq.s32.totalorder %s75, 1
    %p98 = por %p96, %p97
    %p100 = scmp.ne.s32.totalorder %s83, %s99
    %p101 = scmp.eq.s32.totalorder %s75, 0
    %p102 = por %p100, %p101
    %s104 = sadd.s32 %s103, 1
    %p107 = scmp.eq.s32.totalorder %s69, 1
    %p108 = scmp.ne.s32.totalorder %s103, %s105
    %p109 = scmp.eq.s32.totalorder %s69, 0
    %p110 = por %p108, %p109
    %p111 = scmp.ne.s32.totalorder %s103, %s105
    %p112 = scmp.eq.s32.totalorder %s74, 1
    %p113 = por %p111, %p112
    %p114 = scmp.ne.s32.totalorder %s105, %s106
    %p115 = scmp.eq.s32.totalorder %s74, 0
    %p116 = por %p114, %p115
    %p117 = scmp.ne.s32.totalorder %s105, %s106
    %p118 = scmp.eq.s32.totalorder %s75, 1
    %p119 = por %p117, %p118
    %p121 = scmp.ne.s32.totalorder %s106, %s120
    %p122 = scmp.eq.s32.totalorder %s75, 0
    %p123 = por %p121, %p122
    %s125 = sadd.s32 %s124, 1
    %p128 = scmp.eq.s32.totalorder %s69, 1
    %p129 = scmp.ne.s32.totalorder %s124, %s126
    %p130 = scmp.eq.s32.totalorder %s69, 0
    %p131 = por %p129, %p130
    %p132 = scmp.ne.s32.totalorder %s124, %s126
    %p133 = scmp.eq.s32.totalorder %s74, 1
    %p134 = por %p132, %p133
    %p135 = scmp.ne.s32.totalorder %s126, %s127
    %p136 = scmp.eq.s32.totalorder %s74, 0
    %p137 = por %p135, %p136
    %p138 = scmp.ne.s32.totalorder %s126, %s127
    %p139 = scmp.eq.s32.totalorder %s75, 1
    %p140 = por %p138, %p139
    %p142 = scmp.ne.s32.totalorder %s127, %s141
    %p143 = scmp.eq.s32.totalorder %s75, 0
    %p144 = por %p142, %p143
    %s146 = sadd.s32 %s145, 1
    %p149 = scmp.eq.s32.totalorder %s69, 1
    %p150 = scmp.ne.s32.totalorder %s145, %s147
    %p151 = scmp.eq.s32.totalorder %s69, 0
    %p152 = por %p150, %p151
    %p153 = scmp.ne.s32.totalorder %s145, %s147
    %p154 = scmp.eq.s32.totalorder %s74, 1
    %p155 = por %p153, %p154
    %p156 = scmp.ne.s32.totalorder %s147, %s148
    %p157 = scmp.eq.s32.totalorder %s74, 0
    %p158 = por %p156, %p157
    %p159 = scmp.ne.s32.totalorder %s147, %s148
    %p160 = scmp.eq.s32.totalorder %s75, 1
    %p161 = por %p159, %p160
    %p163 = scmp.ne.s32.totalorder %s148, %s162
    %p164 = scmp.eq.s32.totalorder %s75, 0
    %p165 = por %p163, %p164
    %s167 = sadd.s32 %s166, 1
    %p170 = scmp.eq.s32.totalorder %s69, 1
    %p171 = scmp.ne.s32.totalorder %s166, %s168
    %p172 = scmp.eq.s32.totalorder %s69, 0
    %p173 = por %p171, %p172
    %p174 = scmp.ne.s32.totalorder %s166, %s168
    %p175 = scmp.eq.s32.totalorder %s74, 1
    %p176 = por %p174, %p175
    %p177 = scmp.ne.s32.totalorder %s168, %s169
    %p178 = scmp.eq.s32.totalorder %s74, 0
    %p179 = por %p177, %p178
    %p180 = scmp.ne.s32.totalorder %s168, %s169
    %p181 = scmp.eq.s32.totalorder %s75, 1
    %p182 = por %p180, %p181
    %p184 = scmp.ne.s32.totalorder %s169, %s183
    %p185 = scmp.eq.s32.totalorder %s75, 0
    %p186 = por %p184, %p185
    %s188 = sadd.s32 %s187, 1
    %p191 = scmp.eq.s32.totalorder %s69, 1
    %p192 = scmp.ne.s32.totalorder %s187, %s189
    %p193 = scmp.eq.s32.totalorder %s69, 0
    %p194 = por %p192, %p193
    %p195 = scmp.ne.s32.totalorder %s187, %s189
    %p196 = scmp.eq.s32.totalorder %s74, 1
    %p197 = por %p195, %p196
    %p198 = scmp.ne.s32.totalorder %s189, %s190
    %p199 = scmp.eq.s32.totalorder %s74, 0
    %p200 = por %p198, %p199
    %p201 = scmp.ne.s32.totalorder %s189, %s190
    %p202 = scmp.eq.s32.totalorder %s75, 1
    %p203 = por %p201, %p202
    %p205 = scmp.ne.s32.totalorder %s190, %s204
    %p206 = scmp.eq.s32.totalorder %s75, 0
    %p207 = por %p205, %p206
    %s209 = sadd.s32 %s208, 1
    %p212 = scmp.eq.s32.totalorder %s69, 1
    %p213 = scmp.ne.s32.totalorder %s208, %s210
    %p214 = scmp.eq.s32.totalorder %s69, 0
    %p215 = por %p213, %p214
    %p216 = scmp.ne.s32.totalorder %s208, %s210
    %p217 = scmp.eq.s32.totalorder %s74, 1
    %p218 = por %p216, %p217
    %p219 = scmp.ne.s32.totalorder %s210, %s211
    %p220 = scmp.eq.s32.totalorder %s74, 0
    %p221 = por %p219, %p220
    %p222 = scmp.ne.s32.totalorder %s210, %s211
    %p223 = scmp.eq.s32.totalorder %s75, 1
    %p224 = por %p222, %p223
    %p226 = scmp.ne.s32.totalorder %s211, %s225
    %p227 = scmp.eq.s32.totalorder %s75, 0
    %p228 = por %p226, %p227
    %s230 = sadd.s32 %s229, 1
    %p233 = scmp.eq.s32.totalorder %s69, 1
    %p234 = scmp.ne.s32.totalorder %s229, %s231
    %p235 = scmp.eq.s32.totalorder %s69, 0
    %p236 = por %p234, %p235
    %p237 = scmp.ne.s32.totalorder %s229, %s231
    %p238 = scmp.eq.s32.totalorder %s74, 1
    %p239 = por %p237, %p238
    %p240 = scmp.ne.s32.totalorder %s231, %s232
    %p241 = scmp.eq.s32.totalorder %s74, 0
    %p242 = por %p240, %p241
    %p243 = scmp.ne.s32.totalorder %s231, %s232
    %p244 = scmp.eq.s32.totalorder %s75, 1
    %p245 = por %p243, %p244
    %p247 = scmp.ne.s32.totalorder %s232, %s246
    %p248 = scmp.eq.s32.totalorder %s75, 0
    %p249 = por %p247, %p248
    %s251 = sadd.s32 %s250, 1
    %p254 = scmp.eq.s32.totalorder %s69, 1
    %p255 = scmp.ne.s32.totalorder %s250, %s252
    %p256 = scmp.eq.s32.totalorder %s69, 0
    %p257 = por %p255, %p256
    %p258 = scmp.ne.s32.totalorder %s250, %s252
    %p259 = scmp.eq.s32.totalorder %s74, 1
    %p260 = por %p258, %p259
    %p261 = scmp.ne.s32.totalorder %s252, %s253
    %p262 = scmp.eq.s32.totalorder %s74, 0
    %p263 = por %p261, %p262
    %p264 = scmp.ne.s32.totalorder %s252, %s253
    %p265 = scmp.eq.s32.totalorder %s75, 1
    %p266 = por %p264, %p265
    %p268 = scmp.ne.s32.totalorder %s253, %s267
    %p269 = scmp.eq.s32.totalorder %s75, 0
    %p270 = por %p268, %p269
    %s272 = sadd.s32 %s271, 1
    %p275 = scmp.eq.s32.totalorder %s69, 1
    %p276 = scmp.ne.s32.totalorder %s271, %s273
    %p277 = scmp.eq.s32.totalorder %s69, 0
    %p278 = por %p276, %p277
    %p279 = scmp.ne.s32.totalorder %s271, %s273
    %p280 = scmp.eq.s32.totalorder %s74, 1
    %p281 = por %p279, %p280
    %p282 = scmp.ne.s32.totalorder %s273, %s274
    %p283 = scmp.eq.s32.totalorder %s74, 0
    %p284 = por %p282, %p283
    %p285 = scmp.ne.s32.totalorder %s273, %s274
    %p286 = scmp.eq.s32.totalorder %s75, 1
    %p287 = por %p285, %p286
    %p289 = scmp.ne.s32.totalorder %s274, %s288
    %p290 = scmp.eq.s32.totalorder %s75, 0
    %p291 = por %p289, %p290
    %s293 = sadd.s32 %s292, 1
    %p296 = scmp.eq.s32.totalorder %s69, 1
    %p297 = scmp.ne.s32.totalorder %s292, %s294
    %p298 = scmp.eq.s32.totalorder %s69, 0
    %p299 = por %p297, %p298
    %p300 = scmp.ne.s32.totalorder %s292, %s294
    %p301 = scmp.eq.s32.totalorder %s74, 1
    %p302 = por %p300, %p301
    %p303 = scmp.ne.s32.totalorder %s294, %s295
    %p304 = scmp.eq.s32.totalorder %s74, 0
    %p305 = por %p303, %p304
    %p306 = scmp.ne.s32.totalorder %s294, %s295
    %p307 = scmp.eq.s32.totalorder %s75, 1
    %p308 = por %p306, %p307
    %p310 = scmp.ne.s32.totalorder %s295, %s309
    %p311 = scmp.eq.s32.totalorder %s75, 0
    %p312 = por %p310, %p311
    %s314 = sadd.s32 %s313, 1
    %p317 = scmp.eq.s32.totalorder %s69, 1
    %p318 = scmp.ne.s32.totalorder %s313, %s315
    %p319 = scmp.eq.s32.totalorder %s69, 0
    %p320 = por %p318, %p319
    %p321 = scmp.ne.s32.totalorder %s313, %s315
    %p322 = scmp.eq.s32.totalorder %s74, 1
    %p323 = por %p321, %p322
    %p324 = scmp.ne.s32.totalorder %s315, %s316
    %p325 = scmp.eq.s32.totalorder %s74, 0
    %p326 = por %p324, %p325
    %p327 = scmp.ne.s32.totalorder %s315, %s316
    %p328 = scmp.eq.s32.totalorder %s75, 1
    %p329 = por %p327, %p328
    %p331 = scmp.ne.s32.totalorder %s316, %s330
    %p332 = scmp.eq.s32.totalorder %s75, 0
    %p333 = por %p331, %p332
    %s335 = sadd.s32 %s334, 1
    %p338 = scmp.eq.s32.totalorder %s69, 1
    %p339 = scmp.ne.s32.totalorder %s334, %s336
    %p340 = scmp.eq.s32.totalorder %s69, 0
    %p341 = por %p339, %p340
    %p342 = scmp.ne.s32.totalorder %s334, %s336
    %p343 = scmp.eq.s32.totalorder %s74, 1
    %p344 = por %p342, %p343
    %p345 = scmp.ne.s32.totalorder %s336, %s337
    %p346 = scmp.eq.s32.totalorder %s74, 0
    %p347 = por %p345, %p346
    %p348 = scmp.ne.s32.totalorder %s336, %s337
    %p349 = scmp.eq.s32.totalorder %s75, 1
    %p350 = por %p348, %p349
    %p352 = scmp.ne.s32.totalorder %s337, %s351
    %p353 = scmp.eq.s32.totalorder %s75, 0
    %p354 = por %p352, %p353
    %s356 = sadd.s32 %s355, 1
    %p359 = scmp.eq.s32.totalorder %s69, 1
    %p360 = scmp.ne.s32.totalorder %s355, %s357
    %p361 = scmp.eq.s32.totalorder %s69, 0
    %p362 = por %p360, %p361
    %p363 = scmp.ne.s32.totalorder %s355, %s357
    %p364 = scmp.eq.s32.totalorder %s74, 1
    %p365 = por %p363, %p364
    %p366 = scmp.ne.s32.totalorder %s357, %s358
    %p367 = scmp.eq.s32.totalorder %s74, 0
    %p368 = por %p366, %p367
    %p369 = scmp.ne.s32.totalorder %s357, %s358
    %p370 = scmp.eq.s32.totalorder %s75, 1
    %p371 = por %p369, %p370
    %p373 = scmp.ne.s32.totalorder %s358, %s372
    %p374 = scmp.eq.s32.totalorder %s75, 0
    %p375 = por %p373, %p374
    %s377 = sadd.s32 %s376, 1
    %p380 = scmp.eq.s32.totalorder %s69, 1
    %p381 = scmp.ne.s32.totalorder %s376, %s378
    %p382 = scmp.eq.s32.totalorder %s69, 0
    %p383 = por %p381, %p382
    %p384 = scmp.ne.s32.totalorder %s376, %s378
    %p385 = scmp.eq.s32.totalorder %s74, 1
    %p386 = por %p384, %p385
    %p387 = scmp.ne.s32.totalorder %s378, %s379
    %p388 = scmp.eq.s32.totalorder %s74, 0
    %p389 = por %p387, %p388
    %p390 = scmp.ne.s32.totalorder %s378, %s379
    %p391 = scmp.eq.s32.totalorder %s75, 1
    %p392 = por %p390, %p391
    %p394 = scmp.ne.s32.totalorder %s379, %s393
    %p395 = scmp.eq.s32.totalorder %s75, 0
    %p396 = por %p394, %p395
    %s398 = sadd.s32 %s397, 1
    %p401 = scmp.eq.s32.totalorder %s69, 1
    %p402 = scmp.ne.s32.totalorder %s397, %s399
    %p403 = scmp.eq.s32.totalorder %s69, 0
    %p404 = por %p402, %p403
    %p405 = scmp.ne.s32.totalorder %s397, %s399
    %p406 = scmp.eq.s32.totalorder %s74, 1
    %p407 = por %p405, %p406
    %p408 = scmp.ne.s32.totalorder %s399, %s400
    %p409 = scmp.eq.s32.totalorder %s74, 0
    %p410 = por %p408, %p409
    %p411 = scmp.ne.s32.totalorder %s399, %s400
    %p412 = scmp.eq.s32.totalorder %s75, 1
    %p413 = por %p411, %p412
    %p415 = scmp.ne.s32.totalorder %s400, %s414
    %p416 = scmp.eq.s32.totalorder %s75, 0
    %p417 = por %p415, %p416
    %s419 = sadd.s32 %s418, 1
    %p422 = scmp.eq.s32.totalorder %s69, 1
    %p423 = scmp.ne.s32.totalorder %s418, %s420
    %p424 = scmp.eq.s32.totalorder %s69, 0
    %p425 = por %p423, %p424
    %p426 = scmp.ne.s32.totalorder %s418, %s420
    %p427 = scmp.eq.s32.totalorder %s74, 1
    %p428 = por %p426, %p427
    %p429 = scmp.ne.s32.totalorder %s420, %s421
    %p430 = scmp.eq.s32.totalorder %s74, 0
    %p431 = por %p429, %p430
    %p432 = scmp.ne.s32.totalorder %s420, %s421
    %p433 = scmp.eq.s32.totalorder %s75, 1
    %p434 = por %p432, %p433
    %p436 = scmp.ne.s32.totalorder %s421, %s435
    %p437 = scmp.eq.s32.totalorder %s75, 0
    %p438 = por %p436, %p437
    %s440 = sadd.s32 %s439, 1
    %p443 = scmp.eq.s32.totalorder %s69, 1
    %p444 = scmp.ne.s32.totalorder %s439, %s441
    %p445 = scmp.eq.s32.totalorder %s69, 0
    %p446 = por %p444, %p445
    %p447 = scmp.ne.s32.totalorder %s439, %s441
    %p448 = scmp.eq.s32.totalorder %s74, 1
    %p449 = por %p447, %p448
    %p450 = scmp.ne.s32.totalorder %s441, %s442
    %p451 = scmp.eq.s32.totalorder %s74, 0
    %p452 = por %p450, %p451
    %p453 = scmp.ne.s32.totalorder %s441, %s442
    %p454 = scmp.eq.s32.totalorder %s75, 1
    %p455 = por %p453, %p454
    %p457 = scmp.ne.s32.totalorder %s442, %s456
    %p458 = scmp.eq.s32.totalorder %s75, 0
    %p459 = por %p457, %p458
    %s461 = sadd.s32 %s460, 1
    %p464 = scmp.eq.s32.totalorder %s69, 1
    %p465 = scmp.ne.s32.totalorder %s460, %s462
    %p466 = scmp.eq.s32.totalorder %s69, 0
    %p467 = por %p465, %p466
    %p468 = scmp.ne.s32.totalorder %s460, %s462
    %p469 = scmp.eq.s32.totalorder %s74, 1
    %p470 = por %p468, %p469
    %p471 = scmp.ne.s32.totalorder %s462, %s463
    %p472 = scmp.eq.s32.totalorder %s74, 0
    %p473 = por %p471, %p472
    %p474 = scmp.ne.s32.totalorder %s462, %s463
    %p475 = scmp.eq.s32.totalorder %s75, 1
    %p476 = por %p474, %p475
    %p478 = scmp.ne.s32.totalorder %s463, %s477
    %p479 = scmp.eq.s32.totalorder %s75, 0
    %p480 = por %p478, %p479
    %s482 = sadd.s32 %s481, 1
    %p485 = scmp.eq.s32.totalorder %s69, 1
    %p486 = scmp.ne.s32.totalorder %s481, %s483
    %p487 = scmp.eq.s32.totalorder %s69, 0
    %p488 = por %p486, %p487
    %p489 = scmp.ne.s32.totalorder %s481, %s483
    %p490 = scmp.eq.s32.totalorder %s74, 1
    %p491 = por %p489, %p490
    %p492 = scmp.ne.s32.totalorder %s483, %s484
    %p493 = scmp.eq.s32.totalorder %s74, 0
    %p494 = por %p492, %p493
    %p495 = scmp.ne.s32.totalorder %s483, %s484
    %p496 = scmp.eq.s32.totalorder %s75, 1
    %p497 = por %p495, %p496
    %p499 = scmp.ne.s32.totalorder %s484, %s498
    %p500 = scmp.eq.s32.totalorder %s75, 0
    %p501 = por %p499, %p500
    %s503 = sadd.s32 %s502, 1
    %p506 = scmp.eq.s32.totalorder %s69, 1
    %p507 = scmp.ne.s32.totalorder %s502, %s504
    %p508 = scmp.eq.s32.totalorder %s69, 0
    %p509 = por %p507, %p508
    %p510 = scmp.ne.s32.totalorder %s502, %s504
    %p511 = scmp.eq.s32.totalorder %s74, 1
    %p512 = por %p510, %p511
    %p513 = scmp.ne.s32.totalorder %s504, %s505
    %p514 = scmp.eq.s32.totalorder %s74, 0
    %p515 = por %p513, %p514
    %p516 = scmp.ne.s32.totalorder %s504, %s505
    %p517 = scmp.eq.s32.totalorder %s75, 1
    %p518 = por %p516, %p517
    %p520 = scmp.ne.s32.totalorder %s505, %s519
    %p521 = scmp.eq.s32.totalorder %s75, 0
    %p522 = por %p520, %p521
    %s524 = sadd.s32 %s523, 1
    %p527 = scmp.eq.s32.totalorder %s69, 1
    %p528 = scmp.ne.s32.totalorder %s523, %s525
    %p529 = scmp.eq.s32.totalorder %s69, 0
    %p530 = por %p528, %p529
    %p531 = scmp.ne.s32.totalorder %s523, %s525
    %p532 = scmp.eq.s32.totalorder %s74, 1
    %p533 = por %p531, %p532
    %p534 = scmp.ne.s32.totalorder %s525, %s526
    %p535 = scmp.eq.s32.totalorder %s74, 0
    %p536 = por %p534, %p535
    %p537 = scmp.ne.s32.totalorder %s525, %s526
    %p538 = scmp.eq.s32.totalorder %s75, 1
    %p539 = por %p537, %p538
    %p541 = scmp.ne.s32.totalorder %s526, %s540
    %p542 = scmp.eq.s32.totalorder %s75, 0
    %p543 = por %p541, %p542
    %s545 = sadd.s32 %s544, 1
    %p548 = scmp.eq.s32.totalorder %s69, 1
    %p549 = scmp.ne.s32.totalorder %s544, %s546
    %p550 = scmp.eq.s32.totalorder %s69, 0
    %p551 = por %p549, %p550
    %p552 = scmp.ne.s32.totalorder %s544, %s546
    %p553 = scmp.eq.s32.totalorder %s74, 1
    %p554 = por %p552, %p553
    %p555 = scmp.ne.s32.totalorder %s546, %s547
    %p556 = scmp.eq.s32.totalorder %s74, 0
    %p557 = por %p555, %p556
    %p558 = scmp.ne.s32.totalorder %s546, %s547
    %p559 = scmp.eq.s32.totalorder %s75, 1
    %p560 = por %p558, %p559
    %p562 = scmp.ne.s32.totalorder %s547, %s561
    %p563 = scmp.eq.s32.totalorder %s75, 0
    %p564 = por %p562, %p563
    %s566 = sadd.s32 %s565, 1
    %p569 = scmp.eq.s32.totalorder %s69, 1
    %p570 = scmp.ne.s32.totalorder %s565, %s567
    %p571 = scmp.eq.s32.totalorder %s69, 0
    %p572 = por %p570, %p571
    %p573 = scmp.ne.s32.totalorder %s565, %s567
    %p574 = scmp.eq.s32.totalorder %s74, 1
    %p575 = por %p573, %p574
    %p576 = scmp.ne.s32.totalorder %s567, %s568
    %p577 = scmp.eq.s32.totalorder %s74, 0
    %p578 = por %p576, %p577
    %p579 = scmp.ne.s32.totalorder %s567, %s568
    %p580 = scmp.eq.s32.totalorder %s75, 1
    %p581 = por %p579, %p580
    %p583 = scmp.ne.s32.totalorder %s568, %s582
    %p584 = scmp.eq.s32.totalorder %s75, 0
    %p585 = por %p583, %p584
    %s587 = sadd.s32 %s586, 1
    %p590 = scmp.eq.s32.totalorder %s69, 1
    %p591 = scmp.ne.s32.totalorder %s586, %s588
    %p592 = scmp.eq.s32.totalorder %s69, 0
    %p593 = por %p591, %p592
    %p594 = scmp.ne.s32.totalorder %s586, %s588
    %p595 = scmp.eq.s32.totalorder %s74, 1
    %p596 = por %p594, %p595
    %p597 = scmp.ne.s32.totalorder %s588, %s589
    %p598 = scmp.eq.s32.totalorder %s74, 0
    %p599 = por %p597, %p598
    %p600 = scmp.ne.s32.totalorder %s588, %s589
    %p601 = scmp.eq.s32.totalorder %s75, 1
    %p602 = por %p600, %p601
    %p604 = scmp.ne.s32.totalorder %s589, %s603
    %p605 = scmp.eq.s32.totalorder %s75, 0
    %p606 = por %p604, %p605
    %s608 = sadd.s32 %s607, 1
    %p611 = scmp.eq.s32.totalorder %s69, 1
    %p612 = scmp.ne.s32.totalorder %s607, %s609
    %p613 = scmp.eq.s32.totalorder %s69, 0
    %p614 = por %p612, %p613
    %p615 = scmp.ne.s32.totalorder %s607, %s609
    %p616 = scmp.eq.s32.totalorder %s74, 1
    %p617 = por %p615, %p616
    %p618 = scmp.ne.s32.totalorder %s609, %s610
    %p619 = scmp.eq.s32.totalorder %s74, 0
    %p620 = por %p618, %p619
    %p621 = scmp.ne.s32.totalorder %s609, %s610
    %p622 = scmp.eq.s32.totalorder %s75, 1
    %p623 = por %p621, %p622
    %p625 = scmp.ne.s32.totalorder %s610, %s624
    %p626 = scmp.eq.s32.totalorder %s75, 0
    %p627 = por %p625, %p626
    %s629 = sadd.s32 %s628, 1
    %p632 = scmp.eq.s32.totalorder %s69, 1
    %p633 = scmp.ne.s32.totalorder %s628, %s630
    %p634 = scmp.eq.s32.totalorder %s69, 0
    %p635 = por %p633, %p634
    %p636 = scmp.ne.s32.totalorder %s628, %s630
    %p637 = scmp.eq.s32.totalorder %s74, 1
    %p638 = por %p636, %p637
    %p639 = scmp.ne.s32.totalorder %s630, %s631
    %p640 = scmp.eq.s32.totalorder %s74, 0
    %p641 = por %p639, %p640
    %p642 = scmp.ne.s32.totalorder %s630, %s631
    %p643 = scmp.eq.s32.totalorder %s75, 1
    %p644 = por %p642, %p643
    %p646 = scmp.ne.s32.totalorder %s631, %s645
    %p647 = scmp.eq.s32.totalorder %s75, 0
    %p648 = por %p646, %p647
    %s650 = sadd.s32 %s649, 1
    %p653 = scmp.eq.s32.totalorder %s69, 1
    %p654 = scmp.ne.s32.totalorder %s649, %s651
    %p655 = scmp.eq.s32.totalorder %s69, 0
    %p656 = por %p654, %p655
    %p657 = scmp.ne.s32.totalorder %s649, %s651
    %p658 = scmp.eq.s32.totalorder %s74, 1
    %p659 = por %p657, %p658
    %p660 = scmp.ne.s32.totalorder %s651, %s652
    %p661 = scmp.eq.s32.totalorder %s74, 0
    %p662 = por %p660, %p661
    %p663 = scmp.ne.s32.totalorder %s651, %s652
    %p664 = scmp.eq.s32.totalorder %s75, 1
    %p665 = por %p663, %p664
    %p667 = scmp.ne.s32.totalorder %s652, %s666
    %p668 = scmp.eq.s32.totalorder %s75, 0
    %p669 = por %p667, %p668
    %s671 = sadd.s32 %s670, 1
    %p674 = scmp.eq.s32.totalorder %s69, 1
    %p675 = scmp.ne.s32.totalorder %s670, %s672
    %p676 = scmp.eq.s32.totalorder %s69, 0
    %p677 = por %p675, %p676
    %p678 = scmp.ne.s32.totalorder %s670, %s672
    %p679 = scmp.eq.s32.totalorder %s74, 1
    %p680 = por %p678, %p679
    %p681 = scmp.ne.s32.totalorder %s672, %s673
    %p682 = scmp.eq.s32.totalorder %s74, 0
    %p683 = por %p681, %p682
    %p684 = scmp.ne.s32.totalorder %s672, %s673
    %p685 = scmp.eq.s32.totalorder %s75, 1
    %p686 = por %p684, %p685
    %p688 = scmp.ne.s32.totalorder %s673, %s687
    %p689 = scmp.eq.s32.totalorder %s75, 0
    %p690 = por %p688, %p689
    %s692 = sadd.s32 %s691, 1
    %p695 = scmp.eq.s32.totalorder %s69, 1
    %p696 = scmp.ne.s32.totalorder %s691, %s693
    %p697 = scmp.eq.s32.totalorder %s69, 0
    %p698 = por %p696, %p697
    %p699 = scmp.ne.s32.totalorder %s691, %s693
    %p700 = scmp.eq.s32.totalorder %s74, 1
    %p701 = por %p699, %p700
    %p702 = scmp.ne.s32.totalorder %s693, %s694
    %p703 = scmp.eq.s32.totalorder %s74, 0
    %p704 = por %p702, %p703
    %p705 = scmp.ne.s32.totalorder %s693, %s694
    %p706 = scmp.eq.s32.totalorder %s75, 1
    %p707 = por %p705, %p706
    %p709 = scmp.ne.s32.totalorder %s694, %s708
    %p710 = scmp.eq.s32.totalorder %s75, 0
    %p711 = por %p709, %p710
    %s713 = sadd.s32 %s712, 1
    %p716 = scmp.eq.s32.totalorder %s69, 1
    %p717 = scmp.ne.s32.totalorder %s712, %s714
    %p718 = scmp.eq.s32.totalorder %s69, 0
    %p719 = por %p717, %p718
    %p720 = scmp.ne.s32.totalorder %s712, %s714
    %p721 = scmp.eq.s32.totalorder %s74, 1
    %p722 = por %p720, %p721
    %p723 = scmp.ne.s32.totalorder %s714, %s715
    %p724 = scmp.eq.s32.totalorder %s74, 0
    %p725 = por %p723, %p724
    %p726 = scmp.ne.s32.totalorder %s714, %s715
    %p727 = scmp.eq.s32.totalorder %s75, 1
    %p728 = por %p726, %p727
    %p730 = scmp.ne.s32.totalorder %s715, %s729
    %p731 = scmp.eq.s32.totalorder %s75, 0
    %p732 = por %p730, %p731
    %s733 = ssub.s32 %s69, %s76
    %p734 = scmp.eq.s32.totalorder %s733, 0
    %s736 = sadd.s32 %s735, 1
    %s737 = scalar_select %p734, %s735, %s736
    %p740 = pneg %p734
    %p741 = scmp.eq.s32.totalorder %s69, 1
    %p742 = por %p740, %p741
    %p743 = scmp.ne.s32.totalorder %s735, %s738
    %p744 = scmp.eq.s32.totalorder %s69, 0
    %p745 = por %p743, %p744
    %p746 = scmp.ne.s32.totalorder %s735, %s738
    %p747 = scmp.eq.s32.totalorder %s74, 1
    %p748 = por %p746, %p747
    %p749 = scmp.ne.s32.totalorder %s738, %s739
    %p750 = scmp.eq.s32.totalorder %s74, 0
    %p751 = por %p749, %p750
    %p752 = scmp.ne.s32.totalorder %s738, %s739
    %p753 = scmp.eq.s32.totalorder %s75, 1
    %p754 = por %p752, %p753
    %p756 = scmp.ne.s32.totalorder %s739, %s755
    %p757 = scmp.eq.s32.totalorder %s75, 0
    %p758 = por %p756, %p757
    %p759 = scmp.le.s32.totalorder 1, %s69
    %p760 = scmp.lt.s32.totalorder %s69, 3
    %p761 = pnand %p759, %p760
    %p762 = pneg %p761
    // Predicated region
    $region9: #{swin_t_f_forward.2} parent=5 // pred_check
      _
    $region10: #{swin_t_f_forward.2} parent=5 // pred_check_branch
      %764 = sbr.rel (%p761) target = $region12
    $region11: #{swin_t_f_forward.2} parent=5 // pred_region
      %s765 = ssub.s32 %s69, 1
      // Predicated region
      $region13: #{swin_t_f_forward.2} parent=11 // pred_check
        %p766 = pneg %p116
      $region14: #{swin_t_f_forward.2} parent=11 // pred_check_branch
        %768 = sbr.rel (%p766) target = $region16
      $region15: #{swin_t_f_forward.2} parent=11 // pred_region
        _
      $region16: #{swin_t_f_forward.2} parent=11 // pred_fallthru
        _
      // Predicated region
      $region17: #{swin_t_f_forward.2} parent=11 // pred_check
        %p769 = pneg %p137
      $region18: #{swin_t_f_forward.2} parent=11 // pred_check_branch
        %771 = sbr.rel (%p769) target = $region20
      $region19: #{swin_t_f_forward.2} parent=11 // pred_region
        _
      $region20: #{swin_t_f_forward.2} parent=11 // pred_fallthru
        _
      // Predicated region
      $region21: #{swin_t_f_forward.2} parent=11 // pred_check
        %p772 = pneg %p158
      $region22: #{swin_t_f_forward.2} parent=11 // pred_check_branch
        %774 = sbr.rel (%p772) target = $region24
      $region23: #{swin_t_f_forward.2} parent=11 // pred_region
        _
      $region24: #{swin_t_f_forward.2} parent=11 // pred_fallthru
        _
      // Predicated region
      $region25: #{swin_t_f_forward.2} parent=11 // pred_check
        %p775 = pneg %p179
      $region26: #{swin_t_f_forward.2} parent=11 // pred_check_branch
        %777 = sbr.rel (%p775) target = $region28
      $region27: #{swin_t_f_forward.2} parent=11 // pred_region
        _
      $region28: #{swin_t_f_forward.2} parent=11 // pred_fallthru
        _
      // Predicated region
      $region29: #{swin_t_f_forward.2} parent=11 // pred_check
        %p778 = pneg %p200
      $region30: #{swin_t_f_forward.2} parent=11 // pred_check_branch
        %780 = sbr.rel (%p778) target = $region32
      $region31: #{swin_t_f_forward.2} parent=11 // pred_region
        _
      $region32: #{swin_t_f_forward.2} parent=11 // pred_fallthru
        _
      // Predicated region
      $region33: #{swin_t_f_forward.2} parent=11 // pred_check
        %p781 = pneg %p221
      $region34: #{swin_t_f_forward.2} parent=11 // pred_check_branch
        %783 = sbr.rel (%p781) target = $region36
      $region35: #{swin_t_f_forward.2} parent=11 // pred_region
        _
      $region36: #{swin_t_f_forward.2} parent=11 // pred_fallthru
        _
      // Predicated region
      $region37: #{swin_t_f_forward.2} parent=11 // pred_check
        %p784 = pneg %p242
      $region38: #{swin_t_f_forward.2} parent=11 // pred_check_branch
        %786 = sbr.rel (%p784) target = $region40
      $region39: #{swin_t_f_forward.2} parent=11 // pred_region
        _
      $region40: #{swin_t_f_forward.2} parent=11 // pred_fallthru
        _
      // Predicated region
      $region41: #{swin_t_f_forward.2} parent=11 // pred_check
        %p787 = pneg %p263
      $region42: #{swin_t_f_forward.2} parent=11 // pred_check_branch
        %789 = sbr.rel (%p787) target = $region44
      $region43: #{swin_t_f_forward.2} parent=11 // pred_region
        _
      $region44: #{swin_t_f_forward.2} parent=11 // pred_fallthru
        _
      // Predicated region
      $region45: #{swin_t_f_forward.2} parent=11 // pred_check
        %p790 = pneg %p284
      $region46: #{swin_t_f_forward.2} parent=11 // pred_check_branch
        %792 = sbr.rel (%p790) target = $region48
      $region47: #{swin_t_f_forward.2} parent=11 // pred_region
        _
      $region48: #{swin_t_f_forward.2} parent=11 // pred_fallthru
        _
      // Predicated region
      $region49: #{swin_t_f_forward.2} parent=11 // pred_check
        %p793 = pneg %p305
      $region50: #{swin_t_f_forward.2} parent=11 // pred_check_branch
        %795 = sbr.rel (%p793) target = $region52
      $region51: #{swin_t_f_forward.2} parent=11 // pred_region
        _
      $region52: #{swin_t_f_forward.2} parent=11 // pred_fallthru
        _
      // Predicated region
      $region53: #{swin_t_f_forward.2} parent=11 // pred_check
        %p796 = pneg %p326
      $region54: #{swin_t_f_forward.2} parent=11 // pred_check_branch
        %798 = sbr.rel (%p796) target = $region56
      $region55: #{swin_t_f_forward.2} parent=11 // pred_region
        _
      $region56: #{swin_t_f_forward.2} parent=11 // pred_fallthru
        _
      // Predicated region
      $region57: #{swin_t_f_forward.2} parent=11 // pred_check
        %p799 = pneg %p347
      $region58: #{swin_t_f_forward.2} parent=11 // pred_check_branch
        %801 = sbr.rel (%p799) target = $region60
      $region59: #{swin_t_f_forward.2} parent=11 // pred_region
        _
      $region60: #{swin_t_f_forward.2} parent=11 // pred_fallthru
        _
      // Predicated region
      $region61: #{swin_t_f_forward.2} parent=11 // pred_check
        %p802 = pneg %p368
      $region62: #{swin_t_f_forward.2} parent=11 // pred_check_branch
        %804 = sbr.rel (%p802) target = $region64
      $region63: #{swin_t_f_forward.2} parent=11 // pred_region
        _
      $region64: #{swin_t_f_forward.2} parent=11 // pred_fallthru
        _
      // Predicated region
      $region65: #{swin_t_f_forward.2} parent=11 // pred_check
        %p805 = pneg %p389
      $region66: #{swin_t_f_forward.2} parent=11 // pred_check_branch
        %807 = sbr.rel (%p805) target = $region68
      $region67: #{swin_t_f_forward.2} parent=11 // pred_region
        _
      $region68: #{swin_t_f_forward.2} parent=11 // pred_fallthru
        _
      // Predicated region
      $region69: #{swin_t_f_forward.2} parent=11 // pred_check
        %p808 = pneg %p410
      $region70: #{swin_t_f_forward.2} parent=11 // pred_check_branch
        %810 = sbr.rel (%p808) target = $region72
      $region71: #{swin_t_f_forward.2} parent=11 // pred_region
        _
      $region72: #{swin_t_f_forward.2} parent=11 // pred_fallthru
        _
      // Predicated region
      $region73: #{swin_t_f_forward.2} parent=11 // pred_check
        %p811 = pneg %p431
      $region74: #{swin_t_f_forward.2} parent=11 // pred_check_branch
        %813 = sbr.rel (%p811) target = $region76
      $region75: #{swin_t_f_forward.2} parent=11 // pred_region
        _
      $region76: #{swin_t_f_forward.2} parent=11 // pred_fallthru
        _
      // Predicated region
      $region77: #{swin_t_f_forward.2} parent=11 // pred_check
        %p814 = pneg %p452
      $region78: #{swin_t_f_forward.2} parent=11 // pred_check_branch
        %816 = sbr.rel (%p814) target = $region80
      $region79: #{swin_t_f_forward.2} parent=11 // pred_region
        _
      $region80: #{swin_t_f_forward.2} parent=11 // pred_fallthru
        _
      // Predicated region
      $region81: #{swin_t_f_forward.2} parent=11 // pred_check
        %p817 = pneg %p473
      $region82: #{swin_t_f_forward.2} parent=11 // pred_check_branch
        %819 = sbr.rel (%p817) target = $region84
      $region83: #{swin_t_f_forward.2} parent=11 // pred_region
        _
      $region84: #{swin_t_f_forward.2} parent=11 // pred_fallthru
        _
      // Predicated region
      $region85: #{swin_t_f_forward.2} parent=11 // pred_check
        %p820 = pneg %p494
      $region86: #{swin_t_f_forward.2} parent=11 // pred_check_branch
        %822 = sbr.rel (%p820) target = $region88
      $region87: #{swin_t_f_forward.2} parent=11 // pred_region
        _
      $region88: #{swin_t_f_forward.2} parent=11 // pred_fallthru
        _
      // Predicated region
      $region89: #{swin_t_f_forward.2} parent=11 // pred_check
        %p823 = pneg %p515
      $region90: #{swin_t_f_forward.2} parent=11 // pred_check_branch
        %825 = sbr.rel (%p823) target = $region92
      $region91: #{swin_t_f_forward.2} parent=11 // pred_region
        _
      $region92: #{swin_t_f_forward.2} parent=11 // pred_fallthru
        _
      // Predicated region
      $region93: #{swin_t_f_forward.2} parent=11 // pred_check
        %p826 = pneg %p536
      $region94: #{swin_t_f_forward.2} parent=11 // pred_check_branch
        %828 = sbr.rel (%p826) target = $region96
      $region95: #{swin_t_f_forward.2} parent=11 // pred_region
        _
      $region96: #{swin_t_f_forward.2} parent=11 // pred_fallthru
        _
      // Predicated region
      $region97: #{swin_t_f_forward.2} parent=11 // pred_check
        %p829 = pneg %p557
      $region98: #{swin_t_f_forward.2} parent=11 // pred_check_branch
        %831 = sbr.rel (%p829) target = $region100
      $region99: #{swin_t_f_forward.2} parent=11 // pred_region
        _
      $region100: #{swin_t_f_forward.2} parent=11 // pred_fallthru
        _
      // Predicated region
      $region101: #{swin_t_f_forward.2} parent=11 // pred_check
        %p832 = pneg %p578
      $region102: #{swin_t_f_forward.2} parent=11 // pred_check_branch
        %834 = sbr.rel (%p832) target = $region104
      $region103: #{swin_t_f_forward.2} parent=11 // pred_region
        _
      $region104: #{swin_t_f_forward.2} parent=11 // pred_fallthru
        _
      // Predicated region
      $region105: #{swin_t_f_forward.2} parent=11 // pred_check
        %p835 = pneg %p599
      $region106: #{swin_t_f_forward.2} parent=11 // pred_check_branch
        %837 = sbr.rel (%p835) target = $region108
      $region107: #{swin_t_f_forward.2} parent=11 // pred_region
        _
      $region108: #{swin_t_f_forward.2} parent=11 // pred_fallthru
        _
      // Predicated region
      $region109: #{swin_t_f_forward.2} parent=11 // pred_check
        %p838 = pneg %p620
      $region110: #{swin_t_f_forward.2} parent=11 // pred_check_branch
        %840 = sbr.rel (%p838) target = $region112
      $region111: #{swin_t_f_forward.2} parent=11 // pred_region
        _
      $region112: #{swin_t_f_forward.2} parent=11 // pred_fallthru
        _
      // Predicated region
      $region113: #{swin_t_f_forward.2} parent=11 // pred_check
        %p841 = pneg %p641
      $region114: #{swin_t_f_forward.2} parent=11 // pred_check_branch
        %843 = sbr.rel (%p841) target = $region116
      $region115: #{swin_t_f_forward.2} parent=11 // pred_region
        _
      $region116: #{swin_t_f_forward.2} parent=11 // pred_fallthru
        _
      // Predicated region
      $region117: #{swin_t_f_forward.2} parent=11 // pred_check
        %p844 = pneg %p662
      $region118: #{swin_t_f_forward.2} parent=11 // pred_check_branch
        %846 = sbr.rel (%p844) target = $region120
      $region119: #{swin_t_f_forward.2} parent=11 // pred_region
        _
      $region120: #{swin_t_f_forward.2} parent=11 // pred_fallthru
        _
      // Predicated region
      $region121: #{swin_t_f_forward.2} parent=11 // pred_check
        %p847 = pneg %p683
      $region122: #{swin_t_f_forward.2} parent=11 // pred_check_branch
        %849 = sbr.rel (%p847) target = $region124
      $region123: #{swin_t_f_forward.2} parent=11 // pred_region
        _
      $region124: #{swin_t_f_forward.2} parent=11 // pred_fallthru
        _
      // Predicated region
      $region125: #{swin_t_f_forward.2} parent=11 // pred_check
        %p850 = pneg %p704
      $region126: #{swin_t_f_forward.2} parent=11 // pred_check_branch
        %852 = sbr.rel (%p850) target = $region128
      $region127: #{swin_t_f_forward.2} parent=11 // pred_region
        _
      $region128: #{swin_t_f_forward.2} parent=11 // pred_fallthru
        _
      // Predicated region
      $region129: #{swin_t_f_forward.2} parent=11 // pred_check
        %p853 = pneg %p725
      $region130: #{swin_t_f_forward.2} parent=11 // pred_check_branch
        %855 = sbr.rel (%p853) target = $region132
      $region131: #{swin_t_f_forward.2} parent=11 // pred_region
        _
      $region132: #{swin_t_f_forward.2} parent=11 // pred_fallthru
        _
    $region12: #{swin_t_f_forward.2} parent=5 // pred_fallthru
      _
    %p856 = scmp.lt.s32.totalorder %s69, 2
    // Predicated region
    $region133: #{swin_t_f_forward.2} parent=5 // pred_check
      %p857 = pneg %p856
    $region134: #{swin_t_f_forward.2} parent=5 // pred_check_branch
      %859 = sbr.rel (%p857) target = $region136
    $region135: #{swin_t_f_forward.2} parent=5 // pred_region
      // Predicated region
      $region137: #{swin_t_f_forward.2} parent=135 // pred_check
        %p860 = pneg %p89
      $region138: #{swin_t_f_forward.2} parent=135 // pred_check_branch
        %862 = sbr.rel (%p860) target = $region140
      $region139: #{swin_t_f_forward.2} parent=135 // pred_region
        %p863 = scmp.lt.s32.totalorder %s69, 1
        %s864 = scalar_select %p863, %s69, 1
        %s865 = smul.addr %s864, 8
        %s866 = smul.addr %s865, 8
        %s867 = scalar_lea.vmem %s1, %s866
      $region140: #{swin_t_f_forward.2} parent=135 // pred_fallthru
        _
    $region136: #{swin_t_f_forward.2} parent=5 // pred_fallthru
      _
    %p868 = scmp.le.s32.totalorder 1, %s69
    %p869 = scmp.lt.s32.totalorder %s69, 3
    %p870 = pnand %p868, %p869
    %p871 = pneg %p870
    // Predicated region
    $region141: #{swin_t_f_forward.2} parent=5 // pred_check
      _
    $region142: #{swin_t_f_forward.2} parent=5 // pred_check_branch
      %873 = sbr.rel (%p870) target = $region144
    $region143: #{swin_t_f_forward.2} parent=5 // pred_region
      %s874 = ssub.s32 %s69, 1
      %p875 = scmp.lt.s32.totalorder %s74, 1
      %s876 = scalar_select %p875, %s74, 1
      %s877 = smul.addr %s876, 8
      %s878 = smul.addr %s877, 8
      %s879 = scalar_lea.vmem %s1, %s878
      %p880 = pneg %p95
      %p881 = pneg %p92
      %p882 = pneg %p116
      %p883 = pneg %p113
      %p884 = pneg %p137
      %p885 = pneg %p134
      %p886 = pneg %p158
      %p887 = pneg %p155
      %p888 = pneg %p179
      %p889 = pneg %p176
      %p890 = pneg %p200
      %p891 = pneg %p197
      %p892 = pneg %p221
      %p893 = pneg %p218
      %p894 = pneg %p242
      %p895 = pneg %p239
      %p896 = pneg %p263
      %p897 = pneg %p260
      %p898 = pneg %p284
      %p899 = pneg %p281
      %p900 = pneg %p305
      %p901 = pneg %p302
      %p902 = pneg %p326
      %p903 = pneg %p323
      %p904 = pneg %p347
      %p905 = pneg %p344
      %p906 = pneg %p368
      %p907 = pneg %p365
      %p908 = pneg %p389
      %p909 = pneg %p386
      %p910 = pneg %p410
      %p911 = pneg %p407
      %p912 = pneg %p431
      %p913 = pneg %p428
      %p914 = pneg %p452
      %p915 = pneg %p449
      %p916 = pneg %p473
      %p917 = pneg %p470
      %p918 = pneg %p494
      %p919 = pneg %p491
      %p920 = pneg %p515
      %p921 = pneg %p512
      %p922 = pneg %p536
      %p923 = pneg %p533
      %p924 = pneg %p557
      %p925 = pneg %p554
      %p926 = pneg %p578
      %p927 = pneg %p575
      %p928 = pneg %p599
      %p929 = pneg %p596
      %p930 = pneg %p620
      %p931 = pneg %p617
      %p932 = pneg %p641
      %p933 = pneg %p638
      %p934 = pneg %p662
      %p935 = pneg %p659
      %p936 = pneg %p683
      %p937 = pneg %p680
      %p938 = pneg %p704
      %p939 = pneg %p701
      %p940 = pneg %p725
      %p941 = pneg %p722
      %p942 = pneg %p751
      %p943 = pneg %p748
      %p944 = scmp.lt.s32.totalorder %s74, 1
      %s945 = scalar_select %p944, %s74, 1
      %s946 = smul.addr %s945, 8
      %s947 = smul.addr %s946, 8
      %s948 = scalar_lea.vmem %s63, %s947
      %p949 = scmp.lt.s32.totalorder %s74, 1
      %s950 = scalar_select %p949, %s74, 1
      %s951 = smul.addr %s950, 8
      %s952 = smul.addr %s951, 8
      %s953 = scalar_lea.vmem %s1, %s952
      %p954 = scmp.lt.s32.totalorder %s74, 1
      %s955 = scalar_select %p954, %s74, 1
      %s956 = smul.addr %s955, 8
      %s957 = smul.addr %s956, 8
      %s958 = scalar_lea.vmem %s63, %s957
      %v960 = vld [vmem:[%s953] sm:$0xff]
      %v961 = vld [vmem:[%s953 + $0x8] sm:$0xff]
      %v962 = vld [vmem:[%s953 + $0x10] sm:$0xff]
      %v963 = vld [vmem:[%s953 + $0x18] sm:$0xff]
      %v964 = vld [vmem:[%s953 + $0x20] sm:$0xff]
      %v965 = vld [vmem:[%s953 + $0x28] sm:$0xff]
      %v966 = vld [vmem:[%s953 + $0x30] sm:$0xff]
      %v967 = vld [vmem:[%s953 + $0x38] sm:$0xff]
      %v968 = vld [vmem:[%s3] sm:$0xf]
      %v969 = vld [vmem:[%s3 + $0x4] sm:$0xf]
      %v970 = vld [vmem:[%s3 + $0x8] sm:$0xf]
      %v971 = vld [vmem:[%s3 + $0xc] sm:$0xf]
      %v972 = vld [vmem:[%s3 + $0x10] sm:$0xf]
      %v973 = vld [vmem:[%s3 + $0x14] sm:$0xf]
      %v974 = vld [vmem:[%s3 + $0x18] sm:$0xf]
      %v975 = vld [vmem:[%s3 + $0x1c] sm:$0xf]
      %v976 = vld [vmem:[%s3 + $0x20] sm:$0xf]
      %v977 = vld [vmem:[%s3 + $0x24] sm:$0xf]
      %v978 = vld [vmem:[%s3 + $0x28] sm:$0xf]
      %v979 = vld [vmem:[%s3 + $0x2c] sm:$0xf]
      %v980 = vld [vmem:[%s3 + $0x30] sm:$0xf]
      %v981 = vld [vmem:[%s3 + $0x34] sm:$0xf]
      %v982 = vld [vmem:[%s3 + $0x38] sm:$0xf]
      %v983 = vld [vmem:[%s3 + $0x3c] sm:$0xf]
      %v984 = vpack.c.bf16 %v961, %v960
      %v985 = vpack.c.bf16 %v963, %v962
      %v986 = vpack.c.bf16 %v965, %v964
      %v987 = vpack.c.bf16 %v967, %v966
      %v988 = vld [vmem:[%s5] sm:$0x1]
      %v990 = vperm.slane %v988, 0
      %v1008 = vunpack.c.l.b16 %v968
      %v1009 = vunpack.c.l.b16 %v969
      %v1010 = vunpack.c.l.b16 %v970
      %v1011 = vunpack.c.l.b16 %v971
      %v1012 = vunpack.c.l.b16 %v972
      %v1013 = vunpack.c.l.b16 %v973
      %v1014 = vunpack.c.l.b16 %v974
      %v1015 = vunpack.c.l.b16 %v975
      %v1016 = vunpack.c.l.b16 %v976
      %v1017 = vunpack.c.l.b16 %v977
      %v1018 = vunpack.c.l.b16 %v978
      %v1019 = vunpack.c.l.b16 %v979
      %v1020 = vunpack.c.l.b16 %v980
      %v1021 = vunpack.c.l.b16 %v981
      %v1022 = vunpack.c.l.b16 %v982
      %v1023 = vunpack.c.l.b16 %v983
      %v1024 = vpack.c.b16 %v1009, %v1008
      %v1025 = vpack.c.b16 %v1011, %v1010
      %v1026 = vpack.c.b16 %v1013, %v1012
      %v1027 = vpack.c.b16 %v1015, %v1014
      %v1028 = vpack.c.b16 %v1017, %v1016
      %v1029 = vpack.c.b16 %v1019, %v1018
      %v1030 = vpack.c.b16 %v1021, %v1020
      %v1031 = vpack.c.b16 %v1023, %v1022
      %1040 = vmatpush.bf16.msra.mxu0 %v1031
      %1041 = vmatpush.bf16.msra.mxu0 %v1030
      %1042 = vmatpush.bf16.msra.mxu0 %v1029
      %1043 = vmatpush.bf16.msra.mxu0 %v1028
      %1044 = vmatpush.bf16.msra.mxu0 %v1027
      %1045 = vmatpush.bf16.msra.mxu0 %v1026
      %1046 = vmatpush.bf16.msra.mxu0 %v1025
      %1047 = vmatpush.bf16.msra.mxu0 %v1024
      %1048 = vmatmul.bf16.gmra.mxu0 %v984
      %v1049 = vpop.f32.mrf.mxu0
      %v1050 = vadd.f32 %v990, %v1049
      %v1051 = vpop.f32.mrf.mxu0
      %v1052 = vadd.f32 %v990, %v1051
      %1053 = vmatmul.bf16.gmra.mxu0 %v985
      %v1054 = vpop.f32.mrf.mxu0
      %v1055 = vadd.f32 %v990, %v1054
      %v1056 = vpop.f32.mrf.mxu0
      %v1057 = vadd.f32 %v990, %v1056
      %1058 = vmatmul.bf16.gmra.mxu0 %v986
      %v1059 = vpop.f32.mrf.mxu0
      %v1060 = vadd.f32 %v990, %v1059
      %v1061 = vpop.f32.mrf.mxu0
      %v1062 = vadd.f32 %v990, %v1061
      %1063 = vmatmul.bf16.gmra.mxu0 %v987
      %v1064 = vpop.f32.mrf.mxu0
      %v1065 = vadd.f32 %v990, %v1064
      %v1066 = vpop.f32.mrf.mxu0
      %v1067 = vadd.f32 %v990, %v1066
      %1068 = vdwg.mxu0
      %v1069 = vld [vmem:[%s7] sm:$0x1]
      %v1070 = vld [vmem:[%s9] sm:$0x1]
      %vm1071 = vcmask 261120
      %v1072 = vsel %vm1071, %v1050, 0.0
      %1073 = vadd.xlane.f32.xlu0 %v1072
      %v1074 = vpop.xlane.xlu0 %1073
      %v1075 = vsel %vm1071, %v1052, 0.0
      %1076 = vadd.xlane.f32.xlu0 %v1075
      %v1077 = vpop.xlane.xlu0 %1076
      %v1078 = vsel %vm1071, %v1055, 0.0
      %1079 = vadd.xlane.f32.xlu0 %v1078
      %v1080 = vpop.xlane.xlu0 %1079
      %v1081 = vsel %vm1071, %v1057, 0.0
      %1082 = vadd.xlane.f32.xlu0 %v1081
      %v1083 = vpop.xlane.xlu0 %1082
      %v1084 = vsel %vm1071, %v1060, 0.0
      %1085 = vadd.xlane.f32.xlu0 %v1084
      %v1086 = vpop.xlane.xlu0 %1085
      %v1087 = vsel %vm1071, %v1062, 0.0
      %1088 = vadd.xlane.f32.xlu0 %v1087
      %v1089 = vpop.xlane.xlu0 %1088
      %v1090 = vsel %vm1071, %v1065, 0.0
      %1091 = vadd.xlane.f32.xlu0 %v1090
      %v1092 = vpop.xlane.xlu0 %1091
      %v1093 = vsel %vm1071, %v1067, 0.0
      %1094 = vadd.xlane.f32.xlu0 %v1093
      %v1095 = vpop.xlane.xlu0 %1094
      %v1096 = vrcp.pop 32.0
      %v1097 = vmul.f32 32.0, %v1096
      %v1098 = vsub.f32 1.0, %v1097
      %v1099 = vmul.f32 %v1096, %v1098
      %v1100 = vadd.f32 %v1096, %v1099
      %vm1101 = vweird.f32 %v1096
      %v1102 = vsel %vm1101, %v1096, %v1100
      %v1103 = vmul.f32 %v1074, %v1102
      %v1104 = vmul.f32 %v1077, %v1102
      %v1105 = vmul.f32 %v1080, %v1102
      %v1106 = vmul.f32 %v1083, %v1102
      %v1107 = vmul.f32 %v1086, %v1102
      %v1108 = vmul.f32 %v1089, %v1102
      %v1109 = vmul.f32 %v1092, %v1102
      %v1110 = vmul.f32 %v1095, %v1102
      %v1111 = vsub.f32 %v1050, %v1103
      %v1112 = vsub.f32 %v1052, %v1104
      %v1113 = vsub.f32 %v1055, %v1105
      %v1114 = vsub.f32 %v1057, %v1106
      %v1115 = vsub.f32 %v1060, %v1107
      %v1116 = vsub.f32 %v1062, %v1108
      %v1117 = vsub.f32 %v1065, %v1109
      %v1118 = vsub.f32 %v1067, %v1110
      %v1119 = vmul.f32 %v1111, %v1111
      %v1120 = vmul.f32 %v1112, %v1112
      %v1121 = vmul.f32 %v1113, %v1113
      %v1122 = vmul.f32 %v1114, %v1114
      %v1123 = vmul.f32 %v1115, %v1115
      %v1124 = vmul.f32 %v1116, %v1116
      %v1125 = vmul.f32 %v1117, %v1117
      %v1126 = vmul.f32 %v1118, %v1118
      %v1127 = vsel %vm1071, %v1119, 0.0
      %1128 = vadd.xlane.f32.xlu0 %v1127
      %v1129 = vpop.xlane.xlu0 %1128
      %v1130 = vsel %vm1071, %v1120, 0.0
      %1131 = vadd.xlane.f32.xlu0 %v1130
      %v1132 = vpop.xlane.xlu0 %1131
      %v1133 = vsel %vm1071, %v1121, 0.0
      %1134 = vadd.xlane.f32.xlu0 %v1133
      %v1135 = vpop.xlane.xlu0 %1134
      %v1136 = vsel %vm1071, %v1122, 0.0
      %1137 = vadd.xlane.f32.xlu0 %v1136
      %v1138 = vpop.xlane.xlu0 %1137
      %v1139 = vsel %vm1071, %v1123, 0.0
      %1140 = vadd.xlane.f32.xlu0 %v1139
      %v1141 = vpop.xlane.xlu0 %1140
      %v1142 = vsel %vm1071, %v1124, 0.0
      %1143 = vadd.xlane.f32.xlu0 %v1142
      %v1144 = vpop.xlane.xlu0 %1143
      %v1145 = vsel %vm1071, %v1125, 0.0
      %1146 = vadd.xlane.f32.xlu0 %v1145
      %v1147 = vpop.xlane.xlu0 %1146
      %v1148 = vsel %vm1071, %v1126, 0.0
      %1149 = vadd.xlane.f32.xlu0 %v1148
      %v1150 = vpop.xlane.xlu0 %1149
      %v1151 = vmul.f32 %v1129, %v1102
      %v1152 = vmul.f32 %v1132, %v1102
      %v1153 = vmul.f32 %v1135, %v1102
      %v1154 = vmul.f32 %v1138, %v1102
      %v1155 = vmul.f32 %v1141, %v1102
      %v1156 = vmul.f32 %v1144, %v1102
      %v1157 = vmul.f32 %v1147, %v1102
      %v1158 = vmul.f32 %v1150, %v1102
      %v1159 = vadd.f32 %v1151, 1e-05
      %v1160 = vadd.f32 %v1152, 1e-05
      %v1161 = vadd.f32 %v1153, 1e-05
      %v1162 = vadd.f32 %v1154, 1e-05
      %v1163 = vadd.f32 %v1155, 1e-05
      %v1164 = vadd.f32 %v1156, 1e-05
      %v1165 = vadd.f32 %v1157, 1e-05
      %v1166 = vadd.f32 %v1158, 1e-05
      %v1167 = vrsqrt.pop %v1159
      %v1168 = vmul.f32 %v1167, %v1159
      %v1169 = vmul.f32 %v1168, %v1167
      %v1170 = vmul.f32 0.5, %v1169
      %v1171 = vsub.f32 1.5, %v1170
      %v1172 = vmul.f32 %v1167, %v1171
      %vm1173 = vweird.f32 %v1159
      %vm1174 = vweird.f32 %v1167
      %vm1175 = vmor %vm1173, %vm1174
      %v1176 = vsel %vm1175, %v1167, %v1172
      %v1177 = vrsqrt.pop %v1160
      %v1178 = vmul.f32 %v1177, %v1160
      %v1179 = vmul.f32 %v1178, %v1177
      %v1180 = vmul.f32 0.5, %v1179
      %v1181 = vsub.f32 1.5, %v1180
      %v1182 = vmul.f32 %v1177, %v1181
      %vm1183 = vweird.f32 %v1160
      %vm1184 = vweird.f32 %v1177
      %vm1185 = vmor %vm1183, %vm1184
      %v1186 = vsel %vm1185, %v1177, %v1182
      %v1187 = vrsqrt.pop %v1161
      %v1188 = vmul.f32 %v1187, %v1161
      %v1189 = vmul.f32 %v1188, %v1187
      %v1190 = vmul.f32 0.5, %v1189
      %v1191 = vsub.f32 1.5, %v1190
      %v1192 = vmul.f32 %v1187, %v1191
      %vm1193 = vweird.f32 %v1161
      %vm1194 = vweird.f32 %v1187
      %vm1195 = vmor %vm1193, %vm1194
      %v1196 = vsel %vm1195, %v1187, %v1192
      %v1197 = vrsqrt.pop %v1162
      %v1198 = vmul.f32 %v1197, %v1162
      %v1199 = vmul.f32 %v1198, %v1197
      %v1200 = vmul.f32 0.5, %v1199
      %v1201 = vsub.f32 1.5, %v1200
      %v1202 = vmul.f32 %v1197, %v1201
      %vm1203 = vweird.f32 %v1162
      %vm1204 = vweird.f32 %v1197
      %vm1205 = vmor %vm1203, %vm1204
      %v1206 = vsel %vm1205, %v1197, %v1202
      %v1207 = vrsqrt.pop %v1163
      %v1208 = vmul.f32 %v1207, %v1163
      %v1209 = vmul.f32 %v1208, %v1207
      %v1210 = vmul.f32 0.5, %v1209
      %v1211 = vsub.f32 1.5, %v1210
      %v1212 = vmul.f32 %v1207, %v1211
      %vm1213 = vweird.f32 %v1163
      %vm1214 = vweird.f32 %v1207
      %vm1215 = vmor %vm1213, %vm1214
      %v1216 = vsel %vm1215, %v1207, %v1212
      %v1217 = vrsqrt.pop %v1164
      %v1218 = vmul.f32 %v1217, %v1164
      %v1219 = vmul.f32 %v1218, %v1217
      %v1220 = vmul.f32 0.5, %v1219
      %v1221 = vsub.f32 1.5, %v1220
      %v1222 = vmul.f32 %v1217, %v1221
      %vm1223 = vweird.f32 %v1164
      %vm1224 = vweird.f32 %v1217
      %vm1225 = vmor %vm1223, %vm1224
      %v1226 = vsel %vm1225, %v1217, %v1222
      %v1227 = vrsqrt.pop %v1165
      %v1228 = vmul.f32 %v1227, %v1165
      %v1229 = vmul.f32 %v1228, %v1227
      %v1230 = vmul.f32 0.5, %v1229
      %v1231 = vsub.f32 1.5, %v1230
      %v1232 = vmul.f32 %v1227, %v1231
      %vm1233 = vweird.f32 %v1165
      %vm1234 = vweird.f32 %v1227
      %vm1235 = vmor %vm1233, %vm1234
      %v1236 = vsel %vm1235, %v1227, %v1232
      %v1237 = vrsqrt.pop %v1166
      %v1238 = vmul.f32 %v1237, %v1166
      %v1239 = vmul.f32 %v1238, %v1237
      %v1240 = vmul.f32 0.5, %v1239
      %v1241 = vsub.f32 1.5, %v1240
      %v1242 = vmul.f32 %v1237, %v1241
      %vm1243 = vweird.f32 %v1166
      %vm1244 = vweird.f32 %v1237
      %vm1245 = vmor %vm1243, %vm1244
      %v1246 = vsel %vm1245, %v1237, %v1242
      %v1247 = vmul.f32 %v1111, %v1176
      %v1248 = vmul.f32 %v1112, %v1186
      %v1249 = vmul.f32 %v1113, %v1196
      %v1250 = vmul.f32 %v1114, %v1206
      %v1251 = vmul.f32 %v1115, %v1216
      %v1252 = vmul.f32 %v1116, %v1226
      %v1253 = vmul.f32 %v1117, %v1236
      %v1254 = vmul.f32 %v1118, %v1246
      %v1256 = vperm.slane %v1069, 0
      %v1258 = vmul.f32 %v1247, %v1256
      %v1259 = vmul.f32 %v1248, %v1256
      %v1260 = vmul.f32 %v1249, %v1256
      %v1261 = vmul.f32 %v1250, %v1256
      %v1262 = vmul.f32 %v1251, %v1256
      %v1263 = vmul.f32 %v1252, %v1256
      %v1264 = vmul.f32 %v1253, %v1256
      %v1265 = vmul.f32 %v1254, %v1256
      %v1267 = vperm.slane %v1070, 0
      %v1269 = vadd.f32 %v1258, %v1267
      %v1270 = vadd.f32 %v1259, %v1267
      %v1271 = vadd.f32 %v1260, %v1267
      %v1272 = vadd.f32 %v1261, %v1267
      %v1273 = vadd.f32 %v1262, %v1267
      %v1274 = vadd.f32 %v1263, %v1267
      %v1275 = vadd.f32 %v1264, %v1267
      %v1276 = vadd.f32 %v1265, %v1267
      %v1277 = vld [vmem:[%s11] sm:$0x1]
      %v1278 = vld [vmem:[%s13] sm:$0x1]
      %v1279 = vsel %vm1071, %v1269, 0.0
      %1280 = vadd.xlane.f32.xlu0 %v1279
      %v1281 = vpop.xlane.xlu0 %1280
      %v1282 = vsel %vm1071, %v1270, 0.0
      %1283 = vadd.xlane.f32.xlu0 %v1282
      %v1284 = vpop.xlane.xlu0 %1283
      %v1285 = vsel %vm1071, %v1271, 0.0
      %1286 = vadd.xlane.f32.xlu0 %v1285
      %v1287 = vpop.xlane.xlu0 %1286
      %v1288 = vsel %vm1071, %v1272, 0.0
      %1289 = vadd.xlane.f32.xlu0 %v1288
      %v1290 = vpop.xlane.xlu0 %1289
      %v1291 = vsel %vm1071, %v1273, 0.0
      %1292 = vadd.xlane.f32.xlu0 %v1291
      %v1293 = vpop.xlane.xlu0 %1292
      %v1294 = vsel %vm1071, %v1274, 0.0
      %1295 = vadd.xlane.f32.xlu0 %v1294
      %v1296 = vpop.xlane.xlu0 %1295
      %v1297 = vsel %vm1071, %v1275, 0.0
      %1298 = vadd.xlane.f32.xlu0 %v1297
      %v1299 = vpop.xlane.xlu0 %1298
      %v1300 = vsel %vm1071, %v1276, 0.0
      %1301 = vadd.xlane.f32.xlu0 %v1300
      %v1302 = vpop.xlane.xlu0 %1301
      %v1303 = vmul.f32 %v1281, %v1102
      %v1304 = vmul.f32 %v1284, %v1102
      %v1305 = vmul.f32 %v1287, %v1102
      %v1306 = vmul.f32 %v1290, %v1102
      %v1307 = vmul.f32 %v1293, %v1102
      %v1308 = vmul.f32 %v1296, %v1102
      %v1309 = vmul.f32 %v1299, %v1102
      %v1310 = vmul.f32 %v1302, %v1102
      %v1311 = vsub.f32 %v1269, %v1303
      %v1312 = vsub.f32 %v1270, %v1304
      %v1313 = vsub.f32 %v1271, %v1305
      %v1314 = vsub.f32 %v1272, %v1306
      %v1315 = vsub.f32 %v1273, %v1307
      %v1316 = vsub.f32 %v1274, %v1308
      %v1317 = vsub.f32 %v1275, %v1309
      %v1318 = vsub.f32 %v1276, %v1310
      %v1319 = vmul.f32 %v1311, %v1311
      %v1320 = vmul.f32 %v1312, %v1312
      %v1321 = vmul.f32 %v1313, %v1313
      %v1322 = vmul.f32 %v1314, %v1314
      %v1323 = vmul.f32 %v1315, %v1315
      %v1324 = vmul.f32 %v1316, %v1316
      %v1325 = vmul.f32 %v1317, %v1317
      %v1326 = vmul.f32 %v1318, %v1318
      %v1327 = vsel %vm1071, %v1319, 0.0
      %1328 = vadd.xlane.f32.xlu0 %v1327
      %v1329 = vpop.xlane.xlu0 %1328
      %v1330 = vsel %vm1071, %v1320, 0.0
      %1331 = vadd.xlane.f32.xlu0 %v1330
      %v1332 = vpop.xlane.xlu0 %1331
      %v1333 = vsel %vm1071, %v1321, 0.0
      %1334 = vadd.xlane.f32.xlu0 %v1333
      %v1335 = vpop.xlane.xlu0 %1334
      %v1336 = vsel %vm1071, %v1322, 0.0
      %1337 = vadd.xlane.f32.xlu0 %v1336
      %v1338 = vpop.xlane.xlu0 %1337
      %v1339 = vsel %vm1071, %v1323, 0.0
      %1340 = vadd.xlane.f32.xlu0 %v1339
      %v1341 = vpop.xlane.xlu0 %1340
      %v1342 = vsel %vm1071, %v1324, 0.0
      %1343 = vadd.xlane.f32.xlu0 %v1342
      %v1344 = vpop.xlane.xlu0 %1343
      %v1345 = vsel %vm1071, %v1325, 0.0
      %1346 = vadd.xlane.f32.xlu0 %v1345
      %v1347 = vpop.xlane.xlu0 %1346
      %v1348 = vsel %vm1071, %v1326, 0.0
      %1349 = vadd.xlane.f32.xlu0 %v1348
      %v1350 = vpop.xlane.xlu0 %1349
      %v1351 = vmul.f32 %v1329, %v1102
      %v1352 = vmul.f32 %v1332, %v1102
      %v1353 = vmul.f32 %v1335, %v1102
      %v1354 = vmul.f32 %v1338, %v1102
      %v1355 = vmul.f32 %v1341, %v1102
      %v1356 = vmul.f32 %v1344, %v1102
      %v1357 = vmul.f32 %v1347, %v1102
      %v1358 = vmul.f32 %v1350, %v1102
      %v1359 = vadd.f32 %v1351, 1e-05
      %v1360 = vadd.f32 %v1352, 1e-05
      %v1361 = vadd.f32 %v1353, 1e-05
      %v1362 = vadd.f32 %v1354, 1e-05
      %v1363 = vadd.f32 %v1355, 1e-05
      %v1364 = vadd.f32 %v1356, 1e-05
      %v1365 = vadd.f32 %v1357, 1e-05
      %v1366 = vadd.f32 %v1358, 1e-05
      %v1367 = vrsqrt.pop %v1359
      %v1368 = vmul.f32 %v1367, %v1359
      %v1369 = vmul.f32 %v1368, %v1367
      %v1370 = vmul.f32 0.5, %v1369
      %v1371 = vsub.f32 1.5, %v1370
      %v1372 = vmul.f32 %v1367, %v1371
      %vm1373 = vweird.f32 %v1359
      %vm1374 = vweird.f32 %v1367
      %vm1375 = vmor %vm1373, %vm1374
      %v1376 = vsel %vm1375, %v1367, %v1372
      %v1377 = vrsqrt.pop %v1360
      %v1378 = vmul.f32 %v1377, %v1360
      %v1379 = vmul.f32 %v1378, %v1377
      %v1380 = vmul.f32 0.5, %v1379
      %v1381 = vsub.f32 1.5, %v1380
      %v1382 = vmul.f32 %v1377, %v1381
      %vm1383 = vweird.f32 %v1360
      %vm1384 = vweird.f32 %v1377
      %vm1385 = vmor %vm1383, %vm1384
      %v1386 = vsel %vm1385, %v1377, %v1382
      %v1387 = vrsqrt.pop %v1361
      %v1388 = vmul.f32 %v1387, %v1361
      %v1389 = vmul.f32 %v1388, %v1387
      %v1390 = vmul.f32 0.5, %v1389
      %v1391 = vsub.f32 1.5, %v1390
      %v1392 = vmul.f32 %v1387, %v1391
      %vm1393 = vweird.f32 %v1361
      %vm1394 = vweird.f32 %v1387
      %vm1395 = vmor %vm1393, %vm1394
      %v1396 = vsel %vm1395, %v1387, %v1392
      %v1397 = vrsqrt.pop %v1362
      %v1398 = vmul.f32 %v1397, %v1362
      %v1399 = vmul.f32 %v1398, %v1397
      %v1400 = vmul.f32 0.5, %v1399
      %v1401 = vsub.f32 1.5, %v1400
      %v1402 = vmul.f32 %v1397, %v1401
      %vm1403 = vweird.f32 %v1362
      %vm1404 = vweird.f32 %v1397
      %vm1405 = vmor %vm1403, %vm1404
      %v1406 = vsel %vm1405, %v1397, %v1402
      %v1407 = vrsqrt.pop %v1363
      %v1408 = vmul.f32 %v1407, %v1363
      %v1409 = vmul.f32 %v1408, %v1407
      %v1410 = vmul.f32 0.5, %v1409
      %v1411 = vsub.f32 1.5, %v1410
      %v1412 = vmul.f32 %v1407, %v1411
      %vm1413 = vweird.f32 %v1363
      %vm1414 = vweird.f32 %v1407
      %vm1415 = vmor %vm1413, %vm1414
      %v1416 = vsel %vm1415, %v1407, %v1412
      %v1417 = vrsqrt.pop %v1364
      %v1418 = vmul.f32 %v1417, %v1364
      %v1419 = vmul.f32 %v1418, %v1417
      %v1420 = vmul.f32 0.5, %v1419
      %v1421 = vsub.f32 1.5, %v1420
      %v1422 = vmul.f32 %v1417, %v1421
      %vm1423 = vweird.f32 %v1364
      %vm1424 = vweird.f32 %v1417
      %vm1425 = vmor %vm1423, %vm1424
      %v1426 = vsel %vm1425, %v1417, %v1422
      %v1427 = vrsqrt.pop %v1365
      %v1428 = vmul.f32 %v1427, %v1365
      %v1429 = vmul.f32 %v1428, %v1427
      %v1430 = vmul.f32 0.5, %v1429
      %v1431 = vsub.f32 1.5, %v1430
      %v1432 = vmul.f32 %v1427, %v1431
      %vm1433 = vweird.f32 %v1365
      %vm1434 = vweird.f32 %v1427
      %vm1435 = vmor %vm1433, %vm1434
      %v1436 = vsel %vm1435, %v1427, %v1432
      %v1437 = vrsqrt.pop %v1366
      %v1438 = vmul.f32 %v1437, %v1366
      %v1439 = vmul.f32 %v1438, %v1437
      %v1440 = vmul.f32 0.5, %v1439
      %v1441 = vsub.f32 1.5, %v1440
      %v1442 = vmul.f32 %v1437, %v1441
      %vm1443 = vweird.f32 %v1366
      %vm1444 = vweird.f32 %v1437
      %vm1445 = vmor %vm1443, %vm1444
      %v1446 = vsel %vm1445, %v1437, %v1442
      %v1447 = vmul.f32 %v1311, %v1376
      %v1448 = vmul.f32 %v1312, %v1386
      %v1449 = vmul.f32 %v1313, %v1396
      %v1450 = vmul.f32 %v1314, %v1406
      %v1451 = vmul.f32 %v1315, %v1416
      %v1452 = vmul.f32 %v1316, %v1426
      %v1453 = vmul.f32 %v1317, %v1436
      %v1454 = vmul.f32 %v1318, %v1446
      %v1456 = vperm.slane %v1277, 0
      %v1458 = vmul.f32 %v1447, %v1456
      %v1459 = vmul.f32 %v1448, %v1456
      %v1460 = vmul.f32 %v1449, %v1456
      %v1461 = vmul.f32 %v1450, %v1456
      %v1462 = vmul.f32 %v1451, %v1456
      %v1463 = vmul.f32 %v1452, %v1456
      %v1464 = vmul.f32 %v1453, %v1456
      %v1465 = vmul.f32 %v1454, %v1456
      %v1467 = vperm.slane %v1278, 0
      %v1469 = vadd.f32 %v1458, %v1467
      %v1470 = vadd.f32 %v1459, %v1467
      %v1471 = vadd.f32 %v1460, %v1467
      %v1472 = vadd.f32 %v1461, %v1467
      %v1473 = vadd.f32 %v1462, %v1467
      %v1474 = vadd.f32 %v1463, %v1467
      %v1475 = vadd.f32 %v1464, %v1467
      %v1476 = vadd.f32 %v1465, %v1467
      %v1477 = vld [vmem:[%s15] sm:$0xf]
      %v1478 = vld [vmem:[%s15 + $0x4] sm:$0xf]
      %v1479 = vld [vmem:[%s15 + $0x8] sm:$0xf]
      %v1480 = vld [vmem:[%s15 + $0xc] sm:$0xf]
      %v1481 = vpack.c.bf16 %v1470, %v1469
      %v1482 = vpack.c.bf16 %v1472, %v1471
      %v1483 = vpack.c.bf16 %v1474, %v1473
      %v1484 = vpack.c.bf16 %v1476, %v1475
      %v1485 = vld [vmem:[%s17] sm:$0x1]
      %v1487 = vperm.slane %v1485, 0
      %v1493 = vunpack.c.l.b16 %v1477
      %v1494 = vunpack.c.l.b16 %v1478
      %v1495 = vunpack.c.l.b16 %v1479
      %v1496 = vunpack.c.l.b16 %v1480
      %v1497 = vpack.c.b16 %v1494, %v1493
      %v1498 = vpack.c.b16 %v1496, %v1495
      %v1502 = vsel %vm1071, %v1481, 0
      %v1505 = vsel %vm1071, %v1482, 0
      %v1508 = vsel %vm1071, %v1483, 0
      %v1511 = vsel %vm1071, %v1484, 0
      %1513 = vmatpush.bf16.msra.mxu0 0
      %1514 = vmatpush.bf16.msra.mxu0 0
      %1515 = vmatpush.bf16.msra.mxu0 0
      %1516 = vmatpush.bf16.msra.mxu0 0
      %1517 = vmatpush.bf16.msra.mxu0 0
      %1518 = vmatpush.bf16.msra.mxu0 0
      %1519 = vmatpush.bf16.msra.mxu0 %v1498
      %1520 = vmatpush.bf16.msra.mxu0 %v1497
      %1521 = vmatmul.bf16.gmra.mxu0 %v1502
      %v1522 = vpop.f32.mrf.mxu0
      %v1523 = vadd.f32 %v1487, %v1522
      %v1524 = vpop.f32.mrf.mxu0
      %v1525 = vadd.f32 %v1487, %v1524
      %1526 = vmatmul.bf16.gmra.mxu0 %v1505
      %v1527 = vpop.f32.mrf.mxu0
      %v1528 = vadd.f32 %v1487, %v1527
      %v1529 = vpop.f32.mrf.mxu0
      %v1530 = vadd.f32 %v1487, %v1529
      %1531 = vmatmul.bf16.gmra.mxu0 %v1508
      %v1532 = vpop.f32.mrf.mxu0
      %v1533 = vadd.f32 %v1487, %v1532
      %v1534 = vpop.f32.mrf.mxu0
      %v1535 = vadd.f32 %v1487, %v1534
      %1536 = vmatmul.bf16.gmra.mxu0 %v1511
      %v1537 = vpop.f32.mrf.mxu0
      %v1538 = vadd.f32 %v1487, %v1537
      %v1539 = vpop.f32.mrf.mxu0
      %v1540 = vadd.f32 %v1487, %v1539
      %1541 = vdwg.mxu0
      %v1542 = vmul.f32 %v1523, 0.25
      %v1543 = vmul.f32 %v1525, 0.25
      %v1544 = vmul.f32 %v1528, 0.25
      %v1545 = vmul.f32 %v1530, 0.25
      %v1546 = vmul.f32 %v1533, 0.25
      %v1547 = vmul.f32 %v1535, 0.25
      %v1548 = vmul.f32 %v1538, 0.25
      %v1549 = vmul.f32 %v1540, 0.25
      %v1550 = vpack.c.bf16 %v1543, %v1542
      %v1551 = vpack.c.bf16 %v1545, %v1544
      %v1552 = vpack.c.bf16 %v1547, %v1546
      %v1553 = vpack.c.bf16 %v1549, %v1548
      %v1554 = vpack.c.bf16 %v1525, %v1523
      %v1555 = vpack.c.bf16 %v1530, %v1528
      %v1556 = vpack.c.bf16 %v1535, %v1533
      %v1557 = vpack.c.bf16 %v1540, %v1538
      %v1558 = vld [vmem:[%s19] sm:$0xff]
      %v1559 = vld [vmem:[%s19 + $0x8] sm:$0xff]
      %v1560 = vld [vmem:[%s19 + $0x10] sm:$0xff]
      %v1561 = vld [vmem:[%s19 + $0x18] sm:$0xff]
      %v1562 = vld [vmem:[%s19 + $0x20] sm:$0xff]
      %v1563 = vld [vmem:[%s19 + $0x28] sm:$0xff]
      %v1564 = vld [vmem:[%s19 + $0x30] sm:$0xff]
      %v1565 = vld [vmem:[%s19 + $0x38] sm:$0xff]
      %1570 = vrot.lane.b32.xlu0 %v1554, 96
      %v1571 = vpop.permute.xlu0 %1570
      %1572 = vrot.lane.b32.xlu0 %v1555, 96
      %v1573 = vpop.permute.xlu0 %1572
      %1574 = vrot.lane.b32.xlu0 %v1556, 96
      %v1575 = vpop.permute.xlu0 %1574
      %1576 = vrot.lane.b32.xlu0 %v1557, 96
      %v1577 = vpop.permute.xlu0 %1576
      %vm1578 = vcmask 130048
      %v1580 = vsel %vm1578, %v1550, 0
      %v1583 = vsel %vm1578, %v1551, 0
      %v1586 = vsel %vm1578, %v1552, 0
      %v1589 = vsel %vm1578, %v1553, 0
      %v1592 = vsel %vm1578, %v1571, 0
      %v1595 = vsel %vm1578, %v1573, 0
      %v1598 = vsel %vm1578, %v1575, 0
      %v1601 = vsel %vm1578, %v1577, 0
      %1603 = vmatpush.bf16.xpose.msra.mxu0 0
      %1604 = vmatpush.bf16.xpose.msra.mxu0 0
      %1605 = vmatpush.bf16.xpose.msra.mxu0 0
      %1606 = vmatpush.bf16.xpose.msra.mxu0 0
      %1607 = vmatpush.bf16.xpose.msra.mxu0 %v1601
      %1608 = vmatpush.bf16.xpose.msra.mxu0 %v1598
      %1609 = vmatpush.bf16.xpose.msra.mxu0 %v1595
      %1610 = vmatpush.bf16.xpose.msra.mxu0 %v1592
      %1611 = vmatmul.bf16.gmra.mxu0 %v1580
      %v1612 = vpop.f32.mrf.mxu0
      %v1613 = vadd.f32 %v1558, %v1612
      %v1614 = vpop.f32.mrf.mxu0
      %v1615 = vadd.f32 %v1559, %v1614
      %1616 = vmatmul.bf16.gmra.mxu0 %v1583
      %v1617 = vpop.f32.mrf.mxu0
      %v1618 = vadd.f32 %v1560, %v1617
      %v1619 = vpop.f32.mrf.mxu0
      %v1620 = vadd.f32 %v1561, %v1619
      %1621 = vmatmul.bf16.gmra.mxu0 %v1586
      %v1622 = vpop.f32.mrf.mxu0
      %v1623 = vadd.f32 %v1562, %v1622
      %v1624 = vpop.f32.mrf.mxu0
      %v1625 = vadd.f32 %v1563, %v1624
      %1626 = vmatmul.bf16.gmra.mxu0 %v1589
      %v1627 = vpop.f32.mrf.mxu0
      %v1628 = vadd.f32 %v1564, %v1627
      %v1629 = vpop.f32.mrf.mxu0
      %v1630 = vadd.f32 %v1565, %v1629
      %1631 = vdwg.mxu0
      %vm1632 = vcmask 523264
      %v1633 = vsel %vm1632, %v1613, -inf
      %1634 = vmax.xlane.f32.xlu0 %v1633
      %v1635 = vpop.xlane.xlu0 %1634
      %v1636 = vsel %vm1632, %v1615, -inf
      %1637 = vmax.xlane.f32.xlu0 %v1636
      %v1638 = vpop.xlane.xlu0 %1637
      %v1639 = vsel %vm1632, %v1618, -inf
      %1640 = vmax.xlane.f32.xlu0 %v1639
      %v1641 = vpop.xlane.xlu0 %1640
      %v1642 = vsel %vm1632, %v1620, -inf
      %1643 = vmax.xlane.f32.xlu0 %v1642
      %v1644 = vpop.xlane.xlu0 %1643
      %v1645 = vsel %vm1632, %v1623, -inf
      %1646 = vmax.xlane.f32.xlu0 %v1645
      %v1647 = vpop.xlane.xlu0 %1646
      %v1648 = vsel %vm1632, %v1625, -inf
      %1649 = vmax.xlane.f32.xlu0 %v1648
      %v1650 = vpop.xlane.xlu0 %1649
      %v1651 = vsel %vm1632, %v1628, -inf
      %1652 = vmax.xlane.f32.xlu0 %v1651
      %v1653 = vpop.xlane.xlu0 %1652
      %v1654 = vsel %vm1632, %v1630, -inf
      %1655 = vmax.xlane.f32.xlu0 %v1654
      %v1656 = vpop.xlane.xlu0 %1655
      %v1657 = vsub.f32 %v1613, %v1635
      %v1658 = vsub.f32 %v1615, %v1638
      %v1659 = vsub.f32 %v1618, %v1641
      %v1660 = vsub.f32 %v1620, %v1644
      %v1661 = vsub.f32 %v1623, %v1647
      %v1662 = vsub.f32 %v1625, %v1650
      %v1663 = vsub.f32 %v1628, %v1653
      %v1664 = vsub.f32 %v1630, %v1656
      %v1665 = vmul.f32 %v1657, 1.442695
      %v1666 = vpow.pop %v1665
      %v1667 = vmul.f32 %v1658, 1.442695
      %v1668 = vpow.pop %v1667
      %v1669 = vmul.f32 %v1659, 1.442695
      %v1670 = vpow.pop %v1669
      %v1671 = vmul.f32 %v1660, 1.442695
      %v1672 = vpow.pop %v1671
      %v1673 = vmul.f32 %v1661, 1.442695
      %v1674 = vpow.pop %v1673
      %v1675 = vmul.f32 %v1662, 1.442695
      %v1676 = vpow.pop %v1675
      %v1677 = vmul.f32 %v1663, 1.442695
      %v1678 = vpow.pop %v1677
      %v1679 = vmul.f32 %v1664, 1.442695
      %v1680 = vpow.pop %v1679
      %v1681 = vsel %vm1632, %v1666, 0.0
      %1682 = vadd.xlane.f32.xlu0 %v1681
      %v1683 = vpop.xlane.xlu0 %1682
      %v1684 = vsel %vm1632, %v1668, 0.0
      %1685 = vadd.xlane.f32.xlu0 %v1684
      %v1686 = vpop.xlane.xlu0 %1685
      %v1687 = vsel %vm1632, %v1670, 0.0
      %1688 = vadd.xlane.f32.xlu0 %v1687
      %v1689 = vpop.xlane.xlu0 %1688
      %v1690 = vsel %vm1632, %v1672, 0.0
      %1691 = vadd.xlane.f32.xlu0 %v1690
      %v1692 = vpop.xlane.xlu0 %1691
      %v1693 = vsel %vm1632, %v1674, 0.0
      %1694 = vadd.xlane.f32.xlu0 %v1693
      %v1695 = vpop.xlane.xlu0 %1694
      %v1696 = vsel %vm1632, %v1676, 0.0
      %1697 = vadd.xlane.f32.xlu0 %v1696
      %v1698 = vpop.xlane.xlu0 %1697
      %v1699 = vsel %vm1632, %v1678, 0.0
      %1700 = vadd.xlane.f32.xlu0 %v1699
      %v1701 = vpop.xlane.xlu0 %1700
      %v1702 = vsel %vm1632, %v1680, 0.0
      %1703 = vadd.xlane.f32.xlu0 %v1702
      %v1704 = vpop.xlane.xlu0 %1703
      %v1705 = vrcp.pop %v1683
      %v1706 = vrcp.pop %v1686
      %v1707 = vrcp.pop %v1689
      %v1708 = vrcp.pop %v1692
      %v1709 = vrcp.pop %v1695
      %v1710 = vrcp.pop %v1698
      %v1711 = vrcp.pop %v1701
      %v1712 = vrcp.pop %v1704
      %v1713 = vmul.f32 %v1666, %v1705
      %v1714 = vmul.f32 %v1668, %v1706
      %v1715 = vmul.f32 %v1670, %v1707
      %v1716 = vmul.f32 %v1672, %v1708
      %v1717 = vmul.f32 %v1674, %v1709
      %v1718 = vmul.f32 %v1676, %v1710
      %v1719 = vmul.f32 %v1678, %v1711
      %v1720 = vmul.f32 %v1680, %v1712
      %v1721 = vpack.c.bf16 %v1714, %v1713
      %v1722 = vpack.c.bf16 %v1716, %v1715
      %v1723 = vpack.c.bf16 %v1718, %v1717
      %v1724 = vpack.c.bf16 %v1720, %v1719
      %1725 = vrot.lane.b32.xlu0 %v1554, 64
      %v1726 = vpop.permute.xlu0 %1725
      %1727 = vrot.lane.b32.xlu0 %v1555, 64
      %v1728 = vpop.permute.xlu0 %1727
      %1729 = vrot.lane.b32.xlu0 %v1556, 64
      %v1730 = vpop.permute.xlu0 %1729
      %1731 = vrot.lane.b32.xlu0 %v1557, 64
      %v1732 = vpop.permute.xlu0 %1731
      %v1738 = vsel %vm1632, %v1721, 0
      %v1741 = vsel %vm1632, %v1722, 0
      %v1744 = vsel %vm1632, %v1723, 0
      %v1747 = vsel %vm1632, %v1724, 0
      %1749 = vmatpush.bf16.msra.mxu0 0
      %1750 = vmatpush.bf16.msra.mxu0 0
      %1751 = vmatpush.bf16.msra.mxu0 0
      %1752 = vmatpush.bf16.msra.mxu0 0
      %1753 = vmatpush.bf16.msra.mxu0 %v1732
      %1754 = vmatpush.bf16.msra.mxu0 %v1730
      %1755 = vmatpush.bf16.msra.mxu0 %v1728
      %1756 = vmatpush.bf16.msra.mxu0 %v1726
      %1757 = vmatmul.bf16.gmra.mxu0 %v1738
      %v1758 = vpop.f32.mrf.mxu0
      %v1759 = vadd.f32 0.0, %v1758
      %v1760 = vpop.f32.mrf.mxu0
      %v1761 = vadd.f32 0.0, %v1760
      %1762 = vmatmul.bf16.gmra.mxu0 %v1741
      %v1763 = vpop.f32.mrf.mxu0
      %v1764 = vadd.f32 0.0, %v1763
      %v1765 = vpop.f32.mrf.mxu0
      %v1766 = vadd.f32 0.0, %v1765
      %1767 = vmatmul.bf16.gmra.mxu0 %v1744
      %v1768 = vpop.f32.mrf.mxu0
      %v1769 = vadd.f32 0.0, %v1768
      %v1770 = vpop.f32.mrf.mxu0
      %v1771 = vadd.f32 0.0, %v1770
      %1772 = vmatmul.bf16.gmra.mxu0 %v1747
      %v1773 = vpop.f32.mrf.mxu0
      %v1774 = vadd.f32 0.0, %v1773
      %v1775 = vpop.f32.mrf.mxu0
      %v1776 = vadd.f32 0.0, %v1775
      %1777 = vdwg.mxu0
      %s1778 = scalar_lea.vmem %s19, 64
      %v1779 = vld [vmem:[%s1778] sm:$0xff]
      %v1780 = vld [vmem:[%s1778 + $0x8] sm:$0xff]
      %v1781 = vld [vmem:[%s1778 + $0x10] sm:$0xff]
      %v1782 = vld [vmem:[%s1778 + $0x18] sm:$0xff]
      %v1783 = vld [vmem:[%s1778 + $0x20] sm:$0xff]
      %v1784 = vld [vmem:[%s1778 + $0x28] sm:$0xff]
      %v1785 = vld [vmem:[%s1778 + $0x30] sm:$0xff]
      %v1786 = vld [vmem:[%s1778 + $0x38] sm:$0xff]
      %1791 = vrot.lane.b32.xlu0 %v1550, 112
      %v1792 = vpop.permute.xlu0 %1791
      %1793 = vrot.lane.b32.xlu0 %v1551, 112
      %v1794 = vpop.permute.xlu0 %1793
      %1795 = vrot.lane.b32.xlu0 %v1552, 112
      %v1796 = vpop.permute.xlu0 %1795
      %1797 = vrot.lane.b32.xlu0 %v1553, 112
      %v1798 = vpop.permute.xlu0 %1797
      %1799 = vrot.lane.b32.xlu0 %v1554, 80
      %v1800 = vpop.permute.xlu0 %1799
      %1801 = vrot.lane.b32.xlu0 %v1555, 80
      %v1802 = vpop.permute.xlu0 %1801
      %1803 = vrot.lane.b32.xlu0 %v1556, 80
      %v1804 = vpop.permute.xlu0 %1803
      %1805 = vrot.lane.b32.xlu0 %v1557, 80
      %v1806 = vpop.permute.xlu0 %1805
      %v1808 = vsel %vm1578, %v1792, 0
      %v1811 = vsel %vm1578, %v1794, 0
      %v1814 = vsel %vm1578, %v1796, 0
      %v1817 = vsel %vm1578, %v1798, 0
      %v1820 = vsel %vm1578, %v1800, 0
      %v1823 = vsel %vm1578, %v1802, 0
      %v1826 = vsel %vm1578, %v1804, 0
      %v1829 = vsel %vm1578, %v1806, 0
      %1831 = vmatpush.bf16.xpose.msra.mxu0 0
      %1832 = vmatpush.bf16.xpose.msra.mxu0 0
      %1833 = vmatpush.bf16.xpose.msra.mxu0 0
      %1834 = vmatpush.bf16.xpose.msra.mxu0 0
      %1835 = vmatpush.bf16.xpose.msra.mxu0 %v1829
      %1836 = vmatpush.bf16.xpose.msra.mxu0 %v1826
      %1837 = vmatpush.bf16.xpose.msra.mxu0 %v1823
      %1838 = vmatpush.bf16.xpose.msra.mxu0 %v1820
      %1839 = vmatmul.bf16.gmra.mxu0 %v1808
      %v1840 = vpop.f32.mrf.mxu0
      %v1841 = vadd.f32 %v1779, %v1840
      %v1842 = vpop.f32.mrf.mxu0
      %v1843 = vadd.f32 %v1780, %v1842
      %1844 = vmatmul.bf16.gmra.mxu0 %v1811
      %v1845 = vpop.f32.mrf.mxu0
      %v1846 = vadd.f32 %v1781, %v1845
      %v1847 = vpop.f32.mrf.mxu0
      %v1848 = vadd.f32 %v1782, %v1847
      %1849 = vmatmul.bf16.gmra.mxu0 %v1814
      %v1850 = vpop.f32.mrf.mxu0
      %v1851 = vadd.f32 %v1783, %v1850
      %v1852 = vpop.f32.mrf.mxu0
      %v1853 = vadd.f32 %v1784, %v1852
      %1854 = vmatmul.bf16.gmra.mxu0 %v1817
      %v1855 = vpop.f32.mrf.mxu0
      %v1856 = vadd.f32 %v1785, %v1855
      %v1857 = vpop.f32.mrf.mxu0
      %v1858 = vadd.f32 %v1786, %v1857
      %1859 = vdwg.mxu0
      %v1860 = vsel %vm1632, %v1841, -inf
      %1861 = vmax.xlane.f32.xlu0 %v1860
      %v1862 = vpop.xlane.xlu0 %1861
      %v1863 = vsel %vm1632, %v1843, -inf
      %1864 = vmax.xlane.f32.xlu0 %v1863
      %v1865 = vpop.xlane.xlu0 %1864
      %v1866 = vsel %vm1632, %v1846, -inf
      %1867 = vmax.xlane.f32.xlu0 %v1866
      %v1868 = vpop.xlane.xlu0 %1867
      %v1869 = vsel %vm1632, %v1848, -inf
      %1870 = vmax.xlane.f32.xlu0 %v1869
      %v1871 = vpop.xlane.xlu0 %1870
      %v1872 = vsel %vm1632, %v1851, -inf
      %1873 = vmax.xlane.f32.xlu0 %v1872
      %v1874 = vpop.xlane.xlu0 %1873
      %v1875 = vsel %vm1632, %v1853, -inf
      %1876 = vmax.xlane.f32.xlu0 %v1875
      %v1877 = vpop.xlane.xlu0 %1876
      %v1878 = vsel %vm1632, %v1856, -inf
      %1879 = vmax.xlane.f32.xlu0 %v1878
      %v1880 = vpop.xlane.xlu0 %1879
      %v1881 = vsel %vm1632, %v1858, -inf
      %1882 = vmax.xlane.f32.xlu0 %v1881
      %v1883 = vpop.xlane.xlu0 %1882
      %v1884 = vsub.f32 %v1841, %v1862
      %v1885 = vsub.f32 %v1843, %v1865
      %v1886 = vsub.f32 %v1846, %v1868
      %v1887 = vsub.f32 %v1848, %v1871
      %v1888 = vsub.f32 %v1851, %v1874
      %v1889 = vsub.f32 %v1853, %v1877
      %v1890 = vsub.f32 %v1856, %v1880
      %v1891 = vsub.f32 %v1858, %v1883
      %v1892 = vmul.f32 %v1884, 1.442695
      %v1893 = vpow.pop %v1892
      %v1894 = vmul.f32 %v1885, 1.442695
      %v1895 = vpow.pop %v1894
      %v1896 = vmul.f32 %v1886, 1.442695
      %v1897 = vpow.pop %v1896
      %v1898 = vmul.f32 %v1887, 1.442695
      %v1899 = vpow.pop %v1898
      %v1900 = vmul.f32 %v1888, 1.442695
      %v1901 = vpow.pop %v1900
      %v1902 = vmul.f32 %v1889, 1.442695
      %v1903 = vpow.pop %v1902
      %v1904 = vmul.f32 %v1890, 1.442695
      %v1905 = vpow.pop %v1904
      %v1906 = vmul.f32 %v1891, 1.442695
      %v1907 = vpow.pop %v1906
      %v1908 = vsel %vm1632, %v1893, 0.0
      %1909 = vadd.xlane.f32.xlu0 %v1908
      %v1910 = vpop.xlane.xlu0 %1909
      %v1911 = vsel %vm1632, %v1895, 0.0
      %1912 = vadd.xlane.f32.xlu0 %v1911
      %v1913 = vpop.xlane.xlu0 %1912
      %v1914 = vsel %vm1632, %v1897, 0.0
      %1915 = vadd.xlane.f32.xlu0 %v1914
      %v1916 = vpop.xlane.xlu0 %1915
      %v1917 = vsel %vm1632, %v1899, 0.0
      %1918 = vadd.xlane.f32.xlu0 %v1917
      %v1919 = vpop.xlane.xlu0 %1918
      %v1920 = vsel %vm1632, %v1901, 0.0
      %1921 = vadd.xlane.f32.xlu0 %v1920
      %v1922 = vpop.xlane.xlu0 %1921
      %v1923 = vsel %vm1632, %v1903, 0.0
      %1924 = vadd.xlane.f32.xlu0 %v1923
      %v1925 = vpop.xlane.xlu0 %1924
      %v1926 = vsel %vm1632, %v1905, 0.0
      %1927 = vadd.xlane.f32.xlu0 %v1926
      %v1928 = vpop.xlane.xlu0 %1927
      %v1929 = vsel %vm1632, %v1907, 0.0
      %1930 = vadd.xlane.f32.xlu0 %v1929
      %v1931 = vpop.xlane.xlu0 %1930
      %v1932 = vrcp.pop %v1910
      %v1933 = vrcp.pop %v1913
      %v1934 = vrcp.pop %v1916
      %v1935 = vrcp.pop %v1919
      %v1936 = vrcp.pop %v1922
      %v1937 = vrcp.pop %v1925
      %v1938 = vrcp.pop %v1928
      %v1939 = vrcp.pop %v1931
      %v1940 = vmul.f32 %v1893, %v1932
      %v1941 = vmul.f32 %v1895, %v1933
      %v1942 = vmul.f32 %v1897, %v1934
      %v1943 = vmul.f32 %v1899, %v1935
      %v1944 = vmul.f32 %v1901, %v1936
      %v1945 = vmul.f32 %v1903, %v1937
      %v1946 = vmul.f32 %v1905, %v1938
      %v1947 = vmul.f32 %v1907, %v1939
      %v1948 = vpack.c.bf16 %v1941, %v1940
      %v1949 = vpack.c.bf16 %v1943, %v1942
      %v1950 = vpack.c.bf16 %v1945, %v1944
      %v1951 = vpack.c.bf16 %v1947, %v1946
      %1952 = vrot.lane.b32.xlu0 %v1554, 48
      %v1953 = vpop.permute.xlu0 %1952
      %1954 = vrot.lane.b32.xlu0 %v1555, 48
      %v1955 = vpop.permute.xlu0 %1954
      %1956 = vrot.lane.b32.xlu0 %v1556, 48
      %v1957 = vpop.permute.xlu0 %1956
      %1958 = vrot.lane.b32.xlu0 %v1557, 48
      %v1959 = vpop.permute.xlu0 %1958
      %v1965 = vsel %vm1632, %v1948, 0
      %v1968 = vsel %vm1632, %v1949, 0
      %v1971 = vsel %vm1632, %v1950, 0
      %v1974 = vsel %vm1632, %v1951, 0
      %1976 = vmatpush.bf16.msra.mxu0 0
      %1977 = vmatpush.bf16.msra.mxu0 0
      %1978 = vmatpush.bf16.msra.mxu0 0
      %1979 = vmatpush.bf16.msra.mxu0 0
      %1980 = vmatpush.bf16.msra.mxu0 %v1959
      %1981 = vmatpush.bf16.msra.mxu0 %v1957
      %1982 = vmatpush.bf16.msra.mxu0 %v1955
      %1983 = vmatpush.bf16.msra.mxu0 %v1953
      %1984 = vmatmul.bf16.gmra.mxu0 %v1965
      %v1985 = vpop.f32.mrf.mxu0
      %v1986 = vadd.f32 0.0, %v1985
      %v1987 = vpop.f32.mrf.mxu0
      %v1988 = vadd.f32 0.0, %v1987
      %1989 = vmatmul.bf16.gmra.mxu0 %v1968
      %v1990 = vpop.f32.mrf.mxu0
      %v1991 = vadd.f32 0.0, %v1990
      %v1992 = vpop.f32.mrf.mxu0
      %v1993 = vadd.f32 0.0, %v1992
      %1994 = vmatmul.bf16.gmra.mxu0 %v1971
      %v1995 = vpop.f32.mrf.mxu0
      %v1996 = vadd.f32 0.0, %v1995
      %v1997 = vpop.f32.mrf.mxu0
      %v1998 = vadd.f32 0.0, %v1997
      %1999 = vmatmul.bf16.gmra.mxu0 %v1974
      %v2000 = vpop.f32.mrf.mxu0
      %v2001 = vadd.f32 0.0, %v2000
      %v2002 = vpop.f32.mrf.mxu0
      %v2003 = vadd.f32 0.0, %v2002
      %2004 = vdwg.mxu0
      %2013 = vrot.lane.b32.xlu0 %v1986, 16
      %v2014 = vpop.permute.xlu0 %2013
      %2015 = vrot.lane.b32.xlu0 %v1988, 16
      %v2016 = vpop.permute.xlu0 %2015
      %2017 = vrot.lane.b32.xlu0 %v1991, 16
      %v2018 = vpop.permute.xlu0 %2017
      %2019 = vrot.lane.b32.xlu0 %v1993, 16
      %v2020 = vpop.permute.xlu0 %2019
      %2021 = vrot.lane.b32.xlu0 %v1996, 16
      %v2022 = vpop.permute.xlu0 %2021
      %2023 = vrot.lane.b32.xlu0 %v1998, 16
      %v2024 = vpop.permute.xlu0 %2023
      %2025 = vrot.lane.b32.xlu0 %v2001, 16
      %v2026 = vpop.permute.xlu0 %2025
      %2027 = vrot.lane.b32.xlu0 %v2003, 16
      %v2028 = vpop.permute.xlu0 %2027
      %v2037 = vsel %vm1578, %v1759, %v2014
      %v2038 = vsel %vm1578, %v1761, %v2016
      %v2039 = vsel %vm1578, %v1764, %v2018
      %v2040 = vsel %vm1578, %v1766, %v2020
      %v2041 = vsel %vm1578, %v1769, %v2022
      %v2042 = vsel %vm1578, %v1771, %v2024
      %v2043 = vsel %vm1578, %v1774, %v2026
      %v2044 = vsel %vm1578, %v1776, %v2028
      %v2045 = vld [vmem:[%s21] sm:$0xf]
      %v2046 = vld [vmem:[%s21 + $0x4] sm:$0xf]
      %v2047 = vld [vmem:[%s21 + $0x8] sm:$0xf]
      %v2048 = vld [vmem:[%s21 + $0xc] sm:$0xf]
      %v2049 = vpack.c.bf16 %v2038, %v2037
      %v2050 = vpack.c.bf16 %v2040, %v2039
      %v2051 = vpack.c.bf16 %v2042, %v2041
      %v2052 = vpack.c.bf16 %v2044, %v2043
      %v2057 = vunpack.c.l.b16 %v2045
      %v2058 = vunpack.c.l.b16 %v2046
      %v2059 = vunpack.c.l.b16 %v2047
      %v2060 = vunpack.c.l.b16 %v2048
      %v2061 = vpack.c.b16 %v2058, %v2057
      %v2062 = vpack.c.b16 %v2060, %v2059
      %v2066 = vsel %vm1071, %v2049, 0
      %v2069 = vsel %vm1071, %v2050, 0
      %v2072 = vsel %vm1071, %v2051, 0
      %v2075 = vsel %vm1071, %v2052, 0
      %2077 = vmatpush.bf16.msra.mxu0 0
      %2078 = vmatpush.bf16.msra.mxu0 0
      %2079 = vmatpush.bf16.msra.mxu0 0
      %2080 = vmatpush.bf16.msra.mxu0 0
      %2081 = vmatpush.bf16.msra.mxu0 0
      %2082 = vmatpush.bf16.msra.mxu0 0
      %2083 = vmatpush.bf16.msra.mxu0 %v2062
      %2084 = vmatpush.bf16.msra.mxu0 %v2061
      %2085 = vmatmul.bf16.gmra.mxu0 %v2066
      %v2086 = vpop.f32.mrf.mxu0
      %v2087 = vadd.f32 0.0, %v2086
      %v2088 = vpop.f32.mrf.mxu0
      %v2089 = vadd.f32 0.0, %v2088
      %2090 = vmatmul.bf16.gmra.mxu0 %v2069
      %v2091 = vpop.f32.mrf.mxu0
      %v2092 = vadd.f32 0.0, %v2091
      %v2093 = vpop.f32.mrf.mxu0
      %v2094 = vadd.f32 0.0, %v2093
      %2095 = vmatmul.bf16.gmra.mxu0 %v2072
      %v2096 = vpop.f32.mrf.mxu0
      %v2097 = vadd.f32 0.0, %v2096
      %v2098 = vpop.f32.mrf.mxu0
      %v2099 = vadd.f32 0.0, %v2098
      %2100 = vmatmul.bf16.gmra.mxu0 %v2075
      %v2101 = vpop.f32.mrf.mxu0
      %v2102 = vadd.f32 0.0, %v2101
      %v2103 = vpop.f32.mrf.mxu0
      %v2104 = vadd.f32 0.0, %v2103
      %2105 = vdwg.mxu0
      %v2106 = vadd.f32 %v1269, %v2087
      %v2107 = vadd.f32 %v1270, %v2089
      %v2108 = vadd.f32 %v1271, %v2092
      %v2109 = vadd.f32 %v1272, %v2094
      %v2110 = vadd.f32 %v1273, %v2097
      %v2111 = vadd.f32 %v1274, %v2099
      %v2112 = vadd.f32 %v1275, %v2102
      %v2113 = vadd.f32 %v1276, %v2104
      %v2114 = vld [vmem:[%s23] sm:$0x1]
      %v2116 = vperm.slane %v2114, 0
      %v2118 = vadd.f32 %v2106, %v2116
      %v2119 = vadd.f32 %v2107, %v2116
      %v2120 = vadd.f32 %v2108, %v2116
      %v2121 = vadd.f32 %v2109, %v2116
      %v2122 = vadd.f32 %v2110, %v2116
      %v2123 = vadd.f32 %v2111, %v2116
      %v2124 = vadd.f32 %v2112, %v2116
      %v2125 = vadd.f32 %v2113, %v2116
      %v2126 = vld [vmem:[%s25] sm:$0x1]
      %v2127 = vld [vmem:[%s27] sm:$0x1]
      %v2128 = vsel %vm1071, %v2118, 0.0
      %2129 = vadd.xlane.f32.xlu0 %v2128
      %v2130 = vpop.xlane.xlu0 %2129
      %v2131 = vsel %vm1071, %v2119, 0.0
      %2132 = vadd.xlane.f32.xlu0 %v2131
      %v2133 = vpop.xlane.xlu0 %2132
      %v2134 = vsel %vm1071, %v2120, 0.0
      %2135 = vadd.xlane.f32.xlu0 %v2134
      %v2136 = vpop.xlane.xlu0 %2135
      %v2137 = vsel %vm1071, %v2121, 0.0
      %2138 = vadd.xlane.f32.xlu0 %v2137
      %v2139 = vpop.xlane.xlu0 %2138
      %v2140 = vsel %vm1071, %v2122, 0.0
      %2141 = vadd.xlane.f32.xlu0 %v2140
      %v2142 = vpop.xlane.xlu0 %2141
      %v2143 = vsel %vm1071, %v2123, 0.0
      %2144 = vadd.xlane.f32.xlu0 %v2143
      %v2145 = vpop.xlane.xlu0 %2144
      %v2146 = vsel %vm1071, %v2124, 0.0
      %2147 = vadd.xlane.f32.xlu0 %v2146
      %v2148 = vpop.xlane.xlu0 %2147
      %v2149 = vsel %vm1071, %v2125, 0.0
      %2150 = vadd.xlane.f32.xlu0 %v2149
      %v2151 = vpop.xlane.xlu0 %2150
      %v2152 = vmul.f32 %v2130, %v1102
      %v2153 = vmul.f32 %v2133, %v1102
      %v2154 = vmul.f32 %v2136, %v1102
      %v2155 = vmul.f32 %v2139, %v1102
      %v2156 = vmul.f32 %v2142, %v1102
      %v2157 = vmul.f32 %v2145, %v1102
      %v2158 = vmul.f32 %v2148, %v1102
      %v2159 = vmul.f32 %v2151, %v1102
      %v2160 = vsub.f32 %v2118, %v2152
      %v2161 = vsub.f32 %v2119, %v2153
      %v2162 = vsub.f32 %v2120, %v2154
      %v2163 = vsub.f32 %v2121, %v2155
      %v2164 = vsub.f32 %v2122, %v2156
      %v2165 = vsub.f32 %v2123, %v2157
      %v2166 = vsub.f32 %v2124, %v2158
      %v2167 = vsub.f32 %v2125, %v2159
      %v2168 = vmul.f32 %v2160, %v2160
      %v2169 = vmul.f32 %v2161, %v2161
      %v2170 = vmul.f32 %v2162, %v2162
      %v2171 = vmul.f32 %v2163, %v2163
      %v2172 = vmul.f32 %v2164, %v2164
      %v2173 = vmul.f32 %v2165, %v2165
      %v2174 = vmul.f32 %v2166, %v2166
      %v2175 = vmul.f32 %v2167, %v2167
      %v2176 = vsel %vm1071, %v2168, 0.0
      %2177 = vadd.xlane.f32.xlu0 %v2176
      %v2178 = vpop.xlane.xlu0 %2177
      %v2179 = vsel %vm1071, %v2169, 0.0
      %2180 = vadd.xlane.f32.xlu0 %v2179
      %v2181 = vpop.xlane.xlu0 %2180
      %v2182 = vsel %vm1071, %v2170, 0.0
      %2183 = vadd.xlane.f32.xlu0 %v2182
      %v2184 = vpop.xlane.xlu0 %2183
      %v2185 = vsel %vm1071, %v2171, 0.0
      %2186 = vadd.xlane.f32.xlu0 %v2185
      %v2187 = vpop.xlane.xlu0 %2186
      %v2188 = vsel %vm1071, %v2172, 0.0
      %2189 = vadd.xlane.f32.xlu0 %v2188
      %v2190 = vpop.xlane.xlu0 %2189
      %v2191 = vsel %vm1071, %v2173, 0.0
      %2192 = vadd.xlane.f32.xlu0 %v2191
      %v2193 = vpop.xlane.xlu0 %2192
      %v2194 = vsel %vm1071, %v2174, 0.0
      %2195 = vadd.xlane.f32.xlu0 %v2194
      %v2196 = vpop.xlane.xlu0 %2195
      %v2197 = vsel %vm1071, %v2175, 0.0
      %2198 = vadd.xlane.f32.xlu0 %v2197
      %v2199 = vpop.xlane.xlu0 %2198
      %v2200 = vmul.f32 %v2178, %v1102
      %v2201 = vmul.f32 %v2181, %v1102
      %v2202 = vmul.f32 %v2184, %v1102
      %v2203 = vmul.f32 %v2187, %v1102
      %v2204 = vmul.f32 %v2190, %v1102
      %v2205 = vmul.f32 %v2193, %v1102
      %v2206 = vmul.f32 %v2196, %v1102
      %v2207 = vmul.f32 %v2199, %v1102
      %v2208 = vadd.f32 %v2200, 1e-05
      %v2209 = vadd.f32 %v2201, 1e-05
      %v2210 = vadd.f32 %v2202, 1e-05
      %v2211 = vadd.f32 %v2203, 1e-05
      %v2212 = vadd.f32 %v2204, 1e-05
      %v2213 = vadd.f32 %v2205, 1e-05
      %v2214 = vadd.f32 %v2206, 1e-05
      %v2215 = vadd.f32 %v2207, 1e-05
      %v2216 = vrsqrt.pop %v2208
      %v2217 = vmul.f32 %v2216, %v2208
      %v2218 = vmul.f32 %v2217, %v2216
      %v2219 = vmul.f32 0.5, %v2218
      %v2220 = vsub.f32 1.5, %v2219
      %v2221 = vmul.f32 %v2216, %v2220
      %vm2222 = vweird.f32 %v2208
      %vm2223 = vweird.f32 %v2216
      %vm2224 = vmor %vm2222, %vm2223
      %v2225 = vsel %vm2224, %v2216, %v2221
      %v2226 = vrsqrt.pop %v2209
      %v2227 = vmul.f32 %v2226, %v2209
      %v2228 = vmul.f32 %v2227, %v2226
      %v2229 = vmul.f32 0.5, %v2228
      %v2230 = vsub.f32 1.5, %v2229
      %v2231 = vmul.f32 %v2226, %v2230
      %vm2232 = vweird.f32 %v2209
      %vm2233 = vweird.f32 %v2226
      %vm2234 = vmor %vm2232, %vm2233
      %v2235 = vsel %vm2234, %v2226, %v2231
      %v2236 = vrsqrt.pop %v2210
      %v2237 = vmul.f32 %v2236, %v2210
      %v2238 = vmul.f32 %v2237, %v2236
      %v2239 = vmul.f32 0.5, %v2238
      %v2240 = vsub.f32 1.5, %v2239
      %v2241 = vmul.f32 %v2236, %v2240
      %vm2242 = vweird.f32 %v2210
      %vm2243 = vweird.f32 %v2236
      %vm2244 = vmor %vm2242, %vm2243
      %v2245 = vsel %vm2244, %v2236, %v2241
      %v2246 = vrsqrt.pop %v2211
      %v2247 = vmul.f32 %v2246, %v2211
      %v2248 = vmul.f32 %v2247, %v2246
      %v2249 = vmul.f32 0.5, %v2248
      %v2250 = vsub.f32 1.5, %v2249
      %v2251 = vmul.f32 %v2246, %v2250
      %vm2252 = vweird.f32 %v2211
      %vm2253 = vweird.f32 %v2246
      %vm2254 = vmor %vm2252, %vm2253
      %v2255 = vsel %vm2254, %v2246, %v2251
      %v2256 = vrsqrt.pop %v2212
      %v2257 = vmul.f32 %v2256, %v2212
      %v2258 = vmul.f32 %v2257, %v2256
      %v2259 = vmul.f32 0.5, %v2258
      %v2260 = vsub.f32 1.5, %v2259
      %v2261 = vmul.f32 %v2256, %v2260
      %vm2262 = vweird.f32 %v2212
      %vm2263 = vweird.f32 %v2256
      %vm2264 = vmor %vm2262, %vm2263
      %v2265 = vsel %vm2264, %v2256, %v2261
      %v2266 = vrsqrt.pop %v2213
      %v2267 = vmul.f32 %v2266, %v2213
      %v2268 = vmul.f32 %v2267, %v2266
      %v2269 = vmul.f32 0.5, %v2268
      %v2270 = vsub.f32 1.5, %v2269
      %v2271 = vmul.f32 %v2266, %v2270
      %vm2272 = vweird.f32 %v2213
      %vm2273 = vweird.f32 %v2266
      %vm2274 = vmor %vm2272, %vm2273
      %v2275 = vsel %vm2274, %v2266, %v2271
      %v2276 = vrsqrt.pop %v2214
      %v2277 = vmul.f32 %v2276, %v2214
      %v2278 = vmul.f32 %v2277, %v2276
      %v2279 = vmul.f32 0.5, %v2278
      %v2280 = vsub.f32 1.5, %v2279
      %v2281 = vmul.f32 %v2276, %v2280
      %vm2282 = vweird.f32 %v2214
      %vm2283 = vweird.f32 %v2276
      %vm2284 = vmor %vm2282, %vm2283
      %v2285 = vsel %vm2284, %v2276, %v2281
      %v2286 = vrsqrt.pop %v2215
      %v2287 = vmul.f32 %v2286, %v2215
      %v2288 = vmul.f32 %v2287, %v2286
      %v2289 = vmul.f32 0.5, %v2288
      %v2290 = vsub.f32 1.5, %v2289
      %v2291 = vmul.f32 %v2286, %v2290
      %vm2292 = vweird.f32 %v2215
      %vm2293 = vweird.f32 %v2286
      %vm2294 = vmor %vm2292, %vm2293
      %v2295 = vsel %vm2294, %v2286, %v2291
      %v2296 = vmul.f32 %v2160, %v2225
      %v2297 = vmul.f32 %v2161, %v2235
      %v2298 = vmul.f32 %v2162, %v2245
      %v2299 = vmul.f32 %v2163, %v2255
      %v2300 = vmul.f32 %v2164, %v2265
      %v2301 = vmul.f32 %v2165, %v2275
      %v2302 = vmul.f32 %v2166, %v2285
      %v2303 = vmul.f32 %v2167, %v2295
      %v2305 = vperm.slane %v2126, 0
      %v2307 = vmul.f32 %v2296, %v2305
      %v2308 = vmul.f32 %v2297, %v2305
      %v2309 = vmul.f32 %v2298, %v2305
      %v2310 = vmul.f32 %v2299, %v2305
      %v2311 = vmul.f32 %v2300, %v2305
      %v2312 = vmul.f32 %v2301, %v2305
      %v2313 = vmul.f32 %v2302, %v2305
      %v2314 = vmul.f32 %v2303, %v2305
      %v2316 = vperm.slane %v2127, 0
      %v2318 = vadd.f32 %v2307, %v2316
      %v2319 = vadd.f32 %v2308, %v2316
      %v2320 = vadd.f32 %v2309, %v2316
      %v2321 = vadd.f32 %v2310, %v2316
      %v2322 = vadd.f32 %v2311, %v2316
      %v2323 = vadd.f32 %v2312, %v2316
      %v2324 = vadd.f32 %v2313, %v2316
      %v2325 = vadd.f32 %v2314, %v2316
      %v2326 = vld [vmem:[%s29] sm:$0xf]
      %v2327 = vld [vmem:[%s29 + $0x4] sm:$0xf]
      %v2328 = vld [vmem:[%s29 + $0x8] sm:$0xf]
      %v2329 = vld [vmem:[%s29 + $0xc] sm:$0xf]
      %v2330 = vpack.c.bf16 %v2319, %v2318
      %v2331 = vpack.c.bf16 %v2321, %v2320
      %v2332 = vpack.c.bf16 %v2323, %v2322
      %v2333 = vpack.c.bf16 %v2325, %v2324
      %v2334 = vld [vmem:[%s31] sm:$0x1]
      %v2336 = vperm.slane %v2334, 0
      %v2342 = vunpack.c.l.b16 %v2326
      %v2343 = vunpack.c.l.b16 %v2327
      %v2344 = vunpack.c.l.b16 %v2328
      %v2345 = vunpack.c.l.b16 %v2329
      %v2346 = vpack.c.b16 %v2343, %v2342
      %v2347 = vpack.c.b16 %v2345, %v2344
      %v2351 = vsel %vm1071, %v2330, 0
      %v2354 = vsel %vm1071, %v2331, 0
      %v2357 = vsel %vm1071, %v2332, 0
      %v2360 = vsel %vm1071, %v2333, 0
      %2362 = vmatpush.bf16.msra.mxu0 0
      %2363 = vmatpush.bf16.msra.mxu0 0
      %2364 = vmatpush.bf16.msra.mxu0 0
      %2365 = vmatpush.bf16.msra.mxu0 0
      %2366 = vmatpush.bf16.msra.mxu0 0
      %2367 = vmatpush.bf16.msra.mxu0 0
      %2368 = vmatpush.bf16.msra.mxu0 %v2347
      %2369 = vmatpush.bf16.msra.mxu0 %v2346
      %2370 = vmatmul.bf16.gmra.mxu0 %v2351
      %v2371 = vpop.f32.mrf.mxu0
      %v2372 = vadd.f32 %v2336, %v2371
      %v2373 = vpop.f32.mrf.mxu0
      %v2374 = vadd.f32 %v2336, %v2373
      %2375 = vmatmul.bf16.gmra.mxu0 %v2354
      %v2376 = vpop.f32.mrf.mxu0
      %v2377 = vadd.f32 %v2336, %v2376
      %v2378 = vpop.f32.mrf.mxu0
      %v2379 = vadd.f32 %v2336, %v2378
      %2380 = vmatmul.bf16.gmra.mxu0 %v2357
      %v2381 = vpop.f32.mrf.mxu0
      %v2382 = vadd.f32 %v2336, %v2381
      %v2383 = vpop.f32.mrf.mxu0
      %v2384 = vadd.f32 %v2336, %v2383
      %2385 = vmatmul.bf16.gmra.mxu0 %v2360
      %v2386 = vpop.f32.mrf.mxu0
      %v2387 = vadd.f32 %v2336, %v2386
      %v2388 = vpop.f32.mrf.mxu0
      %v2389 = vadd.f32 %v2336, %v2388
      %2390 = vdwg.mxu0
      %v2391 = vmul.f32 %v2372, 0.5
      %v2392 = vmul.f32 %v2374, 0.5
      %v2393 = vmul.f32 %v2377, 0.5
      %v2394 = vmul.f32 %v2379, 0.5
      %v2395 = vmul.f32 %v2382, 0.5
      %v2396 = vmul.f32 %v2384, 0.5
      %v2397 = vmul.f32 %v2387, 0.5
      %v2398 = vmul.f32 %v2389, 0.5
      %v2399 = vmul.f32 %v2372, 0.70710677
      %v2400 = vmul.f32 %v2374, 0.70710677
      %v2401 = vmul.f32 %v2377, 0.70710677
      %v2402 = vmul.f32 %v2379, 0.70710677
      %v2403 = vmul.f32 %v2382, 0.70710677
      %v2404 = vmul.f32 %v2384, 0.70710677
      %v2405 = vmul.f32 %v2387, 0.70710677
      %v2406 = vmul.f32 %v2389, 0.70710677
      %vm2407 = vcmp.ge.f32.partialorder %v2399, 0.0
      %vm2408 = vcmp.ge.f32.partialorder %v2400, 0.0
      %vm2409 = vcmp.ge.f32.partialorder %v2401, 0.0
      %vm2410 = vcmp.ge.f32.partialorder %v2402, 0.0
      %vm2411 = vcmp.ge.f32.partialorder %v2403, 0.0
      %vm2412 = vcmp.ge.f32.partialorder %v2404, 0.0
      %vm2413 = vcmp.ge.f32.partialorder %v2405, 0.0
      %vm2414 = vcmp.ge.f32.partialorder %v2406, 0.0
      %v2415 = vsel %vm2407, 1.0, -1.0
      %v2416 = vsel %vm2408, 1.0, -1.0
      %v2417 = vsel %vm2409, 1.0, -1.0
      %v2418 = vsel %vm2410, 1.0, -1.0
      %v2419 = vsel %vm2411, 1.0, -1.0
      %v2420 = vsel %vm2412, 1.0, -1.0
      %v2421 = vsel %vm2413, 1.0, -1.0
      %v2422 = vsel %vm2414, 1.0, -1.0
      %v2423 = vand.u32 2147483647, %v2399
      %v2424 = vand.u32 2147483647, %v2400
      %v2425 = vand.u32 2147483647, %v2401
      %v2426 = vand.u32 2147483647, %v2402
      %v2427 = vand.u32 2147483647, %v2403
      %v2428 = vand.u32 2147483647, %v2404
      %v2429 = vand.u32 2147483647, %v2405
      %v2430 = vand.u32 2147483647, %v2406
      %v2431 = vmul.f32 %v2423, 0.3275911
      %v2432 = vmul.f32 %v2424, 0.3275911
      %v2433 = vmul.f32 %v2425, 0.3275911
      %v2434 = vmul.f32 %v2426, 0.3275911
      %v2435 = vmul.f32 %v2427, 0.3275911
      %v2436 = vmul.f32 %v2428, 0.3275911
      %v2437 = vmul.f32 %v2429, 0.3275911
      %v2438 = vmul.f32 %v2430, 0.3275911
      %v2439 = vadd.f32 %v2431, 1.0
      %v2440 = vadd.f32 %v2432, 1.0
      %v2441 = vadd.f32 %v2433, 1.0
      %v2442 = vadd.f32 %v2434, 1.0
      %v2443 = vadd.f32 %v2435, 1.0
      %v2444 = vadd.f32 %v2436, 1.0
      %v2445 = vadd.f32 %v2437, 1.0
      %v2446 = vadd.f32 %v2438, 1.0
      %v2447 = vrcp.pop %v2439
      %v2448 = vmul.f32 %v2439, %v2447
      %v2449 = vsub.f32 1.0, %v2448
      %v2450 = vmul.f32 %v2447, %v2449
      %v2451 = vadd.f32 %v2447, %v2450
      %vm2452 = vweird.f32 %v2439
      %vm2453 = vweird.f32 %v2447
      %vm2454 = vmor %vm2452, %vm2453
      %v2455 = vsel %vm2454, %v2447, %v2451
      %v2456 = vand.u32 2147483647, %v2439
      %vm2457 = vcmp.eq.f32.partialorder %v2456, 8.507059e+37
      %v2458 = vand.u32 %v2439, 2147483648
      %v2459 = vor.u32 1.1754944e-38, %v2458
      %v2460 = vsel %vm2457, %v2459, %v2455
      %v2461 = vmul.f32 1.0, %v2460
      %v2462 = vrcp.pop %v2440
      %v2463 = vmul.f32 %v2440, %v2462
      %v2464 = vsub.f32 1.0, %v2463
      %v2465 = vmul.f32 %v2462, %v2464
      %v2466 = vadd.f32 %v2462, %v2465
      %vm2467 = vweird.f32 %v2440
      %vm2468 = vweird.f32 %v2462
      %vm2469 = vmor %vm2467, %vm2468
      %v2470 = vsel %vm2469, %v2462, %v2466
      %v2471 = vand.u32 2147483647, %v2440
      %vm2472 = vcmp.eq.f32.partialorder %v2471, 8.507059e+37
      %v2473 = vand.u32 %v2440, 2147483648
      %v2474 = vor.u32 1.1754944e-38, %v2473
      %v2475 = vsel %vm2472, %v2474, %v2470
      %v2476 = vmul.f32 1.0, %v2475
      %v2477 = vrcp.pop %v2441
      %v2478 = vmul.f32 %v2441, %v2477
      %v2479 = vsub.f32 1.0, %v2478
      %v2480 = vmul.f32 %v2477, %v2479
      %v2481 = vadd.f32 %v2477, %v2480
      %vm2482 = vweird.f32 %v2441
      %vm2483 = vweird.f32 %v2477
      %vm2484 = vmor %vm2482, %vm2483
      %v2485 = vsel %vm2484, %v2477, %v2481
      %v2486 = vand.u32 2147483647, %v2441
      %vm2487 = vcmp.eq.f32.partialorder %v2486, 8.507059e+37
      %v2488 = vand.u32 %v2441, 2147483648
      %v2489 = vor.u32 1.1754944e-38, %v2488
      %v2490 = vsel %vm2487, %v2489, %v2485
      %v2491 = vmul.f32 1.0, %v2490
      %v2492 = vrcp.pop %v2442
      %v2493 = vmul.f32 %v2442, %v2492
      %v2494 = vsub.f32 1.0, %v2493
      %v2495 = vmul.f32 %v2492, %v2494
      %v2496 = vadd.f32 %v2492, %v2495
      %vm2497 = vweird.f32 %v2442
      %vm2498 = vweird.f32 %v2492
      %vm2499 = vmor %vm2497, %vm2498
      %v2500 = vsel %vm2499, %v2492, %v2496
      %v2501 = vand.u32 2147483647, %v2442
      %vm2502 = vcmp.eq.f32.partialorder %v2501, 8.507059e+37
      %v2503 = vand.u32 %v2442, 2147483648
      %v2504 = vor.u32 1.1754944e-38, %v2503
      %v2505 = vsel %vm2502, %v2504, %v2500
      %v2506 = vmul.f32 1.0, %v2505
      %v2507 = vrcp.pop %v2443
      %v2508 = vmul.f32 %v2443, %v2507
      %v2509 = vsub.f32 1.0, %v2508
      %v2510 = vmul.f32 %v2507, %v2509
      %v2511 = vadd.f32 %v2507, %v2510
      %vm2512 = vweird.f32 %v2443
      %vm2513 = vweird.f32 %v2507
      %vm2514 = vmor %vm2512, %vm2513
      %v2515 = vsel %vm2514, %v2507, %v2511
      %v2516 = vand.u32 2147483647, %v2443
      %vm2517 = vcmp.eq.f32.partialorder %v2516, 8.507059e+37
      %v2518 = vand.u32 %v2443, 2147483648
      %v2519 = vor.u32 1.1754944e-38, %v2518
      %v2520 = vsel %vm2517, %v2519, %v2515
      %v2521 = vmul.f32 1.0, %v2520
      %v2522 = vrcp.pop %v2444
      %v2523 = vmul.f32 %v2444, %v2522
      %v2524 = vsub.f32 1.0, %v2523
      %v2525 = vmul.f32 %v2522, %v2524
      %v2526 = vadd.f32 %v2522, %v2525
      %vm2527 = vweird.f32 %v2444
      %vm2528 = vweird.f32 %v2522
      %vm2529 = vmor %vm2527, %vm2528
      %v2530 = vsel %vm2529, %v2522, %v2526
      %v2531 = vand.u32 2147483647, %v2444
      %vm2532 = vcmp.eq.f32.partialorder %v2531, 8.507059e+37
      %v2533 = vand.u32 %v2444, 2147483648
      %v2534 = vor.u32 1.1754944e-38, %v2533
      %v2535 = vsel %vm2532, %v2534, %v2530
      %v2536 = vmul.f32 1.0, %v2535
      %v2537 = vrcp.pop %v2445
      %v2538 = vmul.f32 %v2445, %v2537
      %v2539 = vsub.f32 1.0, %v2538
      %v2540 = vmul.f32 %v2537, %v2539
      %v2541 = vadd.f32 %v2537, %v2540
      %vm2542 = vweird.f32 %v2445
      %vm2543 = vweird.f32 %v2537
      %vm2544 = vmor %vm2542, %vm2543
      %v2545 = vsel %vm2544, %v2537, %v2541
      %v2546 = vand.u32 2147483647, %v2445
      %vm2547 = vcmp.eq.f32.partialorder %v2546, 8.507059e+37
      %v2548 = vand.u32 %v2445, 2147483648
      %v2549 = vor.u32 1.1754944e-38, %v2548
      %v2550 = vsel %vm2547, %v2549, %v2545
      %v2551 = vmul.f32 1.0, %v2550
      %v2552 = vrcp.pop %v2446
      %v2553 = vmul.f32 %v2446, %v2552
      %v2554 = vsub.f32 1.0, %v2553
      %v2555 = vmul.f32 %v2552, %v2554
      %v2556 = vadd.f32 %v2552, %v2555
      %vm2557 = vweird.f32 %v2446
      %vm2558 = vweird.f32 %v2552
      %vm2559 = vmor %vm2557, %vm2558
      %v2560 = vsel %vm2559, %v2552, %v2556
      %v2561 = vand.u32 2147483647, %v2446
      %vm2562 = vcmp.eq.f32.partialorder %v2561, 8.507059e+37
      %v2563 = vand.u32 %v2446, 2147483648
      %v2564 = vor.u32 1.1754944e-38, %v2563
      %v2565 = vsel %vm2562, %v2564, %v2560
      %v2566 = vmul.f32 1.0, %v2565
      %v2567 = vmul.f32 %v2461, 1.0614054
      %v2568 = vmul.f32 %v2476, 1.0614054
      %v2569 = vmul.f32 %v2491, 1.0614054
      %v2570 = vmul.f32 %v2506, 1.0614054
      %v2571 = vmul.f32 %v2521, 1.0614054
      %v2572 = vmul.f32 %v2536, 1.0614054
      %v2573 = vmul.f32 %v2551, 1.0614054
      %v2574 = vmul.f32 %v2566, 1.0614054
      %v2575 = vadd.f32 %v2567, -1.4531521
      %v2576 = vadd.f32 %v2568, -1.4531521
      %v2577 = vadd.f32 %v2569, -1.4531521
      %v2578 = vadd.f32 %v2570, -1.4531521
      %v2579 = vadd.f32 %v2571, -1.4531521
      %v2580 = vadd.f32 %v2572, -1.4531521
      %v2581 = vadd.f32 %v2573, -1.4531521
      %v2582 = vadd.f32 %v2574, -1.4531521
      %v2583 = vmul.f32 %v2575, %v2461
      %v2584 = vmul.f32 %v2576, %v2476
      %v2585 = vmul.f32 %v2577, %v2491
      %v2586 = vmul.f32 %v2578, %v2506
      %v2587 = vmul.f32 %v2579, %v2521
      %v2588 = vmul.f32 %v2580, %v2536
      %v2589 = vmul.f32 %v2581, %v2551
      %v2590 = vmul.f32 %v2582, %v2566
      %v2591 = vadd.f32 %v2583, 1.4214138
      %v2592 = vadd.f32 %v2584, 1.4214138
      %v2593 = vadd.f32 %v2585, 1.4214138
      %v2594 = vadd.f32 %v2586, 1.4214138
      %v2595 = vadd.f32 %v2587, 1.4214138
      %v2596 = vadd.f32 %v2588, 1.4214138
      %v2597 = vadd.f32 %v2589, 1.4214138
      %v2598 = vadd.f32 %v2590, 1.4214138
      %v2599 = vmul.f32 %v2591, %v2461
      %v2600 = vmul.f32 %v2592, %v2476
      %v2601 = vmul.f32 %v2593, %v2491
      %v2602 = vmul.f32 %v2594, %v2506
      %v2603 = vmul.f32 %v2595, %v2521
      %v2604 = vmul.f32 %v2596, %v2536
      %v2605 = vmul.f32 %v2597, %v2551
      %v2606 = vmul.f32 %v2598, %v2566
      %v2607 = vadd.f32 %v2599, -0.28449672
      %v2608 = vadd.f32 %v2600, -0.28449672
      %v2609 = vadd.f32 %v2601, -0.28449672
      %v2610 = vadd.f32 %v2602, -0.28449672
      %v2611 = vadd.f32 %v2603, -0.28449672
      %v2612 = vadd.f32 %v2604, -0.28449672
      %v2613 = vadd.f32 %v2605, -0.28449672
      %v2614 = vadd.f32 %v2606, -0.28449672
      %v2615 = vmul.f32 %v2607, %v2461
      %v2616 = vmul.f32 %v2608, %v2476
      %v2617 = vmul.f32 %v2609, %v2491
      %v2618 = vmul.f32 %v2610, %v2506
      %v2619 = vmul.f32 %v2611, %v2521
      %v2620 = vmul.f32 %v2612, %v2536
      %v2621 = vmul.f32 %v2613, %v2551
      %v2622 = vmul.f32 %v2614, %v2566
      %v2623 = vadd.f32 %v2615, 0.2548296
      %v2624 = vadd.f32 %v2616, 0.2548296
      %v2625 = vadd.f32 %v2617, 0.2548296
      %v2626 = vadd.f32 %v2618, 0.2548296
      %v2627 = vadd.f32 %v2619, 0.2548296
      %v2628 = vadd.f32 %v2620, 0.2548296
      %v2629 = vadd.f32 %v2621, 0.2548296
      %v2630 = vadd.f32 %v2622, 0.2548296
      %v2631 = vmul.f32 %v2623, %v2461
      %v2632 = vmul.f32 %v2624, %v2476
      %v2633 = vmul.f32 %v2625, %v2491
      %v2634 = vmul.f32 %v2626, %v2506
      %v2635 = vmul.f32 %v2627, %v2521
      %v2636 = vmul.f32 %v2628, %v2536
      %v2637 = vmul.f32 %v2629, %v2551
      %v2638 = vmul.f32 %v2630, %v2566
      %v2639 = vsub.f32 0.0, %v2423
      %v2640 = vsub.f32 0.0, %v2424
      %v2641 = vsub.f32 0.0, %v2425
      %v2642 = vsub.f32 0.0, %v2426
      %v2643 = vsub.f32 0.0, %v2427
      %v2644 = vsub.f32 0.0, %v2428
      %v2645 = vsub.f32 0.0, %v2429
      %v2646 = vsub.f32 0.0, %v2430
      %v2647 = vmul.f32 %v2639, %v2423
      %v2648 = vmul.f32 %v2640, %v2424
      %v2649 = vmul.f32 %v2641, %v2425
      %v2650 = vmul.f32 %v2642, %v2426
      %v2651 = vmul.f32 %v2643, %v2427
      %v2652 = vmul.f32 %v2644, %v2428
      %v2653 = vmul.f32 %v2645, %v2429
      %v2654 = vmul.f32 %v2646, %v2430
      %v2655 = vmul.f32 %v2647, 1.442695
      %v2656 = vpow.pop %v2655
      %v2657 = vmul.f32 %v2648, 1.442695
      %v2658 = vpow.pop %v2657
      %v2659 = vmul.f32 %v2649, 1.442695
      %v2660 = vpow.pop %v2659
      %v2661 = vmul.f32 %v2650, 1.442695
      %v2662 = vpow.pop %v2661
      %v2663 = vmul.f32 %v2651, 1.442695
      %v2664 = vpow.pop %v2663
      %v2665 = vmul.f32 %v2652, 1.442695
      %v2666 = vpow.pop %v2665
      %v2667 = vmul.f32 %v2653, 1.442695
      %v2668 = vpow.pop %v2667
      %v2669 = vmul.f32 %v2654, 1.442695
      %v2670 = vpow.pop %v2669
      %v2671 = vmul.f32 %v2631, %v2656
      %v2672 = vmul.f32 %v2632, %v2658
      %v2673 = vmul.f32 %v2633, %v2660
      %v2674 = vmul.f32 %v2634, %v2662
      %v2675 = vmul.f32 %v2635, %v2664
      %v2676 = vmul.f32 %v2636, %v2666
      %v2677 = vmul.f32 %v2637, %v2668
      %v2678 = vmul.f32 %v2638, %v2670
      %v2679 = vsub.f32 1.0, %v2671
      %v2680 = vsub.f32 1.0, %v2672
      %v2681 = vsub.f32 1.0, %v2673
      %v2682 = vsub.f32 1.0, %v2674
      %v2683 = vsub.f32 1.0, %v2675
      %v2684 = vsub.f32 1.0, %v2676
      %v2685 = vsub.f32 1.0, %v2677
      %v2686 = vsub.f32 1.0, %v2678
      %v2687 = vmul.f32 %v2415, %v2679
      %v2688 = vmul.f32 %v2416, %v2680
      %v2689 = vmul.f32 %v2417, %v2681
      %v2690 = vmul.f32 %v2418, %v2682
      %v2691 = vmul.f32 %v2419, %v2683
      %v2692 = vmul.f32 %v2420, %v2684
      %v2693 = vmul.f32 %v2421, %v2685
      %v2694 = vmul.f32 %v2422, %v2686
      %v2695 = vadd.f32 %v2687, 1.0
      %v2696 = vadd.f32 %v2688, 1.0
      %v2697 = vadd.f32 %v2689, 1.0
      %v2698 = vadd.f32 %v2690, 1.0
      %v2699 = vadd.f32 %v2691, 1.0
      %v2700 = vadd.f32 %v2692, 1.0
      %v2701 = vadd.f32 %v2693, 1.0
      %v2702 = vadd.f32 %v2694, 1.0
      %v2703 = vmul.f32 %v2391, %v2695
      %v2704 = vmul.f32 %v2392, %v2696
      %v2705 = vmul.f32 %v2393, %v2697
      %v2706 = vmul.f32 %v2394, %v2698
      %v2707 = vmul.f32 %v2395, %v2699
      %v2708 = vmul.f32 %v2396, %v2700
      %v2709 = vmul.f32 %v2397, %v2701
      %v2710 = vmul.f32 %v2398, %v2702
      %v2711 = vld [vmem:[%s33] sm:$0xf]
      %v2712 = vld [vmem:[%s33 + $0x4] sm:$0xf]
      %v2713 = vld [vmem:[%s33 + $0x8] sm:$0xf]
      %v2714 = vld [vmem:[%s33 + $0xc] sm:$0xf]
      %v2715 = vld [vmem:[%s33 + $0x10] sm:$0xf]
      %v2716 = vld [vmem:[%s33 + $0x14] sm:$0xf]
      %v2717 = vld [vmem:[%s33 + $0x18] sm:$0xf]
      %v2718 = vld [vmem:[%s33 + $0x1c] sm:$0xf]
      %v2719 = vld [vmem:[%s33 + $0x20] sm:$0xf]
      %v2720 = vld [vmem:[%s33 + $0x24] sm:$0xf]
      %v2721 = vld [vmem:[%s33 + $0x28] sm:$0xf]
      %v2722 = vld [vmem:[%s33 + $0x2c] sm:$0xf]
      %v2723 = vld [vmem:[%s33 + $0x30] sm:$0xf]
      %v2724 = vld [vmem:[%s33 + $0x34] sm:$0xf]
      %v2725 = vld [vmem:[%s33 + $0x38] sm:$0xf]
      %v2726 = vld [vmem:[%s33 + $0x3c] sm:$0xf]
      %v2727 = vpack.c.bf16 %v2704, %v2703
      %v2728 = vpack.c.bf16 %v2706, %v2705
      %v2729 = vpack.c.bf16 %v2708, %v2707
      %v2730 = vpack.c.bf16 %v2710, %v2709
      %v2747 = vunpack.c.l.b16 %v2711
      %v2748 = vunpack.c.l.b16 %v2712
      %v2749 = vunpack.c.l.b16 %v2713
      %v2750 = vunpack.c.l.b16 %v2714
      %v2751 = vunpack.c.l.b16 %v2715
      %v2752 = vunpack.c.l.b16 %v2716
      %v2753 = vunpack.c.l.b16 %v2717
      %v2754 = vunpack.c.l.b16 %v2718
      %v2755 = vunpack.c.l.b16 %v2719
      %v2756 = vunpack.c.l.b16 %v2720
      %v2757 = vunpack.c.l.b16 %v2721
      %v2758 = vunpack.c.l.b16 %v2722
      %v2759 = vunpack.c.l.b16 %v2723
      %v2760 = vunpack.c.l.b16 %v2724
      %v2761 = vunpack.c.l.b16 %v2725
      %v2762 = vunpack.c.l.b16 %v2726
      %v2763 = vpack.c.b16 %v2748, %v2747
      %v2764 = vpack.c.b16 %v2750, %v2749
      %v2765 = vpack.c.b16 %v2752, %v2751
      %v2766 = vpack.c.b16 %v2754, %v2753
      %v2767 = vpack.c.b16 %v2756, %v2755
      %v2768 = vpack.c.b16 %v2758, %v2757
      %v2769 = vpack.c.b16 %v2760, %v2759
      %v2770 = vpack.c.b16 %v2762, %v2761
      %2779 = vmatpush.bf16.msra.mxu0 %v2770
      %2780 = vmatpush.bf16.msra.mxu0 %v2769
      %2781 = vmatpush.bf16.msra.mxu0 %v2768
      %2782 = vmatpush.bf16.msra.mxu0 %v2767
      %2783 = vmatpush.bf16.msra.mxu0 %v2766
      %2784 = vmatpush.bf16.msra.mxu0 %v2765
      %2785 = vmatpush.bf16.msra.mxu0 %v2764
      %2786 = vmatpush.bf16.msra.mxu0 %v2763
      %2787 = vmatmul.bf16.gmra.mxu0 %v2727
      %v2788 = vpop.f32.mrf.mxu0
      %v2789 = vadd.f32 0.0, %v2788
      %v2790 = vpop.f32.mrf.mxu0
      %v2791 = vadd.f32 0.0, %v2790
      %2792 = vmatmul.bf16.gmra.mxu0 %v2728
      %v2793 = vpop.f32.mrf.mxu0
      %v2794 = vadd.f32 0.0, %v2793
      %v2795 = vpop.f32.mrf.mxu0
      %v2796 = vadd.f32 0.0, %v2795
      %2797 = vmatmul.bf16.gmra.mxu0 %v2729
      %v2798 = vpop.f32.mrf.mxu0
      %v2799 = vadd.f32 0.0, %v2798
      %v2800 = vpop.f32.mrf.mxu0
      %v2801 = vadd.f32 0.0, %v2800
      %2802 = vmatmul.bf16.gmra.mxu0 %v2730
      %v2803 = vpop.f32.mrf.mxu0
      %v2804 = vadd.f32 0.0, %v2803
      %v2805 = vpop.f32.mrf.mxu0
      %v2806 = vadd.f32 0.0, %v2805
      %2807 = vdwg.mxu0
      %v2808 = vadd.f32 %v2118, %v2789
      %v2809 = vadd.f32 %v2119, %v2791
      %v2810 = vadd.f32 %v2120, %v2794
      %v2811 = vadd.f32 %v2121, %v2796
      %v2812 = vadd.f32 %v2122, %v2799
      %v2813 = vadd.f32 %v2123, %v2801
      %v2814 = vadd.f32 %v2124, %v2804
      %v2815 = vadd.f32 %v2125, %v2806
      %v2816 = vld [vmem:[%s35] sm:$0x1]
      %v2818 = vperm.slane %v2816, 0
      %v2820 = vadd.f32 %v2808, %v2818
      %v2821 = vadd.f32 %v2809, %v2818
      %v2822 = vadd.f32 %v2810, %v2818
      %v2823 = vadd.f32 %v2811, %v2818
      %v2824 = vadd.f32 %v2812, %v2818
      %v2825 = vadd.f32 %v2813, %v2818
      %v2826 = vadd.f32 %v2814, %v2818
      %v2827 = vadd.f32 %v2815, %v2818
      %v2828 = vld [vmem:[%s37] sm:$0x1]
      %v2829 = vld [vmem:[%s39] sm:$0x1]
      %v2830 = vsel %vm1071, %v2820, 0.0
      %2831 = vadd.xlane.f32.xlu0 %v2830
      %v2832 = vpop.xlane.xlu0 %2831
      %v2833 = vsel %vm1071, %v2821, 0.0
      %2834 = vadd.xlane.f32.xlu0 %v2833
      %v2835 = vpop.xlane.xlu0 %2834
      %v2836 = vsel %vm1071, %v2822, 0.0
      %2837 = vadd.xlane.f32.xlu0 %v2836
      %v2838 = vpop.xlane.xlu0 %2837
      %v2839 = vsel %vm1071, %v2823, 0.0
      %2840 = vadd.xlane.f32.xlu0 %v2839
      %v2841 = vpop.xlane.xlu0 %2840
      %v2842 = vsel %vm1071, %v2824, 0.0
      %2843 = vadd.xlane.f32.xlu0 %v2842
      %v2844 = vpop.xlane.xlu0 %2843
      %v2845 = vsel %vm1071, %v2825, 0.0
      %2846 = vadd.xlane.f32.xlu0 %v2845
      %v2847 = vpop.xlane.xlu0 %2846
      %v2848 = vsel %vm1071, %v2826, 0.0
      %2849 = vadd.xlane.f32.xlu0 %v2848
      %v2850 = vpop.xlane.xlu0 %2849
      %v2851 = vsel %vm1071, %v2827, 0.0
      %2852 = vadd.xlane.f32.xlu0 %v2851
      %v2853 = vpop.xlane.xlu0 %2852
      %v2854 = vmul.f32 %v2832, %v1102
      %v2855 = vmul.f32 %v2835, %v1102
      %v2856 = vmul.f32 %v2838, %v1102
      %v2857 = vmul.f32 %v2841, %v1102
      %v2858 = vmul.f32 %v2844, %v1102
      %v2859 = vmul.f32 %v2847, %v1102
      %v2860 = vmul.f32 %v2850, %v1102
      %v2861 = vmul.f32 %v2853, %v1102
      %v2862 = vsub.f32 %v2820, %v2854
      %v2863 = vsub.f32 %v2821, %v2855
      %v2864 = vsub.f32 %v2822, %v2856
      %v2865 = vsub.f32 %v2823, %v2857
      %v2866 = vsub.f32 %v2824, %v2858
      %v2867 = vsub.f32 %v2825, %v2859
      %v2868 = vsub.f32 %v2826, %v2860
      %v2869 = vsub.f32 %v2827, %v2861
      %v2870 = vmul.f32 %v2862, %v2862
      %v2871 = vmul.f32 %v2863, %v2863
      %v2872 = vmul.f32 %v2864, %v2864
      %v2873 = vmul.f32 %v2865, %v2865
      %v2874 = vmul.f32 %v2866, %v2866
      %v2875 = vmul.f32 %v2867, %v2867
      %v2876 = vmul.f32 %v2868, %v2868
      %v2877 = vmul.f32 %v2869, %v2869
      %v2878 = vsel %vm1071, %v2870, 0.0
      %2879 = vadd.xlane.f32.xlu0 %v2878
      %v2880 = vpop.xlane.xlu0 %2879
      %v2881 = vsel %vm1071, %v2871, 0.0
      %2882 = vadd.xlane.f32.xlu0 %v2881
      %v2883 = vpop.xlane.xlu0 %2882
      %v2884 = vsel %vm1071, %v2872, 0.0
      %2885 = vadd.xlane.f32.xlu0 %v2884
      %v2886 = vpop.xlane.xlu0 %2885
      %v2887 = vsel %vm1071, %v2873, 0.0
      %2888 = vadd.xlane.f32.xlu0 %v2887
      %v2889 = vpop.xlane.xlu0 %2888
      %v2890 = vsel %vm1071, %v2874, 0.0
      %2891 = vadd.xlane.f32.xlu0 %v2890
      %v2892 = vpop.xlane.xlu0 %2891
      %v2893 = vsel %vm1071, %v2875, 0.0
      %2894 = vadd.xlane.f32.xlu0 %v2893
      %v2895 = vpop.xlane.xlu0 %2894
      %v2896 = vsel %vm1071, %v2876, 0.0
      %2897 = vadd.xlane.f32.xlu0 %v2896
      %v2898 = vpop.xlane.xlu0 %2897
      %v2899 = vsel %vm1071, %v2877, 0.0
      %2900 = vadd.xlane.f32.xlu0 %v2899
      %v2901 = vpop.xlane.xlu0 %2900
      %v2902 = vmul.f32 %v2880, %v1102
      %v2903 = vmul.f32 %v2883, %v1102
      %v2904 = vmul.f32 %v2886, %v1102
      %v2905 = vmul.f32 %v2889, %v1102
      %v2906 = vmul.f32 %v2892, %v1102
      %v2907 = vmul.f32 %v2895, %v1102
      %v2908 = vmul.f32 %v2898, %v1102
      %v2909 = vmul.f32 %v2901, %v1102
      %v2910 = vadd.f32 %v2902, 1e-05
      %v2911 = vadd.f32 %v2903, 1e-05
      %v2912 = vadd.f32 %v2904, 1e-05
      %v2913 = vadd.f32 %v2905, 1e-05
      %v2914 = vadd.f32 %v2906, 1e-05
      %v2915 = vadd.f32 %v2907, 1e-05
      %v2916 = vadd.f32 %v2908, 1e-05
      %v2917 = vadd.f32 %v2909, 1e-05
      %v2918 = vrsqrt.pop %v2910
      %v2919 = vmul.f32 %v2918, %v2910
      %v2920 = vmul.f32 %v2919, %v2918
      %v2921 = vmul.f32 0.5, %v2920
      %v2922 = vsub.f32 1.5, %v2921
      %v2923 = vmul.f32 %v2918, %v2922
      %vm2924 = vweird.f32 %v2910
      %vm2925 = vweird.f32 %v2918
      %vm2926 = vmor %vm2924, %vm2925
      %v2927 = vsel %vm2926, %v2918, %v2923
      %v2928 = vrsqrt.pop %v2911
      %v2929 = vmul.f32 %v2928, %v2911
      %v2930 = vmul.f32 %v2929, %v2928
      %v2931 = vmul.f32 0.5, %v2930
      %v2932 = vsub.f32 1.5, %v2931
      %v2933 = vmul.f32 %v2928, %v2932
      %vm2934 = vweird.f32 %v2911
      %vm2935 = vweird.f32 %v2928
      %vm2936 = vmor %vm2934, %vm2935
      %v2937 = vsel %vm2936, %v2928, %v2933
      %v2938 = vrsqrt.pop %v2912
      %v2939 = vmul.f32 %v2938, %v2912
      %v2940 = vmul.f32 %v2939, %v2938
      %v2941 = vmul.f32 0.5, %v2940
      %v2942 = vsub.f32 1.5, %v2941
      %v2943 = vmul.f32 %v2938, %v2942
      %vm2944 = vweird.f32 %v2912
      %vm2945 = vweird.f32 %v2938
      %vm2946 = vmor %vm2944, %vm2945
      %v2947 = vsel %vm2946, %v2938, %v2943
      %v2948 = vrsqrt.pop %v2913
      %v2949 = vmul.f32 %v2948, %v2913
      %v2950 = vmul.f32 %v2949, %v2948
      %v2951 = vmul.f32 0.5, %v2950
      %v2952 = vsub.f32 1.5, %v2951
      %v2953 = vmul.f32 %v2948, %v2952
      %vm2954 = vweird.f32 %v2913
      %vm2955 = vweird.f32 %v2948
      %vm2956 = vmor %vm2954, %vm2955
      %v2957 = vsel %vm2956, %v2948, %v2953
      %v2958 = vrsqrt.pop %v2914
      %v2959 = vmul.f32 %v2958, %v2914
      %v2960 = vmul.f32 %v2959, %v2958
      %v2961 = vmul.f32 0.5, %v2960
      %v2962 = vsub.f32 1.5, %v2961
      %v2963 = vmul.f32 %v2958, %v2962
      %vm2964 = vweird.f32 %v2914
      %vm2965 = vweird.f32 %v2958
      %vm2966 = vmor %vm2964, %vm2965
      %v2967 = vsel %vm2966, %v2958, %v2963
      %v2968 = vrsqrt.pop %v2915
      %v2969 = vmul.f32 %v2968, %v2915
      %v2970 = vmul.f32 %v2969, %v2968
      %v2971 = vmul.f32 0.5, %v2970
      %v2972 = vsub.f32 1.5, %v2971
      %v2973 = vmul.f32 %v2968, %v2972
      %vm2974 = vweird.f32 %v2915
      %vm2975 = vweird.f32 %v2968
      %vm2976 = vmor %vm2974, %vm2975
      %v2977 = vsel %vm2976, %v2968, %v2973
      %v2978 = vrsqrt.pop %v2916
      %v2979 = vmul.f32 %v2978, %v2916
      %v2980 = vmul.f32 %v2979, %v2978
      %v2981 = vmul.f32 0.5, %v2980
      %v2982 = vsub.f32 1.5, %v2981
      %v2983 = vmul.f32 %v2978, %v2982
      %vm2984 = vweird.f32 %v2916
      %vm2985 = vweird.f32 %v2978
      %vm2986 = vmor %vm2984, %vm2985
      %v2987 = vsel %vm2986, %v2978, %v2983
      %v2988 = vrsqrt.pop %v2917
      %v2989 = vmul.f32 %v2988, %v2917
      %v2990 = vmul.f32 %v2989, %v2988
      %v2991 = vmul.f32 0.5, %v2990
      %v2992 = vsub.f32 1.5, %v2991
      %v2993 = vmul.f32 %v2988, %v2992
      %vm2994 = vweird.f32 %v2917
      %vm2995 = vweird.f32 %v2988
      %vm2996 = vmor %vm2994, %vm2995
      %v2997 = vsel %vm2996, %v2988, %v2993
      %v2998 = vmul.f32 %v2862, %v2927
      %v2999 = vmul.f32 %v2863, %v2937
      %v3000 = vmul.f32 %v2864, %v2947
      %v3001 = vmul.f32 %v2865, %v2957
      %v3002 = vmul.f32 %v2866, %v2967
      %v3003 = vmul.f32 %v2867, %v2977
      %v3004 = vmul.f32 %v2868, %v2987
      %v3005 = vmul.f32 %v2869, %v2997
      %v3007 = vperm.slane %v2828, 0
      %v3009 = vmul.f32 %v2998, %v3007
      %v3010 = vmul.f32 %v2999, %v3007
      %v3011 = vmul.f32 %v3000, %v3007
      %v3012 = vmul.f32 %v3001, %v3007
      %v3013 = vmul.f32 %v3002, %v3007
      %v3014 = vmul.f32 %v3003, %v3007
      %v3015 = vmul.f32 %v3004, %v3007
      %v3016 = vmul.f32 %v3005, %v3007
      %v3018 = vperm.slane %v2829, 0
      %v3020 = vadd.f32 %v3009, %v3018
      %v3021 = vadd.f32 %v3010, %v3018
      %v3022 = vadd.f32 %v3011, %v3018
      %v3023 = vadd.f32 %v3012, %v3018
      %v3024 = vadd.f32 %v3013, %v3018
      %v3025 = vadd.f32 %v3014, %v3018
      %v3026 = vadd.f32 %v3015, %v3018
      %v3027 = vadd.f32 %v3016, %v3018
      %v3028 = vld [vmem:[%s41] sm:$0xf]
      %v3029 = vld [vmem:[%s41 + $0x4] sm:$0xf]
      %v3030 = vld [vmem:[%s41 + $0x8] sm:$0xf]
      %v3031 = vld [vmem:[%s41 + $0xc] sm:$0xf]
      %v3032 = vpack.c.bf16 %v3021, %v3020
      %v3033 = vpack.c.bf16 %v3023, %v3022
      %v3034 = vpack.c.bf16 %v3025, %v3024
      %v3035 = vpack.c.bf16 %v3027, %v3026
      %v3036 = vld [vmem:[%s43] sm:$0x1]
      %v3038 = vperm.slane %v3036, 0
      %v3044 = vunpack.c.l.b16 %v3028
      %v3045 = vunpack.c.l.b16 %v3029
      %v3046 = vunpack.c.l.b16 %v3030
      %v3047 = vunpack.c.l.b16 %v3031
      %v3048 = vpack.c.b16 %v3045, %v3044
      %v3049 = vpack.c.b16 %v3047, %v3046
      %v3053 = vsel %vm1071, %v3032, 0
      %v3056 = vsel %vm1071, %v3033, 0
      %v3059 = vsel %vm1071, %v3034, 0
      %v3062 = vsel %vm1071, %v3035, 0
      %3064 = vmatpush.bf16.msra.mxu0 0
      %3065 = vmatpush.bf16.msra.mxu0 0
      %3066 = vmatpush.bf16.msra.mxu0 0
      %3067 = vmatpush.bf16.msra.mxu0 0
      %3068 = vmatpush.bf16.msra.mxu0 0
      %3069 = vmatpush.bf16.msra.mxu0 0
      %3070 = vmatpush.bf16.msra.mxu0 %v3049
      %3071 = vmatpush.bf16.msra.mxu0 %v3048
      %3072 = vmatmul.bf16.gmra.mxu0 %v3053
      %v3073 = vpop.f32.mrf.mxu0
      %v3074 = vadd.f32 %v3038, %v3073
      %v3075 = vpop.f32.mrf.mxu0
      %v3076 = vadd.f32 %v3038, %v3075
      %3077 = vmatmul.bf16.gmra.mxu0 %v3056
      %v3078 = vpop.f32.mrf.mxu0
      %v3079 = vadd.f32 %v3038, %v3078
      %v3080 = vpop.f32.mrf.mxu0
      %v3081 = vadd.f32 %v3038, %v3080
      %3082 = vmatmul.bf16.gmra.mxu0 %v3059
      %v3083 = vpop.f32.mrf.mxu0
      %v3084 = vadd.f32 %v3038, %v3083
      %v3085 = vpop.f32.mrf.mxu0
      %v3086 = vadd.f32 %v3038, %v3085
      %3087 = vmatmul.bf16.gmra.mxu0 %v3062
      %v3088 = vpop.f32.mrf.mxu0
      %v3089 = vadd.f32 %v3038, %v3088
      %v3090 = vpop.f32.mrf.mxu0
      %v3091 = vadd.f32 %v3038, %v3090
      %3092 = vdwg.mxu0
      %v3093 = vmul.f32 %v3074, 0.25
      %v3094 = vmul.f32 %v3076, 0.25
      %v3095 = vmul.f32 %v3079, 0.25
      %v3096 = vmul.f32 %v3081, 0.25
      %v3097 = vmul.f32 %v3084, 0.25
      %v3098 = vmul.f32 %v3086, 0.25
      %v3099 = vmul.f32 %v3089, 0.25
      %v3100 = vmul.f32 %v3091, 0.25
      %v3101 = vpack.c.bf16 %v3094, %v3093
      %v3102 = vpack.c.bf16 %v3096, %v3095
      %v3103 = vpack.c.bf16 %v3098, %v3097
      %v3104 = vpack.c.bf16 %v3100, %v3099
      %v3105 = vpack.c.bf16 %v3076, %v3074
      %v3106 = vpack.c.bf16 %v3081, %v3079
      %v3107 = vpack.c.bf16 %v3086, %v3084
      %v3108 = vpack.c.bf16 %v3091, %v3089
      %v3109 = vld [vmem:[%s45] sm:$0xff]
      %v3110 = vld [vmem:[%s45 + $0x8] sm:$0xff]
      %v3111 = vld [vmem:[%s45 + $0x10] sm:$0xff]
      %v3112 = vld [vmem:[%s45 + $0x18] sm:$0xff]
      %v3113 = vld [vmem:[%s45 + $0x20] sm:$0xff]
      %v3114 = vld [vmem:[%s45 + $0x28] sm:$0xff]
      %v3115 = vld [vmem:[%s45 + $0x30] sm:$0xff]
      %v3116 = vld [vmem:[%s45 + $0x38] sm:$0xff]
      %3121 = vrot.lane.b32.xlu0 %v3105, 96
      %v3122 = vpop.permute.xlu0 %3121
      %3123 = vrot.lane.b32.xlu0 %v3106, 96
      %v3124 = vpop.permute.xlu0 %3123
      %3125 = vrot.lane.b32.xlu0 %v3107, 96
      %v3126 = vpop.permute.xlu0 %3125
      %3127 = vrot.lane.b32.xlu0 %v3108, 96
      %v3128 = vpop.permute.xlu0 %3127
      %v3130 = vsel %vm1578, %v3101, 0
      %v3133 = vsel %vm1578, %v3102, 0
      %v3136 = vsel %vm1578, %v3103, 0
      %v3139 = vsel %vm1578, %v3104, 0
      %v3142 = vsel %vm1578, %v3122, 0
      %v3145 = vsel %vm1578, %v3124, 0
      %v3148 = vsel %vm1578, %v3126, 0
      %v3151 = vsel %vm1578, %v3128, 0
      %3153 = vmatpush.bf16.xpose.msra.mxu0 0
      %3154 = vmatpush.bf16.xpose.msra.mxu0 0
      %3155 = vmatpush.bf16.xpose.msra.mxu0 0
      %3156 = vmatpush.bf16.xpose.msra.mxu0 0
      %3157 = vmatpush.bf16.xpose.msra.mxu0 %v3151
      %3158 = vmatpush.bf16.xpose.msra.mxu0 %v3148
      %3159 = vmatpush.bf16.xpose.msra.mxu0 %v3145
      %3160 = vmatpush.bf16.xpose.msra.mxu0 %v3142
      %3161 = vmatmul.bf16.gmra.mxu0 %v3130
      %v3162 = vpop.f32.mrf.mxu0
      %v3163 = vadd.f32 %v3109, %v3162
      %v3164 = vpop.f32.mrf.mxu0
      %v3165 = vadd.f32 %v3110, %v3164
      %3166 = vmatmul.bf16.gmra.mxu0 %v3133
      %v3167 = vpop.f32.mrf.mxu0
      %v3168 = vadd.f32 %v3111, %v3167
      %v3169 = vpop.f32.mrf.mxu0
      %v3170 = vadd.f32 %v3112, %v3169
      %3171 = vmatmul.bf16.gmra.mxu0 %v3136
      %v3172 = vpop.f32.mrf.mxu0
      %v3173 = vadd.f32 %v3113, %v3172
      %v3174 = vpop.f32.mrf.mxu0
      %v3175 = vadd.f32 %v3114, %v3174
      %3176 = vmatmul.bf16.gmra.mxu0 %v3139
      %v3177 = vpop.f32.mrf.mxu0
      %v3178 = vadd.f32 %v3115, %v3177
      %v3179 = vpop.f32.mrf.mxu0
      %v3180 = vadd.f32 %v3116, %v3179
      %3181 = vdwg.mxu0
      %v3182 = vsel %vm1632, %v3163, -inf
      %3183 = vmax.xlane.f32.xlu0 %v3182
      %v3184 = vpop.xlane.xlu0 %3183
      %v3185 = vsel %vm1632, %v3165, -inf
      %3186 = vmax.xlane.f32.xlu0 %v3185
      %v3187 = vpop.xlane.xlu0 %3186
      %v3188 = vsel %vm1632, %v3168, -inf
      %3189 = vmax.xlane.f32.xlu0 %v3188
      %v3190 = vpop.xlane.xlu0 %3189
      %v3191 = vsel %vm1632, %v3170, -inf
      %3192 = vmax.xlane.f32.xlu0 %v3191
      %v3193 = vpop.xlane.xlu0 %3192
      %v3194 = vsel %vm1632, %v3173, -inf
      %3195 = vmax.xlane.f32.xlu0 %v3194
      %v3196 = vpop.xlane.xlu0 %3195
      %v3197 = vsel %vm1632, %v3175, -inf
      %3198 = vmax.xlane.f32.xlu0 %v3197
      %v3199 = vpop.xlane.xlu0 %3198
      %v3200 = vsel %vm1632, %v3178, -inf
      %3201 = vmax.xlane.f32.xlu0 %v3200
      %v3202 = vpop.xlane.xlu0 %3201
      %v3203 = vsel %vm1632, %v3180, -inf
      %3204 = vmax.xlane.f32.xlu0 %v3203
      %v3205 = vpop.xlane.xlu0 %3204
      %v3206 = vsub.f32 %v3163, %v3184
      %v3207 = vsub.f32 %v3165, %v3187
      %v3208 = vsub.f32 %v3168, %v3190
      %v3209 = vsub.f32 %v3170, %v3193
      %v3210 = vsub.f32 %v3173, %v3196
      %v3211 = vsub.f32 %v3175, %v3199
      %v3212 = vsub.f32 %v3178, %v3202
      %v3213 = vsub.f32 %v3180, %v3205
      %v3214 = vmul.f32 %v3206, 1.442695
      %v3215 = vpow.pop %v3214
      %v3216 = vmul.f32 %v3207, 1.442695
      %v3217 = vpow.pop %v3216
      %v3218 = vmul.f32 %v3208, 1.442695
      %v3219 = vpow.pop %v3218
      %v3220 = vmul.f32 %v3209, 1.442695
      %v3221 = vpow.pop %v3220
      %v3222 = vmul.f32 %v3210, 1.442695
      %v3223 = vpow.pop %v3222
      %v3224 = vmul.f32 %v3211, 1.442695
      %v3225 = vpow.pop %v3224
      %v3226 = vmul.f32 %v3212, 1.442695
      %v3227 = vpow.pop %v3226
      %v3228 = vmul.f32 %v3213, 1.442695
      %v3229 = vpow.pop %v3228
      %v3230 = vsel %vm1632, %v3215, 0.0
      %3231 = vadd.xlane.f32.xlu0 %v3230
      %v3232 = vpop.xlane.xlu0 %3231
      %v3233 = vsel %vm1632, %v3217, 0.0
      %3234 = vadd.xlane.f32.xlu0 %v3233
      %v3235 = vpop.xlane.xlu0 %3234
      %v3236 = vsel %vm1632, %v3219, 0.0
      %3237 = vadd.xlane.f32.xlu0 %v3236
      %v3238 = vpop.xlane.xlu0 %3237
      %v3239 = vsel %vm1632, %v3221, 0.0
      %3240 = vadd.xlane.f32.xlu0 %v3239
      %v3241 = vpop.xlane.xlu0 %3240
      %v3242 = vsel %vm1632, %v3223, 0.0
      %3243 = vadd.xlane.f32.xlu0 %v3242
      %v3244 = vpop.xlane.xlu0 %3243
      %v3245 = vsel %vm1632, %v3225, 0.0
      %3246 = vadd.xlane.f32.xlu0 %v3245
      %v3247 = vpop.xlane.xlu0 %3246
      %v3248 = vsel %vm1632, %v3227, 0.0
      %3249 = vadd.xlane.f32.xlu0 %v3248
      %v3250 = vpop.xlane.xlu0 %3249
      %v3251 = vsel %vm1632, %v3229, 0.0
      %3252 = vadd.xlane.f32.xlu0 %v3251
      %v3253 = vpop.xlane.xlu0 %3252
      %v3254 = vrcp.pop %v3232
      %v3255 = vrcp.pop %v3235
      %v3256 = vrcp.pop %v3238
      %v3257 = vrcp.pop %v3241
      %v3258 = vrcp.pop %v3244
      %v3259 = vrcp.pop %v3247
      %v3260 = vrcp.pop %v3250
      %v3261 = vrcp.pop %v3253
      %v3262 = vmul.f32 %v3215, %v3254
      %v3263 = vmul.f32 %v3217, %v3255
      %v3264 = vmul.f32 %v3219, %v3256
      %v3265 = vmul.f32 %v3221, %v3257
      %v3266 = vmul.f32 %v3223, %v3258
      %v3267 = vmul.f32 %v3225, %v3259
      %v3268 = vmul.f32 %v3227, %v3260
      %v3269 = vmul.f32 %v3229, %v3261
      %v3270 = vpack.c.bf16 %v3263, %v3262
      %v3271 = vpack.c.bf16 %v3265, %v3264
      %v3272 = vpack.c.bf16 %v3267, %v3266
      %v3273 = vpack.c.bf16 %v3269, %v3268
      %3274 = vrot.lane.b32.xlu0 %v3105, 64
      %v3275 = vpop.permute.xlu0 %3274
      %3276 = vrot.lane.b32.xlu0 %v3106, 64
      %v3277 = vpop.permute.xlu0 %3276
      %3278 = vrot.lane.b32.xlu0 %v3107, 64
      %v3279 = vpop.permute.xlu0 %3278
      %3280 = vrot.lane.b32.xlu0 %v3108, 64
      %v3281 = vpop.permute.xlu0 %3280
      %v3287 = vsel %vm1632, %v3270, 0
      %v3290 = vsel %vm1632, %v3271, 0
      %v3293 = vsel %vm1632, %v3272, 0
      %v3296 = vsel %vm1632, %v3273, 0
      %3298 = vmatpush.bf16.msra.mxu0 0
      %3299 = vmatpush.bf16.msra.mxu0 0
      %3300 = vmatpush.bf16.msra.mxu0 0
      %3301 = vmatpush.bf16.msra.mxu0 0
      %3302 = vmatpush.bf16.msra.mxu0 %v3281
      %3303 = vmatpush.bf16.msra.mxu0 %v3279
      %3304 = vmatpush.bf16.msra.mxu0 %v3277
      %3305 = vmatpush.bf16.msra.mxu0 %v3275
      %3306 = vmatmul.bf16.gmra.mxu0 %v3287
      %v3307 = vpop.f32.mrf.mxu0
      %v3308 = vadd.f32 0.0, %v3307
      %v3309 = vpop.f32.mrf.mxu0
      %v3310 = vadd.f32 0.0, %v3309
      %3311 = vmatmul.bf16.gmra.mxu0 %v3290
      %v3312 = vpop.f32.mrf.mxu0
      %v3313 = vadd.f32 0.0, %v3312
      %v3314 = vpop.f32.mrf.mxu0
      %v3315 = vadd.f32 0.0, %v3314
      %3316 = vmatmul.bf16.gmra.mxu0 %v3293
      %v3317 = vpop.f32.mrf.mxu0
      %v3318 = vadd.f32 0.0, %v3317
      %v3319 = vpop.f32.mrf.mxu0
      %v3320 = vadd.f32 0.0, %v3319
      %3321 = vmatmul.bf16.gmra.mxu0 %v3296
      %v3322 = vpop.f32.mrf.mxu0
      %v3323 = vadd.f32 0.0, %v3322
      %v3324 = vpop.f32.mrf.mxu0
      %v3325 = vadd.f32 0.0, %v3324
      %3326 = vdwg.mxu0
      %s3327 = scalar_lea.vmem %s45, 64
      %v3328 = vld [vmem:[%s3327] sm:$0xff]
      %v3329 = vld [vmem:[%s3327 + $0x8] sm:$0xff]
      %v3330 = vld [vmem:[%s3327 + $0x10] sm:$0xff]
      %v3331 = vld [vmem:[%s3327 + $0x18] sm:$0xff]
      %v3332 = vld [vmem:[%s3327 + $0x20] sm:$0xff]
      %v3333 = vld [vmem:[%s3327 + $0x28] sm:$0xff]
      %v3334 = vld [vmem:[%s3327 + $0x30] sm:$0xff]
      %v3335 = vld [vmem:[%s3327 + $0x38] sm:$0xff]
      %3340 = vrot.lane.b32.xlu0 %v3101, 112
      %v3341 = vpop.permute.xlu0 %3340
      %3342 = vrot.lane.b32.xlu0 %v3102, 112
      %v3343 = vpop.permute.xlu0 %3342
      %3344 = vrot.lane.b32.xlu0 %v3103, 112
      %v3345 = vpop.permute.xlu0 %3344
      %3346 = vrot.lane.b32.xlu0 %v3104, 112
      %v3347 = vpop.permute.xlu0 %3346
      %3348 = vrot.lane.b32.xlu0 %v3105, 80
      %v3349 = vpop.permute.xlu0 %3348
      %3350 = vrot.lane.b32.xlu0 %v3106, 80
      %v3351 = vpop.permute.xlu0 %3350
      %3352 = vrot.lane.b32.xlu0 %v3107, 80
      %v3353 = vpop.permute.xlu0 %3352
      %3354 = vrot.lane.b32.xlu0 %v3108, 80
      %v3355 = vpop.permute.xlu0 %3354
      %v3357 = vsel %vm1578, %v3341, 0
      %v3360 = vsel %vm1578, %v3343, 0
      %v3363 = vsel %vm1578, %v3345, 0
      %v3366 = vsel %vm1578, %v3347, 0
      %v3369 = vsel %vm1578, %v3349, 0
      %v3372 = vsel %vm1578, %v3351, 0
      %v3375 = vsel %vm1578, %v3353, 0
      %v3378 = vsel %vm1578, %v3355, 0
      %3380 = vmatpush.bf16.xpose.msra.mxu0 0
      %3381 = vmatpush.bf16.xpose.msra.mxu0 0
      %3382 = vmatpush.bf16.xpose.msra.mxu0 0
      %3383 = vmatpush.bf16.xpose.msra.mxu0 0
      %3384 = vmatpush.bf16.xpose.msra.mxu0 %v3378
      %3385 = vmatpush.bf16.xpose.msra.mxu0 %v3375
      %3386 = vmatpush.bf16.xpose.msra.mxu0 %v3372
      %3387 = vmatpush.bf16.xpose.msra.mxu0 %v3369
      %3388 = vmatmul.bf16.gmra.mxu0 %v3357
      %v3389 = vpop.f32.mrf.mxu0
      %v3390 = vadd.f32 %v3328, %v3389
      %v3391 = vpop.f32.mrf.mxu0
      %v3392 = vadd.f32 %v3329, %v3391
      %3393 = vmatmul.bf16.gmra.mxu0 %v3360
      %v3394 = vpop.f32.mrf.mxu0
      %v3395 = vadd.f32 %v3330, %v3394
      %v3396 = vpop.f32.mrf.mxu0
      %v3397 = vadd.f32 %v3331, %v3396
      %3398 = vmatmul.bf16.gmra.mxu0 %v3363
      %v3399 = vpop.f32.mrf.mxu0
      %v3400 = vadd.f32 %v3332, %v3399
      %v3401 = vpop.f32.mrf.mxu0
      %v3402 = vadd.f32 %v3333, %v3401
      %3403 = vmatmul.bf16.gmra.mxu0 %v3366
      %v3404 = vpop.f32.mrf.mxu0
      %v3405 = vadd.f32 %v3334, %v3404
      %v3406 = vpop.f32.mrf.mxu0
      %v3407 = vadd.f32 %v3335, %v3406
      %3408 = vdwg.mxu0
      %v3409 = vsel %vm1632, %v3390, -inf
      %3410 = vmax.xlane.f32.xlu0 %v3409
      %v3411 = vpop.xlane.xlu0 %3410
      %v3412 = vsel %vm1632, %v3392, -inf
      %3413 = vmax.xlane.f32.xlu0 %v3412
      %v3414 = vpop.xlane.xlu0 %3413
      %v3415 = vsel %vm1632, %v3395, -inf
      %3416 = vmax.xlane.f32.xlu0 %v3415
      %v3417 = vpop.xlane.xlu0 %3416
      %v3418 = vsel %vm1632, %v3397, -inf
      %3419 = vmax.xlane.f32.xlu0 %v3418
      %v3420 = vpop.xlane.xlu0 %3419
      %v3421 = vsel %vm1632, %v3400, -inf
      %3422 = vmax.xlane.f32.xlu0 %v3421
      %v3423 = vpop.xlane.xlu0 %3422
      %v3424 = vsel %vm1632, %v3402, -inf
      %3425 = vmax.xlane.f32.xlu0 %v3424
      %v3426 = vpop.xlane.xlu0 %3425
      %v3427 = vsel %vm1632, %v3405, -inf
      %3428 = vmax.xlane.f32.xlu0 %v3427
      %v3429 = vpop.xlane.xlu0 %3428
      %v3430 = vsel %vm1632, %v3407, -inf
      %3431 = vmax.xlane.f32.xlu0 %v3430
      %v3432 = vpop.xlane.xlu0 %3431
      %v3433 = vsub.f32 %v3390, %v3411
      %v3434 = vsub.f32 %v3392, %v3414
      %v3435 = vsub.f32 %v3395, %v3417
      %v3436 = vsub.f32 %v3397, %v3420
      %v3437 = vsub.f32 %v3400, %v3423
      %v3438 = vsub.f32 %v3402, %v3426
      %v3439 = vsub.f32 %v3405, %v3429
      %v3440 = vsub.f32 %v3407, %v3432
      %v3441 = vmul.f32 %v3433, 1.442695
      %v3442 = vpow.pop %v3441
      %v3443 = vmul.f32 %v3434, 1.442695
      %v3444 = vpow.pop %v3443
      %v3445 = vmul.f32 %v3435, 1.442695
      %v3446 = vpow.pop %v3445
      %v3447 = vmul.f32 %v3436, 1.442695
      %v3448 = vpow.pop %v3447
      %v3449 = vmul.f32 %v3437, 1.442695
      %v3450 = vpow.pop %v3449
      %v3451 = vmul.f32 %v3438, 1.442695
      %v3452 = vpow.pop %v3451
      %v3453 = vmul.f32 %v3439, 1.442695
      %v3454 = vpow.pop %v3453
      %v3455 = vmul.f32 %v3440, 1.442695
      %v3456 = vpow.pop %v3455
      %v3457 = vsel %vm1632, %v3442, 0.0
      %3458 = vadd.xlane.f32.xlu0 %v3457
      %v3459 = vpop.xlane.xlu0 %3458
      %v3460 = vsel %vm1632, %v3444, 0.0
      %3461 = vadd.xlane.f32.xlu0 %v3460
      %v3462 = vpop.xlane.xlu0 %3461
      %v3463 = vsel %vm1632, %v3446, 0.0
      %3464 = vadd.xlane.f32.xlu0 %v3463
      %v3465 = vpop.xlane.xlu0 %3464
      %v3466 = vsel %vm1632, %v3448, 0.0
      %3467 = vadd.xlane.f32.xlu0 %v3466
      %v3468 = vpop.xlane.xlu0 %3467
      %v3469 = vsel %vm1632, %v3450, 0.0
      %3470 = vadd.xlane.f32.xlu0 %v3469
      %v3471 = vpop.xlane.xlu0 %3470
      %v3472 = vsel %vm1632, %v3452, 0.0
      %3473 = vadd.xlane.f32.xlu0 %v3472
      %v3474 = vpop.xlane.xlu0 %3473
      %v3475 = vsel %vm1632, %v3454, 0.0
      %3476 = vadd.xlane.f32.xlu0 %v3475
      %v3477 = vpop.xlane.xlu0 %3476
      %v3478 = vsel %vm1632, %v3456, 0.0
      %3479 = vadd.xlane.f32.xlu0 %v3478
      %v3480 = vpop.xlane.xlu0 %3479
      %v3481 = vrcp.pop %v3459
      %v3482 = vrcp.pop %v3462
      %v3483 = vrcp.pop %v3465
      %v3484 = vrcp.pop %v3468
      %v3485 = vrcp.pop %v3471
      %v3486 = vrcp.pop %v3474
      %v3487 = vrcp.pop %v3477
      %v3488 = vrcp.pop %v3480
      %v3489 = vmul.f32 %v3442, %v3481
      %v3490 = vmul.f32 %v3444, %v3482
      %v3491 = vmul.f32 %v3446, %v3483
      %v3492 = vmul.f32 %v3448, %v3484
      %v3493 = vmul.f32 %v3450, %v3485
      %v3494 = vmul.f32 %v3452, %v3486
      %v3495 = vmul.f32 %v3454, %v3487
      %v3496 = vmul.f32 %v3456, %v3488
      %v3497 = vpack.c.bf16 %v3490, %v3489
      %v3498 = vpack.c.bf16 %v3492, %v3491
      %v3499 = vpack.c.bf16 %v3494, %v3493
      %v3500 = vpack.c.bf16 %v3496, %v3495
      %3501 = vrot.lane.b32.xlu0 %v3105, 48
      %v3502 = vpop.permute.xlu0 %3501
      %3503 = vrot.lane.b32.xlu0 %v3106, 48
      %v3504 = vpop.permute.xlu0 %3503
      %3505 = vrot.lane.b32.xlu0 %v3107, 48
      %v3506 = vpop.permute.xlu0 %3505
      %3507 = vrot.lane.b32.xlu0 %v3108, 48
      %v3508 = vpop.permute.xlu0 %3507
      %v3514 = vsel %vm1632, %v3497, 0
      %v3517 = vsel %vm1632, %v3498, 0
      %v3520 = vsel %vm1632, %v3499, 0
      %v3523 = vsel %vm1632, %v3500, 0
      %3525 = vmatpush.bf16.msra.mxu0 0
      %3526 = vmatpush.bf16.msra.mxu0 0
      %3527 = vmatpush.bf16.msra.mxu0 0
      %3528 = vmatpush.bf16.msra.mxu0 0
      %3529 = vmatpush.bf16.msra.mxu0 %v3508
      %3530 = vmatpush.bf16.msra.mxu0 %v3506
      %3531 = vmatpush.bf16.msra.mxu0 %v3504
      %3532 = vmatpush.bf16.msra.mxu0 %v3502
      %3533 = vmatmul.bf16.gmra.mxu0 %v3514
      %v3534 = vpop.f32.mrf.mxu0
      %v3535 = vadd.f32 0.0, %v3534
      %v3536 = vpop.f32.mrf.mxu0
      %v3537 = vadd.f32 0.0, %v3536
      %3538 = vmatmul.bf16.gmra.mxu0 %v3517
      %v3539 = vpop.f32.mrf.mxu0
      %v3540 = vadd.f32 0.0, %v3539
      %v3541 = vpop.f32.mrf.mxu0
      %v3542 = vadd.f32 0.0, %v3541
      %3543 = vmatmul.bf16.gmra.mxu0 %v3520
      %v3544 = vpop.f32.mrf.mxu0
      %v3545 = vadd.f32 0.0, %v3544
      %v3546 = vpop.f32.mrf.mxu0
      %v3547 = vadd.f32 0.0, %v3546
      %3548 = vmatmul.bf16.gmra.mxu0 %v3523
      %v3549 = vpop.f32.mrf.mxu0
      %v3550 = vadd.f32 0.0, %v3549
      %v3551 = vpop.f32.mrf.mxu0
      %v3552 = vadd.f32 0.0, %v3551
      %3553 = vdwg.mxu0
      %3562 = vrot.lane.b32.xlu0 %v3535, 16
      %v3563 = vpop.permute.xlu0 %3562
      %3564 = vrot.lane.b32.xlu0 %v3537, 16
      %v3565 = vpop.permute.xlu0 %3564
      %3566 = vrot.lane.b32.xlu0 %v3540, 16
      %v3567 = vpop.permute.xlu0 %3566
      %3568 = vrot.lane.b32.xlu0 %v3542, 16
      %v3569 = vpop.permute.xlu0 %3568
      %3570 = vrot.lane.b32.xlu0 %v3545, 16
      %v3571 = vpop.permute.xlu0 %3570
      %3572 = vrot.lane.b32.xlu0 %v3547, 16
      %v3573 = vpop.permute.xlu0 %3572
      %3574 = vrot.lane.b32.xlu0 %v3550, 16
      %v3575 = vpop.permute.xlu0 %3574
      %3576 = vrot.lane.b32.xlu0 %v3552, 16
      %v3577 = vpop.permute.xlu0 %3576
      %v3586 = vsel %vm1578, %v3308, %v3563
      %v3587 = vsel %vm1578, %v3310, %v3565
      %v3588 = vsel %vm1578, %v3313, %v3567
      %v3589 = vsel %vm1578, %v3315, %v3569
      %v3590 = vsel %vm1578, %v3318, %v3571
      %v3591 = vsel %vm1578, %v3320, %v3573
      %v3592 = vsel %vm1578, %v3323, %v3575
      %v3593 = vsel %vm1578, %v3325, %v3577
      %v3594 = vld [vmem:[%s47] sm:$0xf]
      %v3595 = vld [vmem:[%s47 + $0x4] sm:$0xf]
      %v3596 = vld [vmem:[%s47 + $0x8] sm:$0xf]
      %v3597 = vld [vmem:[%s47 + $0xc] sm:$0xf]
      %v3598 = vpack.c.bf16 %v3587, %v3586
      %v3599 = vpack.c.bf16 %v3589, %v3588
      %v3600 = vpack.c.bf16 %v3591, %v3590
      %v3601 = vpack.c.bf16 %v3593, %v3592
      %v3606 = vunpack.c.l.b16 %v3594
      %v3607 = vunpack.c.l.b16 %v3595
      %v3608 = vunpack.c.l.b16 %v3596
      %v3609 = vunpack.c.l.b16 %v3597
      %v3610 = vpack.c.b16 %v3607, %v3606
      %v3611 = vpack.c.b16 %v3609, %v3608
      %v3615 = vsel %vm1071, %v3598, 0
      %v3618 = vsel %vm1071, %v3599, 0
      %v3621 = vsel %vm1071, %v3600, 0
      %v3624 = vsel %vm1071, %v3601, 0
      %3626 = vmatpush.bf16.msra.mxu0 0
      %3627 = vmatpush.bf16.msra.mxu0 0
      %3628 = vmatpush.bf16.msra.mxu0 0
      %3629 = vmatpush.bf16.msra.mxu0 0
      %3630 = vmatpush.bf16.msra.mxu0 0
      %3631 = vmatpush.bf16.msra.mxu0 0
      %3632 = vmatpush.bf16.msra.mxu0 %v3611
      %3633 = vmatpush.bf16.msra.mxu0 %v3610
      %3634 = vmatmul.bf16.gmra.mxu0 %v3615
      %v3635 = vpop.f32.mrf.mxu0
      %v3636 = vadd.f32 0.0, %v3635
      %v3637 = vpop.f32.mrf.mxu0
      %v3638 = vadd.f32 0.0, %v3637
      %3639 = vmatmul.bf16.gmra.mxu0 %v3618
      %v3640 = vpop.f32.mrf.mxu0
      %v3641 = vadd.f32 0.0, %v3640
      %v3642 = vpop.f32.mrf.mxu0
      %v3643 = vadd.f32 0.0, %v3642
      %3644 = vmatmul.bf16.gmra.mxu0 %v3621
      %v3645 = vpop.f32.mrf.mxu0
      %v3646 = vadd.f32 0.0, %v3645
      %v3647 = vpop.f32.mrf.mxu0
      %v3648 = vadd.f32 0.0, %v3647
      %3649 = vmatmul.bf16.gmra.mxu0 %v3624
      %v3650 = vpop.f32.mrf.mxu0
      %v3651 = vadd.f32 0.0, %v3650
      %v3652 = vpop.f32.mrf.mxu0
      %v3653 = vadd.f32 0.0, %v3652
      %3654 = vdwg.mxu0
      %v3655 = vadd.f32 %v2820, %v3636
      %v3656 = vadd.f32 %v2821, %v3638
      %v3657 = vadd.f32 %v2822, %v3641
      %v3658 = vadd.f32 %v2823, %v3643
      %v3659 = vadd.f32 %v2824, %v3646
      %v3660 = vadd.f32 %v2825, %v3648
      %v3661 = vadd.f32 %v2826, %v3651
      %v3662 = vadd.f32 %v2827, %v3653
      %v3663 = vld [vmem:[%s49] sm:$0x1]
      %v3665 = vperm.slane %v3663, 0
      %v3667 = vadd.f32 %v3655, %v3665
      %v3668 = vadd.f32 %v3656, %v3665
      %v3669 = vadd.f32 %v3657, %v3665
      %v3670 = vadd.f32 %v3658, %v3665
      %v3671 = vadd.f32 %v3659, %v3665
      %v3672 = vadd.f32 %v3660, %v3665
      %v3673 = vadd.f32 %v3661, %v3665
      %v3674 = vadd.f32 %v3662, %v3665
      %v3675 = vld [vmem:[%s51] sm:$0x1]
      %v3676 = vld [vmem:[%s53] sm:$0x1]
      %v3677 = vsel %vm1071, %v3667, 0.0
      %3678 = vadd.xlane.f32.xlu0 %v3677
      %v3679 = vpop.xlane.xlu0 %3678
      %v3680 = vsel %vm1071, %v3668, 0.0
      %3681 = vadd.xlane.f32.xlu0 %v3680
      %v3682 = vpop.xlane.xlu0 %3681
      %v3683 = vsel %vm1071, %v3669, 0.0
      %3684 = vadd.xlane.f32.xlu0 %v3683
      %v3685 = vpop.xlane.xlu0 %3684
      %v3686 = vsel %vm1071, %v3670, 0.0
      %3687 = vadd.xlane.f32.xlu0 %v3686
      %v3688 = vpop.xlane.xlu0 %3687
      %v3689 = vsel %vm1071, %v3671, 0.0
      %3690 = vadd.xlane.f32.xlu0 %v3689
      %v3691 = vpop.xlane.xlu0 %3690
      %v3692 = vsel %vm1071, %v3672, 0.0
      %3693 = vadd.xlane.f32.xlu0 %v3692
      %v3694 = vpop.xlane.xlu0 %3693
      %v3695 = vsel %vm1071, %v3673, 0.0
      %3696 = vadd.xlane.f32.xlu0 %v3695
      %v3697 = vpop.xlane.xlu0 %3696
      %v3698 = vsel %vm1071, %v3674, 0.0
      %3699 = vadd.xlane.f32.xlu0 %v3698
      %v3700 = vpop.xlane.xlu0 %3699
      %v3701 = vmul.f32 %v3679, %v1102
      %v3702 = vmul.f32 %v3682, %v1102
      %v3703 = vmul.f32 %v3685, %v1102
      %v3704 = vmul.f32 %v3688, %v1102
      %v3705 = vmul.f32 %v3691, %v1102
      %v3706 = vmul.f32 %v3694, %v1102
      %v3707 = vmul.f32 %v3697, %v1102
      %v3708 = vmul.f32 %v3700, %v1102
      %v3709 = vsub.f32 %v3667, %v3701
      %v3710 = vsub.f32 %v3668, %v3702
      %v3711 = vsub.f32 %v3669, %v3703
      %v3712 = vsub.f32 %v3670, %v3704
      %v3713 = vsub.f32 %v3671, %v3705
      %v3714 = vsub.f32 %v3672, %v3706
      %v3715 = vsub.f32 %v3673, %v3707
      %v3716 = vsub.f32 %v3674, %v3708
      %v3717 = vmul.f32 %v3709, %v3709
      %v3718 = vmul.f32 %v3710, %v3710
      %v3719 = vmul.f32 %v3711, %v3711
      %v3720 = vmul.f32 %v3712, %v3712
      %v3721 = vmul.f32 %v3713, %v3713
      %v3722 = vmul.f32 %v3714, %v3714
      %v3723 = vmul.f32 %v3715, %v3715
      %v3724 = vmul.f32 %v3716, %v3716
      %v3725 = vsel %vm1071, %v3717, 0.0
      %3726 = vadd.xlane.f32.xlu0 %v3725
      %v3727 = vpop.xlane.xlu0 %3726
      %v3728 = vsel %vm1071, %v3718, 0.0
      %3729 = vadd.xlane.f32.xlu0 %v3728
      %v3730 = vpop.xlane.xlu0 %3729
      %v3731 = vsel %vm1071, %v3719, 0.0
      %3732 = vadd.xlane.f32.xlu0 %v3731
      %v3733 = vpop.xlane.xlu0 %3732
      %v3734 = vsel %vm1071, %v3720, 0.0
      %3735 = vadd.xlane.f32.xlu0 %v3734
      %v3736 = vpop.xlane.xlu0 %3735
      %v3737 = vsel %vm1071, %v3721, 0.0
      %3738 = vadd.xlane.f32.xlu0 %v3737
      %v3739 = vpop.xlane.xlu0 %3738
      %v3740 = vsel %vm1071, %v3722, 0.0
      %3741 = vadd.xlane.f32.xlu0 %v3740
      %v3742 = vpop.xlane.xlu0 %3741
      %v3743 = vsel %vm1071, %v3723, 0.0
      %3744 = vadd.xlane.f32.xlu0 %v3743
      %v3745 = vpop.xlane.xlu0 %3744
      %v3746 = vsel %vm1071, %v3724, 0.0
      %3747 = vadd.xlane.f32.xlu0 %v3746
      %v3748 = vpop.xlane.xlu0 %3747
      %v3749 = vmul.f32 %v3727, %v1102
      %v3750 = vmul.f32 %v3730, %v1102
      %v3751 = vmul.f32 %v3733, %v1102
      %v3752 = vmul.f32 %v3736, %v1102
      %v3753 = vmul.f32 %v3739, %v1102
      %v3754 = vmul.f32 %v3742, %v1102
      %v3755 = vmul.f32 %v3745, %v1102
      %v3756 = vmul.f32 %v3748, %v1102
      %v3757 = vadd.f32 %v3749, 1e-05
      %v3758 = vadd.f32 %v3750, 1e-05
      %v3759 = vadd.f32 %v3751, 1e-05
      %v3760 = vadd.f32 %v3752, 1e-05
      %v3761 = vadd.f32 %v3753, 1e-05
      %v3762 = vadd.f32 %v3754, 1e-05
      %v3763 = vadd.f32 %v3755, 1e-05
      %v3764 = vadd.f32 %v3756, 1e-05
      %v3765 = vrsqrt.pop %v3757
      %v3766 = vmul.f32 %v3765, %v3757
      %v3767 = vmul.f32 %v3766, %v3765
      %v3768 = vmul.f32 0.5, %v3767
      %v3769 = vsub.f32 1.5, %v3768
      %v3770 = vmul.f32 %v3765, %v3769
      %vm3771 = vweird.f32 %v3757
      %vm3772 = vweird.f32 %v3765
      %vm3773 = vmor %vm3771, %vm3772
      %v3774 = vsel %vm3773, %v3765, %v3770
      %v3775 = vrsqrt.pop %v3758
      %v3776 = vmul.f32 %v3775, %v3758
      %v3777 = vmul.f32 %v3776, %v3775
      %v3778 = vmul.f32 0.5, %v3777
      %v3779 = vsub.f32 1.5, %v3778
      %v3780 = vmul.f32 %v3775, %v3779
      %vm3781 = vweird.f32 %v3758
      %vm3782 = vweird.f32 %v3775
      %vm3783 = vmor %vm3781, %vm3782
      %v3784 = vsel %vm3783, %v3775, %v3780
      %v3785 = vrsqrt.pop %v3759
      %v3786 = vmul.f32 %v3785, %v3759
      %v3787 = vmul.f32 %v3786, %v3785
      %v3788 = vmul.f32 0.5, %v3787
      %v3789 = vsub.f32 1.5, %v3788
      %v3790 = vmul.f32 %v3785, %v3789
      %vm3791 = vweird.f32 %v3759
      %vm3792 = vweird.f32 %v3785
      %vm3793 = vmor %vm3791, %vm3792
      %v3794 = vsel %vm3793, %v3785, %v3790
      %v3795 = vrsqrt.pop %v3760
      %v3796 = vmul.f32 %v3795, %v3760
      %v3797 = vmul.f32 %v3796, %v3795
      %v3798 = vmul.f32 0.5, %v3797
      %v3799 = vsub.f32 1.5, %v3798
      %v3800 = vmul.f32 %v3795, %v3799
      %vm3801 = vweird.f32 %v3760
      %vm3802 = vweird.f32 %v3795
      %vm3803 = vmor %vm3801, %vm3802
      %v3804 = vsel %vm3803, %v3795, %v3800
      %v3805 = vrsqrt.pop %v3761
      %v3806 = vmul.f32 %v3805, %v3761
      %v3807 = vmul.f32 %v3806, %v3805
      %v3808 = vmul.f32 0.5, %v3807
      %v3809 = vsub.f32 1.5, %v3808
      %v3810 = vmul.f32 %v3805, %v3809
      %vm3811 = vweird.f32 %v3761
      %vm3812 = vweird.f32 %v3805
      %vm3813 = vmor %vm3811, %vm3812
      %v3814 = vsel %vm3813, %v3805, %v3810
      %v3815 = vrsqrt.pop %v3762
      %v3816 = vmul.f32 %v3815, %v3762
      %v3817 = vmul.f32 %v3816, %v3815
      %v3818 = vmul.f32 0.5, %v3817
      %v3819 = vsub.f32 1.5, %v3818
      %v3820 = vmul.f32 %v3815, %v3819
      %vm3821 = vweird.f32 %v3762
      %vm3822 = vweird.f32 %v3815
      %vm3823 = vmor %vm3821, %vm3822
      %v3824 = vsel %vm3823, %v3815, %v3820
      %v3825 = vrsqrt.pop %v3763
      %v3826 = vmul.f32 %v3825, %v3763
      %v3827 = vmul.f32 %v3826, %v3825
      %v3828 = vmul.f32 0.5, %v3827
      %v3829 = vsub.f32 1.5, %v3828
      %v3830 = vmul.f32 %v3825, %v3829
      %vm3831 = vweird.f32 %v3763
      %vm3832 = vweird.f32 %v3825
      %vm3833 = vmor %vm3831, %vm3832
      %v3834 = vsel %vm3833, %v3825, %v3830
      %v3835 = vrsqrt.pop %v3764
      %v3836 = vmul.f32 %v3835, %v3764
      %v3837 = vmul.f32 %v3836, %v3835
      %v3838 = vmul.f32 0.5, %v3837
      %v3839 = vsub.f32 1.5, %v3838
      %v3840 = vmul.f32 %v3835, %v3839
      %vm3841 = vweird.f32 %v3764
      %vm3842 = vweird.f32 %v3835
      %vm3843 = vmor %vm3841, %vm3842
      %v3844 = vsel %vm3843, %v3835, %v3840
      %v3845 = vmul.f32 %v3709, %v3774
      %v3846 = vmul.f32 %v3710, %v3784
      %v3847 = vmul.f32 %v3711, %v3794
      %v3848 = vmul.f32 %v3712, %v3804
      %v3849 = vmul.f32 %v3713, %v3814
      %v3850 = vmul.f32 %v3714, %v3824
      %v3851 = vmul.f32 %v3715, %v3834
      %v3852 = vmul.f32 %v3716, %v3844
      %v3854 = vperm.slane %v3675, 0
      %v3856 = vmul.f32 %v3845, %v3854
      %v3857 = vmul.f32 %v3846, %v3854
      %v3858 = vmul.f32 %v3847, %v3854
      %v3859 = vmul.f32 %v3848, %v3854
      %v3860 = vmul.f32 %v3849, %v3854
      %v3861 = vmul.f32 %v3850, %v3854
      %v3862 = vmul.f32 %v3851, %v3854
      %v3863 = vmul.f32 %v3852, %v3854
      %v3865 = vperm.slane %v3676, 0
      %v3867 = vadd.f32 %v3856, %v3865
      %v3868 = vadd.f32 %v3857, %v3865
      %v3869 = vadd.f32 %v3858, %v3865
      %v3870 = vadd.f32 %v3859, %v3865
      %v3871 = vadd.f32 %v3860, %v3865
      %v3872 = vadd.f32 %v3861, %v3865
      %v3873 = vadd.f32 %v3862, %v3865
      %v3874 = vadd.f32 %v3863, %v3865
      %v3875 = vld [vmem:[%s55] sm:$0xf]
      %v3876 = vld [vmem:[%s55 + $0x4] sm:$0xf]
      %v3877 = vld [vmem:[%s55 + $0x8] sm:$0xf]
      %v3878 = vld [vmem:[%s55 + $0xc] sm:$0xf]
      %v3879 = vpack.c.bf16 %v3868, %v3867
      %v3880 = vpack.c.bf16 %v3870, %v3869
      %v3881 = vpack.c.bf16 %v3872, %v3871
      %v3882 = vpack.c.bf16 %v3874, %v3873
      %v3883 = vld [vmem:[%s57] sm:$0x1]
      %v3885 = vperm.slane %v3883, 0
      %v3891 = vunpack.c.l.b16 %v3875
      %v3892 = vunpack.c.l.b16 %v3876
      %v3893 = vunpack.c.l.b16 %v3877
      %v3894 = vunpack.c.l.b16 %v3878
      %v3895 = vpack.c.b16 %v3892, %v3891
      %v3896 = vpack.c.b16 %v3894, %v3893
      %v3900 = vsel %vm1071, %v3879, 0
      %v3903 = vsel %vm1071, %v3880, 0
      %v3906 = vsel %vm1071, %v3881, 0
      %v3909 = vsel %vm1071, %v3882, 0
      %3911 = vmatpush.bf16.msra.mxu0 0
      %3912 = vmatpush.bf16.msra.mxu0 0
      %3913 = vmatpush.bf16.msra.mxu0 0
      %3914 = vmatpush.bf16.msra.mxu0 0
      %3915 = vmatpush.bf16.msra.mxu0 0
      %3916 = vmatpush.bf16.msra.mxu0 0
      %3917 = vmatpush.bf16.msra.mxu0 %v3896
      %3918 = vmatpush.bf16.msra.mxu0 %v3895
      %3919 = vmatmul.bf16.gmra.mxu0 %v3900
      %v3920 = vpop.f32.mrf.mxu0
      %v3921 = vadd.f32 %v3885, %v3920
      %v3922 = vpop.f32.mrf.mxu0
      %v3923 = vadd.f32 %v3885, %v3922
      %3924 = vmatmul.bf16.gmra.mxu0 %v3903
      %v3925 = vpop.f32.mrf.mxu0
      %v3926 = vadd.f32 %v3885, %v3925
      %v3927 = vpop.f32.mrf.mxu0
      %v3928 = vadd.f32 %v3885, %v3927
      %3929 = vmatmul.bf16.gmra.mxu0 %v3906
      %v3930 = vpop.f32.mrf.mxu0
      %v3931 = vadd.f32 %v3885, %v3930
      %v3932 = vpop.f32.mrf.mxu0
      %v3933 = vadd.f32 %v3885, %v3932
      %3934 = vmatmul.bf16.gmra.mxu0 %v3909
      %v3935 = vpop.f32.mrf.mxu0
      %v3936 = vadd.f32 %v3885, %v3935
      %v3937 = vpop.f32.mrf.mxu0
      %v3938 = vadd.f32 %v3885, %v3937
      %3939 = vdwg.mxu0
      %v3940 = vmul.f32 %v3921, 0.5
      %v3941 = vmul.f32 %v3923, 0.5
      %v3942 = vmul.f32 %v3926, 0.5
      %v3943 = vmul.f32 %v3928, 0.5
      %v3944 = vmul.f32 %v3931, 0.5
      %v3945 = vmul.f32 %v3933, 0.5
      %v3946 = vmul.f32 %v3936, 0.5
      %v3947 = vmul.f32 %v3938, 0.5
      %v3948 = vmul.f32 %v3921, 0.70710677
      %v3949 = vmul.f32 %v3923, 0.70710677
      %v3950 = vmul.f32 %v3926, 0.70710677
      %v3951 = vmul.f32 %v3928, 0.70710677
      %v3952 = vmul.f32 %v3931, 0.70710677
      %v3953 = vmul.f32 %v3933, 0.70710677
      %v3954 = vmul.f32 %v3936, 0.70710677
      %v3955 = vmul.f32 %v3938, 0.70710677
      %vm3956 = vcmp.ge.f32.partialorder %v3948, 0.0
      %vm3957 = vcmp.ge.f32.partialorder %v3949, 0.0
      %vm3958 = vcmp.ge.f32.partialorder %v3950, 0.0
      %vm3959 = vcmp.ge.f32.partialorder %v3951, 0.0
      %vm3960 = vcmp.ge.f32.partialorder %v3952, 0.0
      %vm3961 = vcmp.ge.f32.partialorder %v3953, 0.0
      %vm3962 = vcmp.ge.f32.partialorder %v3954, 0.0
      %vm3963 = vcmp.ge.f32.partialorder %v3955, 0.0
      %v3964 = vsel %vm3956, 1.0, -1.0
      %v3965 = vsel %vm3957, 1.0, -1.0
      %v3966 = vsel %vm3958, 1.0, -1.0
      %v3967 = vsel %vm3959, 1.0, -1.0
      %v3968 = vsel %vm3960, 1.0, -1.0
      %v3969 = vsel %vm3961, 1.0, -1.0
      %v3970 = vsel %vm3962, 1.0, -1.0
      %v3971 = vsel %vm3963, 1.0, -1.0
      %v3972 = vand.u32 2147483647, %v3948
      %v3973 = vand.u32 2147483647, %v3949
      %v3974 = vand.u32 2147483647, %v3950
      %v3975 = vand.u32 2147483647, %v3951
      %v3976 = vand.u32 2147483647, %v3952
      %v3977 = vand.u32 2147483647, %v3953
      %v3978 = vand.u32 2147483647, %v3954
      %v3979 = vand.u32 2147483647, %v3955
      %v3980 = vmul.f32 %v3972, 0.3275911
      %v3981 = vmul.f32 %v3973, 0.3275911
      %v3982 = vmul.f32 %v3974, 0.3275911
      %v3983 = vmul.f32 %v3975, 0.3275911
      %v3984 = vmul.f32 %v3976, 0.3275911
      %v3985 = vmul.f32 %v3977, 0.3275911
      %v3986 = vmul.f32 %v3978, 0.3275911
      %v3987 = vmul.f32 %v3979, 0.3275911
      %v3988 = vadd.f32 %v3980, 1.0
      %v3989 = vadd.f32 %v3981, 1.0
      %v3990 = vadd.f32 %v3982, 1.0
      %v3991 = vadd.f32 %v3983, 1.0
      %v3992 = vadd.f32 %v3984, 1.0
      %v3993 = vadd.f32 %v3985, 1.0
      %v3994 = vadd.f32 %v3986, 1.0
      %v3995 = vadd.f32 %v3987, 1.0
      %v3996 = vrcp.pop %v3988
      %v3997 = vmul.f32 %v3988, %v3996
      %v3998 = vsub.f32 1.0, %v3997
      %v3999 = vmul.f32 %v3996, %v3998
      %v4000 = vadd.f32 %v3996, %v3999
      %vm4001 = vweird.f32 %v3988
      %vm4002 = vweird.f32 %v3996
      %vm4003 = vmor %vm4001, %vm4002
      %v4004 = vsel %vm4003, %v3996, %v4000
      %v4005 = vand.u32 2147483647, %v3988
      %vm4006 = vcmp.eq.f32.partialorder %v4005, 8.507059e+37
      %v4007 = vand.u32 %v3988, 2147483648
      %v4008 = vor.u32 1.1754944e-38, %v4007
      %v4009 = vsel %vm4006, %v4008, %v4004
      %v4010 = vmul.f32 1.0, %v4009
      %v4011 = vrcp.pop %v3989
      %v4012 = vmul.f32 %v3989, %v4011
      %v4013 = vsub.f32 1.0, %v4012
      %v4014 = vmul.f32 %v4011, %v4013
      %v4015 = vadd.f32 %v4011, %v4014
      %vm4016 = vweird.f32 %v3989
      %vm4017 = vweird.f32 %v4011
      %vm4018 = vmor %vm4016, %vm4017
      %v4019 = vsel %vm4018, %v4011, %v4015
      %v4020 = vand.u32 2147483647, %v3989
      %vm4021 = vcmp.eq.f32.partialorder %v4020, 8.507059e+37
      %v4022 = vand.u32 %v3989, 2147483648
      %v4023 = vor.u32 1.1754944e-38, %v4022
      %v4024 = vsel %vm4021, %v4023, %v4019
      %v4025 = vmul.f32 1.0, %v4024
      %v4026 = vrcp.pop %v3990
      %v4027 = vmul.f32 %v3990, %v4026
      %v4028 = vsub.f32 1.0, %v4027
      %v4029 = vmul.f32 %v4026, %v4028
      %v4030 = vadd.f32 %v4026, %v4029
      %vm4031 = vweird.f32 %v3990
      %vm4032 = vweird.f32 %v4026
      %vm4033 = vmor %vm4031, %vm4032
      %v4034 = vsel %vm4033, %v4026, %v4030
      %v4035 = vand.u32 2147483647, %v3990
      %vm4036 = vcmp.eq.f32.partialorder %v4035, 8.507059e+37
      %v4037 = vand.u32 %v3990, 2147483648
      %v4038 = vor.u32 1.1754944e-38, %v4037
      %v4039 = vsel %vm4036, %v4038, %v4034
      %v4040 = vmul.f32 1.0, %v4039
      %v4041 = vrcp.pop %v3991
      %v4042 = vmul.f32 %v3991, %v4041
      %v4043 = vsub.f32 1.0, %v4042
      %v4044 = vmul.f32 %v4041, %v4043
      %v4045 = vadd.f32 %v4041, %v4044
      %vm4046 = vweird.f32 %v3991
      %vm4047 = vweird.f32 %v4041
      %vm4048 = vmor %vm4046, %vm4047
      %v4049 = vsel %vm4048, %v4041, %v4045
      %v4050 = vand.u32 2147483647, %v3991
      %vm4051 = vcmp.eq.f32.partialorder %v4050, 8.507059e+37
      %v4052 = vand.u32 %v3991, 2147483648
      %v4053 = vor.u32 1.1754944e-38, %v4052
      %v4054 = vsel %vm4051, %v4053, %v4049
      %v4055 = vmul.f32 1.0, %v4054
      %v4056 = vrcp.pop %v3992
      %v4057 = vmul.f32 %v3992, %v4056
      %v4058 = vsub.f32 1.0, %v4057
      %v4059 = vmul.f32 %v4056, %v4058
      %v4060 = vadd.f32 %v4056, %v4059
      %vm4061 = vweird.f32 %v3992
      %vm4062 = vweird.f32 %v4056
      %vm4063 = vmor %vm4061, %vm4062
      %v4064 = vsel %vm4063, %v4056, %v4060
      %v4065 = vand.u32 2147483647, %v3992
      %vm4066 = vcmp.eq.f32.partialorder %v4065, 8.507059e+37
      %v4067 = vand.u32 %v3992, 2147483648
      %v4068 = vor.u32 1.1754944e-38, %v4067
      %v4069 = vsel %vm4066, %v4068, %v4064
      %v4070 = vmul.f32 1.0, %v4069
      %v4071 = vrcp.pop %v3993
      %v4072 = vmul.f32 %v3993, %v4071
      %v4073 = vsub.f32 1.0, %v4072
      %v4074 = vmul.f32 %v4071, %v4073
      %v4075 = vadd.f32 %v4071, %v4074
      %vm4076 = vweird.f32 %v3993
      %vm4077 = vweird.f32 %v4071
      %vm4078 = vmor %vm4076, %vm4077
      %v4079 = vsel %vm4078, %v4071, %v4075
      %v4080 = vand.u32 2147483647, %v3993
      %vm4081 = vcmp.eq.f32.partialorder %v4080, 8.507059e+37
      %v4082 = vand.u32 %v3993, 2147483648
      %v4083 = vor.u32 1.1754944e-38, %v4082
      %v4084 = vsel %vm4081, %v4083, %v4079
      %v4085 = vmul.f32 1.0, %v4084
      %v4086 = vrcp.pop %v3994
      %v4087 = vmul.f32 %v3994, %v4086
      %v4088 = vsub.f32 1.0, %v4087
      %v4089 = vmul.f32 %v4086, %v4088
      %v4090 = vadd.f32 %v4086, %v4089
      %vm4091 = vweird.f32 %v3994
      %vm4092 = vweird.f32 %v4086
      %vm4093 = vmor %vm4091, %vm4092
      %v4094 = vsel %vm4093, %v4086, %v4090
      %v4095 = vand.u32 2147483647, %v3994
      %vm4096 = vcmp.eq.f32.partialorder %v4095, 8.507059e+37
      %v4097 = vand.u32 %v3994, 2147483648
      %v4098 = vor.u32 1.1754944e-38, %v4097
      %v4099 = vsel %vm4096, %v4098, %v4094
      %v4100 = vmul.f32 1.0, %v4099
      %v4101 = vrcp.pop %v3995
      %v4102 = vmul.f32 %v3995, %v4101
      %v4103 = vsub.f32 1.0, %v4102
      %v4104 = vmul.f32 %v4101, %v4103
      %v4105 = vadd.f32 %v4101, %v4104
      %vm4106 = vweird.f32 %v3995
      %vm4107 = vweird.f32 %v4101
      %vm4108 = vmor %vm4106, %vm4107
      %v4109 = vsel %vm4108, %v4101, %v4105
      %v4110 = vand.u32 2147483647, %v3995
      %vm4111 = vcmp.eq.f32.partialorder %v4110, 8.507059e+37
      %v4112 = vand.u32 %v3995, 2147483648
      %v4113 = vor.u32 1.1754944e-38, %v4112
      %v4114 = vsel %vm4111, %v4113, %v4109
      %v4115 = vmul.f32 1.0, %v4114
      %v4116 = vmul.f32 %v4010, 1.0614054
      %v4117 = vmul.f32 %v4025, 1.0614054
      %v4118 = vmul.f32 %v4040, 1.0614054
      %v4119 = vmul.f32 %v4055, 1.0614054
      %v4120 = vmul.f32 %v4070, 1.0614054
      %v4121 = vmul.f32 %v4085, 1.0614054
      %v4122 = vmul.f32 %v4100, 1.0614054
      %v4123 = vmul.f32 %v4115, 1.0614054
      %v4124 = vadd.f32 %v4116, -1.4531521
      %v4125 = vadd.f32 %v4117, -1.4531521
      %v4126 = vadd.f32 %v4118, -1.4531521
      %v4127 = vadd.f32 %v4119, -1.4531521
      %v4128 = vadd.f32 %v4120, -1.4531521
      %v4129 = vadd.f32 %v4121, -1.4531521
      %v4130 = vadd.f32 %v4122, -1.4531521
      %v4131 = vadd.f32 %v4123, -1.4531521
      %v4132 = vmul.f32 %v4124, %v4010
      %v4133 = vmul.f32 %v4125, %v4025
      %v4134 = vmul.f32 %v4126, %v4040
      %v4135 = vmul.f32 %v4127, %v4055
      %v4136 = vmul.f32 %v4128, %v4070
      %v4137 = vmul.f32 %v4129, %v4085
      %v4138 = vmul.f32 %v4130, %v4100
      %v4139 = vmul.f32 %v4131, %v4115
      %v4140 = vadd.f32 %v4132, 1.4214138
      %v4141 = vadd.f32 %v4133, 1.4214138
      %v4142 = vadd.f32 %v4134, 1.4214138
      %v4143 = vadd.f32 %v4135, 1.4214138
      %v4144 = vadd.f32 %v4136, 1.4214138
      %v4145 = vadd.f32 %v4137, 1.4214138
      %v4146 = vadd.f32 %v4138, 1.4214138
      %v4147 = vadd.f32 %v4139, 1.4214138
      %v4148 = vmul.f32 %v4140, %v4010
      %v4149 = vmul.f32 %v4141, %v4025
      %v4150 = vmul.f32 %v4142, %v4040
      %v4151 = vmul.f32 %v4143, %v4055
      %v4152 = vmul.f32 %v4144, %v4070
      %v4153 = vmul.f32 %v4145, %v4085
      %v4154 = vmul.f32 %v4146, %v4100
      %v4155 = vmul.f32 %v4147, %v4115
      %v4156 = vadd.f32 %v4148, -0.28449672
      %v4157 = vadd.f32 %v4149, -0.28449672
      %v4158 = vadd.f32 %v4150, -0.28449672
      %v4159 = vadd.f32 %v4151, -0.28449672
      %v4160 = vadd.f32 %v4152, -0.28449672
      %v4161 = vadd.f32 %v4153, -0.28449672
      %v4162 = vadd.f32 %v4154, -0.28449672
      %v4163 = vadd.f32 %v4155, -0.28449672
      %v4164 = vmul.f32 %v4156, %v4010
      %v4165 = vmul.f32 %v4157, %v4025
      %v4166 = vmul.f32 %v4158, %v4040
      %v4167 = vmul.f32 %v4159, %v4055
      %v4168 = vmul.f32 %v4160, %v4070
      %v4169 = vmul.f32 %v4161, %v4085
      %v4170 = vmul.f32 %v4162, %v4100
      %v4171 = vmul.f32 %v4163, %v4115
      %v4172 = vadd.f32 %v4164, 0.2548296
      %v4173 = vadd.f32 %v4165, 0.2548296
      %v4174 = vadd.f32 %v4166, 0.2548296
      %v4175 = vadd.f32 %v4167, 0.2548296
      %v4176 = vadd.f32 %v4168, 0.2548296
      %v4177 = vadd.f32 %v4169, 0.2548296
      %v4178 = vadd.f32 %v4170, 0.2548296
      %v4179 = vadd.f32 %v4171, 0.2548296
      %v4180 = vmul.f32 %v4172, %v4010
      %v4181 = vmul.f32 %v4173, %v4025
      %v4182 = vmul.f32 %v4174, %v4040
      %v4183 = vmul.f32 %v4175, %v4055
      %v4184 = vmul.f32 %v4176, %v4070
      %v4185 = vmul.f32 %v4177, %v4085
      %v4186 = vmul.f32 %v4178, %v4100
      %v4187 = vmul.f32 %v4179, %v4115
      %v4188 = vsub.f32 0.0, %v3972
      %v4189 = vsub.f32 0.0, %v3973
      %v4190 = vsub.f32 0.0, %v3974
      %v4191 = vsub.f32 0.0, %v3975
      %v4192 = vsub.f32 0.0, %v3976
      %v4193 = vsub.f32 0.0, %v3977
      %v4194 = vsub.f32 0.0, %v3978
      %v4195 = vsub.f32 0.0, %v3979
      %v4196 = vmul.f32 %v4188, %v3972
      %v4197 = vmul.f32 %v4189, %v3973
      %v4198 = vmul.f32 %v4190, %v3974
      %v4199 = vmul.f32 %v4191, %v3975
      %v4200 = vmul.f32 %v4192, %v3976
      %v4201 = vmul.f32 %v4193, %v3977
      %v4202 = vmul.f32 %v4194, %v3978
      %v4203 = vmul.f32 %v4195, %v3979
      %v4204 = vmul.f32 %v4196, 1.442695
      %v4205 = vpow.pop %v4204
      %v4206 = vmul.f32 %v4197, 1.442695
      %v4207 = vpow.pop %v4206
      %v4208 = vmul.f32 %v4198, 1.442695
      %v4209 = vpow.pop %v4208
      %v4210 = vmul.f32 %v4199, 1.442695
      %v4211 = vpow.pop %v4210
      %v4212 = vmul.f32 %v4200, 1.442695
      %v4213 = vpow.pop %v4212
      %v4214 = vmul.f32 %v4201, 1.442695
      %v4215 = vpow.pop %v4214
      %v4216 = vmul.f32 %v4202, 1.442695
      %v4217 = vpow.pop %v4216
      %v4218 = vmul.f32 %v4203, 1.442695
      %v4219 = vpow.pop %v4218
      %v4220 = vmul.f32 %v4180, %v4205
      %v4221 = vmul.f32 %v4181, %v4207
      %v4222 = vmul.f32 %v4182, %v4209
      %v4223 = vmul.f32 %v4183, %v4211
      %v4224 = vmul.f32 %v4184, %v4213
      %v4225 = vmul.f32 %v4185, %v4215
      %v4226 = vmul.f32 %v4186, %v4217
      %v4227 = vmul.f32 %v4187, %v4219
      %v4228 = vsub.f32 1.0, %v4220
      %v4229 = vsub.f32 1.0, %v4221
      %v4230 = vsub.f32 1.0, %v4222
      %v4231 = vsub.f32 1.0, %v4223
      %v4232 = vsub.f32 1.0, %v4224
      %v4233 = vsub.f32 1.0, %v4225
      %v4234 = vsub.f32 1.0, %v4226
      %v4235 = vsub.f32 1.0, %v4227
      %v4236 = vmul.f32 %v3964, %v4228
      %v4237 = vmul.f32 %v3965, %v4229
      %v4238 = vmul.f32 %v3966, %v4230
      %v4239 = vmul.f32 %v3967, %v4231
      %v4240 = vmul.f32 %v3968, %v4232
      %v4241 = vmul.f32 %v3969, %v4233
      %v4242 = vmul.f32 %v3970, %v4234
      %v4243 = vmul.f32 %v3971, %v4235
      %v4244 = vadd.f32 %v4236, 1.0
      %v4245 = vadd.f32 %v4237, 1.0
      %v4246 = vadd.f32 %v4238, 1.0
      %v4247 = vadd.f32 %v4239, 1.0
      %v4248 = vadd.f32 %v4240, 1.0
      %v4249 = vadd.f32 %v4241, 1.0
      %v4250 = vadd.f32 %v4242, 1.0
      %v4251 = vadd.f32 %v4243, 1.0
      %v4252 = vmul.f32 %v3940, %v4244
      %v4253 = vmul.f32 %v3941, %v4245
      %v4254 = vmul.f32 %v3942, %v4246
      %v4255 = vmul.f32 %v3943, %v4247
      %v4256 = vmul.f32 %v3944, %v4248
      %v4257 = vmul.f32 %v3945, %v4249
      %v4258 = vmul.f32 %v3946, %v4250
      %v4259 = vmul.f32 %v3947, %v4251
      %v4260 = vld [vmem:[%s59] sm:$0xf]
      %v4261 = vld [vmem:[%s59 + $0x4] sm:$0xf]
      %v4262 = vld [vmem:[%s59 + $0x8] sm:$0xf]
      %v4263 = vld [vmem:[%s59 + $0xc] sm:$0xf]
      %v4264 = vld [vmem:[%s59 + $0x10] sm:$0xf]
      %v4265 = vld [vmem:[%s59 + $0x14] sm:$0xf]
      %v4266 = vld [vmem:[%s59 + $0x18] sm:$0xf]
      %v4267 = vld [vmem:[%s59 + $0x1c] sm:$0xf]
      %v4268 = vld [vmem:[%s59 + $0x20] sm:$0xf]
      %v4269 = vld [vmem:[%s59 + $0x24] sm:$0xf]
      %v4270 = vld [vmem:[%s59 + $0x28] sm:$0xf]
      %v4271 = vld [vmem:[%s59 + $0x2c] sm:$0xf]
      %v4272 = vld [vmem:[%s59 + $0x30] sm:$0xf]
      %v4273 = vld [vmem:[%s59 + $0x34] sm:$0xf]
      %v4274 = vld [vmem:[%s59 + $0x38] sm:$0xf]
      %v4275 = vld [vmem:[%s59 + $0x3c] sm:$0xf]
      %v4276 = vpack.c.bf16 %v4253, %v4252
      %v4277 = vpack.c.bf16 %v4255, %v4254
      %v4278 = vpack.c.bf16 %v4257, %v4256
      %v4279 = vpack.c.bf16 %v4259, %v4258
      %v4296 = vunpack.c.l.b16 %v4260
      %v4297 = vunpack.c.l.b16 %v4261
      %v4298 = vunpack.c.l.b16 %v4262
      %v4299 = vunpack.c.l.b16 %v4263
      %v4300 = vunpack.c.l.b16 %v4264
      %v4301 = vunpack.c.l.b16 %v4265
      %v4302 = vunpack.c.l.b16 %v4266
      %v4303 = vunpack.c.l.b16 %v4267
      %v4304 = vunpack.c.l.b16 %v4268
      %v4305 = vunpack.c.l.b16 %v4269
      %v4306 = vunpack.c.l.b16 %v4270
      %v4307 = vunpack.c.l.b16 %v4271
      %v4308 = vunpack.c.l.b16 %v4272
      %v4309 = vunpack.c.l.b16 %v4273
      %v4310 = vunpack.c.l.b16 %v4274
      %v4311 = vunpack.c.l.b16 %v4275
      %v4312 = vpack.c.b16 %v4297, %v4296
      %v4313 = vpack.c.b16 %v4299, %v4298
      %v4314 = vpack.c.b16 %v4301, %v4300
      %v4315 = vpack.c.b16 %v4303, %v4302
      %v4316 = vpack.c.b16 %v4305, %v4304
      %v4317 = vpack.c.b16 %v4307, %v4306
      %v4318 = vpack.c.b16 %v4309, %v4308
      %v4319 = vpack.c.b16 %v4311, %v4310
      %4328 = vmatpush.bf16.msra.mxu0 %v4319
      %4329 = vmatpush.bf16.msra.mxu0 %v4318
      %4330 = vmatpush.bf16.msra.mxu0 %v4317
      %4331 = vmatpush.bf16.msra.mxu0 %v4316
      %4332 = vmatpush.bf16.msra.mxu0 %v4315
      %4333 = vmatpush.bf16.msra.mxu0 %v4314
      %4334 = vmatpush.bf16.msra.mxu0 %v4313
      %4335 = vmatpush.bf16.msra.mxu0 %v4312
      %4336 = vmatmul.bf16.gmra.mxu0 %v4276
      %v4337 = vpop.f32.mrf.mxu0
      %v4338 = vadd.f32 0.0, %v4337
      %v4339 = vpop.f32.mrf.mxu0
      %v4340 = vadd.f32 0.0, %v4339
      %4341 = vmatmul.bf16.gmra.mxu0 %v4277
      %v4342 = vpop.f32.mrf.mxu0
      %v4343 = vadd.f32 0.0, %v4342
      %v4344 = vpop.f32.mrf.mxu0
      %v4345 = vadd.f32 0.0, %v4344
      %4346 = vmatmul.bf16.gmra.mxu0 %v4278
      %v4347 = vpop.f32.mrf.mxu0
      %v4348 = vadd.f32 0.0, %v4347
      %v4349 = vpop.f32.mrf.mxu0
      %v4350 = vadd.f32 0.0, %v4349
      %4351 = vmatmul.bf16.gmra.mxu0 %v4279
      %v4352 = vpop.f32.mrf.mxu0
      %v4353 = vadd.f32 0.0, %v4352
      %v4354 = vpop.f32.mrf.mxu0
      %v4355 = vadd.f32 0.0, %v4354
      %4356 = vdwg.mxu0
      %v4357 = vadd.f32 %v3667, %v4338
      %v4358 = vadd.f32 %v3668, %v4340
      %v4359 = vadd.f32 %v3669, %v4343
      %v4360 = vadd.f32 %v3670, %v4345
      %v4361 = vadd.f32 %v3671, %v4348
      %v4362 = vadd.f32 %v3672, %v4350
      %v4363 = vadd.f32 %v3673, %v4353
      %v4364 = vadd.f32 %v3674, %v4355
      %v4365 = vld [vmem:[%s61] sm:$0x1]
      %v4367 = vperm.slane %v4365, 0
      %v4369 = vadd.f32 %v4357, %v4367
      %v4370 = vadd.f32 %v4358, %v4367
      %v4371 = vadd.f32 %v4359, %v4367
      %v4372 = vadd.f32 %v4360, %v4367
      %v4373 = vadd.f32 %v4361, %v4367
      %v4374 = vadd.f32 %v4362, %v4367
      %v4375 = vadd.f32 %v4363, %v4367
      %v4376 = vadd.f32 %v4364, %v4367
      %4377 = vst.msk [vmem:[%s958] sm:$0xff] %vm1071, %v4369
      %4378 = vst.msk [vmem:[%s958 + $0x8] sm:$0xff] %vm1071, %v4370
      %4379 = vst.msk [vmem:[%s958 + $0x10] sm:$0xff] %vm1071, %v4371
      %4380 = vst.msk [vmem:[%s958 + $0x18] sm:$0xff] %vm1071, %v4372
      %4381 = vst.msk [vmem:[%s958 + $0x20] sm:$0xff] %vm1071, %v4373
      %4382 = vst.msk [vmem:[%s958 + $0x28] sm:$0xff] %vm1071, %v4374
      %4383 = vst.msk [vmem:[%s958 + $0x30] sm:$0xff] %vm1071, %v4375
      %4384 = vst.msk [vmem:[%s958 + $0x38] sm:$0xff] %vm1071, %v4376
      %p4385 = scmp.lt.s32.totalorder %s74, 1
      %s4386 = scalar_select %p4385, %s74, 1
      %s4387 = smul.addr %s4386, 8
      %s4388 = smul.addr %s4387, 8
      %s4389 = scalar_lea.vmem %s63, %s4388
      // Predicated region
      $region145: #{swin_t_f_forward.2} parent=143 // pred_check
        %p4390 = pneg %p748
      $region146: #{swin_t_f_forward.2} parent=143 // pred_check_branch
        %4392 = sbr.rel (%p4390) target = $region148
      $region147: #{swin_t_f_forward.2} parent=143 // pred_region
        _
      $region148: #{swin_t_f_forward.2} parent=143 // pred_fallthru
        _
    $region144: #{swin_t_f_forward.2} parent=5 // pred_fallthru
      _
    %p4393 = scmp.le.s32.totalorder 2, %s69
    // Predicated region
    $region149: #{swin_t_f_forward.2} parent=5 // pred_check
      %p4394 = pneg %p4393
    $region150: #{swin_t_f_forward.2} parent=5 // pred_check_branch
      %4396 = sbr.rel (%p4394) target = $region152
    $region151: #{swin_t_f_forward.2} parent=5 // pred_region
      %s4397 = ssub.s32 %s69, 2
      // Predicated region
      $region153: #{swin_t_f_forward.2} parent=151 // pred_check
        %p4398 = pneg %p754
      $region154: #{swin_t_f_forward.2} parent=151 // pred_check_branch
        %4400 = sbr.rel (%p4398) target = $region156
      $region155: #{swin_t_f_forward.2} parent=151 // pred_region
        %p4401 = scmp.lt.s32.totalorder %s75, 1
        %s4402 = scalar_select %p4401, %s75, 1
        %s4403 = smul.addr %s4402, 8
        %s4404 = smul.addr %s4403, 8
        %s4405 = scalar_lea.vmem %s63, %s4404
      $region156: #{swin_t_f_forward.2} parent=151 // pred_fallthru
        _
    $region152: #{swin_t_f_forward.2} parent=5 // pred_fallthru
      _
  $region6: #{swin_t_f_forward.2} parent=0 // loop_footer
    %s73 = sadd.s32 1, %s69
  $region7: #{swin_t_f_forward.2} parent=0 // loop_footer_branch
    %68 = sbr.rel target = $region3
  $region8: #{swin_t_f_forward.2} parent=0 // loop_exit
    _

// kernel: swin_t_f_forward.3
$region0: #{swin_t_f_forward.3}
  #allocation0 [shape = 'u32[]', space=smem, size = 0x4, offset = 0x4, fixed_abs, tag = 'smem constant byte address 0x4 - core index']
  #allocation1 [shape = 'u32[72,128]{1,0:T(1,128)}', space=vmem, size = 0x9000, scoped, tag = 'internal scratch']
  %s0 = inlined_call_operand.smem [shape: u32[33], index: -1, kind: input, shape index: {}]
  %s1 = sld [smem:[%s0]]
  %s2 = scalar_lea.smem %s0, 1
  %s3 = sld [smem:[%s2]]
  %s4 = scalar_lea.smem %s0, 2
  %s5 = sld [smem:[%s4]]
  %s6 = scalar_lea.smem %s0, 3
  %s7 = sld [smem:[%s6]]
  %s8 = scalar_lea.smem %s0, 4
  %s9 = sld [smem:[%s8]]
  %s10 = scalar_lea.smem %s0, 5
  %s11 = sld [smem:[%s10]]
  %s12 = scalar_lea.smem %s0, 6
  %s13 = sld [smem:[%s12]]
  %s14 = scalar_lea.smem %s0, 7
  %s15 = sld [smem:[%s14]]
  %s16 = scalar_lea.smem %s0, 8
  %s17 = sld [smem:[%s16]]
  %s18 = scalar_lea.smem %s0, 9
  %s19 = sld [smem:[%s18]]
  %s20 = scalar_lea.smem %s0, 10
  %s21 = sld [smem:[%s20]]
  %s22 = scalar_lea.smem %s0, 11
  %s23 = sld [smem:[%s22]]
  %s24 = scalar_lea.smem %s0, 12
  %s25 = sld [smem:[%s24]]
  %s26 = scalar_lea.smem %s0, 13
  %s27 = sld [smem:[%s26]]
  %s28 = scalar_lea.smem %s0, 14
  %s29 = sld [smem:[%s28]]
  %s30 = scalar_lea.smem %s0, 15
  %s31 = sld [smem:[%s30]]
  %s32 = scalar_lea.smem %s0, 16
  %s33 = sld [smem:[%s32]]
  %s34 = scalar_lea.smem %s0, 17
  %s35 = sld [smem:[%s34]]
  %s36 = scalar_lea.smem %s0, 18
  %s37 = sld [smem:[%s36]]
  %s38 = scalar_lea.smem %s0, 19
  %s39 = sld [smem:[%s38]]
  %s40 = scalar_lea.smem %s0, 20
  %s41 = sld [smem:[%s40]]
  %s42 = scalar_lea.smem %s0, 21
  %s43 = sld [smem:[%s42]]
  %s44 = scalar_lea.smem %s0, 22
  %s45 = sld [smem:[%s44]]
  %s46 = scalar_lea.smem %s0, 23
  %s47 = sld [smem:[%s46]]
  %s48 = scalar_lea.smem %s0, 24
  %s49 = sld [smem:[%s48]]
  %s50 = scalar_lea.smem %s0, 25
  %s51 = sld [smem:[%s50]]
  %s52 = scalar_lea.smem %s0, 26
  %s53 = sld [smem:[%s52]]
  %s54 = scalar_lea.smem %s0, 27
  %s55 = sld [smem:[%s54]]
  %s56 = scalar_lea.smem %s0, 28
  %s57 = sld [smem:[%s56]]
  %s58 = scalar_lea.smem %s0, 29
  %s59 = sld [smem:[%s58]]
  %s60 = scalar_lea.smem %s0, 30
  %s61 = sld [smem:[%s60]]
  %s62 = scalar_lea.smem %s0, 31
  %s63 = sld [smem:[%s62]]
  %s64 = scalar_lea.smem %s0, 32
  %s65 = sld [smem:[%s64]]
  %s66 = sld [smem:[#allocation0]]
  $region161: #{swin_t_f_forward.3} parent=0
    _
  %s68 = ssub.s32 1, %s66
  %s69 = scalar_select 0, %s68, %s66
  $region1: #{swin_t_f_forward.3} parent=0
    #allocation2 [shape = 'u8[1024]{0}', space=vmem, size = 0x400, scoped, tag = 'output window, operand 0']
    #allocation3 [shape = 's32[2]{0}', space=sflag, size = 0x8, scoped, tag = 'scoped memory for swin_t_f_forward.3']
    %70 = vsyncpa [#allocation3], 0
    %s71 = scalar_lea.sflag [#allocation3], 1
    %72 = vsyncpa %s71, 0
    loop: start=0, step=1, limit=4
    $region2: #{swin_t_f_forward.3} parent=1 // loop_pre_header
      _
    $region3: #{swin_t_f_forward.3} parent=1 // loop_header
      %s74 = sphi 0, %s78
      %p75 = scmp.ge.s32.totalorder %s74, 4
      %s84 = sphi 0, %s86
      %s87 = sphi 0, %s84
      %s88 = sphi 0, %s87
      %s104 = sphi 0, %s88
      %s108 = sphi 0, %s108
      %s110 = sphi 0, %s108
      %s111 = sphi 0, %s110
      %s125 = sphi 0, %s111
      %s129 = sphi 0, %s129
      %s131 = sphi 0, %s129
      %s132 = sphi 0, %s131
      %s146 = sphi 0, %s132
      %s150 = sphi 0, %s150
      %s152 = sphi 0, %s150
      %s153 = sphi 0, %s152
      %s167 = sphi 0, %s153
      %s171 = sphi 0, %s171
      %s173 = sphi 0, %s171
      %s174 = sphi 0, %s173
      %s188 = sphi 0, %s174
      %s192 = sphi 0, %s192
      %s194 = sphi 0, %s192
      %s195 = sphi 0, %s194
      %s209 = sphi 0, %s195
      %s213 = sphi 0, %s213
      %s215 = sphi 0, %s213
      %s216 = sphi 0, %s215
      %s230 = sphi 0, %s216
      %s234 = sphi 0, %s234
      %s236 = sphi 0, %s234
      %s237 = sphi 0, %s236
      %s251 = sphi 0, %s237
      %s255 = sphi 0, %s255
      %s257 = sphi 0, %s255
      %s258 = sphi 0, %s257
      %s272 = sphi 0, %s258
      %s276 = sphi 0, %s276
      %s278 = sphi 0, %s276
      %s279 = sphi 0, %s278
      %s293 = sphi 0, %s279
      %s297 = sphi 0, %s297
      %s299 = sphi 0, %s297
      %s300 = sphi 0, %s299
      %s314 = sphi 0, %s300
      %s318 = sphi 0, %s318
      %s320 = sphi 0, %s318
      %s321 = sphi 0, %s320
      %s335 = sphi 0, %s321
      %s339 = sphi 0, %s339
      %s341 = sphi 0, %s339
      %s342 = sphi 0, %s341
      %s356 = sphi 0, %s342
      %s360 = sphi 0, %s360
      %s362 = sphi 0, %s360
      %s363 = sphi 0, %s362
      %s377 = sphi 0, %s363
      %s381 = sphi 0, %s381
      %s383 = sphi 0, %s381
      %s384 = sphi 0, %s383
      %s398 = sphi 0, %s384
      %s402 = sphi 0, %s402
      %s404 = sphi 0, %s402
      %s405 = sphi 0, %s404
      %s419 = sphi 0, %s405
      %s423 = sphi 0, %s423
      %s425 = sphi 0, %s423
      %s426 = sphi 0, %s425
      %s440 = sphi 0, %s426
      %s444 = sphi 0, %s444
      %s446 = sphi 0, %s444
      %s447 = sphi 0, %s446
      %s461 = sphi 0, %s447
      %s465 = sphi 0, %s465
      %s467 = sphi 0, %s465
      %s468 = sphi 0, %s467
      %s482 = sphi 0, %s468
      %s486 = sphi 0, %s486
      %s488 = sphi 0, %s486
      %s489 = sphi 0, %s488
      %s503 = sphi 0, %s489
      %s507 = sphi 0, %s507
      %s509 = sphi 0, %s507
      %s510 = sphi 0, %s509
      %s524 = sphi 0, %s510
      %s528 = sphi 0, %s528
      %s530 = sphi 0, %s528
      %s531 = sphi 0, %s530
      %s545 = sphi 0, %s531
      %s549 = sphi 0, %s549
      %s551 = sphi 0, %s549
      %s552 = sphi 0, %s551
      %s566 = sphi 0, %s552
      %s570 = sphi 0, %s570
      %s572 = sphi 0, %s570
      %s573 = sphi 0, %s572
      %s587 = sphi 0, %s573
      %s591 = sphi 0, %s591
      %s593 = sphi 0, %s591
      %s594 = sphi 0, %s593
      %s608 = sphi 0, %s594
      %s612 = sphi 0, %s612
      %s614 = sphi 0, %s612
      %s615 = sphi 0, %s614
      %s629 = sphi 0, %s615
      %s633 = sphi 0, %s633
      %s635 = sphi 0, %s633
      %s636 = sphi 0, %s635
      %s650 = sphi 0, %s636
      %s654 = sphi 0, %s654
      %s656 = sphi 0, %s654
      %s657 = sphi 0, %s656
      %s671 = sphi 0, %s657
      %s675 = sphi 0, %s675
      %s677 = sphi 0, %s675
      %s678 = sphi 0, %s677
      %s692 = sphi 0, %s678
      %s696 = sphi 0, %s696
      %s698 = sphi 0, %s696
      %s699 = sphi 0, %s698
      %s713 = sphi 0, %s699
      %s717 = sphi 0, %s717
      %s719 = sphi 0, %s717
      %s720 = sphi 0, %s719
      %s734 = sphi 0, %s720
      %s738 = sphi 0, %s738
      %s740 = sphi 0, %s738
      %s741 = sphi 0, %s740
      %s755 = sphi 0, %s741
      %s761 = sphi 0, %s763
      %s764 = sphi 0, %s761
      %s765 = sphi 0, %s764
      %s781 = sphi 0, %s765
    $region4: #{swin_t_f_forward.3} parent=1 // loop_header_branch
      %77 = sbr.rel (%p75) target = $region8
    $region5: #{swin_t_f_forward.3} parent=1 // loop_body
      %s79 = ssub.s32 %s74, 1
      %s80 = ssub.s32 %s74, 2
      %s81 = sadd.s32 %s74, 1
      %s82 = ssub.s32 %s74, %s81
      %p83 = scmp.eq.s32.totalorder %s82, 0
      %s85 = sadd.s32 %s84, 1
      %s86 = scalar_select %p83, %s84, %s85
      %p89 = pneg %p83
      %p90 = scmp.eq.s32.totalorder %s74, 1
      %p91 = por %p89, %p90
      %p92 = scmp.ne.s32.totalorder %s84, %s87
      %p93 = scmp.eq.s32.totalorder %s74, 0
      %p94 = por %p92, %p93
      %p95 = scmp.ne.s32.totalorder %s84, %s87
      %p96 = scmp.eq.s32.totalorder %s79, 1
      %p97 = por %p95, %p96
      %p98 = scmp.ne.s32.totalorder %s87, %s88
      %p99 = scmp.eq.s32.totalorder %s79, 0
      %p100 = por %p98, %p99
      %p101 = scmp.ne.s32.totalorder %s87, %s88
      %p102 = scmp.eq.s32.totalorder %s80, 1
      %p103 = por %p101, %p102
      %p105 = scmp.ne.s32.totalorder %s88, %s104
      %p106 = scmp.eq.s32.totalorder %s80, 0
      %p107 = por %p105, %p106
      %s109 = sadd.s32 %s108, 1
      %p112 = scmp.eq.s32.totalorder %s74, 1
      %p113 = scmp.ne.s32.totalorder %s108, %s110
      %p114 = scmp.eq.s32.totalorder %s74, 0
      %p115 = por %p113, %p114
      %p116 = scmp.ne.s32.totalorder %s108, %s110
      %p117 = scmp.eq.s32.totalorder %s79, 1
      %p118 = por %p116, %p117
      %p119 = scmp.ne.s32.totalorder %s110, %s111
      %p120 = scmp.eq.s32.totalorder %s79, 0
      %p121 = por %p119, %p120
      %p122 = scmp.ne.s32.totalorder %s110, %s111
      %p123 = scmp.eq.s32.totalorder %s80, 1
      %p124 = por %p122, %p123
      %p126 = scmp.ne.s32.totalorder %s111, %s125
      %p127 = scmp.eq.s32.totalorder %s80, 0
      %p128 = por %p126, %p127
      %s130 = sadd.s32 %s129, 1
      %p133 = scmp.eq.s32.totalorder %s74, 1
      %p134 = scmp.ne.s32.totalorder %s129, %s131
      %p135 = scmp.eq.s32.totalorder %s74, 0
      %p136 = por %p134, %p135
      %p137 = scmp.ne.s32.totalorder %s129, %s131
      %p138 = scmp.eq.s32.totalorder %s79, 1
      %p139 = por %p137, %p138
      %p140 = scmp.ne.s32.totalorder %s131, %s132
      %p141 = scmp.eq.s32.totalorder %s79, 0
      %p142 = por %p140, %p141
      %p143 = scmp.ne.s32.totalorder %s131, %s132
      %p144 = scmp.eq.s32.totalorder %s80, 1
      %p145 = por %p143, %p144
      %p147 = scmp.ne.s32.totalorder %s132, %s146
      %p148 = scmp.eq.s32.totalorder %s80, 0
      %p149 = por %p147, %p148
      %s151 = sadd.s32 %s150, 1
      %p154 = scmp.eq.s32.totalorder %s74, 1
      %p155 = scmp.ne.s32.totalorder %s150, %s152
      %p156 = scmp.eq.s32.totalorder %s74, 0
      %p157 = por %p155, %p156
      %p158 = scmp.ne.s32.totalorder %s150, %s152
      %p159 = scmp.eq.s32.totalorder %s79, 1
      %p160 = por %p158, %p159
      %p161 = scmp.ne.s32.totalorder %s152, %s153
      %p162 = scmp.eq.s32.totalorder %s79, 0
      %p163 = por %p161, %p162
      %p164 = scmp.ne.s32.totalorder %s152, %s153
      %p165 = scmp.eq.s32.totalorder %s80, 1
      %p166 = por %p164, %p165
      %p168 = scmp.ne.s32.totalorder %s153, %s167
      %p169 = scmp.eq.s32.totalorder %s80, 0
      %p170 = por %p168, %p169
      %s172 = sadd.s32 %s171, 1
      %p175 = scmp.eq.s32.totalorder %s74, 1
      %p176 = scmp.ne.s32.totalorder %s171, %s173
      %p177 = scmp.eq.s32.totalorder %s74, 0
      %p178 = por %p176, %p177
      %p179 = scmp.ne.s32.totalorder %s171, %s173
      %p180 = scmp.eq.s32.totalorder %s79, 1
      %p181 = por %p179, %p180
      %p182 = scmp.ne.s32.totalorder %s173, %s174
      %p183 = scmp.eq.s32.totalorder %s79, 0
      %p184 = por %p182, %p183
      %p185 = scmp.ne.s32.totalorder %s173, %s174
      %p186 = scmp.eq.s32.totalorder %s80, 1
      %p187 = por %p185, %p186
      %p189 = scmp.ne.s32.totalorder %s174, %s188
      %p190 = scmp.eq.s32.totalorder %s80, 0
      %p191 = por %p189, %p190
      %s193 = sadd.s32 %s192, 1
      %p196 = scmp.eq.s32.totalorder %s74, 1
      %p197 = scmp.ne.s32.totalorder %s192, %s194
      %p198 = scmp.eq.s32.totalorder %s74, 0
      %p199 = por %p197, %p198
      %p200 = scmp.ne.s32.totalorder %s192, %s194
      %p201 = scmp.eq.s32.totalorder %s79, 1
      %p202 = por %p200, %p201
      %p203 = scmp.ne.s32.totalorder %s194, %s195
      %p204 = scmp.eq.s32.totalorder %s79, 0
      %p205 = por %p203, %p204
      %p206 = scmp.ne.s32.totalorder %s194, %s195
      %p207 = scmp.eq.s32.totalorder %s80, 1
      %p208 = por %p206, %p207
      %p210 = scmp.ne.s32.totalorder %s195, %s209
      %p211 = scmp.eq.s32.totalorder %s80, 0
      %p212 = por %p210, %p211
      %s214 = sadd.s32 %s213, 1
      %p217 = scmp.eq.s32.totalorder %s74, 1
      %p218 = scmp.ne.s32.totalorder %s213, %s215
      %p219 = scmp.eq.s32.totalorder %s74, 0
      %p220 = por %p218, %p219
      %p221 = scmp.ne.s32.totalorder %s213, %s215
      %p222 = scmp.eq.s32.totalorder %s79, 1
      %p223 = por %p221, %p222
      %p224 = scmp.ne.s32.totalorder %s215, %s216
      %p225 = scmp.eq.s32.totalorder %s79, 0
      %p226 = por %p224, %p225
      %p227 = scmp.ne.s32.totalorder %s215, %s216
      %p228 = scmp.eq.s32.totalorder %s80, 1
      %p229 = por %p227, %p228
      %p231 = scmp.ne.s32.totalorder %s216, %s230
      %p232 = scmp.eq.s32.totalorder %s80, 0
      %p233 = por %p231, %p232
      %s235 = sadd.s32 %s234, 1
      %p238 = scmp.eq.s32.totalorder %s74, 1
      %p239 = scmp.ne.s32.totalorder %s234, %s236
      %p240 = scmp.eq.s32.totalorder %s74, 0
      %p241 = por %p239, %p240
      %p242 = scmp.ne.s32.totalorder %s234, %s236
      %p243 = scmp.eq.s32.totalorder %s79, 1
      %p244 = por %p242, %p243
      %p245 = scmp.ne.s32.totalorder %s236, %s237
      %p246 = scmp.eq.s32.totalorder %s79, 0
      %p247 = por %p245, %p246
      %p248 = scmp.ne.s32.totalorder %s236, %s237
      %p249 = scmp.eq.s32.totalorder %s80, 1
      %p250 = por %p248, %p249
      %p252 = scmp.ne.s32.totalorder %s237, %s251
      %p253 = scmp.eq.s32.totalorder %s80, 0
      %p254 = por %p252, %p253
      %s256 = sadd.s32 %s255, 1
      %p259 = scmp.eq.s32.totalorder %s74, 1
      %p260 = scmp.ne.s32.totalorder %s255, %s257
      %p261 = scmp.eq.s32.totalorder %s74, 0
      %p262 = por %p260, %p261
      %p263 = scmp.ne.s32.totalorder %s255, %s257
      %p264 = scmp.eq.s32.totalorder %s79, 1
      %p265 = por %p263, %p264
      %p266 = scmp.ne.s32.totalorder %s257, %s258
      %p267 = scmp.eq.s32.totalorder %s79, 0
      %p268 = por %p266, %p267
      %p269 = scmp.ne.s32.totalorder %s257, %s258
      %p270 = scmp.eq.s32.totalorder %s80, 1
      %p271 = por %p269, %p270
      %p273 = scmp.ne.s32.totalorder %s258, %s272
      %p274 = scmp.eq.s32.totalorder %s80, 0
      %p275 = por %p273, %p274
      %s277 = sadd.s32 %s276, 1
      %p280 = scmp.eq.s32.totalorder %s74, 1
      %p281 = scmp.ne.s32.totalorder %s276, %s278
      %p282 = scmp.eq.s32.totalorder %s74, 0
      %p283 = por %p281, %p282
      %p284 = scmp.ne.s32.totalorder %s276, %s278
      %p285 = scmp.eq.s32.totalorder %s79, 1
      %p286 = por %p284, %p285
      %p287 = scmp.ne.s32.totalorder %s278, %s279
      %p288 = scmp.eq.s32.totalorder %s79, 0
      %p289 = por %p287, %p288
      %p290 = scmp.ne.s32.totalorder %s278, %s279
      %p291 = scmp.eq.s32.totalorder %s80, 1
      %p292 = por %p290, %p291
      %p294 = scmp.ne.s32.totalorder %s279, %s293
      %p295 = scmp.eq.s32.totalorder %s80, 0
      %p296 = por %p294, %p295
      %s298 = sadd.s32 %s297, 1
      %p301 = scmp.eq.s32.totalorder %s74, 1
      %p302 = scmp.ne.s32.totalorder %s297, %s299
      %p303 = scmp.eq.s32.totalorder %s74, 0
      %p304 = por %p302, %p303
      %p305 = scmp.ne.s32.totalorder %s297, %s299
      %p306 = scmp.eq.s32.totalorder %s79, 1
      %p307 = por %p305, %p306
      %p308 = scmp.ne.s32.totalorder %s299, %s300
      %p309 = scmp.eq.s32.totalorder %s79, 0
      %p310 = por %p308, %p309
      %p311 = scmp.ne.s32.totalorder %s299, %s300
      %p312 = scmp.eq.s32.totalorder %s80, 1
      %p313 = por %p311, %p312
      %p315 = scmp.ne.s32.totalorder %s300, %s314
      %p316 = scmp.eq.s32.totalorder %s80, 0
      %p317 = por %p315, %p316
      %s319 = sadd.s32 %s318, 1
      %p322 = scmp.eq.s32.totalorder %s74, 1
      %p323 = scmp.ne.s32.totalorder %s318, %s320
      %p324 = scmp.eq.s32.totalorder %s74, 0
      %p325 = por %p323, %p324
      %p326 = scmp.ne.s32.totalorder %s318, %s320
      %p327 = scmp.eq.s32.totalorder %s79, 1
      %p328 = por %p326, %p327
      %p329 = scmp.ne.s32.totalorder %s320, %s321
      %p330 = scmp.eq.s32.totalorder %s79, 0
      %p331 = por %p329, %p330
      %p332 = scmp.ne.s32.totalorder %s320, %s321
      %p333 = scmp.eq.s32.totalorder %s80, 1
      %p334 = por %p332, %p333
      %p336 = scmp.ne.s32.totalorder %s321, %s335
      %p337 = scmp.eq.s32.totalorder %s80, 0
      %p338 = por %p336, %p337
      %s340 = sadd.s32 %s339, 1
      %p343 = scmp.eq.s32.totalorder %s74, 1
      %p344 = scmp.ne.s32.totalorder %s339, %s341
      %p345 = scmp.eq.s32.totalorder %s74, 0
      %p346 = por %p344, %p345
      %p347 = scmp.ne.s32.totalorder %s339, %s341
      %p348 = scmp.eq.s32.totalorder %s79, 1
      %p349 = por %p347, %p348
      %p350 = scmp.ne.s32.totalorder %s341, %s342
      %p351 = scmp.eq.s32.totalorder %s79, 0
      %p352 = por %p350, %p351
      %p353 = scmp.ne.s32.totalorder %s341, %s342
      %p354 = scmp.eq.s32.totalorder %s80, 1
      %p355 = por %p353, %p354
      %p357 = scmp.ne.s32.totalorder %s342, %s356
      %p358 = scmp.eq.s32.totalorder %s80, 0
      %p359 = por %p357, %p358
      %s361 = sadd.s32 %s360, 1
      %p364 = scmp.eq.s32.totalorder %s74, 1
      %p365 = scmp.ne.s32.totalorder %s360, %s362
      %p366 = scmp.eq.s32.totalorder %s74, 0
      %p367 = por %p365, %p366
      %p368 = scmp.ne.s32.totalorder %s360, %s362
      %p369 = scmp.eq.s32.totalorder %s79, 1
      %p370 = por %p368, %p369
      %p371 = scmp.ne.s32.totalorder %s362, %s363
      %p372 = scmp.eq.s32.totalorder %s79, 0
      %p373 = por %p371, %p372
      %p374 = scmp.ne.s32.totalorder %s362, %s363
      %p375 = scmp.eq.s32.totalorder %s80, 1
      %p376 = por %p374, %p375
      %p378 = scmp.ne.s32.totalorder %s363, %s377
      %p379 = scmp.eq.s32.totalorder %s80, 0
      %p380 = por %p378, %p379
      %s382 = sadd.s32 %s381, 1
      %p385 = scmp.eq.s32.totalorder %s74, 1
      %p386 = scmp.ne.s32.totalorder %s381, %s383
      %p387 = scmp.eq.s32.totalorder %s74, 0
      %p388 = por %p386, %p387
      %p389 = scmp.ne.s32.totalorder %s381, %s383
      %p390 = scmp.eq.s32.totalorder %s79, 1
      %p391 = por %p389, %p390
      %p392 = scmp.ne.s32.totalorder %s383, %s384
      %p393 = scmp.eq.s32.totalorder %s79, 0
      %p394 = por %p392, %p393
      %p395 = scmp.ne.s32.totalorder %s383, %s384
      %p396 = scmp.eq.s32.totalorder %s80, 1
      %p397 = por %p395, %p396
      %p399 = scmp.ne.s32.totalorder %s384, %s398
      %p400 = scmp.eq.s32.totalorder %s80, 0
      %p401 = por %p399, %p400
      %s403 = sadd.s32 %s402, 1
      %p406 = scmp.eq.s32.totalorder %s74, 1
      %p407 = scmp.ne.s32.totalorder %s402, %s404
      %p408 = scmp.eq.s32.totalorder %s74, 0
      %p409 = por %p407, %p408
      %p410 = scmp.ne.s32.totalorder %s402, %s404
      %p411 = scmp.eq.s32.totalorder %s79, 1
      %p412 = por %p410, %p411
      %p413 = scmp.ne.s32.totalorder %s404, %s405
      %p414 = scmp.eq.s32.totalorder %s79, 0
      %p415 = por %p413, %p414
      %p416 = scmp.ne.s32.totalorder %s404, %s405
      %p417 = scmp.eq.s32.totalorder %s80, 1
      %p418 = por %p416, %p417
      %p420 = scmp.ne.s32.totalorder %s405, %s419
      %p421 = scmp.eq.s32.totalorder %s80, 0
      %p422 = por %p420, %p421
      %s424 = sadd.s32 %s423, 1
      %p427 = scmp.eq.s32.totalorder %s74, 1
      %p428 = scmp.ne.s32.totalorder %s423, %s425
      %p429 = scmp.eq.s32.totalorder %s74, 0
      %p430 = por %p428, %p429
      %p431 = scmp.ne.s32.totalorder %s423, %s425
      %p432 = scmp.eq.s32.totalorder %s79, 1
      %p433 = por %p431, %p432
      %p434 = scmp.ne.s32.totalorder %s425, %s426
      %p435 = scmp.eq.s32.totalorder %s79, 0
      %p436 = por %p434, %p435
      %p437 = scmp.ne.s32.totalorder %s425, %s426
      %p438 = scmp.eq.s32.totalorder %s80, 1
      %p439 = por %p437, %p438
      %p441 = scmp.ne.s32.totalorder %s426, %s440
      %p442 = scmp.eq.s32.totalorder %s80, 0
      %p443 = por %p441, %p442
      %s445 = sadd.s32 %s444, 1
      %p448 = scmp.eq.s32.totalorder %s74, 1
      %p449 = scmp.ne.s32.totalorder %s444, %s446
      %p450 = scmp.eq.s32.totalorder %s74, 0
      %p451 = por %p449, %p450
      %p452 = scmp.ne.s32.totalorder %s444, %s446
      %p453 = scmp.eq.s32.totalorder %s79, 1
      %p454 = por %p452, %p453
      %p455 = scmp.ne.s32.totalorder %s446, %s447
      %p456 = scmp.eq.s32.totalorder %s79, 0
      %p457 = por %p455, %p456
      %p458 = scmp.ne.s32.totalorder %s446, %s447
      %p459 = scmp.eq.s32.totalorder %s80, 1
      %p460 = por %p458, %p459
      %p462 = scmp.ne.s32.totalorder %s447, %s461
      %p463 = scmp.eq.s32.totalorder %s80, 0
      %p464 = por %p462, %p463
      %s466 = sadd.s32 %s465, 1
      %p469 = scmp.eq.s32.totalorder %s74, 1
      %p470 = scmp.ne.s32.totalorder %s465, %s467
      %p471 = scmp.eq.s32.totalorder %s74, 0
      %p472 = por %p470, %p471
      %p473 = scmp.ne.s32.totalorder %s465, %s467
      %p474 = scmp.eq.s32.totalorder %s79, 1
      %p475 = por %p473, %p474
      %p476 = scmp.ne.s32.totalorder %s467, %s468
      %p477 = scmp.eq.s32.totalorder %s79, 0
      %p478 = por %p476, %p477
      %p479 = scmp.ne.s32.totalorder %s467, %s468
      %p480 = scmp.eq.s32.totalorder %s80, 1
      %p481 = por %p479, %p480
      %p483 = scmp.ne.s32.totalorder %s468, %s482
      %p484 = scmp.eq.s32.totalorder %s80, 0
      %p485 = por %p483, %p484
      %s487 = sadd.s32 %s486, 1
      %p490 = scmp.eq.s32.totalorder %s74, 1
      %p491 = scmp.ne.s32.totalorder %s486, %s488
      %p492 = scmp.eq.s32.totalorder %s74, 0
      %p493 = por %p491, %p492
      %p494 = scmp.ne.s32.totalorder %s486, %s488
      %p495 = scmp.eq.s32.totalorder %s79, 1
      %p496 = por %p494, %p495
      %p497 = scmp.ne.s32.totalorder %s488, %s489
      %p498 = scmp.eq.s32.totalorder %s79, 0
      %p499 = por %p497, %p498
      %p500 = scmp.ne.s32.totalorder %s488, %s489
      %p501 = scmp.eq.s32.totalorder %s80, 1
      %p502 = por %p500, %p501
      %p504 = scmp.ne.s32.totalorder %s489, %s503
      %p505 = scmp.eq.s32.totalorder %s80, 0
      %p506 = por %p504, %p505
      %s508 = sadd.s32 %s507, 1
      %p511 = scmp.eq.s32.totalorder %s74, 1
      %p512 = scmp.ne.s32.totalorder %s507, %s509
      %p513 = scmp.eq.s32.totalorder %s74, 0
      %p514 = por %p512, %p513
      %p515 = scmp.ne.s32.totalorder %s507, %s509
      %p516 = scmp.eq.s32.totalorder %s79, 1
      %p517 = por %p515, %p516
      %p518 = scmp.ne.s32.totalorder %s509, %s510
      %p519 = scmp.eq.s32.totalorder %s79, 0
      %p520 = por %p518, %p519
      %p521 = scmp.ne.s32.totalorder %s509, %s510
      %p522 = scmp.eq.s32.totalorder %s80, 1
      %p523 = por %p521, %p522
      %p525 = scmp.ne.s32.totalorder %s510, %s524
      %p526 = scmp.eq.s32.totalorder %s80, 0
      %p527 = por %p525, %p526
      %s529 = sadd.s32 %s528, 1
      %p532 = scmp.eq.s32.totalorder %s74, 1
      %p533 = scmp.ne.s32.totalorder %s528, %s530
      %p534 = scmp.eq.s32.totalorder %s74, 0
      %p535 = por %p533, %p534
      %p536 = scmp.ne.s32.totalorder %s528, %s530
      %p537 = scmp.eq.s32.totalorder %s79, 1
      %p538 = por %p536, %p537
      %p539 = scmp.ne.s32.totalorder %s530, %s531
      %p540 = scmp.eq.s32.totalorder %s79, 0
      %p541 = por %p539, %p540
      %p542 = scmp.ne.s32.totalorder %s530, %s531
      %p543 = scmp.eq.s32.totalorder %s80, 1
      %p544 = por %p542, %p543
      %p546 = scmp.ne.s32.totalorder %s531, %s545
      %p547 = scmp.eq.s32.totalorder %s80, 0
      %p548 = por %p546, %p547
      %s550 = sadd.s32 %s549, 1
      %p553 = scmp.eq.s32.totalorder %s74, 1
      %p554 = scmp.ne.s32.totalorder %s549, %s551
      %p555 = scmp.eq.s32.totalorder %s74, 0
      %p556 = por %p554, %p555
      %p557 = scmp.ne.s32.totalorder %s549, %s551
      %p558 = scmp.eq.s32.totalorder %s79, 1
      %p559 = por %p557, %p558
      %p560 = scmp.ne.s32.totalorder %s551, %s552
      %p561 = scmp.eq.s32.totalorder %s79, 0
      %p562 = por %p560, %p561
      %p563 = scmp.ne.s32.totalorder %s551, %s552
      %p564 = scmp.eq.s32.totalorder %s80, 1
      %p565 = por %p563, %p564
      %p567 = scmp.ne.s32.totalorder %s552, %s566
      %p568 = scmp.eq.s32.totalorder %s80, 0
      %p569 = por %p567, %p568
      %s571 = sadd.s32 %s570, 1
      %p574 = scmp.eq.s32.totalorder %s74, 1
      %p575 = scmp.ne.s32.totalorder %s570, %s572
      %p576 = scmp.eq.s32.totalorder %s74, 0
      %p577 = por %p575, %p576
      %p578 = scmp.ne.s32.totalorder %s570, %s572
      %p579 = scmp.eq.s32.totalorder %s79, 1
      %p580 = por %p578, %p579
      %p581 = scmp.ne.s32.totalorder %s572, %s573
      %p582 = scmp.eq.s32.totalorder %s79, 0
      %p583 = por %p581, %p582
      %p584 = scmp.ne.s32.totalorder %s572, %s573
      %p585 = scmp.eq.s32.totalorder %s80, 1
      %p586 = por %p584, %p585
      %p588 = scmp.ne.s32.totalorder %s573, %s587
      %p589 = scmp.eq.s32.totalorder %s80, 0
      %p590 = por %p588, %p589
      %s592 = sadd.s32 %s591, 1
      %p595 = scmp.eq.s32.totalorder %s74, 1
      %p596 = scmp.ne.s32.totalorder %s591, %s593
      %p597 = scmp.eq.s32.totalorder %s74, 0
      %p598 = por %p596, %p597
      %p599 = scmp.ne.s32.totalorder %s591, %s593
      %p600 = scmp.eq.s32.totalorder %s79, 1
      %p601 = por %p599, %p600
      %p602 = scmp.ne.s32.totalorder %s593, %s594
      %p603 = scmp.eq.s32.totalorder %s79, 0
      %p604 = por %p602, %p603
      %p605 = scmp.ne.s32.totalorder %s593, %s594
      %p606 = scmp.eq.s32.totalorder %s80, 1
      %p607 = por %p605, %p606
      %p609 = scmp.ne.s32.totalorder %s594, %s608
      %p610 = scmp.eq.s32.totalorder %s80, 0
      %p611 = por %p609, %p610
      %s613 = sadd.s32 %s612, 1
      %p616 = scmp.eq.s32.totalorder %s74, 1
      %p617 = scmp.ne.s32.totalorder %s612, %s614
      %p618 = scmp.eq.s32.totalorder %s74, 0
      %p619 = por %p617, %p618
      %p620 = scmp.ne.s32.totalorder %s612, %s614
      %p621 = scmp.eq.s32.totalorder %s79, 1
      %p622 = por %p620, %p621
      %p623 = scmp.ne.s32.totalorder %s614, %s615
      %p624 = scmp.eq.s32.totalorder %s79, 0
      %p625 = por %p623, %p624
      %p626 = scmp.ne.s32.totalorder %s614, %s615
      %p627 = scmp.eq.s32.totalorder %s80, 1
      %p628 = por %p626, %p627
      %p630 = scmp.ne.s32.totalorder %s615, %s629
      %p631 = scmp.eq.s32.totalorder %s80, 0
      %p632 = por %p630, %p631
      %s634 = sadd.s32 %s633, 1
      %p637 = scmp.eq.s32.totalorder %s74, 1
      %p638 = scmp.ne.s32.totalorder %s633, %s635
      %p639 = scmp.eq.s32.totalorder %s74, 0
      %p640 = por %p638, %p639
      %p641 = scmp.ne.s32.totalorder %s633, %s635
      %p642 = scmp.eq.s32.totalorder %s79, 1
      %p643 = por %p641, %p642
      %p644 = scmp.ne.s32.totalorder %s635, %s636
      %p645 = scmp.eq.s32.totalorder %s79, 0
      %p646 = por %p644, %p645
      %p647 = scmp.ne.s32.totalorder %s635, %s636
      %p648 = scmp.eq.s32.totalorder %s80, 1
      %p649 = por %p647, %p648
      %p651 = scmp.ne.s32.totalorder %s636, %s650
      %p652 = scmp.eq.s32.totalorder %s80, 0
      %p653 = por %p651, %p652
      %s655 = sadd.s32 %s654, 1
      %p658 = scmp.eq.s32.totalorder %s74, 1
      %p659 = scmp.ne.s32.totalorder %s654, %s656
      %p660 = scmp.eq.s32.totalorder %s74, 0
      %p661 = por %p659, %p660
      %p662 = scmp.ne.s32.totalorder %s654, %s656
      %p663 = scmp.eq.s32.totalorder %s79, 1
      %p664 = por %p662, %p663
      %p665 = scmp.ne.s32.totalorder %s656, %s657
      %p666 = scmp.eq.s32.totalorder %s79, 0
      %p667 = por %p665, %p666
      %p668 = scmp.ne.s32.totalorder %s656, %s657
      %p669 = scmp.eq.s32.totalorder %s80, 1
      %p670 = por %p668, %p669
      %p672 = scmp.ne.s32.totalorder %s657, %s671
      %p673 = scmp.eq.s32.totalorder %s80, 0
      %p674 = por %p672, %p673
      %s676 = sadd.s32 %s675, 1
      %p679 = scmp.eq.s32.totalorder %s74, 1
      %p680 = scmp.ne.s32.totalorder %s675, %s677
      %p681 = scmp.eq.s32.totalorder %s74, 0
      %p682 = por %p680, %p681
      %p683 = scmp.ne.s32.totalorder %s675, %s677
      %p684 = scmp.eq.s32.totalorder %s79, 1
      %p685 = por %p683, %p684
      %p686 = scmp.ne.s32.totalorder %s677, %s678
      %p687 = scmp.eq.s32.totalorder %s79, 0
      %p688 = por %p686, %p687
      %p689 = scmp.ne.s32.totalorder %s677, %s678
      %p690 = scmp.eq.s32.totalorder %s80, 1
      %p691 = por %p689, %p690
      %p693 = scmp.ne.s32.totalorder %s678, %s692
      %p694 = scmp.eq.s32.totalorder %s80, 0
      %p695 = por %p693, %p694
      %s697 = sadd.s32 %s696, 1
      %p700 = scmp.eq.s32.totalorder %s74, 1
      %p701 = scmp.ne.s32.totalorder %s696, %s698
      %p702 = scmp.eq.s32.totalorder %s74, 0
      %p703 = por %p701, %p702
      %p704 = scmp.ne.s32.totalorder %s696, %s698
      %p705 = scmp.eq.s32.totalorder %s79, 1
      %p706 = por %p704, %p705
      %p707 = scmp.ne.s32.totalorder %s698, %s699
      %p708 = scmp.eq.s32.totalorder %s79, 0
      %p709 = por %p707, %p708
      %p710 = scmp.ne.s32.totalorder %s698, %s699
      %p711 = scmp.eq.s32.totalorder %s80, 1
      %p712 = por %p710, %p711
      %p714 = scmp.ne.s32.totalorder %s699, %s713
      %p715 = scmp.eq.s32.totalorder %s80, 0
      %p716 = por %p714, %p715
      %s718 = sadd.s32 %s717, 1
      %p721 = scmp.eq.s32.totalorder %s74, 1
      %p722 = scmp.ne.s32.totalorder %s717, %s719
      %p723 = scmp.eq.s32.totalorder %s74, 0
      %p724 = por %p722, %p723
      %p725 = scmp.ne.s32.totalorder %s717, %s719
      %p726 = scmp.eq.s32.totalorder %s79, 1
      %p727 = por %p725, %p726
      %p728 = scmp.ne.s32.totalorder %s719, %s720
      %p729 = scmp.eq.s32.totalorder %s79, 0
      %p730 = por %p728, %p729
      %p731 = scmp.ne.s32.totalorder %s719, %s720
      %p732 = scmp.eq.s32.totalorder %s80, 1
      %p733 = por %p731, %p732
      %p735 = scmp.ne.s32.totalorder %s720, %s734
      %p736 = scmp.eq.s32.totalorder %s80, 0
      %p737 = por %p735, %p736
      %s739 = sadd.s32 %s738, 1
      %p742 = scmp.eq.s32.totalorder %s74, 1
      %p743 = scmp.ne.s32.totalorder %s738, %s740
      %p744 = scmp.eq.s32.totalorder %s74, 0
      %p745 = por %p743, %p744
      %p746 = scmp.ne.s32.totalorder %s738, %s740
      %p747 = scmp.eq.s32.totalorder %s79, 1
      %p748 = por %p746, %p747
      %p749 = scmp.ne.s32.totalorder %s740, %s741
      %p750 = scmp.eq.s32.totalorder %s79, 0
      %p751 = por %p749, %p750
      %p752 = scmp.ne.s32.totalorder %s740, %s741
      %p753 = scmp.eq.s32.totalorder %s80, 1
      %p754 = por %p752, %p753
      %p756 = scmp.ne.s32.totalorder %s741, %s755
      %p757 = scmp.eq.s32.totalorder %s80, 0
      %p758 = por %p756, %p757
      %s759 = ssub.s32 %s74, %s81
      %p760 = scmp.eq.s32.totalorder %s759, 0
      %s762 = sadd.s32 %s761, 1
      %s763 = scalar_select %p760, %s761, %s762
      %p766 = pneg %p760
      %p767 = scmp.eq.s32.totalorder %s74, 1
      %p768 = por %p766, %p767
      %p769 = scmp.ne.s32.totalorder %s761, %s764
      %p770 = scmp.eq.s32.totalorder %s74, 0
      %p771 = por %p769, %p770
      %p772 = scmp.ne.s32.totalorder %s761, %s764
      %p773 = scmp.eq.s32.totalorder %s79, 1
      %p774 = por %p772, %p773
      %p775 = scmp.ne.s32.totalorder %s764, %s765
      %p776 = scmp.eq.s32.totalorder %s79, 0
      %p777 = por %p775, %p776
      %p778 = scmp.ne.s32.totalorder %s764, %s765
      %p779 = scmp.eq.s32.totalorder %s80, 1
      %p780 = por %p778, %p779
      %p782 = scmp.ne.s32.totalorder %s765, %s781
      %p783 = scmp.eq.s32.totalorder %s80, 0
      %p784 = por %p782, %p783
      %p785 = scmp.le.s32.totalorder 1, %s74
      %p786 = scmp.lt.s32.totalorder %s74, 3
      %p787 = pnand %p785, %p786
      %p788 = pneg %p787
      // Predicated region
      $region9: #{swin_t_f_forward.3} parent=5 // pred_check
        _
      $region10: #{swin_t_f_forward.3} parent=5 // pred_check_branch
        %790 = sbr.rel (%p787) target = $region12
      $region11: #{swin_t_f_forward.3} parent=5 // pred_region
        %s791 = ssub.s32 %s74, 1
        // Predicated region
        $region13: #{swin_t_f_forward.3} parent=11 // pred_check
          %p792 = pneg %p121
        $region14: #{swin_t_f_forward.3} parent=11 // pred_check_branch
          %794 = sbr.rel (%p792) target = $region16
        $region15: #{swin_t_f_forward.3} parent=11 // pred_region
          _
        $region16: #{swin_t_f_forward.3} parent=11 // pred_fallthru
          _
        // Predicated region
        $region17: #{swin_t_f_forward.3} parent=11 // pred_check
          %p795 = pneg %p142
        $region18: #{swin_t_f_forward.3} parent=11 // pred_check_branch
          %797 = sbr.rel (%p795) target = $region20
        $region19: #{swin_t_f_forward.3} parent=11 // pred_region
          _
        $region20: #{swin_t_f_forward.3} parent=11 // pred_fallthru
          _
        // Predicated region
        $region21: #{swin_t_f_forward.3} parent=11 // pred_check
          %p798 = pneg %p163
        $region22: #{swin_t_f_forward.3} parent=11 // pred_check_branch
          %800 = sbr.rel (%p798) target = $region24
        $region23: #{swin_t_f_forward.3} parent=11 // pred_region
          _
        $region24: #{swin_t_f_forward.3} parent=11 // pred_fallthru
          _
        // Predicated region
        $region25: #{swin_t_f_forward.3} parent=11 // pred_check
          %p801 = pneg %p184
        $region26: #{swin_t_f_forward.3} parent=11 // pred_check_branch
          %803 = sbr.rel (%p801) target = $region28
        $region27: #{swin_t_f_forward.3} parent=11 // pred_region
          _
        $region28: #{swin_t_f_forward.3} parent=11 // pred_fallthru
          _
        // Predicated region
        $region29: #{swin_t_f_forward.3} parent=11 // pred_check
          %p804 = pneg %p205
        $region30: #{swin_t_f_forward.3} parent=11 // pred_check_branch
          %806 = sbr.rel (%p804) target = $region32
        $region31: #{swin_t_f_forward.3} parent=11 // pred_region
          _
        $region32: #{swin_t_f_forward.3} parent=11 // pred_fallthru
          _
        // Predicated region
        $region33: #{swin_t_f_forward.3} parent=11 // pred_check
          %p807 = pneg %p226
        $region34: #{swin_t_f_forward.3} parent=11 // pred_check_branch
          %809 = sbr.rel (%p807) target = $region36
        $region35: #{swin_t_f_forward.3} parent=11 // pred_region
          _
        $region36: #{swin_t_f_forward.3} parent=11 // pred_fallthru
          _
        // Predicated region
        $region37: #{swin_t_f_forward.3} parent=11 // pred_check
          %p810 = pneg %p247
        $region38: #{swin_t_f_forward.3} parent=11 // pred_check_branch
          %812 = sbr.rel (%p810) target = $region40
        $region39: #{swin_t_f_forward.3} parent=11 // pred_region
          _
        $region40: #{swin_t_f_forward.3} parent=11 // pred_fallthru
          _
        // Predicated region
        $region41: #{swin_t_f_forward.3} parent=11 // pred_check
          %p813 = pneg %p268
        $region42: #{swin_t_f_forward.3} parent=11 // pred_check_branch
          %815 = sbr.rel (%p813) target = $region44
        $region43: #{swin_t_f_forward.3} parent=11 // pred_region
          _
        $region44: #{swin_t_f_forward.3} parent=11 // pred_fallthru
          _
        // Predicated region
        $region45: #{swin_t_f_forward.3} parent=11 // pred_check
          %p816 = pneg %p289
        $region46: #{swin_t_f_forward.3} parent=11 // pred_check_branch
          %818 = sbr.rel (%p816) target = $region48
        $region47: #{swin_t_f_forward.3} parent=11 // pred_region
          _
        $region48: #{swin_t_f_forward.3} parent=11 // pred_fallthru
          _
        // Predicated region
        $region49: #{swin_t_f_forward.3} parent=11 // pred_check
          %p819 = pneg %p310
        $region50: #{swin_t_f_forward.3} parent=11 // pred_check_branch
          %821 = sbr.rel (%p819) target = $region52
        $region51: #{swin_t_f_forward.3} parent=11 // pred_region
          _
        $region52: #{swin_t_f_forward.3} parent=11 // pred_fallthru
          _
        // Predicated region
        $region53: #{swin_t_f_forward.3} parent=11 // pred_check
          %p822 = pneg %p331
        $region54: #{swin_t_f_forward.3} parent=11 // pred_check_branch
          %824 = sbr.rel (%p822) target = $region56
        $region55: #{swin_t_f_forward.3} parent=11 // pred_region
          _
        $region56: #{swin_t_f_forward.3} parent=11 // pred_fallthru
          _
        // Predicated region
        $region57: #{swin_t_f_forward.3} parent=11 // pred_check
          %p825 = pneg %p352
        $region58: #{swin_t_f_forward.3} parent=11 // pred_check_branch
          %827 = sbr.rel (%p825) target = $region60
        $region59: #{swin_t_f_forward.3} parent=11 // pred_region
          _
        $region60: #{swin_t_f_forward.3} parent=11 // pred_fallthru
          _
        // Predicated region
        $region61: #{swin_t_f_forward.3} parent=11 // pred_check
          %p828 = pneg %p373
        $region62: #{swin_t_f_forward.3} parent=11 // pred_check_branch
          %830 = sbr.rel (%p828) target = $region64
        $region63: #{swin_t_f_forward.3} parent=11 // pred_region
          _
        $region64: #{swin_t_f_forward.3} parent=11 // pred_fallthru
          _
        // Predicated region
        $region65: #{swin_t_f_forward.3} parent=11 // pred_check
          %p831 = pneg %p394
        $region66: #{swin_t_f_forward.3} parent=11 // pred_check_branch
          %833 = sbr.rel (%p831) target = $region68
        $region67: #{swin_t_f_forward.3} parent=11 // pred_region
          _
        $region68: #{swin_t_f_forward.3} parent=11 // pred_fallthru
          _
        // Predicated region
        $region69: #{swin_t_f_forward.3} parent=11 // pred_check
          %p834 = pneg %p415
        $region70: #{swin_t_f_forward.3} parent=11 // pred_check_branch
          %836 = sbr.rel (%p834) target = $region72
        $region71: #{swin_t_f_forward.3} parent=11 // pred_region
          _
        $region72: #{swin_t_f_forward.3} parent=11 // pred_fallthru
          _
        // Predicated region
        $region73: #{swin_t_f_forward.3} parent=11 // pred_check
          %p837 = pneg %p436
        $region74: #{swin_t_f_forward.3} parent=11 // pred_check_branch
          %839 = sbr.rel (%p837) target = $region76
        $region75: #{swin_t_f_forward.3} parent=11 // pred_region
          _
        $region76: #{swin_t_f_forward.3} parent=11 // pred_fallthru
          _
        // Predicated region
        $region77: #{swin_t_f_forward.3} parent=11 // pred_check
          %p840 = pneg %p457
        $region78: #{swin_t_f_forward.3} parent=11 // pred_check_branch
          %842 = sbr.rel (%p840) target = $region80
        $region79: #{swin_t_f_forward.3} parent=11 // pred_region
          _
        $region80: #{swin_t_f_forward.3} parent=11 // pred_fallthru
          _
        // Predicated region
        $region81: #{swin_t_f_forward.3} parent=11 // pred_check
          %p843 = pneg %p478
        $region82: #{swin_t_f_forward.3} parent=11 // pred_check_branch
          %845 = sbr.rel (%p843) target = $region84
        $region83: #{swin_t_f_forward.3} parent=11 // pred_region
          _
        $region84: #{swin_t_f_forward.3} parent=11 // pred_fallthru
          _
        // Predicated region
        $region85: #{swin_t_f_forward.3} parent=11 // pred_check
          %p846 = pneg %p499
        $region86: #{swin_t_f_forward.3} parent=11 // pred_check_branch
          %848 = sbr.rel (%p846) target = $region88
        $region87: #{swin_t_f_forward.3} parent=11 // pred_region
          _
        $region88: #{swin_t_f_forward.3} parent=11 // pred_fallthru
          _
        // Predicated region
        $region89: #{swin_t_f_forward.3} parent=11 // pred_check
          %p849 = pneg %p520
        $region90: #{swin_t_f_forward.3} parent=11 // pred_check_branch
          %851 = sbr.rel (%p849) target = $region92
        $region91: #{swin_t_f_forward.3} parent=11 // pred_region
          _
        $region92: #{swin_t_f_forward.3} parent=11 // pred_fallthru
          _
        // Predicated region
        $region93: #{swin_t_f_forward.3} parent=11 // pred_check
          %p852 = pneg %p541
        $region94: #{swin_t_f_forward.3} parent=11 // pred_check_branch
          %854 = sbr.rel (%p852) target = $region96
        $region95: #{swin_t_f_forward.3} parent=11 // pred_region
          _
        $region96: #{swin_t_f_forward.3} parent=11 // pred_fallthru
          _
        // Predicated region
        $region97: #{swin_t_f_forward.3} parent=11 // pred_check
          %p855 = pneg %p562
        $region98: #{swin_t_f_forward.3} parent=11 // pred_check_branch
          %857 = sbr.rel (%p855) target = $region100
        $region99: #{swin_t_f_forward.3} parent=11 // pred_region
          _
        $region100: #{swin_t_f_forward.3} parent=11 // pred_fallthru
          _
        // Predicated region
        $region101: #{swin_t_f_forward.3} parent=11 // pred_check
          %p858 = pneg %p583
        $region102: #{swin_t_f_forward.3} parent=11 // pred_check_branch
          %860 = sbr.rel (%p858) target = $region104
        $region103: #{swin_t_f_forward.3} parent=11 // pred_region
          _
        $region104: #{swin_t_f_forward.3} parent=11 // pred_fallthru
          _
        // Predicated region
        $region105: #{swin_t_f_forward.3} parent=11 // pred_check
          %p861 = pneg %p604
        $region106: #{swin_t_f_forward.3} parent=11 // pred_check_branch
          %863 = sbr.rel (%p861) target = $region108
        $region107: #{swin_t_f_forward.3} parent=11 // pred_region
          _
        $region108: #{swin_t_f_forward.3} parent=11 // pred_fallthru
          _
        // Predicated region
        $region109: #{swin_t_f_forward.3} parent=11 // pred_check
          %p864 = pneg %p625
        $region110: #{swin_t_f_forward.3} parent=11 // pred_check_branch
          %866 = sbr.rel (%p864) target = $region112
        $region111: #{swin_t_f_forward.3} parent=11 // pred_region
          _
        $region112: #{swin_t_f_forward.3} parent=11 // pred_fallthru
          _
        // Predicated region
        $region113: #{swin_t_f_forward.3} parent=11 // pred_check
          %p867 = pneg %p646
        $region114: #{swin_t_f_forward.3} parent=11 // pred_check_branch
          %869 = sbr.rel (%p867) target = $region116
        $region115: #{swin_t_f_forward.3} parent=11 // pred_region
          _
        $region116: #{swin_t_f_forward.3} parent=11 // pred_fallthru
          _
        // Predicated region
        $region117: #{swin_t_f_forward.3} parent=11 // pred_check
          %p870 = pneg %p667
        $region118: #{swin_t_f_forward.3} parent=11 // pred_check_branch
          %872 = sbr.rel (%p870) target = $region120
        $region119: #{swin_t_f_forward.3} parent=11 // pred_region
          _
        $region120: #{swin_t_f_forward.3} parent=11 // pred_fallthru
          _
        // Predicated region
        $region121: #{swin_t_f_forward.3} parent=11 // pred_check
          %p873 = pneg %p688
        $region122: #{swin_t_f_forward.3} parent=11 // pred_check_branch
          %875 = sbr.rel (%p873) target = $region124
        $region123: #{swin_t_f_forward.3} parent=11 // pred_region
          _
        $region124: #{swin_t_f_forward.3} parent=11 // pred_fallthru
          _
        // Predicated region
        $region125: #{swin_t_f_forward.3} parent=11 // pred_check
          %p876 = pneg %p709
        $region126: #{swin_t_f_forward.3} parent=11 // pred_check_branch
          %878 = sbr.rel (%p876) target = $region128
        $region127: #{swin_t_f_forward.3} parent=11 // pred_region
          _
        $region128: #{swin_t_f_forward.3} parent=11 // pred_fallthru
          _
        // Predicated region
        $region129: #{swin_t_f_forward.3} parent=11 // pred_check
          %p879 = pneg %p730
        $region130: #{swin_t_f_forward.3} parent=11 // pred_check_branch
          %881 = sbr.rel (%p879) target = $region132
        $region131: #{swin_t_f_forward.3} parent=11 // pred_region
          _
        $region132: #{swin_t_f_forward.3} parent=11 // pred_fallthru
          _
        // Predicated region
        $region133: #{swin_t_f_forward.3} parent=11 // pred_check
          %p882 = pneg %p751
        $region134: #{swin_t_f_forward.3} parent=11 // pred_check_branch
          %884 = sbr.rel (%p882) target = $region136
        $region135: #{swin_t_f_forward.3} parent=11 // pred_region
          _
        $region136: #{swin_t_f_forward.3} parent=11 // pred_fallthru
          _
      $region12: #{swin_t_f_forward.3} parent=5 // pred_fallthru
        _
      %p885 = scmp.lt.s32.totalorder %s74, 2
      // Predicated region
      $region137: #{swin_t_f_forward.3} parent=5 // pred_check
        %p886 = pneg %p885
      $region138: #{swin_t_f_forward.3} parent=5 // pred_check_branch
        %888 = sbr.rel (%p886) target = $region140
      $region139: #{swin_t_f_forward.3} parent=5 // pred_region
        // Predicated region
        $region141: #{swin_t_f_forward.3} parent=139 // pred_check
          %p889 = pneg %p94
        $region142: #{swin_t_f_forward.3} parent=139 // pred_check_branch
          %891 = sbr.rel (%p889) target = $region144
        $region143: #{swin_t_f_forward.3} parent=139 // pred_region
          %p892 = scmp.lt.s32.totalorder %s74, 1
          %s893 = scalar_select %p892, %s74, 1
          %s894 = smul.addr %s893, 2
          %s895 = smul.addr %s894, 8
          %s896 = scalar_lea.vmem %s1, %s895
        $region144: #{swin_t_f_forward.3} parent=139 // pred_fallthru
          _
      $region140: #{swin_t_f_forward.3} parent=5 // pred_fallthru
        _
      %p897 = scmp.le.s32.totalorder 1, %s74
      %p898 = scmp.lt.s32.totalorder %s74, 3
      %p899 = pnand %p897, %p898
      %p900 = pneg %p899
      // Predicated region
      $region145: #{swin_t_f_forward.3} parent=5 // pred_check
        _
      $region146: #{swin_t_f_forward.3} parent=5 // pred_check_branch
        %902 = sbr.rel (%p899) target = $region148
      $region147: #{swin_t_f_forward.3} parent=5 // pred_region
        %s903 = ssub.s32 %s74, 1
        %p904 = scmp.lt.s32.totalorder %s79, 1
        %s905 = scalar_select %p904, %s79, 1
        %s906 = smul.addr %s905, 2
        %s907 = smul.addr %s906, 8
        %s908 = scalar_lea.vmem %s1, %s907
        %p909 = pneg %p100
        %p910 = pneg %p97
        %p911 = pneg %p121
        %p912 = pneg %p118
        %p913 = pneg %p142
        %p914 = pneg %p139
        %p915 = pneg %p163
        %p916 = pneg %p160
        %p917 = pneg %p184
        %p918 = pneg %p181
        %p919 = pneg %p205
        %p920 = pneg %p202
        %p921 = pneg %p226
        %p922 = pneg %p223
        %p923 = pneg %p247
        %p924 = pneg %p244
        %p925 = pneg %p268
        %p926 = pneg %p265
        %p927 = pneg %p289
        %p928 = pneg %p286
        %p929 = pneg %p310
        %p930 = pneg %p307
        %p931 = pneg %p331
        %p932 = pneg %p328
        %p933 = pneg %p352
        %p934 = pneg %p349
        %p935 = pneg %p373
        %p936 = pneg %p370
        %p937 = pneg %p394
        %p938 = pneg %p391
        %p939 = pneg %p415
        %p940 = pneg %p412
        %p941 = pneg %p436
        %p942 = pneg %p433
        %p943 = pneg %p457
        %p944 = pneg %p454
        %p945 = pneg %p478
        %p946 = pneg %p475
        %p947 = pneg %p499
        %p948 = pneg %p496
        %p949 = pneg %p520
        %p950 = pneg %p517
        %p951 = pneg %p541
        %p952 = pneg %p538
        %p953 = pneg %p562
        %p954 = pneg %p559
        %p955 = pneg %p583
        %p956 = pneg %p580
        %p957 = pneg %p604
        %p958 = pneg %p601
        %p959 = pneg %p625
        %p960 = pneg %p622
        %p961 = pneg %p646
        %p962 = pneg %p643
        %p963 = pneg %p667
        %p964 = pneg %p664
        %p965 = pneg %p688
        %p966 = pneg %p685
        %p967 = pneg %p709
        %p968 = pneg %p706
        %p969 = pneg %p730
        %p970 = pneg %p727
        %p971 = pneg %p751
        %p972 = pneg %p748
        %p973 = pneg %p777
        %p974 = pneg %p774
        %s975 = sand.u32 %s764, 1
        %s976 = scalar_lea.sflag [#allocation3], %s975
        %s977 = sand.u32 %s764, 1
        %s978 = scalar_lea.vmem [#allocation2], %s977
        %p979 = scmp.lt.s32.totalorder %s79, 1
        %s980 = scalar_select %p979, %s79, 1
        %s981 = smul.addr %s980, 2
        %s982 = smul.addr %s981, 8
        %s983 = scalar_lea.vmem %s1, %s982
        %v985 = vld [vmem:[%s983] sm:$0xff]
        %v986 = vld [vmem:[%s983 + $0x8] sm:$0xff]
        %v987 = vld [vmem:[%s3] sm:$0x1]
        %v988 = vld [vmem:[%s5] sm:$0x1]
        %989 = vadd.xlane.f32.xlu0 %v985
        %v990 = vpop.xlane.xlu0 %989
        %991 = vadd.xlane.f32.xlu0 %v986
        %v992 = vpop.xlane.xlu0 %991
        %v993 = vrcp.pop 128.0
        %v994 = vmul.f32 128.0, %v993
        %v995 = vsub.f32 1.0, %v994
        %v996 = vmul.f32 %v993, %v995
        %v997 = vadd.f32 %v993, %v996
        %vm998 = vweird.f32 %v993
        %v999 = vsel %vm998, %v993, %v997
        %v1000 = vmul.f32 %v990, %v999
        %v1001 = vmul.f32 %v992, %v999
        %v1002 = vsub.f32 %v985, %v1000
        %v1003 = vsub.f32 %v986, %v1001
        %v1004 = vmul.f32 %v1002, %v1002
        %v1005 = vmul.f32 %v1003, %v1003
        %1006 = vadd.xlane.f32.xlu0 %v1004
        %v1007 = vpop.xlane.xlu0 %1006
        %1008 = vadd.xlane.f32.xlu0 %v1005
        %v1009 = vpop.xlane.xlu0 %1008
        %v1010 = vmul.f32 %v1007, %v999
        %v1011 = vmul.f32 %v1009, %v999
        %v1012 = vadd.f32 %v1010, 1e-05
        %v1013 = vadd.f32 %v1011, 1e-05
        %v1014 = vrsqrt.pop %v1012
        %v1015 = vmul.f32 %v1014, %v1012
        %v1016 = vmul.f32 %v1015, %v1014
        %v1017 = vmul.f32 0.5, %v1016
        %v1018 = vsub.f32 1.5, %v1017
        %v1019 = vmul.f32 %v1014, %v1018
        %vm1020 = vweird.f32 %v1012
        %vm1021 = vweird.f32 %v1014
        %vm1022 = vmor %vm1020, %vm1021
        %v1023 = vsel %vm1022, %v1014, %v1019
        %v1024 = vrsqrt.pop %v1013
        %v1025 = vmul.f32 %v1024, %v1013
        %v1026 = vmul.f32 %v1025, %v1024
        %v1027 = vmul.f32 0.5, %v1026
        %v1028 = vsub.f32 1.5, %v1027
        %v1029 = vmul.f32 %v1024, %v1028
        %vm1030 = vweird.f32 %v1013
        %vm1031 = vweird.f32 %v1024
        %vm1032 = vmor %vm1030, %vm1031
        %v1033 = vsel %vm1032, %v1024, %v1029
        %v1034 = vmul.f32 %v1002, %v1023
        %v1035 = vmul.f32 %v1003, %v1033
        %v1037 = vperm.slane %v987, 0
        %v1039 = vmul.f32 %v1034, %v1037
        %v1040 = vmul.f32 %v1035, %v1037
        %v1042 = vperm.slane %v988, 0
        %v1044 = vadd.f32 %v1039, %v1042
        %v1045 = vadd.f32 %v1040, %v1042
        %v1046 = vld [vmem:[%s7] sm:$0xf]
        %v1047 = vld [vmem:[%s7 + $0x4] sm:$0xf]
        %v1048 = vld [vmem:[%s7 + $0x8] sm:$0xf]
        %v1049 = vld [vmem:[%s7 + $0xc] sm:$0xf]
        %v1050 = vld [vmem:[%s7 + $0x10] sm:$0xf]
        %v1051 = vld [vmem:[%s7 + $0x14] sm:$0xf]
        %v1052 = vld [vmem:[%s7 + $0x18] sm:$0xf]
        %v1053 = vld [vmem:[%s7 + $0x1c] sm:$0xf]
        %v1054 = vld [vmem:[%s7 + $0x20] sm:$0xf]
        %v1055 = vld [vmem:[%s7 + $0x24] sm:$0xf]
        %v1056 = vld [vmem:[%s7 + $0x28] sm:$0xf]
        %v1057 = vld [vmem:[%s7 + $0x2c] sm:$0xf]
        %v1058 = vld [vmem:[%s7 + $0x30] sm:$0xf]
        %v1059 = vld [vmem:[%s7 + $0x34] sm:$0xf]
        %v1060 = vld [vmem:[%s7 + $0x38] sm:$0xf]
        %v1061 = vld [vmem:[%s7 + $0x3c] sm:$0xf]
        %v1062 = vpack.c.bf16 %v1045, %v1044
        %v1079 = vunpack.c.l.b16 %v1046
        %v1080 = vunpack.c.l.b16 %v1047
        %v1081 = vunpack.c.l.b16 %v1048
        %v1082 = vunpack.c.l.b16 %v1049
        %v1083 = vunpack.c.l.b16 %v1050
        %v1084 = vunpack.c.l.b16 %v1051
        %v1085 = vunpack.c.l.b16 %v1052
        %v1086 = vunpack.c.l.b16 %v1053
        %v1087 = vunpack.c.l.b16 %v1054
        %v1088 = vunpack.c.l.b16 %v1055
        %v1089 = vunpack.c.l.b16 %v1056
        %v1090 = vunpack.c.l.b16 %v1057
        %v1091 = vunpack.c.l.b16 %v1058
        %v1092 = vunpack.c.l.b16 %v1059
        %v1093 = vunpack.c.l.b16 %v1060
        %v1094 = vunpack.c.l.b16 %v1061
        %v1095 = vpack.c.b16 %v1080, %v1079
        %v1096 = vpack.c.b16 %v1082, %v1081
        %v1097 = vpack.c.b16 %v1084, %v1083
        %v1098 = vpack.c.b16 %v1086, %v1085
        %v1099 = vpack.c.b16 %v1088, %v1087
        %v1100 = vpack.c.b16 %v1090, %v1089
        %v1101 = vpack.c.b16 %v1092, %v1091
        %v1102 = vpack.c.b16 %v1094, %v1093
        %1111 = vmatpush.bf16.msra.mxu0 %v1102
        %1112 = vmatpush.bf16.msra.mxu0 %v1101
        %1113 = vmatpush.bf16.msra.mxu0 %v1100
        %1114 = vmatpush.bf16.msra.mxu0 %v1099
        %1115 = vmatpush.bf16.msra.mxu0 %v1098
        %1116 = vmatpush.bf16.msra.mxu0 %v1097
        %1117 = vmatpush.bf16.msra.mxu0 %v1096
        %1118 = vmatpush.bf16.msra.mxu0 %v1095
        %1119 = vmatmul.bf16.gmra.mxu0 %v1062
        %v1120 = vpop.f32.mrf.mxu0
        %v1121 = vadd.f32 0.0, %v1120
        %v1122 = vpop.f32.mrf.mxu0
        %v1123 = vadd.f32 0.0, %v1122
        %1124 = vdwg.mxu0
        %v1125 = vld [vmem:[%s9] sm:$0x1]
        %v1126 = vld [vmem:[%s11] sm:$0x1]
        %vm1127 = vcmask 523264
        %v1128 = vsel %vm1127, %v1121, 0.0
        %1129 = vadd.xlane.f32.xlu0 %v1128
        %v1130 = vpop.xlane.xlu0 %1129
        %v1131 = vsel %vm1127, %v1123, 0.0
        %1132 = vadd.xlane.f32.xlu0 %v1131
        %v1133 = vpop.xlane.xlu0 %1132
        %v1134 = vrcp.pop 64.0
        %v1135 = vmul.f32 64.0, %v1134
        %v1136 = vsub.f32 1.0, %v1135
        %v1137 = vmul.f32 %v1134, %v1136
        %v1138 = vadd.f32 %v1134, %v1137
        %vm1139 = vweird.f32 %v1134
        %v1140 = vsel %vm1139, %v1134, %v1138
        %v1141 = vmul.f32 %v1130, %v1140
        %v1142 = vmul.f32 %v1133, %v1140
        %v1143 = vsub.f32 %v1121, %v1141
        %v1144 = vsub.f32 %v1123, %v1142
        %v1145 = vmul.f32 %v1143, %v1143
        %v1146 = vmul.f32 %v1144, %v1144
        %v1147 = vsel %vm1127, %v1145, 0.0
        %1148 = vadd.xlane.f32.xlu0 %v1147
        %v1149 = vpop.xlane.xlu0 %1148
        %v1150 = vsel %vm1127, %v1146, 0.0
        %1151 = vadd.xlane.f32.xlu0 %v1150
        %v1152 = vpop.xlane.xlu0 %1151
        %v1153 = vmul.f32 %v1149, %v1140
        %v1154 = vmul.f32 %v1152, %v1140
        %v1155 = vadd.f32 %v1153, 1e-05
        %v1156 = vadd.f32 %v1154, 1e-05
        %v1157 = vrsqrt.pop %v1155
        %v1158 = vmul.f32 %v1157, %v1155
        %v1159 = vmul.f32 %v1158, %v1157
        %v1160 = vmul.f32 0.5, %v1159
        %v1161 = vsub.f32 1.5, %v1160
        %v1162 = vmul.f32 %v1157, %v1161
        %vm1163 = vweird.f32 %v1155
        %vm1164 = vweird.f32 %v1157
        %vm1165 = vmor %vm1163, %vm1164
        %v1166 = vsel %vm1165, %v1157, %v1162
        %v1167 = vrsqrt.pop %v1156
        %v1168 = vmul.f32 %v1167, %v1156
        %v1169 = vmul.f32 %v1168, %v1167
        %v1170 = vmul.f32 0.5, %v1169
        %v1171 = vsub.f32 1.5, %v1170
        %v1172 = vmul.f32 %v1167, %v1171
        %vm1173 = vweird.f32 %v1156
        %vm1174 = vweird.f32 %v1167
        %vm1175 = vmor %vm1173, %vm1174
        %v1176 = vsel %vm1175, %v1167, %v1172
        %v1177 = vmul.f32 %v1143, %v1166
        %v1178 = vmul.f32 %v1144, %v1176
        %v1180 = vperm.slane %v1125, 0
        %v1182 = vmul.f32 %v1177, %v1180
        %v1183 = vmul.f32 %v1178, %v1180
        %v1185 = vperm.slane %v1126, 0
        %v1187 = vadd.f32 %v1182, %v1185
        %v1188 = vadd.f32 %v1183, %v1185
        %v1189 = vld [vmem:[%s13] sm:$0xff]
        %v1190 = vld [vmem:[%s13 + $0x8] sm:$0xff]
        %v1191 = vld [vmem:[%s13 + $0x10] sm:$0xff]
        %v1192 = vld [vmem:[%s13 + $0x18] sm:$0xff]
        %v1193 = vld [vmem:[%s13 + $0x20] sm:$0xff]
        %v1194 = vld [vmem:[%s13 + $0x28] sm:$0xff]
        %v1195 = vld [vmem:[%s13 + $0x30] sm:$0xff]
        %v1196 = vld [vmem:[%s13 + $0x38] sm:$0xff]
        %v1197 = vpack.c.bf16 %v1188, %v1187
        %v1198 = vld [vmem:[%s15] sm:$0x3]
        %v1200 = vperm.slane %v1198, 0
        %v1201 = vperm.slane %v1198, 1
        %v1212 = vunpack.c.l.b16 %v1189
        %v1213 = vunpack.c.h.b16 %v1189
        %v1214 = vunpack.c.l.b16 %v1190
        %v1215 = vunpack.c.h.b16 %v1190
        %v1216 = vunpack.c.l.b16 %v1191
        %v1217 = vunpack.c.h.b16 %v1191
        %v1218 = vunpack.c.l.b16 %v1192
        %v1219 = vunpack.c.h.b16 %v1192
        %v1220 = vunpack.c.l.b16 %v1193
        %v1221 = vunpack.c.h.b16 %v1193
        %v1222 = vunpack.c.l.b16 %v1194
        %v1223 = vunpack.c.h.b16 %v1194
        %v1224 = vunpack.c.l.b16 %v1195
        %v1225 = vunpack.c.h.b16 %v1195
        %v1226 = vunpack.c.l.b16 %v1196
        %v1227 = vunpack.c.h.b16 %v1196
        %v1228 = vpack.c.b16 %v1214, %v1212
        %v1229 = vpack.c.b16 %v1215, %v1213
        %v1230 = vpack.c.b16 %v1218, %v1216
        %v1231 = vpack.c.b16 %v1219, %v1217
        %v1232 = vpack.c.b16 %v1222, %v1220
        %v1233 = vpack.c.b16 %v1223, %v1221
        %v1234 = vpack.c.b16 %v1226, %v1224
        %v1235 = vpack.c.b16 %v1227, %v1225
        %v1245 = vsel %vm1127, %v1197, 0
        %1247 = vmatpush.bf16.msra.mxu0 0
        %1248 = vmatpush.bf16.msra.mxu0 0
        %1249 = vmatpush.bf16.msra.mxu0 0
        %1250 = vmatpush.bf16.msra.mxu0 0
        %1251 = vmatpush.bf16.msra.mxu0 %v1234
        %1252 = vmatpush.bf16.msra.mxu0 %v1232
        %1253 = vmatpush.bf16.msra.mxu0 %v1230
        %1254 = vmatpush.bf16.msra.mxu0 %v1228
        %1255 = vmatmul.bf16.gmra.mxu0 %v1245
        %v1256 = vpop.f32.mrf.mxu0
        %v1257 = vadd.f32 %v1200, %v1256
        %v1258 = vpop.f32.mrf.mxu0
        %v1259 = vadd.f32 %v1200, %v1258
        %1260 = vdwg.mxu0
        %1261 = vmatpush.bf16.msra.mxu0 0
        %1262 = vmatpush.bf16.msra.mxu0 0
        %1263 = vmatpush.bf16.msra.mxu0 0
        %1264 = vmatpush.bf16.msra.mxu0 0
        %1265 = vmatpush.bf16.msra.mxu0 %v1235
        %1266 = vmatpush.bf16.msra.mxu0 %v1233
        %1267 = vmatpush.bf16.msra.mxu0 %v1231
        %1268 = vmatpush.bf16.msra.mxu0 %v1229
        %1269 = vmatmul.bf16.gmra.mxu0 %v1245
        %v1270 = vpop.f32.mrf.mxu0
        %v1271 = vadd.f32 %v1201, %v1270
        %v1272 = vpop.f32.mrf.mxu0
        %v1273 = vadd.f32 %v1201, %v1272
        %1274 = vdwg.mxu0
        %v1275 = vmul.f32 %v1257, 0.25
        %v1276 = vmul.f32 %v1259, 0.25
        %v1277 = vpack.c.bf16 %v1276, %v1275
        %v1278 = vpack.c.bf16 %v1259, %v1257
        %v1279 = vpack.c.bf16 %v1273, %v1271
        %v1280 = vld [vmem:[%s17] sm:$0xff]
        %v1281 = vld [vmem:[%s17 + $0x8] sm:$0xff]
        %1283 = vrot.lane.b32.xlu0 %v1278, 64
        %v1284 = vpop.permute.xlu0 %1283
        %vm1285 = vcmask 130048
        %v1287 = vsel %vm1285, %v1277, 0
        %v1290 = vsel %vm1285, %v1284, 0
        %1292 = vmatpush.bf16.xpose.msra.mxu0 0
        %1293 = vmatpush.bf16.xpose.msra.mxu0 0
        %1294 = vmatpush.bf16.xpose.msra.mxu0 0
        %1295 = vmatpush.bf16.xpose.msra.mxu0 0
        %1296 = vmatpush.bf16.xpose.msra.mxu0 0
        %1297 = vmatpush.bf16.xpose.msra.mxu0 0
        %1298 = vmatpush.bf16.xpose.msra.mxu0 0
        %1299 = vmatpush.bf16.xpose.msra.mxu0 %v1290
        %1300 = vmatmul.bf16.gmra.mxu0 %v1287
        %v1301 = vpop.f32.mrf.mxu0
        %v1302 = vadd.f32 %v1280, %v1301
        %v1303 = vpop.f32.mrf.mxu0
        %v1304 = vadd.f32 %v1281, %v1303
        %1305 = vdwg.mxu0
        %v1306 = vsel %vm1285, %v1302, -inf
        %1307 = vmax.xlane.f32.xlu0 %v1306
        %v1308 = vpop.xlane.xlu0 %1307
        %v1309 = vsel %vm1285, %v1304, -inf
        %1310 = vmax.xlane.f32.xlu0 %v1309
        %v1311 = vpop.xlane.xlu0 %1310
        %v1312 = vsub.f32 %v1302, %v1308
        %v1313 = vsub.f32 %v1304, %v1311
        %v1314 = vmul.f32 %v1312, 1.442695
        %v1315 = vpow.pop %v1314
        %v1316 = vmul.f32 %v1313, 1.442695
        %v1317 = vpow.pop %v1316
        %v1318 = vsel %vm1285, %v1315, 0.0
        %1319 = vadd.xlane.f32.xlu0 %v1318
        %v1320 = vpop.xlane.xlu0 %1319
        %v1321 = vsel %vm1285, %v1317, 0.0
        %1322 = vadd.xlane.f32.xlu0 %v1321
        %v1323 = vpop.xlane.xlu0 %1322
        %v1324 = vrcp.pop %v1320
        %v1325 = vrcp.pop %v1323
        %v1326 = vmul.f32 %v1315, %v1324
        %v1327 = vmul.f32 %v1317, %v1325
        %v1328 = vpack.c.bf16 %v1327, %v1326
        %v1330 = vsel %vm1285, %v1328, 0
        %1332 = vmatpush.bf16.msra.mxu0 0
        %1333 = vmatpush.bf16.msra.mxu0 0
        %1334 = vmatpush.bf16.msra.mxu0 0
        %1335 = vmatpush.bf16.msra.mxu0 0
        %1336 = vmatpush.bf16.msra.mxu0 0
        %1337 = vmatpush.bf16.msra.mxu0 0
        %1338 = vmatpush.bf16.msra.mxu0 0
        %1339 = vmatpush.bf16.msra.mxu0 %v1279
        %1340 = vmatmul.bf16.gmra.mxu0 %v1330
        %v1341 = vpop.f32.mrf.mxu0
        %v1342 = vadd.f32 0.0, %v1341
        %v1343 = vpop.f32.mrf.mxu0
        %v1344 = vadd.f32 0.0, %v1343
        %1345 = vdwg.mxu0
        %s1346 = scalar_lea.vmem %s17, 16
        %v1347 = vld [vmem:[%s1346] sm:$0xff]
        %v1348 = vld [vmem:[%s1346 + $0x8] sm:$0xff]
        %1350 = vrot.lane.b32.xlu0 %v1277, 112
        %v1351 = vpop.permute.xlu0 %1350
        %1352 = vrot.lane.b32.xlu0 %v1278, 48
        %v1353 = vpop.permute.xlu0 %1352
        %v1355 = vsel %vm1285, %v1351, 0
        %v1358 = vsel %vm1285, %v1353, 0
        %1360 = vmatpush.bf16.xpose.msra.mxu0 0
        %1361 = vmatpush.bf16.xpose.msra.mxu0 0
        %1362 = vmatpush.bf16.xpose.msra.mxu0 0
        %1363 = vmatpush.bf16.xpose.msra.mxu0 0
        %1364 = vmatpush.bf16.xpose.msra.mxu0 0
        %1365 = vmatpush.bf16.xpose.msra.mxu0 0
        %1366 = vmatpush.bf16.xpose.msra.mxu0 0
        %1367 = vmatpush.bf16.xpose.msra.mxu0 %v1358
        %1368 = vmatmul.bf16.gmra.mxu0 %v1355
        %v1369 = vpop.f32.mrf.mxu0
        %v1370 = vadd.f32 %v1347, %v1369
        %v1371 = vpop.f32.mrf.mxu0
        %v1372 = vadd.f32 %v1348, %v1371
        %1373 = vdwg.mxu0
        %v1374 = vsel %vm1285, %v1370, -inf
        %1375 = vmax.xlane.f32.xlu0 %v1374
        %v1376 = vpop.xlane.xlu0 %1375
        %v1377 = vsel %vm1285, %v1372, -inf
        %1378 = vmax.xlane.f32.xlu0 %v1377
        %v1379 = vpop.xlane.xlu0 %1378
        %v1380 = vsub.f32 %v1370, %v1376
        %v1381 = vsub.f32 %v1372, %v1379
        %v1382 = vmul.f32 %v1380, 1.442695
        %v1383 = vpow.pop %v1382
        %v1384 = vmul.f32 %v1381, 1.442695
        %v1385 = vpow.pop %v1384
        %v1386 = vsel %vm1285, %v1383, 0.0
        %1387 = vadd.xlane.f32.xlu0 %v1386
        %v1388 = vpop.xlane.xlu0 %1387
        %v1389 = vsel %vm1285, %v1385, 0.0
        %1390 = vadd.xlane.f32.xlu0 %v1389
        %v1391 = vpop.xlane.xlu0 %1390
        %v1392 = vrcp.pop %v1388
        %v1393 = vrcp.pop %v1391
        %v1394 = vmul.f32 %v1383, %v1392
        %v1395 = vmul.f32 %v1385, %v1393
        %v1396 = vpack.c.bf16 %v1395, %v1394
        %1398 = vrot.lane.b32.xlu0 %v1279, 112
        %v1399 = vpop.permute.xlu0 %1398
        %v1402 = vsel %vm1285, %v1396, 0
        %1404 = vmatpush.bf16.msra.mxu0 0
        %1405 = vmatpush.bf16.msra.mxu0 0
        %1406 = vmatpush.bf16.msra.mxu0 0
        %1407 = vmatpush.bf16.msra.mxu0 0
        %1408 = vmatpush.bf16.msra.mxu0 0
        %1409 = vmatpush.bf16.msra.mxu0 0
        %1410 = vmatpush.bf16.msra.mxu0 0
        %1411 = vmatpush.bf16.msra.mxu0 %v1399
        %1412 = vmatmul.bf16.gmra.mxu0 %v1402
        %v1413 = vpop.f32.mrf.mxu0
        %v1414 = vadd.f32 0.0, %v1413
        %v1415 = vpop.f32.mrf.mxu0
        %v1416 = vadd.f32 0.0, %v1415
        %1417 = vdwg.mxu0
        %s1418 = scalar_lea.vmem %s17, 32
        %v1419 = vld [vmem:[%s1418] sm:$0xff]
        %v1420 = vld [vmem:[%s1418 + $0x8] sm:$0xff]
        %1421 = vrot.lane.b32.xlu0 %v1277, 96
        %v1422 = vpop.permute.xlu0 %1421
        %1423 = vrot.lane.b32.xlu0 %v1278, 32
        %v1424 = vpop.permute.xlu0 %1423
        %v1426 = vsel %vm1285, %v1422, 0
        %v1429 = vsel %vm1285, %v1424, 0
        %1431 = vmatpush.bf16.xpose.msra.mxu0 0
        %1432 = vmatpush.bf16.xpose.msra.mxu0 0
        %1433 = vmatpush.bf16.xpose.msra.mxu0 0
        %1434 = vmatpush.bf16.xpose.msra.mxu0 0
        %1435 = vmatpush.bf16.xpose.msra.mxu0 0
        %1436 = vmatpush.bf16.xpose.msra.mxu0 0
        %1437 = vmatpush.bf16.xpose.msra.mxu0 0
        %1438 = vmatpush.bf16.xpose.msra.mxu0 %v1429
        %1439 = vmatmul.bf16.gmra.mxu0 %v1426
        %v1440 = vpop.f32.mrf.mxu0
        %v1441 = vadd.f32 %v1419, %v1440
        %v1442 = vpop.f32.mrf.mxu0
        %v1443 = vadd.f32 %v1420, %v1442
        %1444 = vdwg.mxu0
        %v1445 = vsel %vm1285, %v1441, -inf
        %1446 = vmax.xlane.f32.xlu0 %v1445
        %v1447 = vpop.xlane.xlu0 %1446
        %v1448 = vsel %vm1285, %v1443, -inf
        %1449 = vmax.xlane.f32.xlu0 %v1448
        %v1450 = vpop.xlane.xlu0 %1449
        %v1451 = vsub.f32 %v1441, %v1447
        %v1452 = vsub.f32 %v1443, %v1450
        %v1453 = vmul.f32 %v1451, 1.442695
        %v1454 = vpow.pop %v1453
        %v1455 = vmul.f32 %v1452, 1.442695
        %v1456 = vpow.pop %v1455
        %v1457 = vsel %vm1285, %v1454, 0.0
        %1458 = vadd.xlane.f32.xlu0 %v1457
        %v1459 = vpop.xlane.xlu0 %1458
        %v1460 = vsel %vm1285, %v1456, 0.0
        %1461 = vadd.xlane.f32.xlu0 %v1460
        %v1462 = vpop.xlane.xlu0 %1461
        %v1463 = vrcp.pop %v1459
        %v1464 = vrcp.pop %v1462
        %v1465 = vmul.f32 %v1454, %v1463
        %v1466 = vmul.f32 %v1456, %v1464
        %v1467 = vpack.c.bf16 %v1466, %v1465
        %1468 = vrot.lane.b32.xlu0 %v1279, 96
        %v1469 = vpop.permute.xlu0 %1468
        %v1472 = vsel %vm1285, %v1467, 0
        %1474 = vmatpush.bf16.msra.mxu0 0
        %1475 = vmatpush.bf16.msra.mxu0 0
        %1476 = vmatpush.bf16.msra.mxu0 0
        %1477 = vmatpush.bf16.msra.mxu0 0
        %1478 = vmatpush.bf16.msra.mxu0 0
        %1479 = vmatpush.bf16.msra.mxu0 0
        %1480 = vmatpush.bf16.msra.mxu0 0
        %1481 = vmatpush.bf16.msra.mxu0 %v1469
        %1482 = vmatmul.bf16.gmra.mxu0 %v1472
        %v1483 = vpop.f32.mrf.mxu0
        %v1484 = vadd.f32 0.0, %v1483
        %v1485 = vpop.f32.mrf.mxu0
        %v1486 = vadd.f32 0.0, %v1485
        %1487 = vdwg.mxu0
        %s1488 = scalar_lea.vmem %s17, 48
        %v1489 = vld [vmem:[%s1488] sm:$0xff]
        %v1490 = vld [vmem:[%s1488 + $0x8] sm:$0xff]
        %1491 = vrot.lane.b32.xlu0 %v1277, 80
        %v1492 = vpop.permute.xlu0 %1491
        %1493 = vrot.lane.b32.xlu0 %v1278, 16
        %v1494 = vpop.permute.xlu0 %1493
        %v1496 = vsel %vm1285, %v1492, 0
        %v1499 = vsel %vm1285, %v1494, 0
        %1501 = vmatpush.bf16.xpose.msra.mxu0 0
        %1502 = vmatpush.bf16.xpose.msra.mxu0 0
        %1503 = vmatpush.bf16.xpose.msra.mxu0 0
        %1504 = vmatpush.bf16.xpose.msra.mxu0 0
        %1505 = vmatpush.bf16.xpose.msra.mxu0 0
        %1506 = vmatpush.bf16.xpose.msra.mxu0 0
        %1507 = vmatpush.bf16.xpose.msra.mxu0 0
        %1508 = vmatpush.bf16.xpose.msra.mxu0 %v1499
        %1509 = vmatmul.bf16.gmra.mxu0 %v1496
        %v1510 = vpop.f32.mrf.mxu0
        %v1511 = vadd.f32 %v1489, %v1510
        %v1512 = vpop.f32.mrf.mxu0
        %v1513 = vadd.f32 %v1490, %v1512
        %1514 = vdwg.mxu0
        %v1515 = vsel %vm1285, %v1511, -inf
        %1516 = vmax.xlane.f32.xlu0 %v1515
        %v1517 = vpop.xlane.xlu0 %1516
        %v1518 = vsel %vm1285, %v1513, -inf
        %1519 = vmax.xlane.f32.xlu0 %v1518
        %v1520 = vpop.xlane.xlu0 %1519
        %v1521 = vsub.f32 %v1511, %v1517
        %v1522 = vsub.f32 %v1513, %v1520
        %v1523 = vmul.f32 %v1521, 1.442695
        %v1524 = vpow.pop %v1523
        %v1525 = vmul.f32 %v1522, 1.442695
        %v1526 = vpow.pop %v1525
        %v1527 = vsel %vm1285, %v1524, 0.0
        %1528 = vadd.xlane.f32.xlu0 %v1527
        %v1529 = vpop.xlane.xlu0 %1528
        %v1530 = vsel %vm1285, %v1526, 0.0
        %1531 = vadd.xlane.f32.xlu0 %v1530
        %v1532 = vpop.xlane.xlu0 %1531
        %v1533 = vrcp.pop %v1529
        %v1534 = vrcp.pop %v1532
        %v1535 = vmul.f32 %v1524, %v1533
        %v1536 = vmul.f32 %v1526, %v1534
        %v1537 = vpack.c.bf16 %v1536, %v1535
        %1538 = vrot.lane.b32.xlu0 %v1279, 80
        %v1539 = vpop.permute.xlu0 %1538
        %v1542 = vsel %vm1285, %v1537, 0
        %1544 = vmatpush.bf16.msra.mxu0 0
        %1545 = vmatpush.bf16.msra.mxu0 0
        %1546 = vmatpush.bf16.msra.mxu0 0
        %1547 = vmatpush.bf16.msra.mxu0 0
        %1548 = vmatpush.bf16.msra.mxu0 0
        %1549 = vmatpush.bf16.msra.mxu0 0
        %1550 = vmatpush.bf16.msra.mxu0 0
        %1551 = vmatpush.bf16.msra.mxu0 %v1539
        %1552 = vmatmul.bf16.gmra.mxu0 %v1542
        %v1553 = vpop.f32.mrf.mxu0
        %v1554 = vadd.f32 0.0, %v1553
        %v1555 = vpop.f32.mrf.mxu0
        %v1556 = vadd.f32 0.0, %v1555
        %1557 = vdwg.mxu0
        %1560 = vrot.lane.b32.xlu0 %v1414, 16
        %v1561 = vpop.permute.xlu0 %1560
        %1562 = vrot.lane.b32.xlu0 %v1416, 16
        %v1563 = vpop.permute.xlu0 %1562
        %1568 = vrot.lane.b32.xlu0 %v1484, 32
        %v1569 = vpop.permute.xlu0 %1568
        %1570 = vrot.lane.b32.xlu0 %v1486, 32
        %v1571 = vpop.permute.xlu0 %1570
        %1576 = vrot.lane.b32.xlu0 %v1554, 48
        %v1577 = vpop.permute.xlu0 %1576
        %1578 = vrot.lane.b32.xlu0 %v1556, 48
        %v1579 = vpop.permute.xlu0 %1578
        %v1582 = vsel %vm1285, %v1342, %v1561
        %v1583 = vsel %vm1285, %v1344, %v1563
        %vm1584 = vcmask 261120
        %v1585 = vsel %vm1584, %v1582, %v1569
        %v1586 = vsel %vm1584, %v1583, %v1571
        %vm1587 = vcmask 392192
        %v1588 = vsel %vm1587, %v1585, %v1577
        %v1589 = vsel %vm1587, %v1586, %v1579
        %v1590 = vld [vmem:[%s19] sm:$0xf]
        %v1591 = vld [vmem:[%s19 + $0x4] sm:$0xf]
        %v1592 = vld [vmem:[%s19 + $0x8] sm:$0xf]
        %v1593 = vld [vmem:[%s19 + $0xc] sm:$0xf]
        %v1594 = vld [vmem:[%s19 + $0x10] sm:$0xf]
        %v1595 = vld [vmem:[%s19 + $0x14] sm:$0xf]
        %v1596 = vld [vmem:[%s19 + $0x18] sm:$0xf]
        %v1597 = vld [vmem:[%s19 + $0x1c] sm:$0xf]
        %v1598 = vpack.c.bf16 %v1589, %v1588
        %v1607 = vunpack.c.l.b16 %v1590
        %v1608 = vunpack.c.l.b16 %v1591
        %v1609 = vunpack.c.l.b16 %v1592
        %v1610 = vunpack.c.l.b16 %v1593
        %v1611 = vunpack.c.l.b16 %v1594
        %v1612 = vunpack.c.l.b16 %v1595
        %v1613 = vunpack.c.l.b16 %v1596
        %v1614 = vunpack.c.l.b16 %v1597
        %v1615 = vpack.c.b16 %v1608, %v1607
        %v1616 = vpack.c.b16 %v1610, %v1609
        %v1617 = vpack.c.b16 %v1612, %v1611
        %v1618 = vpack.c.b16 %v1614, %v1613
        %v1624 = vsel %vm1127, %v1598, 0
        %1626 = vmatpush.bf16.msra.mxu0 0
        %1627 = vmatpush.bf16.msra.mxu0 0
        %1628 = vmatpush.bf16.msra.mxu0 0
        %1629 = vmatpush.bf16.msra.mxu0 0
        %1630 = vmatpush.bf16.msra.mxu0 %v1618
        %1631 = vmatpush.bf16.msra.mxu0 %v1617
        %1632 = vmatpush.bf16.msra.mxu0 %v1616
        %1633 = vmatpush.bf16.msra.mxu0 %v1615
        %1634 = vmatmul.bf16.gmra.mxu0 %v1624
        %v1635 = vpop.f32.mrf.mxu0
        %v1636 = vadd.f32 0.0, %v1635
        %v1637 = vpop.f32.mrf.mxu0
        %v1638 = vadd.f32 0.0, %v1637
        %1639 = vdwg.mxu0
        %v1640 = vadd.f32 %v1121, %v1636
        %v1641 = vadd.f32 %v1123, %v1638
        %v1642 = vld [vmem:[%s21] sm:$0x1]
        %v1644 = vperm.slane %v1642, 0
        %v1646 = vadd.f32 %v1640, %v1644
        %v1647 = vadd.f32 %v1641, %v1644
        %v1648 = vld [vmem:[%s23] sm:$0x1]
        %v1649 = vld [vmem:[%s25] sm:$0x1]
        %v1650 = vsel %vm1127, %v1646, 0.0
        %1651 = vadd.xlane.f32.xlu0 %v1650
        %v1652 = vpop.xlane.xlu0 %1651
        %v1653 = vsel %vm1127, %v1647, 0.0
        %1654 = vadd.xlane.f32.xlu0 %v1653
        %v1655 = vpop.xlane.xlu0 %1654
        %v1656 = vmul.f32 %v1652, %v1140
        %v1657 = vmul.f32 %v1655, %v1140
        %v1658 = vsub.f32 %v1646, %v1656
        %v1659 = vsub.f32 %v1647, %v1657
        %v1660 = vmul.f32 %v1658, %v1658
        %v1661 = vmul.f32 %v1659, %v1659
        %v1662 = vsel %vm1127, %v1660, 0.0
        %1663 = vadd.xlane.f32.xlu0 %v1662
        %v1664 = vpop.xlane.xlu0 %1663
        %v1665 = vsel %vm1127, %v1661, 0.0
        %1666 = vadd.xlane.f32.xlu0 %v1665
        %v1667 = vpop.xlane.xlu0 %1666
        %v1668 = vmul.f32 %v1664, %v1140
        %v1669 = vmul.f32 %v1667, %v1140
        %v1670 = vadd.f32 %v1668, 1e-05
        %v1671 = vadd.f32 %v1669, 1e-05
        %v1672 = vrsqrt.pop %v1670
        %v1673 = vmul.f32 %v1672, %v1670
        %v1674 = vmul.f32 %v1673, %v1672
        %v1675 = vmul.f32 0.5, %v1674
        %v1676 = vsub.f32 1.5, %v1675
        %v1677 = vmul.f32 %v1672, %v1676
        %vm1678 = vweird.f32 %v1670
        %vm1679 = vweird.f32 %v1672
        %vm1680 = vmor %vm1678, %vm1679
        %v1681 = vsel %vm1680, %v1672, %v1677
        %v1682 = vrsqrt.pop %v1671
        %v1683 = vmul.f32 %v1682, %v1671
        %v1684 = vmul.f32 %v1683, %v1682
        %v1685 = vmul.f32 0.5, %v1684
        %v1686 = vsub.f32 1.5, %v1685
        %v1687 = vmul.f32 %v1682, %v1686
        %vm1688 = vweird.f32 %v1671
        %vm1689 = vweird.f32 %v1682
        %vm1690 = vmor %vm1688, %vm1689
        %v1691 = vsel %vm1690, %v1682, %v1687
        %v1692 = vmul.f32 %v1658, %v1681
        %v1693 = vmul.f32 %v1659, %v1691
        %v1695 = vperm.slane %v1648, 0
        %v1697 = vmul.f32 %v1692, %v1695
        %v1698 = vmul.f32 %v1693, %v1695
        %v1700 = vperm.slane %v1649, 0
        %v1702 = vadd.f32 %v1697, %v1700
        %v1703 = vadd.f32 %v1698, %v1700
        %v1704 = vld [vmem:[%s27] sm:$0xff]
        %v1705 = vld [vmem:[%s27 + $0x8] sm:$0xff]
        %v1706 = vld [vmem:[%s27 + $0x10] sm:$0xff]
        %v1707 = vld [vmem:[%s27 + $0x18] sm:$0xff]
        %v1708 = vld [vmem:[%s27 + $0x20] sm:$0xff]
        %v1709 = vld [vmem:[%s27 + $0x28] sm:$0xff]
        %v1710 = vld [vmem:[%s27 + $0x30] sm:$0xff]
        %v1711 = vld [vmem:[%s27 + $0x38] sm:$0xff]
        %v1712 = vpack.c.bf16 %v1703, %v1702
        %v1713 = vld [vmem:[%s29] sm:$0x3]
        %v1715 = vperm.slane %v1713, 0
        %v1716 = vperm.slane %v1713, 1
        %v1727 = vunpack.c.l.b16 %v1704
        %v1728 = vunpack.c.h.b16 %v1704
        %v1729 = vunpack.c.l.b16 %v1705
        %v1730 = vunpack.c.h.b16 %v1705
        %v1731 = vunpack.c.l.b16 %v1706
        %v1732 = vunpack.c.h.b16 %v1706
        %v1733 = vunpack.c.l.b16 %v1707
        %v1734 = vunpack.c.h.b16 %v1707
        %v1735 = vunpack.c.l.b16 %v1708
        %v1736 = vunpack.c.h.b16 %v1708
        %v1737 = vunpack.c.l.b16 %v1709
        %v1738 = vunpack.c.h.b16 %v1709
        %v1739 = vunpack.c.l.b16 %v1710
        %v1740 = vunpack.c.h.b16 %v1710
        %v1741 = vunpack.c.l.b16 %v1711
        %v1742 = vunpack.c.h.b16 %v1711
        %v1743 = vpack.c.b16 %v1729, %v1727
        %v1744 = vpack.c.b16 %v1730, %v1728
        %v1745 = vpack.c.b16 %v1733, %v1731
        %v1746 = vpack.c.b16 %v1734, %v1732
        %v1747 = vpack.c.b16 %v1737, %v1735
        %v1748 = vpack.c.b16 %v1738, %v1736
        %v1749 = vpack.c.b16 %v1741, %v1739
        %v1750 = vpack.c.b16 %v1742, %v1740
        %v1760 = vsel %vm1127, %v1712, 0
        %1762 = vmatpush.bf16.msra.mxu0 0
        %1763 = vmatpush.bf16.msra.mxu0 0
        %1764 = vmatpush.bf16.msra.mxu0 0
        %1765 = vmatpush.bf16.msra.mxu0 0
        %1766 = vmatpush.bf16.msra.mxu0 %v1749
        %1767 = vmatpush.bf16.msra.mxu0 %v1747
        %1768 = vmatpush.bf16.msra.mxu0 %v1745
        %1769 = vmatpush.bf16.msra.mxu0 %v1743
        %1770 = vmatmul.bf16.gmra.mxu0 %v1760
        %v1771 = vpop.f32.mrf.mxu0
        %v1772 = vadd.f32 %v1715, %v1771
        %v1773 = vpop.f32.mrf.mxu0
        %v1774 = vadd.f32 %v1715, %v1773
        %1775 = vdwg.mxu0
        %1776 = vmatpush.bf16.msra.mxu0 0
        %1777 = vmatpush.bf16.msra.mxu0 0
        %1778 = vmatpush.bf16.msra.mxu0 0
        %1779 = vmatpush.bf16.msra.mxu0 0
        %1780 = vmatpush.bf16.msra.mxu0 %v1750
        %1781 = vmatpush.bf16.msra.mxu0 %v1748
        %1782 = vmatpush.bf16.msra.mxu0 %v1746
        %1783 = vmatpush.bf16.msra.mxu0 %v1744
        %1784 = vmatmul.bf16.gmra.mxu0 %v1760
        %v1785 = vpop.f32.mrf.mxu0
        %v1786 = vadd.f32 %v1716, %v1785
        %v1787 = vpop.f32.mrf.mxu0
        %v1788 = vadd.f32 %v1716, %v1787
        %1789 = vdwg.mxu0
        %v1790 = vmul.f32 %v1772, 0.5
        %v1791 = vmul.f32 %v1786, 0.5
        %v1792 = vmul.f32 %v1774, 0.5
        %v1793 = vmul.f32 %v1788, 0.5
        %v1794 = vmul.f32 %v1772, 0.70710677
        %v1795 = vmul.f32 %v1786, 0.70710677
        %v1796 = vmul.f32 %v1774, 0.70710677
        %v1797 = vmul.f32 %v1788, 0.70710677
        %vm1798 = vcmp.ge.f32.partialorder %v1794, 0.0
        %vm1799 = vcmp.ge.f32.partialorder %v1795, 0.0
        %vm1800 = vcmp.ge.f32.partialorder %v1796, 0.0
        %vm1801 = vcmp.ge.f32.partialorder %v1797, 0.0
        %v1802 = vsel %vm1798, 1.0, -1.0
        %v1803 = vsel %vm1799, 1.0, -1.0
        %v1804 = vsel %vm1800, 1.0, -1.0
        %v1805 = vsel %vm1801, 1.0, -1.0
        %v1806 = vand.u32 2147483647, %v1794
        %v1807 = vand.u32 2147483647, %v1795
        %v1808 = vand.u32 2147483647, %v1796
        %v1809 = vand.u32 2147483647, %v1797
        %v1810 = vmul.f32 %v1806, 0.3275911
        %v1811 = vmul.f32 %v1807, 0.3275911
        %v1812 = vmul.f32 %v1808, 0.3275911
        %v1813 = vmul.f32 %v1809, 0.3275911
        %v1814 = vadd.f32 %v1810, 1.0
        %v1815 = vadd.f32 %v1811, 1.0
        %v1816 = vadd.f32 %v1812, 1.0
        %v1817 = vadd.f32 %v1813, 1.0
        %v1818 = vrcp.pop %v1814
        %v1819 = vmul.f32 %v1814, %v1818
        %v1820 = vsub.f32 1.0, %v1819
        %v1821 = vmul.f32 %v1818, %v1820
        %v1822 = vadd.f32 %v1818, %v1821
        %vm1823 = vweird.f32 %v1814
        %vm1824 = vweird.f32 %v1818
        %vm1825 = vmor %vm1823, %vm1824
        %v1826 = vsel %vm1825, %v1818, %v1822
        %v1827 = vand.u32 2147483647, %v1814
        %vm1828 = vcmp.eq.f32.partialorder %v1827, 8.507059e+37
        %v1829 = vand.u32 %v1814, 2147483648
        %v1830 = vor.u32 1.1754944e-38, %v1829
        %v1831 = vsel %vm1828, %v1830, %v1826
        %v1832 = vmul.f32 1.0, %v1831
        %v1833 = vrcp.pop %v1815
        %v1834 = vmul.f32 %v1815, %v1833
        %v1835 = vsub.f32 1.0, %v1834
        %v1836 = vmul.f32 %v1833, %v1835
        %v1837 = vadd.f32 %v1833, %v1836
        %vm1838 = vweird.f32 %v1815
        %vm1839 = vweird.f32 %v1833
        %vm1840 = vmor %vm1838, %vm1839
        %v1841 = vsel %vm1840, %v1833, %v1837
        %v1842 = vand.u32 2147483647, %v1815
        %vm1843 = vcmp.eq.f32.partialorder %v1842, 8.507059e+37
        %v1844 = vand.u32 %v1815, 2147483648
        %v1845 = vor.u32 1.1754944e-38, %v1844
        %v1846 = vsel %vm1843, %v1845, %v1841
        %v1847 = vmul.f32 1.0, %v1846
        %v1848 = vrcp.pop %v1816
        %v1849 = vmul.f32 %v1816, %v1848
        %v1850 = vsub.f32 1.0, %v1849
        %v1851 = vmul.f32 %v1848, %v1850
        %v1852 = vadd.f32 %v1848, %v1851
        %vm1853 = vweird.f32 %v1816
        %vm1854 = vweird.f32 %v1848
        %vm1855 = vmor %vm1853, %vm1854
        %v1856 = vsel %vm1855, %v1848, %v1852
        %v1857 = vand.u32 2147483647, %v1816
        %vm1858 = vcmp.eq.f32.partialorder %v1857, 8.507059e+37
        %v1859 = vand.u32 %v1816, 2147483648
        %v1860 = vor.u32 1.1754944e-38, %v1859
        %v1861 = vsel %vm1858, %v1860, %v1856
        %v1862 = vmul.f32 1.0, %v1861
        %v1863 = vrcp.pop %v1817
        %v1864 = vmul.f32 %v1817, %v1863
        %v1865 = vsub.f32 1.0, %v1864
        %v1866 = vmul.f32 %v1863, %v1865
        %v1867 = vadd.f32 %v1863, %v1866
        %vm1868 = vweird.f32 %v1817
        %vm1869 = vweird.f32 %v1863
        %vm1870 = vmor %vm1868, %vm1869
        %v1871 = vsel %vm1870, %v1863, %v1867
        %v1872 = vand.u32 2147483647, %v1817
        %vm1873 = vcmp.eq.f32.partialorder %v1872, 8.507059e+37
        %v1874 = vand.u32 %v1817, 2147483648
        %v1875 = vor.u32 1.1754944e-38, %v1874
        %v1876 = vsel %vm1873, %v1875, %v1871
        %v1877 = vmul.f32 1.0, %v1876
        %v1878 = vmul.f32 %v1832, 1.0614054
        %v1879 = vmul.f32 %v1847, 1.0614054
        %v1880 = vmul.f32 %v1862, 1.0614054
        %v1881 = vmul.f32 %v1877, 1.0614054
        %v1882 = vadd.f32 %v1878, -1.4531521
        %v1883 = vadd.f32 %v1879, -1.4531521
        %v1884 = vadd.f32 %v1880, -1.4531521
        %v1885 = vadd.f32 %v1881, -1.4531521
        %v1886 = vmul.f32 %v1882, %v1832
        %v1887 = vmul.f32 %v1883, %v1847
        %v1888 = vmul.f32 %v1884, %v1862
        %v1889 = vmul.f32 %v1885, %v1877
        %v1890 = vadd.f32 %v1886, 1.4214138
        %v1891 = vadd.f32 %v1887, 1.4214138
        %v1892 = vadd.f32 %v1888, 1.4214138
        %v1893 = vadd.f32 %v1889, 1.4214138
        %v1894 = vmul.f32 %v1890, %v1832
        %v1895 = vmul.f32 %v1891, %v1847
        %v1896 = vmul.f32 %v1892, %v1862
        %v1897 = vmul.f32 %v1893, %v1877
        %v1898 = vadd.f32 %v1894, -0.28449672
        %v1899 = vadd.f32 %v1895, -0.28449672
        %v1900 = vadd.f32 %v1896, -0.28449672
        %v1901 = vadd.f32 %v1897, -0.28449672
        %v1902 = vmul.f32 %v1898, %v1832
        %v1903 = vmul.f32 %v1899, %v1847
        %v1904 = vmul.f32 %v1900, %v1862
        %v1905 = vmul.f32 %v1901, %v1877
        %v1906 = vadd.f32 %v1902, 0.2548296
        %v1907 = vadd.f32 %v1903, 0.2548296
        %v1908 = vadd.f32 %v1904, 0.2548296
        %v1909 = vadd.f32 %v1905, 0.2548296
        %v1910 = vmul.f32 %v1906, %v1832
        %v1911 = vmul.f32 %v1907, %v1847
        %v1912 = vmul.f32 %v1908, %v1862
        %v1913 = vmul.f32 %v1909, %v1877
        %v1914 = vsub.f32 0.0, %v1806
        %v1915 = vsub.f32 0.0, %v1807
        %v1916 = vsub.f32 0.0, %v1808
        %v1917 = vsub.f32 0.0, %v1809
        %v1918 = vmul.f32 %v1914, %v1806
        %v1919 = vmul.f32 %v1915, %v1807
        %v1920 = vmul.f32 %v1916, %v1808
        %v1921 = vmul.f32 %v1917, %v1809
        %v1922 = vmul.f32 %v1918, 1.442695
        %v1923 = vpow.pop %v1922
        %v1924 = vmul.f32 %v1919, 1.442695
        %v1925 = vpow.pop %v1924
        %v1926 = vmul.f32 %v1920, 1.442695
        %v1927 = vpow.pop %v1926
        %v1928 = vmul.f32 %v1921, 1.442695
        %v1929 = vpow.pop %v1928
        %v1930 = vmul.f32 %v1910, %v1923
        %v1931 = vmul.f32 %v1911, %v1925
        %v1932 = vmul.f32 %v1912, %v1927
        %v1933 = vmul.f32 %v1913, %v1929
        %v1934 = vsub.f32 1.0, %v1930
        %v1935 = vsub.f32 1.0, %v1931
        %v1936 = vsub.f32 1.0, %v1932
        %v1937 = vsub.f32 1.0, %v1933
        %v1938 = vmul.f32 %v1802, %v1934
        %v1939 = vmul.f32 %v1803, %v1935
        %v1940 = vmul.f32 %v1804, %v1936
        %v1941 = vmul.f32 %v1805, %v1937
        %v1942 = vadd.f32 %v1938, 1.0
        %v1943 = vadd.f32 %v1939, 1.0
        %v1944 = vadd.f32 %v1940, 1.0
        %v1945 = vadd.f32 %v1941, 1.0
        %v1946 = vmul.f32 %v1790, %v1942
        %v1947 = vmul.f32 %v1791, %v1943
        %v1948 = vmul.f32 %v1792, %v1944
        %v1949 = vmul.f32 %v1793, %v1945
        %v1950 = vld [vmem:[%s31] sm:$0xf]
        %v1951 = vld [vmem:[%s31 + $0x4] sm:$0xf]
        %v1952 = vld [vmem:[%s31 + $0x8] sm:$0xf]
        %v1953 = vld [vmem:[%s31 + $0xc] sm:$0xf]
        %v1954 = vld [vmem:[%s31 + $0x10] sm:$0xf]
        %v1955 = vld [vmem:[%s31 + $0x14] sm:$0xf]
        %v1956 = vld [vmem:[%s31 + $0x18] sm:$0xf]
        %v1957 = vld [vmem:[%s31 + $0x1c] sm:$0xf]
        %v1958 = vld [vmem:[%s31 + $0x20] sm:$0xf]
        %v1959 = vld [vmem:[%s31 + $0x24] sm:$0xf]
        %v1960 = vld [vmem:[%s31 + $0x28] sm:$0xf]
        %v1961 = vld [vmem:[%s31 + $0x2c] sm:$0xf]
        %v1962 = vld [vmem:[%s31 + $0x30] sm:$0xf]
        %v1963 = vld [vmem:[%s31 + $0x34] sm:$0xf]
        %v1964 = vld [vmem:[%s31 + $0x38] sm:$0xf]
        %v1965 = vld [vmem:[%s31 + $0x3c] sm:$0xf]
        %v1966 = vld [vmem:[%s31 + $0x40] sm:$0xf]
        %v1967 = vld [vmem:[%s31 + $0x44] sm:$0xf]
        %v1968 = vld [vmem:[%s31 + $0x48] sm:$0xf]
        %v1969 = vld [vmem:[%s31 + $0x4c] sm:$0xf]
        %v1970 = vld [vmem:[%s31 + $0x50] sm:$0xf]
        %v1971 = vld [vmem:[%s31 + $0x54] sm:$0xf]
        %v1972 = vld [vmem:[%s31 + $0x58] sm:$0xf]
        %v1973 = vld [vmem:[%s31 + $0x5c] sm:$0xf]
        %v1974 = vld [vmem:[%s31 + $0x60] sm:$0xf]
        %v1975 = vld [vmem:[%s31 + $0x64] sm:$0xf]
        %v1976 = vld [vmem:[%s31 + $0x68] sm:$0xf]
        %v1977 = vld [vmem:[%s31 + $0x6c] sm:$0xf]
        %v1978 = vld [vmem:[%s31 + $0x70] sm:$0xf]
        %v1979 = vld [vmem:[%s31 + $0x74] sm:$0xf]
        %v1980 = vld [vmem:[%s31 + $0x78] sm:$0xf]
        %v1981 = vld [vmem:[%s31 + $0x7c] sm:$0xf]
        %v1982 = vpack.c.bf16 %v1948, %v1946
        %v1983 = vpack.c.bf16 %v1949, %v1947
        %v2016 = vunpack.c.l.b16 %v1950
        %v2017 = vunpack.c.l.b16 %v1951
        %v2018 = vunpack.c.l.b16 %v1952
        %v2019 = vunpack.c.l.b16 %v1953
        %v2020 = vunpack.c.l.b16 %v1954
        %v2021 = vunpack.c.l.b16 %v1955
        %v2022 = vunpack.c.l.b16 %v1956
        %v2023 = vunpack.c.l.b16 %v1957
        %v2024 = vunpack.c.l.b16 %v1958
        %v2025 = vunpack.c.l.b16 %v1959
        %v2026 = vunpack.c.l.b16 %v1960
        %v2027 = vunpack.c.l.b16 %v1961
        %v2028 = vunpack.c.l.b16 %v1962
        %v2029 = vunpack.c.l.b16 %v1963
        %v2030 = vunpack.c.l.b16 %v1964
        %v2031 = vunpack.c.l.b16 %v1965
        %v2032 = vunpack.c.l.b16 %v1966
        %v2033 = vunpack.c.l.b16 %v1967
        %v2034 = vunpack.c.l.b16 %v1968
        %v2035 = vunpack.c.l.b16 %v1969
        %v2036 = vunpack.c.l.b16 %v1970
        %v2037 = vunpack.c.l.b16 %v1971
        %v2038 = vunpack.c.l.b16 %v1972
        %v2039 = vunpack.c.l.b16 %v1973
        %v2040 = vunpack.c.l.b16 %v1974
        %v2041 = vunpack.c.l.b16 %v1975
        %v2042 = vunpack.c.l.b16 %v1976
        %v2043 = vunpack.c.l.b16 %v1977
        %v2044 = vunpack.c.l.b16 %v1978
        %v2045 = vunpack.c.l.b16 %v1979
        %v2046 = vunpack.c.l.b16 %v1980
        %v2047 = vunpack.c.l.b16 %v1981
        %v2048 = vpack.c.b16 %v2017, %v2016
        %v2049 = vpack.c.b16 %v2019, %v2018
        %v2050 = vpack.c.b16 %v2021, %v2020
        %v2051 = vpack.c.b16 %v2023, %v2022
        %v2052 = vpack.c.b16 %v2025, %v2024
        %v2053 = vpack.c.b16 %v2027, %v2026
        %v2054 = vpack.c.b16 %v2029, %v2028
        %v2055 = vpack.c.b16 %v2031, %v2030
        %v2056 = vpack.c.b16 %v2033, %v2032
        %v2057 = vpack.c.b16 %v2035, %v2034
        %v2058 = vpack.c.b16 %v2037, %v2036
        %v2059 = vpack.c.b16 %v2039, %v2038
        %v2060 = vpack.c.b16 %v2041, %v2040
        %v2061 = vpack.c.b16 %v2043, %v2042
        %v2062 = vpack.c.b16 %v2045, %v2044
        %v2063 = vpack.c.b16 %v2047, %v2046
        %2080 = vmatpush.bf16.msra.mxu0 %v2055
        %2081 = vmatpush.bf16.msra.mxu0 %v2054
        %2082 = vmatpush.bf16.msra.mxu0 %v2053
        %2083 = vmatpush.bf16.msra.mxu0 %v2052
        %2084 = vmatpush.bf16.msra.mxu0 %v2051
        %2085 = vmatpush.bf16.msra.mxu0 %v2050
        %2086 = vmatpush.bf16.msra.mxu0 %v2049
        %2087 = vmatpush.bf16.msra.mxu0 %v2048
        %2088 = vmatmul.bf16.gmra.mxu0 %v1982
        %v2089 = vpop.f32.mrf.mxu0
        %v2090 = vadd.f32 0.0, %v2089
        %v2091 = vpop.f32.mrf.mxu0
        %v2092 = vadd.f32 0.0, %v2091
        %2093 = vdwg.mxu0
        %2094 = vmatpush.bf16.msra.mxu0 %v2063
        %2095 = vmatpush.bf16.msra.mxu0 %v2062
        %2096 = vmatpush.bf16.msra.mxu0 %v2061
        %2097 = vmatpush.bf16.msra.mxu0 %v2060
        %2098 = vmatpush.bf16.msra.mxu0 %v2059
        %2099 = vmatpush.bf16.msra.mxu0 %v2058
        %2100 = vmatpush.bf16.msra.mxu0 %v2057
        %2101 = vmatpush.bf16.msra.mxu0 %v2056
        %2102 = vmatmul.bf16.gmra.mxu0 %v1983
        %v2103 = vpop.f32.mrf.mxu0
        %v2104 = vadd.f32 %v2090, %v2103
        %v2105 = vpop.f32.mrf.mxu0
        %v2106 = vadd.f32 %v2092, %v2105
        %2107 = vdwg.mxu0
        %v2108 = vadd.f32 %v1646, %v2104
        %v2109 = vadd.f32 %v1647, %v2106
        %v2110 = vld [vmem:[%s33] sm:$0x1]
        %v2112 = vperm.slane %v2110, 0
        %v2114 = vadd.f32 %v2108, %v2112
        %v2115 = vadd.f32 %v2109, %v2112
        %v2116 = vld [vmem:[%s35] sm:$0x1]
        %v2117 = vld [vmem:[%s37] sm:$0x1]
        %v2118 = vsel %vm1127, %v2114, 0.0
        %2119 = vadd.xlane.f32.xlu0 %v2118
        %v2120 = vpop.xlane.xlu0 %2119
        %v2121 = vsel %vm1127, %v2115, 0.0
        %2122 = vadd.xlane.f32.xlu0 %v2121
        %v2123 = vpop.xlane.xlu0 %2122
        %v2124 = vmul.f32 %v2120, %v1140
        %v2125 = vmul.f32 %v2123, %v1140
        %v2126 = vsub.f32 %v2114, %v2124
        %v2127 = vsub.f32 %v2115, %v2125
        %v2128 = vmul.f32 %v2126, %v2126
        %v2129 = vmul.f32 %v2127, %v2127
        %v2130 = vsel %vm1127, %v2128, 0.0
        %2131 = vadd.xlane.f32.xlu0 %v2130
        %v2132 = vpop.xlane.xlu0 %2131
        %v2133 = vsel %vm1127, %v2129, 0.0
        %2134 = vadd.xlane.f32.xlu0 %v2133
        %v2135 = vpop.xlane.xlu0 %2134
        %v2136 = vmul.f32 %v2132, %v1140
        %v2137 = vmul.f32 %v2135, %v1140
        %v2138 = vadd.f32 %v2136, 1e-05
        %v2139 = vadd.f32 %v2137, 1e-05
        %v2140 = vrsqrt.pop %v2138
        %v2141 = vmul.f32 %v2140, %v2138
        %v2142 = vmul.f32 %v2141, %v2140
        %v2143 = vmul.f32 0.5, %v2142
        %v2144 = vsub.f32 1.5, %v2143
        %v2145 = vmul.f32 %v2140, %v2144
        %vm2146 = vweird.f32 %v2138
        %vm2147 = vweird.f32 %v2140
        %vm2148 = vmor %vm2146, %vm2147
        %v2149 = vsel %vm2148, %v2140, %v2145
        %v2150 = vrsqrt.pop %v2139
        %v2151 = vmul.f32 %v2150, %v2139
        %v2152 = vmul.f32 %v2151, %v2150
        %v2153 = vmul.f32 0.5, %v2152
        %v2154 = vsub.f32 1.5, %v2153
        %v2155 = vmul.f32 %v2150, %v2154
        %vm2156 = vweird.f32 %v2139
        %vm2157 = vweird.f32 %v2150
        %vm2158 = vmor %vm2156, %vm2157
        %v2159 = vsel %vm2158, %v2150, %v2155
        %v2160 = vmul.f32 %v2126, %v2149
        %v2161 = vmul.f32 %v2127, %v2159
        %v2163 = vperm.slane %v2116, 0
        %v2165 = vmul.f32 %v2160, %v2163
        %v2166 = vmul.f32 %v2161, %v2163
        %v2168 = vperm.slane %v2117, 0
        %v2170 = vadd.f32 %v2165, %v2168
        %v2171 = vadd.f32 %v2166, %v2168
        %v2172 = vld [vmem:[%s39] sm:$0xff]
        %v2173 = vld [vmem:[%s39 + $0x8] sm:$0xff]
        %v2174 = vld [vmem:[%s39 + $0x10] sm:$0xff]
        %v2175 = vld [vmem:[%s39 + $0x18] sm:$0xff]
        %v2176 = vld [vmem:[%s39 + $0x20] sm:$0xff]
        %v2177 = vld [vmem:[%s39 + $0x28] sm:$0xff]
        %v2178 = vld [vmem:[%s39 + $0x30] sm:$0xff]
        %v2179 = vld [vmem:[%s39 + $0x38] sm:$0xff]
        %v2180 = vpack.c.bf16 %v2171, %v2170
        %v2181 = vld [vmem:[%s41] sm:$0x3]
        %v2183 = vperm.slane %v2181, 0
        %v2184 = vperm.slane %v2181, 1
        %v2195 = vunpack.c.l.b16 %v2172
        %v2196 = vunpack.c.h.b16 %v2172
        %v2197 = vunpack.c.l.b16 %v2173
        %v2198 = vunpack.c.h.b16 %v2173
        %v2199 = vunpack.c.l.b16 %v2174
        %v2200 = vunpack.c.h.b16 %v2174
        %v2201 = vunpack.c.l.b16 %v2175
        %v2202 = vunpack.c.h.b16 %v2175
        %v2203 = vunpack.c.l.b16 %v2176
        %v2204 = vunpack.c.h.b16 %v2176
        %v2205 = vunpack.c.l.b16 %v2177
        %v2206 = vunpack.c.h.b16 %v2177
        %v2207 = vunpack.c.l.b16 %v2178
        %v2208 = vunpack.c.h.b16 %v2178
        %v2209 = vunpack.c.l.b16 %v2179
        %v2210 = vunpack.c.h.b16 %v2179
        %v2211 = vpack.c.b16 %v2197, %v2195
        %v2212 = vpack.c.b16 %v2198, %v2196
        %v2213 = vpack.c.b16 %v2201, %v2199
        %v2214 = vpack.c.b16 %v2202, %v2200
        %v2215 = vpack.c.b16 %v2205, %v2203
        %v2216 = vpack.c.b16 %v2206, %v2204
        %v2217 = vpack.c.b16 %v2209, %v2207
        %v2218 = vpack.c.b16 %v2210, %v2208
        %v2228 = vsel %vm1127, %v2180, 0
        %2230 = vmatpush.bf16.msra.mxu0 0
        %2231 = vmatpush.bf16.msra.mxu0 0
        %2232 = vmatpush.bf16.msra.mxu0 0
        %2233 = vmatpush.bf16.msra.mxu0 0
        %2234 = vmatpush.bf16.msra.mxu0 %v2217
        %2235 = vmatpush.bf16.msra.mxu0 %v2215
        %2236 = vmatpush.bf16.msra.mxu0 %v2213
        %2237 = vmatpush.bf16.msra.mxu0 %v2211
        %2238 = vmatmul.bf16.gmra.mxu0 %v2228
        %v2239 = vpop.f32.mrf.mxu0
        %v2240 = vadd.f32 %v2183, %v2239
        %v2241 = vpop.f32.mrf.mxu0
        %v2242 = vadd.f32 %v2183, %v2241
        %2243 = vdwg.mxu0
        %2244 = vmatpush.bf16.msra.mxu0 0
        %2245 = vmatpush.bf16.msra.mxu0 0
        %2246 = vmatpush.bf16.msra.mxu0 0
        %2247 = vmatpush.bf16.msra.mxu0 0
        %2248 = vmatpush.bf16.msra.mxu0 %v2218
        %2249 = vmatpush.bf16.msra.mxu0 %v2216
        %2250 = vmatpush.bf16.msra.mxu0 %v2214
        %2251 = vmatpush.bf16.msra.mxu0 %v2212
        %2252 = vmatmul.bf16.gmra.mxu0 %v2228
        %v2253 = vpop.f32.mrf.mxu0
        %v2254 = vadd.f32 %v2184, %v2253
        %v2255 = vpop.f32.mrf.mxu0
        %v2256 = vadd.f32 %v2184, %v2255
        %2257 = vdwg.mxu0
        %v2258 = vmul.f32 %v2240, 0.25
        %v2259 = vmul.f32 %v2242, 0.25
        %v2260 = vpack.c.bf16 %v2259, %v2258
        %v2261 = vpack.c.bf16 %v2242, %v2240
        %v2262 = vpack.c.bf16 %v2256, %v2254
        %v2263 = vld [vmem:[%s43] sm:$0xff]
        %v2264 = vld [vmem:[%s43 + $0x8] sm:$0xff]
        %2266 = vrot.lane.b32.xlu0 %v2261, 64
        %v2267 = vpop.permute.xlu0 %2266
        %v2269 = vsel %vm1285, %v2260, 0
        %v2272 = vsel %vm1285, %v2267, 0
        %2274 = vmatpush.bf16.xpose.msra.mxu0 0
        %2275 = vmatpush.bf16.xpose.msra.mxu0 0
        %2276 = vmatpush.bf16.xpose.msra.mxu0 0
        %2277 = vmatpush.bf16.xpose.msra.mxu0 0
        %2278 = vmatpush.bf16.xpose.msra.mxu0 0
        %2279 = vmatpush.bf16.xpose.msra.mxu0 0
        %2280 = vmatpush.bf16.xpose.msra.mxu0 0
        %2281 = vmatpush.bf16.xpose.msra.mxu0 %v2272
        %2282 = vmatmul.bf16.gmra.mxu0 %v2269
        %v2283 = vpop.f32.mrf.mxu0
        %v2284 = vadd.f32 %v2263, %v2283
        %v2285 = vpop.f32.mrf.mxu0
        %v2286 = vadd.f32 %v2264, %v2285
        %2287 = vdwg.mxu0
        %v2288 = vsel %vm1285, %v2284, -inf
        %2289 = vmax.xlane.f32.xlu0 %v2288
        %v2290 = vpop.xlane.xlu0 %2289
        %v2291 = vsel %vm1285, %v2286, -inf
        %2292 = vmax.xlane.f32.xlu0 %v2291
        %v2293 = vpop.xlane.xlu0 %2292
        %v2294 = vsub.f32 %v2284, %v2290
        %v2295 = vsub.f32 %v2286, %v2293
        %v2296 = vmul.f32 %v2294, 1.442695
        %v2297 = vpow.pop %v2296
        %v2298 = vmul.f32 %v2295, 1.442695
        %v2299 = vpow.pop %v2298
        %v2300 = vsel %vm1285, %v2297, 0.0
        %2301 = vadd.xlane.f32.xlu0 %v2300
        %v2302 = vpop.xlane.xlu0 %2301
        %v2303 = vsel %vm1285, %v2299, 0.0
        %2304 = vadd.xlane.f32.xlu0 %v2303
        %v2305 = vpop.xlane.xlu0 %2304
        %v2306 = vrcp.pop %v2302
        %v2307 = vrcp.pop %v2305
        %v2308 = vmul.f32 %v2297, %v2306
        %v2309 = vmul.f32 %v2299, %v2307
        %v2310 = vpack.c.bf16 %v2309, %v2308
        %v2312 = vsel %vm1285, %v2310, 0
        %2314 = vmatpush.bf16.msra.mxu0 0
        %2315 = vmatpush.bf16.msra.mxu0 0
        %2316 = vmatpush.bf16.msra.mxu0 0
        %2317 = vmatpush.bf16.msra.mxu0 0
        %2318 = vmatpush.bf16.msra.mxu0 0
        %2319 = vmatpush.bf16.msra.mxu0 0
        %2320 = vmatpush.bf16.msra.mxu0 0
        %2321 = vmatpush.bf16.msra.mxu0 %v2262
        %2322 = vmatmul.bf16.gmra.mxu0 %v2312
        %v2323 = vpop.f32.mrf.mxu0
        %v2324 = vadd.f32 0.0, %v2323
        %v2325 = vpop.f32.mrf.mxu0
        %v2326 = vadd.f32 0.0, %v2325
        %2327 = vdwg.mxu0
        %s2328 = scalar_lea.vmem %s43, 16
        %v2329 = vld [vmem:[%s2328] sm:$0xff]
        %v2330 = vld [vmem:[%s2328 + $0x8] sm:$0xff]
        %2332 = vrot.lane.b32.xlu0 %v2260, 112
        %v2333 = vpop.permute.xlu0 %2332
        %2334 = vrot.lane.b32.xlu0 %v2261, 48
        %v2335 = vpop.permute.xlu0 %2334
        %v2337 = vsel %vm1285, %v2333, 0
        %v2340 = vsel %vm1285, %v2335, 0
        %2342 = vmatpush.bf16.xpose.msra.mxu0 0
        %2343 = vmatpush.bf16.xpose.msra.mxu0 0
        %2344 = vmatpush.bf16.xpose.msra.mxu0 0
        %2345 = vmatpush.bf16.xpose.msra.mxu0 0
        %2346 = vmatpush.bf16.xpose.msra.mxu0 0
        %2347 = vmatpush.bf16.xpose.msra.mxu0 0
        %2348 = vmatpush.bf16.xpose.msra.mxu0 0
        %2349 = vmatpush.bf16.xpose.msra.mxu0 %v2340
        %2350 = vmatmul.bf16.gmra.mxu0 %v2337
        %v2351 = vpop.f32.mrf.mxu0
        %v2352 = vadd.f32 %v2329, %v2351
        %v2353 = vpop.f32.mrf.mxu0
        %v2354 = vadd.f32 %v2330, %v2353
        %2355 = vdwg.mxu0
        %v2356 = vsel %vm1285, %v2352, -inf
        %2357 = vmax.xlane.f32.xlu0 %v2356
        %v2358 = vpop.xlane.xlu0 %2357
        %v2359 = vsel %vm1285, %v2354, -inf
        %2360 = vmax.xlane.f32.xlu0 %v2359
        %v2361 = vpop.xlane.xlu0 %2360
        %v2362 = vsub.f32 %v2352, %v2358
        %v2363 = vsub.f32 %v2354, %v2361
        %v2364 = vmul.f32 %v2362, 1.442695
        %v2365 = vpow.pop %v2364
        %v2366 = vmul.f32 %v2363, 1.442695
        %v2367 = vpow.pop %v2366
        %v2368 = vsel %vm1285, %v2365, 0.0
        %2369 = vadd.xlane.f32.xlu0 %v2368
        %v2370 = vpop.xlane.xlu0 %2369
        %v2371 = vsel %vm1285, %v2367, 0.0
        %2372 = vadd.xlane.f32.xlu0 %v2371
        %v2373 = vpop.xlane.xlu0 %2372
        %v2374 = vrcp.pop %v2370
        %v2375 = vrcp.pop %v2373
        %v2376 = vmul.f32 %v2365, %v2374
        %v2377 = vmul.f32 %v2367, %v2375
        %v2378 = vpack.c.bf16 %v2377, %v2376
        %2380 = vrot.lane.b32.xlu0 %v2262, 112
        %v2381 = vpop.permute.xlu0 %2380
        %v2384 = vsel %vm1285, %v2378, 0
        %2386 = vmatpush.bf16.msra.mxu0 0
        %2387 = vmatpush.bf16.msra.mxu0 0
        %2388 = vmatpush.bf16.msra.mxu0 0
        %2389 = vmatpush.bf16.msra.mxu0 0
        %2390 = vmatpush.bf16.msra.mxu0 0
        %2391 = vmatpush.bf16.msra.mxu0 0
        %2392 = vmatpush.bf16.msra.mxu0 0
        %2393 = vmatpush.bf16.msra.mxu0 %v2381
        %2394 = vmatmul.bf16.gmra.mxu0 %v2384
        %v2395 = vpop.f32.mrf.mxu0
        %v2396 = vadd.f32 0.0, %v2395
        %v2397 = vpop.f32.mrf.mxu0
        %v2398 = vadd.f32 0.0, %v2397
        %2399 = vdwg.mxu0
        %s2400 = scalar_lea.vmem %s43, 32
        %v2401 = vld [vmem:[%s2400] sm:$0xff]
        %v2402 = vld [vmem:[%s2400 + $0x8] sm:$0xff]
        %2403 = vrot.lane.b32.xlu0 %v2260, 96
        %v2404 = vpop.permute.xlu0 %2403
        %2405 = vrot.lane.b32.xlu0 %v2261, 32
        %v2406 = vpop.permute.xlu0 %2405
        %v2408 = vsel %vm1285, %v2404, 0
        %v2411 = vsel %vm1285, %v2406, 0
        %2413 = vmatpush.bf16.xpose.msra.mxu0 0
        %2414 = vmatpush.bf16.xpose.msra.mxu0 0
        %2415 = vmatpush.bf16.xpose.msra.mxu0 0
        %2416 = vmatpush.bf16.xpose.msra.mxu0 0
        %2417 = vmatpush.bf16.xpose.msra.mxu0 0
        %2418 = vmatpush.bf16.xpose.msra.mxu0 0
        %2419 = vmatpush.bf16.xpose.msra.mxu0 0
        %2420 = vmatpush.bf16.xpose.msra.mxu0 %v2411
        %2421 = vmatmul.bf16.gmra.mxu0 %v2408
        %v2422 = vpop.f32.mrf.mxu0
        %v2423 = vadd.f32 %v2401, %v2422
        %v2424 = vpop.f32.mrf.mxu0
        %v2425 = vadd.f32 %v2402, %v2424
        %2426 = vdwg.mxu0
        %v2427 = vsel %vm1285, %v2423, -inf
        %2428 = vmax.xlane.f32.xlu0 %v2427
        %v2429 = vpop.xlane.xlu0 %2428
        %v2430 = vsel %vm1285, %v2425, -inf
        %2431 = vmax.xlane.f32.xlu0 %v2430
        %v2432 = vpop.xlane.xlu0 %2431
        %v2433 = vsub.f32 %v2423, %v2429
        %v2434 = vsub.f32 %v2425, %v2432
        %v2435 = vmul.f32 %v2433, 1.442695
        %v2436 = vpow.pop %v2435
        %v2437 = vmul.f32 %v2434, 1.442695
        %v2438 = vpow.pop %v2437
        %v2439 = vsel %vm1285, %v2436, 0.0
        %2440 = vadd.xlane.f32.xlu0 %v2439
        %v2441 = vpop.xlane.xlu0 %2440
        %v2442 = vsel %vm1285, %v2438, 0.0
        %2443 = vadd.xlane.f32.xlu0 %v2442
        %v2444 = vpop.xlane.xlu0 %2443
        %v2445 = vrcp.pop %v2441
        %v2446 = vrcp.pop %v2444
        %v2447 = vmul.f32 %v2436, %v2445
        %v2448 = vmul.f32 %v2438, %v2446
        %v2449 = vpack.c.bf16 %v2448, %v2447
        %2450 = vrot.lane.b32.xlu0 %v2262, 96
        %v2451 = vpop.permute.xlu0 %2450
        %v2454 = vsel %vm1285, %v2449, 0
        %2456 = vmatpush.bf16.msra.mxu0 0
        %2457 = vmatpush.bf16.msra.mxu0 0
        %2458 = vmatpush.bf16.msra.mxu0 0
        %2459 = vmatpush.bf16.msra.mxu0 0
        %2460 = vmatpush.bf16.msra.mxu0 0
        %2461 = vmatpush.bf16.msra.mxu0 0
        %2462 = vmatpush.bf16.msra.mxu0 0
        %2463 = vmatpush.bf16.msra.mxu0 %v2451
        %2464 = vmatmul.bf16.gmra.mxu0 %v2454
        %v2465 = vpop.f32.mrf.mxu0
        %v2466 = vadd.f32 0.0, %v2465
        %v2467 = vpop.f32.mrf.mxu0
        %v2468 = vadd.f32 0.0, %v2467
        %2469 = vdwg.mxu0
        %s2470 = scalar_lea.vmem %s43, 48
        %v2471 = vld [vmem:[%s2470] sm:$0xff]
        %v2472 = vld [vmem:[%s2470 + $0x8] sm:$0xff]
        %2473 = vrot.lane.b32.xlu0 %v2260, 80
        %v2474 = vpop.permute.xlu0 %2473
        %2475 = vrot.lane.b32.xlu0 %v2261, 16
        %v2476 = vpop.permute.xlu0 %2475
        %v2478 = vsel %vm1285, %v2474, 0
        %v2481 = vsel %vm1285, %v2476, 0
        %2483 = vmatpush.bf16.xpose.msra.mxu0 0
        %2484 = vmatpush.bf16.xpose.msra.mxu0 0
        %2485 = vmatpush.bf16.xpose.msra.mxu0 0
        %2486 = vmatpush.bf16.xpose.msra.mxu0 0
        %2487 = vmatpush.bf16.xpose.msra.mxu0 0
        %2488 = vmatpush.bf16.xpose.msra.mxu0 0
        %2489 = vmatpush.bf16.xpose.msra.mxu0 0
        %2490 = vmatpush.bf16.xpose.msra.mxu0 %v2481
        %2491 = vmatmul.bf16.gmra.mxu0 %v2478
        %v2492 = vpop.f32.mrf.mxu0
        %v2493 = vadd.f32 %v2471, %v2492
        %v2494 = vpop.f32.mrf.mxu0
        %v2495 = vadd.f32 %v2472, %v2494
        %2496 = vdwg.mxu0
        %v2497 = vsel %vm1285, %v2493, -inf
        %2498 = vmax.xlane.f32.xlu0 %v2497
        %v2499 = vpop.xlane.xlu0 %2498
        %v2500 = vsel %vm1285, %v2495, -inf
        %2501 = vmax.xlane.f32.xlu0 %v2500
        %v2502 = vpop.xlane.xlu0 %2501
        %v2503 = vsub.f32 %v2493, %v2499
        %v2504 = vsub.f32 %v2495, %v2502
        %v2505 = vmul.f32 %v2503, 1.442695
        %v2506 = vpow.pop %v2505
        %v2507 = vmul.f32 %v2504, 1.442695
        %v2508 = vpow.pop %v2507
        %v2509 = vsel %vm1285, %v2506, 0.0
        %2510 = vadd.xlane.f32.xlu0 %v2509
        %v2511 = vpop.xlane.xlu0 %2510
        %v2512 = vsel %vm1285, %v2508, 0.0
        %2513 = vadd.xlane.f32.xlu0 %v2512
        %v2514 = vpop.xlane.xlu0 %2513
        %v2515 = vrcp.pop %v2511
        %v2516 = vrcp.pop %v2514
        %v2517 = vmul.f32 %v2506, %v2515
        %v2518 = vmul.f32 %v2508, %v2516
        %v2519 = vpack.c.bf16 %v2518, %v2517
        %2520 = vrot.lane.b32.xlu0 %v2262, 80
        %v2521 = vpop.permute.xlu0 %2520
        %v2524 = vsel %vm1285, %v2519, 0
        %2526 = vmatpush.bf16.msra.mxu0 0
        %2527 = vmatpush.bf16.msra.mxu0 0
        %2528 = vmatpush.bf16.msra.mxu0 0
        %2529 = vmatpush.bf16.msra.mxu0 0
        %2530 = vmatpush.bf16.msra.mxu0 0
        %2531 = vmatpush.bf16.msra.mxu0 0
        %2532 = vmatpush.bf16.msra.mxu0 0
        %2533 = vmatpush.bf16.msra.mxu0 %v2521
        %2534 = vmatmul.bf16.gmra.mxu0 %v2524
        %v2535 = vpop.f32.mrf.mxu0
        %v2536 = vadd.f32 0.0, %v2535
        %v2537 = vpop.f32.mrf.mxu0
        %v2538 = vadd.f32 0.0, %v2537
        %2539 = vdwg.mxu0
        %2542 = vrot.lane.b32.xlu0 %v2396, 16
        %v2543 = vpop.permute.xlu0 %2542
        %2544 = vrot.lane.b32.xlu0 %v2398, 16
        %v2545 = vpop.permute.xlu0 %2544
        %2550 = vrot.lane.b32.xlu0 %v2466, 32
        %v2551 = vpop.permute.xlu0 %2550
        %2552 = vrot.lane.b32.xlu0 %v2468, 32
        %v2553 = vpop.permute.xlu0 %2552
        %2558 = vrot.lane.b32.xlu0 %v2536, 48
        %v2559 = vpop.permute.xlu0 %2558
        %2560 = vrot.lane.b32.xlu0 %v2538, 48
        %v2561 = vpop.permute.xlu0 %2560
        %v2564 = vsel %vm1285, %v2324, %v2543
        %v2565 = vsel %vm1285, %v2326, %v2545
        %v2566 = vsel %vm1584, %v2564, %v2551
        %v2567 = vsel %vm1584, %v2565, %v2553
        %v2568 = vsel %vm1587, %v2566, %v2559
        %v2569 = vsel %vm1587, %v2567, %v2561
        %v2570 = vld [vmem:[%s45] sm:$0xf]
        %v2571 = vld [vmem:[%s45 + $0x4] sm:$0xf]
        %v2572 = vld [vmem:[%s45 + $0x8] sm:$0xf]
        %v2573 = vld [vmem:[%s45 + $0xc] sm:$0xf]
        %v2574 = vld [vmem:[%s45 + $0x10] sm:$0xf]
        %v2575 = vld [vmem:[%s45 + $0x14] sm:$0xf]
        %v2576 = vld [vmem:[%s45 + $0x18] sm:$0xf]
        %v2577 = vld [vmem:[%s45 + $0x1c] sm:$0xf]
        %v2578 = vpack.c.bf16 %v2569, %v2568
        %v2587 = vunpack.c.l.b16 %v2570
        %v2588 = vunpack.c.l.b16 %v2571
        %v2589 = vunpack.c.l.b16 %v2572
        %v2590 = vunpack.c.l.b16 %v2573
        %v2591 = vunpack.c.l.b16 %v2574
        %v2592 = vunpack.c.l.b16 %v2575
        %v2593 = vunpack.c.l.b16 %v2576
        %v2594 = vunpack.c.l.b16 %v2577
        %v2595 = vpack.c.b16 %v2588, %v2587
        %v2596 = vpack.c.b16 %v2590, %v2589
        %v2597 = vpack.c.b16 %v2592, %v2591
        %v2598 = vpack.c.b16 %v2594, %v2593
        %v2604 = vsel %vm1127, %v2578, 0
        %2606 = vmatpush.bf16.msra.mxu0 0
        %2607 = vmatpush.bf16.msra.mxu0 0
        %2608 = vmatpush.bf16.msra.mxu0 0
        %2609 = vmatpush.bf16.msra.mxu0 0
        %2610 = vmatpush.bf16.msra.mxu0 %v2598
        %2611 = vmatpush.bf16.msra.mxu0 %v2597
        %2612 = vmatpush.bf16.msra.mxu0 %v2596
        %2613 = vmatpush.bf16.msra.mxu0 %v2595
        %2614 = vmatmul.bf16.gmra.mxu0 %v2604
        %v2615 = vpop.f32.mrf.mxu0
        %v2616 = vadd.f32 0.0, %v2615
        %v2617 = vpop.f32.mrf.mxu0
        %v2618 = vadd.f32 0.0, %v2617
        %2619 = vdwg.mxu0
        %v2620 = vadd.f32 %v2114, %v2616
        %v2621 = vadd.f32 %v2115, %v2618
        %v2622 = vld [vmem:[%s47] sm:$0x1]
        %v2624 = vperm.slane %v2622, 0
        %v2626 = vadd.f32 %v2620, %v2624
        %v2627 = vadd.f32 %v2621, %v2624
        %v2628 = vld [vmem:[%s49] sm:$0x1]
        %v2629 = vld [vmem:[%s51] sm:$0x1]
        %v2630 = vsel %vm1127, %v2626, 0.0
        %2631 = vadd.xlane.f32.xlu0 %v2630
        %v2632 = vpop.xlane.xlu0 %2631
        %v2633 = vsel %vm1127, %v2627, 0.0
        %2634 = vadd.xlane.f32.xlu0 %v2633
        %v2635 = vpop.xlane.xlu0 %2634
        %v2636 = vmul.f32 %v2632, %v1140
        %v2637 = vmul.f32 %v2635, %v1140
        %v2638 = vsub.f32 %v2626, %v2636
        %v2639 = vsub.f32 %v2627, %v2637
        %v2640 = vmul.f32 %v2638, %v2638
        %v2641 = vmul.f32 %v2639, %v2639
        %v2642 = vsel %vm1127, %v2640, 0.0
        %2643 = vadd.xlane.f32.xlu0 %v2642
        %v2644 = vpop.xlane.xlu0 %2643
        %v2645 = vsel %vm1127, %v2641, 0.0
        %2646 = vadd.xlane.f32.xlu0 %v2645
        %v2647 = vpop.xlane.xlu0 %2646
        %v2648 = vmul.f32 %v2644, %v1140
        %v2649 = vmul.f32 %v2647, %v1140
        %v2650 = vadd.f32 %v2648, 1e-05
        %v2651 = vadd.f32 %v2649, 1e-05
        %v2652 = vrsqrt.pop %v2650
        %v2653 = vmul.f32 %v2652, %v2650
        %v2654 = vmul.f32 %v2653, %v2652
        %v2655 = vmul.f32 0.5, %v2654
        %v2656 = vsub.f32 1.5, %v2655
        %v2657 = vmul.f32 %v2652, %v2656
        %vm2658 = vweird.f32 %v2650
        %vm2659 = vweird.f32 %v2652
        %vm2660 = vmor %vm2658, %vm2659
        %v2661 = vsel %vm2660, %v2652, %v2657
        %v2662 = vrsqrt.pop %v2651
        %v2663 = vmul.f32 %v2662, %v2651
        %v2664 = vmul.f32 %v2663, %v2662
        %v2665 = vmul.f32 0.5, %v2664
        %v2666 = vsub.f32 1.5, %v2665
        %v2667 = vmul.f32 %v2662, %v2666
        %vm2668 = vweird.f32 %v2651
        %vm2669 = vweird.f32 %v2662
        %vm2670 = vmor %vm2668, %vm2669
        %v2671 = vsel %vm2670, %v2662, %v2667
        %v2672 = vmul.f32 %v2638, %v2661
        %v2673 = vmul.f32 %v2639, %v2671
        %v2675 = vperm.slane %v2628, 0
        %v2677 = vmul.f32 %v2672, %v2675
        %v2678 = vmul.f32 %v2673, %v2675
        %v2680 = vperm.slane %v2629, 0
        %v2682 = vadd.f32 %v2677, %v2680
        %v2683 = vadd.f32 %v2678, %v2680
        %v2684 = vld [vmem:[%s53] sm:$0xff]
        %v2685 = vld [vmem:[%s53 + $0x8] sm:$0xff]
        %v2686 = vld [vmem:[%s53 + $0x10] sm:$0xff]
        %v2687 = vld [vmem:[%s53 + $0x18] sm:$0xff]
        %v2688 = vld [vmem:[%s53 + $0x20] sm:$0xff]
        %v2689 = vld [vmem:[%s53 + $0x28] sm:$0xff]
        %v2690 = vld [vmem:[%s53 + $0x30] sm:$0xff]
        %v2691 = vld [vmem:[%s53 + $0x38] sm:$0xff]
        %v2692 = vpack.c.bf16 %v2683, %v2682
        %v2693 = vld [vmem:[%s55] sm:$0x3]
        %v2695 = vperm.slane %v2693, 0
        %v2696 = vperm.slane %v2693, 1
        %v2707 = vunpack.c.l.b16 %v2684
        %v2708 = vunpack.c.h.b16 %v2684
        %v2709 = vunpack.c.l.b16 %v2685
        %v2710 = vunpack.c.h.b16 %v2685
        %v2711 = vunpack.c.l.b16 %v2686
        %v2712 = vunpack.c.h.b16 %v2686
        %v2713 = vunpack.c.l.b16 %v2687
        %v2714 = vunpack.c.h.b16 %v2687
        %v2715 = vunpack.c.l.b16 %v2688
        %v2716 = vunpack.c.h.b16 %v2688
        %v2717 = vunpack.c.l.b16 %v2689
        %v2718 = vunpack.c.h.b16 %v2689
        %v2719 = vunpack.c.l.b16 %v2690
        %v2720 = vunpack.c.h.b16 %v2690
        %v2721 = vunpack.c.l.b16 %v2691
        %v2722 = vunpack.c.h.b16 %v2691
        %v2723 = vpack.c.b16 %v2709, %v2707
        %v2724 = vpack.c.b16 %v2710, %v2708
        %v2725 = vpack.c.b16 %v2713, %v2711
        %v2726 = vpack.c.b16 %v2714, %v2712
        %v2727 = vpack.c.b16 %v2717, %v2715
        %v2728 = vpack.c.b16 %v2718, %v2716
        %v2729 = vpack.c.b16 %v2721, %v2719
        %v2730 = vpack.c.b16 %v2722, %v2720
        %v2740 = vsel %vm1127, %v2692, 0
        %2742 = vmatpush.bf16.msra.mxu0 0
        %2743 = vmatpush.bf16.msra.mxu0 0
        %2744 = vmatpush.bf16.msra.mxu0 0
        %2745 = vmatpush.bf16.msra.mxu0 0
        %2746 = vmatpush.bf16.msra.mxu0 %v2729
        %2747 = vmatpush.bf16.msra.mxu0 %v2727
        %2748 = vmatpush.bf16.msra.mxu0 %v2725
        %2749 = vmatpush.bf16.msra.mxu0 %v2723
        %2750 = vmatmul.bf16.gmra.mxu0 %v2740
        %v2751 = vpop.f32.mrf.mxu0
        %v2752 = vadd.f32 %v2695, %v2751
        %v2753 = vpop.f32.mrf.mxu0
        %v2754 = vadd.f32 %v2695, %v2753
        %2755 = vdwg.mxu0
        %2756 = vmatpush.bf16.msra.mxu0 0
        %2757 = vmatpush.bf16.msra.mxu0 0
        %2758 = vmatpush.bf16.msra.mxu0 0
        %2759 = vmatpush.bf16.msra.mxu0 0
        %2760 = vmatpush.bf16.msra.mxu0 %v2730
        %2761 = vmatpush.bf16.msra.mxu0 %v2728
        %2762 = vmatpush.bf16.msra.mxu0 %v2726
        %2763 = vmatpush.bf16.msra.mxu0 %v2724
        %2764 = vmatmul.bf16.gmra.mxu0 %v2740
        %v2765 = vpop.f32.mrf.mxu0
        %v2766 = vadd.f32 %v2696, %v2765
        %v2767 = vpop.f32.mrf.mxu0
        %v2768 = vadd.f32 %v2696, %v2767
        %2769 = vdwg.mxu0
        %v2770 = vmul.f32 %v2752, 0.5
        %v2771 = vmul.f32 %v2766, 0.5
        %v2772 = vmul.f32 %v2754, 0.5
        %v2773 = vmul.f32 %v2768, 0.5
        %v2774 = vmul.f32 %v2752, 0.70710677
        %v2775 = vmul.f32 %v2766, 0.70710677
        %v2776 = vmul.f32 %v2754, 0.70710677
        %v2777 = vmul.f32 %v2768, 0.70710677
        %vm2778 = vcmp.ge.f32.partialorder %v2774, 0.0
        %vm2779 = vcmp.ge.f32.partialorder %v2775, 0.0
        %vm2780 = vcmp.ge.f32.partialorder %v2776, 0.0
        %vm2781 = vcmp.ge.f32.partialorder %v2777, 0.0
        %v2782 = vsel %vm2778, 1.0, -1.0
        %v2783 = vsel %vm2779, 1.0, -1.0
        %v2784 = vsel %vm2780, 1.0, -1.0
        %v2785 = vsel %vm2781, 1.0, -1.0
        %v2786 = vand.u32 2147483647, %v2774
        %v2787 = vand.u32 2147483647, %v2775
        %v2788 = vand.u32 2147483647, %v2776
        %v2789 = vand.u32 2147483647, %v2777
        %v2790 = vmul.f32 %v2786, 0.3275911
        %v2791 = vmul.f32 %v2787, 0.3275911
        %v2792 = vmul.f32 %v2788, 0.3275911
        %v2793 = vmul.f32 %v2789, 0.3275911
        %v2794 = vadd.f32 %v2790, 1.0
        %v2795 = vadd.f32 %v2791, 1.0
        %v2796 = vadd.f32 %v2792, 1.0
        %v2797 = vadd.f32 %v2793, 1.0
        %v2798 = vrcp.pop %v2794
        %v2799 = vmul.f32 %v2794, %v2798
        %v2800 = vsub.f32 1.0, %v2799
        %v2801 = vmul.f32 %v2798, %v2800
        %v2802 = vadd.f32 %v2798, %v2801
        %vm2803 = vweird.f32 %v2794
        %vm2804 = vweird.f32 %v2798
        %vm2805 = vmor %vm2803, %vm2804
        %v2806 = vsel %vm2805, %v2798, %v2802
        %v2807 = vand.u32 2147483647, %v2794
        %vm2808 = vcmp.eq.f32.partialorder %v2807, 8.507059e+37
        %v2809 = vand.u32 %v2794, 2147483648
        %v2810 = vor.u32 1.1754944e-38, %v2809
        %v2811 = vsel %vm2808, %v2810, %v2806
        %v2812 = vmul.f32 1.0, %v2811
        %v2813 = vrcp.pop %v2795
        %v2814 = vmul.f32 %v2795, %v2813
        %v2815 = vsub.f32 1.0, %v2814
        %v2816 = vmul.f32 %v2813, %v2815
        %v2817 = vadd.f32 %v2813, %v2816
        %vm2818 = vweird.f32 %v2795
        %vm2819 = vweird.f32 %v2813
        %vm2820 = vmor %vm2818, %vm2819
        %v2821 = vsel %vm2820, %v2813, %v2817
        %v2822 = vand.u32 2147483647, %v2795
        %vm2823 = vcmp.eq.f32.partialorder %v2822, 8.507059e+37
        %v2824 = vand.u32 %v2795, 2147483648
        %v2825 = vor.u32 1.1754944e-38, %v2824
        %v2826 = vsel %vm2823, %v2825, %v2821
        %v2827 = vmul.f32 1.0, %v2826
        %v2828 = vrcp.pop %v2796
        %v2829 = vmul.f32 %v2796, %v2828
        %v2830 = vsub.f32 1.0, %v2829
        %v2831 = vmul.f32 %v2828, %v2830
        %v2832 = vadd.f32 %v2828, %v2831
        %vm2833 = vweird.f32 %v2796
        %vm2834 = vweird.f32 %v2828
        %vm2835 = vmor %vm2833, %vm2834
        %v2836 = vsel %vm2835, %v2828, %v2832
        %v2837 = vand.u32 2147483647, %v2796
        %vm2838 = vcmp.eq.f32.partialorder %v2837, 8.507059e+37
        %v2839 = vand.u32 %v2796, 2147483648
        %v2840 = vor.u32 1.1754944e-38, %v2839
        %v2841 = vsel %vm2838, %v2840, %v2836
        %v2842 = vmul.f32 1.0, %v2841
        %v2843 = vrcp.pop %v2797
        %v2844 = vmul.f32 %v2797, %v2843
        %v2845 = vsub.f32 1.0, %v2844
        %v2846 = vmul.f32 %v2843, %v2845
        %v2847 = vadd.f32 %v2843, %v2846
        %vm2848 = vweird.f32 %v2797
        %vm2849 = vweird.f32 %v2843
        %vm2850 = vmor %vm2848, %vm2849
        %v2851 = vsel %vm2850, %v2843, %v2847
        %v2852 = vand.u32 2147483647, %v2797
        %vm2853 = vcmp.eq.f32.partialorder %v2852, 8.507059e+37
        %v2854 = vand.u32 %v2797, 2147483648
        %v2855 = vor.u32 1.1754944e-38, %v2854
        %v2856 = vsel %vm2853, %v2855, %v2851
        %v2857 = vmul.f32 1.0, %v2856
        %v2858 = vmul.f32 %v2812, 1.0614054
        %v2859 = vmul.f32 %v2827, 1.0614054
        %v2860 = vmul.f32 %v2842, 1.0614054
        %v2861 = vmul.f32 %v2857, 1.0614054
        %v2862 = vadd.f32 %v2858, -1.4531521
        %v2863 = vadd.f32 %v2859, -1.4531521
        %v2864 = vadd.f32 %v2860, -1.4531521
        %v2865 = vadd.f32 %v2861, -1.4531521
        %v2866 = vmul.f32 %v2862, %v2812
        %v2867 = vmul.f32 %v2863, %v2827
        %v2868 = vmul.f32 %v2864, %v2842
        %v2869 = vmul.f32 %v2865, %v2857
        %v2870 = vadd.f32 %v2866, 1.4214138
        %v2871 = vadd.f32 %v2867, 1.4214138
        %v2872 = vadd.f32 %v2868, 1.4214138
        %v2873 = vadd.f32 %v2869, 1.4214138
        %v2874 = vmul.f32 %v2870, %v2812
        %v2875 = vmul.f32 %v2871, %v2827
        %v2876 = vmul.f32 %v2872, %v2842
        %v2877 = vmul.f32 %v2873, %v2857
        %v2878 = vadd.f32 %v2874, -0.28449672
        %v2879 = vadd.f32 %v2875, -0.28449672
        %v2880 = vadd.f32 %v2876, -0.28449672
        %v2881 = vadd.f32 %v2877, -0.28449672
        %v2882 = vmul.f32 %v2878, %v2812
        %v2883 = vmul.f32 %v2879, %v2827
        %v2884 = vmul.f32 %v2880, %v2842
        %v2885 = vmul.f32 %v2881, %v2857
        %v2886 = vadd.f32 %v2882, 0.2548296
        %v2887 = vadd.f32 %v2883, 0.2548296
        %v2888 = vadd.f32 %v2884, 0.2548296
        %v2889 = vadd.f32 %v2885, 0.2548296
        %v2890 = vmul.f32 %v2886, %v2812
        %v2891 = vmul.f32 %v2887, %v2827
        %v2892 = vmul.f32 %v2888, %v2842
        %v2893 = vmul.f32 %v2889, %v2857
        %v2894 = vsub.f32 0.0, %v2786
        %v2895 = vsub.f32 0.0, %v2787
        %v2896 = vsub.f32 0.0, %v2788
        %v2897 = vsub.f32 0.0, %v2789
        %v2898 = vmul.f32 %v2894, %v2786
        %v2899 = vmul.f32 %v2895, %v2787
        %v2900 = vmul.f32 %v2896, %v2788
        %v2901 = vmul.f32 %v2897, %v2789
        %v2902 = vmul.f32 %v2898, 1.442695
        %v2903 = vpow.pop %v2902
        %v2904 = vmul.f32 %v2899, 1.442695
        %v2905 = vpow.pop %v2904
        %v2906 = vmul.f32 %v2900, 1.442695
        %v2907 = vpow.pop %v2906
        %v2908 = vmul.f32 %v2901, 1.442695
        %v2909 = vpow.pop %v2908
        %v2910 = vmul.f32 %v2890, %v2903
        %v2911 = vmul.f32 %v2891, %v2905
        %v2912 = vmul.f32 %v2892, %v2907
        %v2913 = vmul.f32 %v2893, %v2909
        %v2914 = vsub.f32 1.0, %v2910
        %v2915 = vsub.f32 1.0, %v2911
        %v2916 = vsub.f32 1.0, %v2912
        %v2917 = vsub.f32 1.0, %v2913
        %v2918 = vmul.f32 %v2782, %v2914
        %v2919 = vmul.f32 %v2783, %v2915
        %v2920 = vmul.f32 %v2784, %v2916
        %v2921 = vmul.f32 %v2785, %v2917
        %v2922 = vadd.f32 %v2918, 1.0
        %v2923 = vadd.f32 %v2919, 1.0
        %v2924 = vadd.f32 %v2920, 1.0
        %v2925 = vadd.f32 %v2921, 1.0
        %v2926 = vmul.f32 %v2770, %v2922
        %v2927 = vmul.f32 %v2771, %v2923
        %v2928 = vmul.f32 %v2772, %v2924
        %v2929 = vmul.f32 %v2773, %v2925
        %v2930 = vld [vmem:[%s57] sm:$0xf]
        %v2931 = vld [vmem:[%s57 + $0x4] sm:$0xf]
        %v2932 = vld [vmem:[%s57 + $0x8] sm:$0xf]
        %v2933 = vld [vmem:[%s57 + $0xc] sm:$0xf]
        %v2934 = vld [vmem:[%s57 + $0x10] sm:$0xf]
        %v2935 = vld [vmem:[%s57 + $0x14] sm:$0xf]
        %v2936 = vld [vmem:[%s57 + $0x18] sm:$0xf]
        %v2937 = vld [vmem:[%s57 + $0x1c] sm:$0xf]
        %v2938 = vld [vmem:[%s57 + $0x20] sm:$0xf]
        %v2939 = vld [vmem:[%s57 + $0x24] sm:$0xf]
        %v2940 = vld [vmem:[%s57 + $0x28] sm:$0xf]
        %v2941 = vld [vmem:[%s57 + $0x2c] sm:$0xf]
        %v2942 = vld [vmem:[%s57 + $0x30] sm:$0xf]
        %v2943 = vld [vmem:[%s57 + $0x34] sm:$0xf]
        %v2944 = vld [vmem:[%s57 + $0x38] sm:$0xf]
        %v2945 = vld [vmem:[%s57 + $0x3c] sm:$0xf]
        %v2946 = vld [vmem:[%s57 + $0x40] sm:$0xf]
        %v2947 = vld [vmem:[%s57 + $0x44] sm:$0xf]
        %v2948 = vld [vmem:[%s57 + $0x48] sm:$0xf]
        %v2949 = vld [vmem:[%s57 + $0x4c] sm:$0xf]
        %v2950 = vld [vmem:[%s57 + $0x50] sm:$0xf]
        %v2951 = vld [vmem:[%s57 + $0x54] sm:$0xf]
        %v2952 = vld [vmem:[%s57 + $0x58] sm:$0xf]
        %v2953 = vld [vmem:[%s57 + $0x5c] sm:$0xf]
        %v2954 = vld [vmem:[%s57 + $0x60] sm:$0xf]
        %v2955 = vld [vmem:[%s57 + $0x64] sm:$0xf]
        %v2956 = vld [vmem:[%s57 + $0x68] sm:$0xf]
        %v2957 = vld [vmem:[%s57 + $0x6c] sm:$0xf]
        %v2958 = vld [vmem:[%s57 + $0x70] sm:$0xf]
        %v2959 = vld [vmem:[%s57 + $0x74] sm:$0xf]
        %v2960 = vld [vmem:[%s57 + $0x78] sm:$0xf]
        %v2961 = vld [vmem:[%s57 + $0x7c] sm:$0xf]
        %v2962 = vpack.c.bf16 %v2928, %v2926
        %v2963 = vpack.c.bf16 %v2929, %v2927
        %v2996 = vunpack.c.l.b16 %v2930
        %v2997 = vunpack.c.l.b16 %v2931
        %v2998 = vunpack.c.l.b16 %v2932
        %v2999 = vunpack.c.l.b16 %v2933
        %v3000 = vunpack.c.l.b16 %v2934
        %v3001 = vunpack.c.l.b16 %v2935
        %v3002 = vunpack.c.l.b16 %v2936
        %v3003 = vunpack.c.l.b16 %v2937
        %v3004 = vunpack.c.l.b16 %v2938
        %v3005 = vunpack.c.l.b16 %v2939
        %v3006 = vunpack.c.l.b16 %v2940
        %v3007 = vunpack.c.l.b16 %v2941
        %v3008 = vunpack.c.l.b16 %v2942
        %v3009 = vunpack.c.l.b16 %v2943
        %v3010 = vunpack.c.l.b16 %v2944
        %v3011 = vunpack.c.l.b16 %v2945
        %v3012 = vunpack.c.l.b16 %v2946
        %v3013 = vunpack.c.l.b16 %v2947
        %v3014 = vunpack.c.l.b16 %v2948
        %v3015 = vunpack.c.l.b16 %v2949
        %v3016 = vunpack.c.l.b16 %v2950
        %v3017 = vunpack.c.l.b16 %v2951
        %v3018 = vunpack.c.l.b16 %v2952
        %v3019 = vunpack.c.l.b16 %v2953
        %v3020 = vunpack.c.l.b16 %v2954
        %v3021 = vunpack.c.l.b16 %v2955
        %v3022 = vunpack.c.l.b16 %v2956
        %v3023 = vunpack.c.l.b16 %v2957
        %v3024 = vunpack.c.l.b16 %v2958
        %v3025 = vunpack.c.l.b16 %v2959
        %v3026 = vunpack.c.l.b16 %v2960
        %v3027 = vunpack.c.l.b16 %v2961
        %v3028 = vpack.c.b16 %v2997, %v2996
        %v3029 = vpack.c.b16 %v2999, %v2998
        %v3030 = vpack.c.b16 %v3001, %v3000
        %v3031 = vpack.c.b16 %v3003, %v3002
        %v3032 = vpack.c.b16 %v3005, %v3004
        %v3033 = vpack.c.b16 %v3007, %v3006
        %v3034 = vpack.c.b16 %v3009, %v3008
        %v3035 = vpack.c.b16 %v3011, %v3010
        %v3036 = vpack.c.b16 %v3013, %v3012
        %v3037 = vpack.c.b16 %v3015, %v3014
        %v3038 = vpack.c.b16 %v3017, %v3016
        %v3039 = vpack.c.b16 %v3019, %v3018
        %v3040 = vpack.c.b16 %v3021, %v3020
        %v3041 = vpack.c.b16 %v3023, %v3022
        %v3042 = vpack.c.b16 %v3025, %v3024
        %v3043 = vpack.c.b16 %v3027, %v3026
        %3060 = vmatpush.bf16.msra.mxu0 %v3035
        %3061 = vmatpush.bf16.msra.mxu0 %v3034
        %3062 = vmatpush.bf16.msra.mxu0 %v3033
        %3063 = vmatpush.bf16.msra.mxu0 %v3032
        %3064 = vmatpush.bf16.msra.mxu0 %v3031
        %3065 = vmatpush.bf16.msra.mxu0 %v3030
        %3066 = vmatpush.bf16.msra.mxu0 %v3029
        %3067 = vmatpush.bf16.msra.mxu0 %v3028
        %3068 = vmatmul.bf16.gmra.mxu0 %v2962
        %v3069 = vpop.f32.mrf.mxu0
        %v3070 = vadd.f32 0.0, %v3069
        %v3071 = vpop.f32.mrf.mxu0
        %v3072 = vadd.f32 0.0, %v3071
        %3073 = vdwg.mxu0
        %3074 = vmatpush.bf16.msra.mxu0 %v3043
        %3075 = vmatpush.bf16.msra.mxu0 %v3042
        %3076 = vmatpush.bf16.msra.mxu0 %v3041
        %3077 = vmatpush.bf16.msra.mxu0 %v3040
        %3078 = vmatpush.bf16.msra.mxu0 %v3039
        %3079 = vmatpush.bf16.msra.mxu0 %v3038
        %3080 = vmatpush.bf16.msra.mxu0 %v3037
        %3081 = vmatpush.bf16.msra.mxu0 %v3036
        %3082 = vmatmul.bf16.gmra.mxu0 %v2963
        %v3083 = vpop.f32.mrf.mxu0
        %v3084 = vadd.f32 %v3070, %v3083
        %v3085 = vpop.f32.mrf.mxu0
        %v3086 = vadd.f32 %v3072, %v3085
        %3087 = vdwg.mxu0
        %v3088 = vadd.f32 %v2626, %v3084
        %v3089 = vadd.f32 %v2627, %v3086
        %v3090 = vld [vmem:[%s59] sm:$0x1]
        %v3092 = vperm.slane %v3090, 0
        %v3094 = vadd.f32 %v3088, %v3092
        %v3095 = vadd.f32 %v3089, %v3092
        %v3096 = vld [vmem:[%s61] sm:$0x1]
        %v3097 = vld [vmem:[%s63] sm:$0x1]
        %v3098 = vsel %vm1127, %v3094, 0.0
        %3099 = vadd.xlane.f32.xlu0 %v3098
        %v3100 = vpop.xlane.xlu0 %3099
        %v3101 = vsel %vm1127, %v3095, 0.0
        %3102 = vadd.xlane.f32.xlu0 %v3101
        %v3103 = vpop.xlane.xlu0 %3102
        %v3104 = vmul.f32 %v3100, %v1140
        %v3105 = vmul.f32 %v3103, %v1140
        %v3106 = vsub.f32 %v3094, %v3104
        %v3107 = vsub.f32 %v3095, %v3105
        %v3108 = vmul.f32 %v3106, %v3106
        %v3109 = vmul.f32 %v3107, %v3107
        %v3110 = vsel %vm1127, %v3108, 0.0
        %3111 = vadd.xlane.f32.xlu0 %v3110
        %v3112 = vpop.xlane.xlu0 %3111
        %v3113 = vsel %vm1127, %v3109, 0.0
        %3114 = vadd.xlane.f32.xlu0 %v3113
        %v3115 = vpop.xlane.xlu0 %3114
        %v3116 = vmul.f32 %v3112, %v1140
        %v3117 = vmul.f32 %v3115, %v1140
        %v3118 = vadd.f32 %v3116, 1e-05
        %v3119 = vadd.f32 %v3117, 1e-05
        %v3120 = vrsqrt.pop %v3118
        %v3121 = vmul.f32 %v3120, %v3118
        %v3122 = vmul.f32 %v3121, %v3120
        %v3123 = vmul.f32 0.5, %v3122
        %v3124 = vsub.f32 1.5, %v3123
        %v3125 = vmul.f32 %v3120, %v3124
        %vm3126 = vweird.f32 %v3118
        %vm3127 = vweird.f32 %v3120
        %vm3128 = vmor %vm3126, %vm3127
        %v3129 = vsel %vm3128, %v3120, %v3125
        %v3130 = vrsqrt.pop %v3119
        %v3131 = vmul.f32 %v3130, %v3119
        %v3132 = vmul.f32 %v3131, %v3130
        %v3133 = vmul.f32 0.5, %v3132
        %v3134 = vsub.f32 1.5, %v3133
        %v3135 = vmul.f32 %v3130, %v3134
        %vm3136 = vweird.f32 %v3119
        %vm3137 = vweird.f32 %v3130
        %vm3138 = vmor %vm3136, %vm3137
        %v3139 = vsel %vm3138, %v3130, %v3135
        %v3140 = vmul.f32 %v3106, %v3129
        %v3141 = vmul.f32 %v3107, %v3139
        %v3143 = vperm.slane %v3096, 0
        %v3145 = vmul.f32 %v3140, %v3143
        %v3146 = vmul.f32 %v3141, %v3143
        %v3148 = vperm.slane %v3097, 0
        %v3150 = vadd.f32 %v3145, %v3148
        %v3151 = vadd.f32 %v3146, %v3148
        %v3152 = vsel %vm1127, %v3150, 0.0
        %v3153 = vsel %vm1127, %v3151, 0.0
        %v3154 = vadd.f32 %v3152, %v3153
        %v3155 = vrot.slane %v3154, 4
        %v3156 = vadd.f32 %v3154, %v3155
        %v3157 = vrot.slane %v3156, 2
        %v3158 = vadd.f32 %v3156, %v3157
        %v3159 = vrot.slane %v3158, 1
        %v3160 = vadd.f32 %v3158, %v3159
        %v3161 = vrcp.pop 16.0
        %v3162 = vmul.f32 16.0, %v3161
        %v3163 = vsub.f32 1.0, %v3162
        %v3164 = vmul.f32 %v3161, %v3163
        %v3165 = vadd.f32 %v3161, %v3164
        %vm3166 = vweird.f32 %v3161
        %v3167 = vsel %vm3166, %v3161, %v3165
        %v3168 = vmul.f32 %v3160, %v3167
        %vm3169 = vcmask 516096
        %3170 = vst.msk [vmem:[%s978] sm:$0x1] %vm3169, %v3168
        %s3171 = sand.u32 %s764, 1
        %s3172 = scalar_lea.sflag [#allocation3], %s3171
        %s3173 = sand.u32 %s764, 1
        %s3174 = scalar_lea.vmem [#allocation2], %s3173
        // Predicated region
        $region149: #{swin_t_f_forward.3} parent=147 // pred_check
          %p3175 = pneg %p774
        $region150: #{swin_t_f_forward.3} parent=147 // pred_check_branch
          %3177 = sbr.rel (%p3175) target = $region152
        $region151: #{swin_t_f_forward.3} parent=147 // pred_region
          %3179 = vsyncadd %s3172, 0
          %s3180 = scalar_lea.hbm %s65, %s79
          %s3182 = sshll.u32 %s3174, 4
          %s3183 = int_to_ptr.vmem [resolvable:$true] %s3182
          %s3184 = sshll.u32 %s3180, 4
          %s3185 = int_to_ptr.hbm [resolvable:$true] %s3184
          %3187 = dma.vmem_to_hbm [thread:$0]  %s3183, 16, %s3185, %s3172
        $region152: #{swin_t_f_forward.3} parent=147 // pred_fallthru
          _
      $region148: #{swin_t_f_forward.3} parent=5 // pred_fallthru
        _
      %p3188 = scmp.le.s32.totalorder 2, %s74
      // Predicated region
      $region153: #{swin_t_f_forward.3} parent=5 // pred_check
        %p3189 = pneg %p3188
      $region154: #{swin_t_f_forward.3} parent=5 // pred_check_branch
        %3191 = sbr.rel (%p3189) target = $region156
      $region155: #{swin_t_f_forward.3} parent=5 // pred_region
        %s3192 = ssub.s32 %s74, 2
        // Predicated region
        $region157: #{swin_t_f_forward.3} parent=155 // pred_check
          %p3193 = pneg %p780
        $region158: #{swin_t_f_forward.3} parent=155 // pred_check_branch
          %3195 = sbr.rel (%p3193) target = $region160
        $region159: #{swin_t_f_forward.3} parent=155 // pred_region
          %s3196 = sand.u32 %s765, 1
          %s3197 = scalar_lea.sflag [#allocation3], %s3196
          %s3198 = sand.u32 %s765, 1
          %s3199 = scalar_lea.vmem [#allocation2], %s3198
          %3201 = dma.done %s3197, 16
        $region160: #{swin_t_f_forward.3} parent=155 // pred_fallthru
          _
      $region156: #{swin_t_f_forward.3} parent=5 // pred_fallthru
        _
    $region6: #{swin_t_f_forward.3} parent=1 // loop_footer
      %s78 = sadd.s32 1, %s74
    $region7: #{swin_t_f_forward.3} parent=1 // loop_footer_branch
      %73 = sbr.rel target = $region3
    $region8: #{swin_t_f_forward.3} parent=1 // loop_exit
      _
    %3202 = vsyncpa [#allocation3], 1
    %s3203 = scalar_lea.sflag [#allocation3], 1
    %3204 = vsyncpa %s3203, 1

</llo_original>
